<compile_context>
chip_gen: v7x
topology: tpu7x:2x2x1
jax: 0.10.0
libtpu: 0.0.40
codegen_flags: <defaults>
</compile_context>

<pallas_src>
import jax
import jax.numpy as jnp
from jax.experimental import pallas as pl
from jax.experimental.pallas import tpu as pltpu

BN_EPS = 1e-5
COMPUTE_DTYPE = jnp.bfloat16        # MXU operand dtype; stats/accumulation are f32.
VMEM_LIMIT_BYTES = 32 * 1024 * 1024  # explicit, sized for v7x (64 MiB physical).


def _cparams():
    # All grids here are 1-D and fully independent across steps.
    return pltpu.CompilerParams(
        dimension_semantics=("parallel",),
        vmem_limit_bytes=VMEM_LIMIT_BYTES,
    )


def _row_tile(m):
    """Largest row tile (multiple of 8, capped at 512) that divides m."""
    for t in (512, 256, 128, 64, 32, 16, 8):
        if m % t == 0:
            return t
    return m


# --------------------------- Pallas kernels ----------------------------------

def _make_conv_kernel(k, img_w):
    """ReLU -> kxk conv (k*k accumulated MXU matmuls over row-shifted windows)
    -> per-image partial BN statistics.  Input is the H-padded, spatially
    flattened image with one zero guard row on each end (see wrapper)."""

    def kernel(x_ref, w_ref, mask_ref, y_ref, stat_ref):
        # x_ref:    (1, R, Cin)        bf16, R = H*W (+ 2*W + 2 when k == 3)
        # w_ref:    (k*k, Cin, Cout)   bf16, resident across the grid
        # mask_ref: (H*W, k)           f32 column-validity masks, resident
        # y_ref:    (1, H*W, Cout)     f32 un-normalized conv output
        # stat_ref: (1, 2, Cout)       f32 per-image [sum, sum-of-squares]
        hw, cout = y_ref.shape[1], y_ref.shape[2]
        acc = jnp.zeros((hw, cout), jnp.float32)
        for dy in range(k):
            for dx in range(k):
                start = dy * img_w + dx if k == 3 else 0     # static offset
                win = jnp.maximum(x_ref[0, start:start + hw, :], 0)   # ReLU (bf16)
                t = jnp.dot(win, w_ref[dy * k + dx],
                            preferred_element_type=jnp.float32)       # MXU
                # zero out contributions from out-of-range columns
                acc = acc + t * mask_ref[:, dx:dx + 1]
        y_ref[0] = acc
        stat_ref[0, 0:1, :] = jnp.sum(acc, axis=0, keepdims=True)
        stat_ref[0, 1:2, :] = jnp.sum(acc * acc, axis=0, keepdims=True)

    return kernel


def _bn_norm_kernel(y_ref, scale_ref, shift_ref, o_ref):
    # Second BN pass: y * inv_std - mean * inv_std, per-channel, row-tiled.
    o_ref[...] = y_ref[...] * scale_ref[...] + shift_ref[...]


def _make_pool_kernel(img_w):
    """3x3 avg pool (stride 1, pad 1, count_include_pad=False) as 9 shifted
    VPU adds on the flattened image, scaled by a tiny reciprocal-count table."""

    def kernel(x_ref, mask_ref, inv_ref, o_ref):
        hw, c = o_ref.shape[1], o_ref.shape[2]
        s = jnp.zeros((hw, c), jnp.float32)
        for dy in range(3):
            for dx in range(3):
                start = dy * img_w + dx
                s = s + x_ref[0, start:start + hw, :] * mask_ref[:, dx:dx + 1]
        o_ref[0] = s * inv_ref[...]

    return kernel


# --------------------------- wrappers (glue) ----------------------------------

def _flatten_padded(x_nhwc, k, dtype):
    """(N,H,W,C) -> (N,R,C): zero-pad H by 1 (k=3 only), flatten spatial, add one
    zero guard row on each end so every shifted window is a plain row slice."""
    n, h, w, c = x_nhwc.shape
    if k == 1:
        return x_nhwc.reshape(n, h * w, c).astype(dtype)
    xp = jnp.pad(x_nhwc, ((0, 0), (1, 1), (0, 0), (0, 0)))
    x2 = xp.reshape(n, (h + 2) * w, c)
    x3 = jnp.pad(x2, ((0, 0), (1, 1), (0, 0)))
    return x3.astype(dtype)


def _col_masks(h, w, k):
    """Per-output-position validity masks for the dx = 0..k-1 column shifts."""
    if k == 1:
        return jnp.ones((h * w, 1), jnp.float32)
    col = jnp.arange(h * w, dtype=jnp.int32) % w
    m0 = (col != 0).astype(jnp.float32)          # needs column w-1
    m1 = jnp.ones((h * w,), jnp.float32)
    m2 = (col != w - 1).astype(jnp.float32)      # needs column w+1
    return jnp.stack([m0, m1, m2], axis=1)       # (H*W, 3)


def relu_conv_bn(x_nhwc, w_packed, k):
    """ReLU -> Conv kxk (pad k//2, no bias) -> BatchNorm with batch statistics
    (biased var, affine=False), matching nn.BatchNorm2d(track_running_stats=False)."""
    n, h, w, c = x_nhwc.shape
    cout = w_packed.shape[-1]
    hw = h * w
    x3 = _flatten_padded(x_nhwc, k, COMPUTE_DTYPE)
    r = x3.shape[1]
    masks = _col_masks(h, w, k)

    # Pass 1: per-image conv + partial statistics (grid over N, fully parallel).
    y, stats = pl.pallas_call(
        _make_conv_kernel(k, w),
        grid=(n,),
        in_specs=[
            pl.BlockSpec((1, r, c), lambda i: (i, 0, 0)),
            pl.BlockSpec((k * k, c, cout), lambda i: (0, 0, 0)),   # resident
            pl.BlockSpec((hw, k), lambda i: (0, 0)),               # resident
        ],
        out_specs=[
            pl.BlockSpec((1, hw, cout), lambda i: (i, 0, 0)),
            pl.BlockSpec((1, 2, cout), lambda i: (i, 0, 0)),
        ],
        out_shape=[
            jax.ShapeDtypeStruct((n, hw, cout), jnp.float32),
            jax.ShapeDtypeStruct((n, 2, cout), jnp.float32),
        ],
        compiler_params=_cparams(),
    )(x3, w_packed, masks)

    # Global batch statistics: tiny (2, Cout) reduction in plain XLA (f32).
    m = n * hw
    total = jnp.sum(stats, axis=0)
    mean = total[0] / m
    var = total[1] / m - mean * mean           # biased variance
    inv = jax.lax.rsqrt(var + BN_EPS)
    scale = inv[None, :].astype(jnp.float32)            # (1, Cout)
    shift = (-mean * inv)[None, :].astype(jnp.float32)  # (1, Cout)

    # Pass 2: row-tiled normalize (cheap, memory-bound).
    y2 = y.reshape(m, cout)
    tm = _row_tile(m)
    out = pl.pallas_call(
        _bn_norm_kernel,
        grid=(m // tm,),
        in_specs=[
            pl.BlockSpec((tm, cout), lambda i: (i, 0)),
            pl.BlockSpec((1, cout), lambda i: (0, 0)),
            pl.BlockSpec((1, cout), lambda i: (0, 0)),
        ],
        out_specs=pl.BlockSpec((tm, cout), lambda i: (i, 0)),
        out_shape=jax.ShapeDtypeStruct((m, cout), jnp.float32),
        compiler_params=_cparams(),
    )(y2, scale, shift)
    return out.reshape(n, h, w, cout)


def avg_pool_3x3(x_nhwc):
    n, h, w, c = x_nhwc.shape
    hw = h * w
    x3 = _flatten_padded(x_nhwc, 3, jnp.float32)
    r = x3.shape[1]
    masks = _col_masks(h, w, 3)
    # Reciprocal of the count_include_pad=False divisor (tiny resident table).
    hi = jnp.arange(h, dtype=jnp.float32)[:, None]
    wi = jnp.arange(w, dtype=jnp.float32)[None, :]
    rh = 1.0 + (hi > 0) + (hi < h - 1)
    rw = 1.0 + (wi > 0) + (wi < w - 1)
    inv = (1.0 / (rh * rw)).reshape(hw, 1)

    out = pl.pallas_call(
        _make_pool_kernel(w),
        grid=(n,),
        in_specs=[
            pl.BlockSpec((1, r, c), lambda i: (i, 0, 0)),
            pl.BlockSpec((hw, 3), lambda i: (0, 0)),     # resident
            pl.BlockSpec((hw, 1), lambda i: (0, 0)),     # resident
        ],
        out_specs=pl.BlockSpec((1, hw, c), lambda i: (i, 0, 0)),
        out_shape=jax.ShapeDtypeStruct((n, hw, c), jnp.float32),
        compiler_params=_cparams(),
    )(x3, masks, inv)
    return out.reshape(n, h, w, c)


def zero_op(x_nhwc):
    # TODO(synk): PyTorch's Zero does x.mul(0.) which propagates NaN; a constant
    # zeros is used instead (no HBM round trip), per the performance review.
    return jnp.zeros_like(x_nhwc)


# --------------------------- CellDAG -------------------------------------------

class CellDAG:
    """Pallas re-implementation of search_spaces.cells.CellDAG: out = op_2(op_1(op_0(x)))."""

    def __init__(self, C, operations, key):
        assert len(operations) == 3
        self.C = C
        self.operations = list(operations)
        self.params = []    # conv weights, PyTorch OIHW layout, f32 (reference use)
        self.packed = []    # cached (k*k, Cin, Cout) bf16 weights for the kernel
        for op in operations:
            if op in ('nor_conv_3x3', 'nor_conv_1x1'):
                k = 3 if op == 'nor_conv_3x3' else 1
                key, sub = jax.random.split(key)
                w = 0.1 * jax.random.normal(sub, (C, C, k, k), jnp.float32)
                self.params.append(w)
                wp = jnp.transpose(w, (2, 3, 1, 0)).reshape(k * k, C, C)
                self.packed.append(wp.astype(COMPUTE_DTYPE))
            else:
                self.params.append(None)
                self.packed.append(None)
        self._forward = jax.jit(self._forward_impl)

    def get_arch_str(self):
        return f'|{self.operations[0]}~0|+|{self.operations[1]}~1|+|{self.operations[2]}~2|'

    def _apply(self, op, w, h):
        if op == 'skip_connect':
            return h                          # Identity
        if op == 'none':
            return zero_op(h)                 # Zero(stride=1)
        if op == 'nor_conv_3x3':
            return relu_conv_bn(h, w, 3)
        if op == 'nor_conv_1x1':
            return relu_conv_bn(h, w, 1)
        if op == 'avg_pool_3x3':
            return avg_pool_3x3(h)
        raise ValueError(f'unknown op {op}')

    def _forward_impl(self, x_nchw):
        # layout: accept NCHW (PyTorch convention), compute in NHWC, return NCHW.
        h = jnp.transpose(x_nchw, (0, 2, 3, 1))
        for op, w in zip(self.operations, self.packed):
            h = self._apply(op, w, h)
        return jnp.transpose(h, (0, 3, 1, 2))

    def __call__(self, x_nchw):
        return self._forward(x_nchw)


# --------------------------- pure-JAX reference (sanity check) -----------------

def _ref_relu_conv_bn(x_nhwc, w_oihw, k):
    pad = (k - 1) // 2
    # Conv operands cast to the same compute dtype as the kernel (f32 accumulation),
    # so the check isolates kernel-structure errors rather than bf16 rounding.
    y = jax.lax.conv_general_dilated(
        jnp.maximum(x_nhwc, 0.0).astype(COMPUTE_DTYPE),
        w_oihw.astype(COMPUTE_DTYPE),
        window_strides=(1, 1), padding=[(pad, pad), (pad, pad)],
        dimension_numbers=('NHWC', 'OIHW', 'NHWC'),
        preferred_element_type=jnp.float32)
    mean = y.mean(axis=(0, 1, 2), keepdims=True)
    var = jnp.square(y - mean).mean(axis=(0, 1, 2), keepdims=True)
    return (y - mean) * jax.lax.rsqrt(var + BN_EPS)


def _ref_avg_pool(x_nhwc):
    n, h, w, c = x_nhwc.shape
    xp = jnp.pad(x_nhwc, ((0, 0), (1, 1), (1, 1), (0, 0)))
    s = sum(xp[:, dy:dy + h, dx:dx + w, :] for dy in range(3) for dx in range(3))
    ones = jnp.pad(jnp.ones((h, w), jnp.float32), ((1, 1), (1, 1)))
    cnt = sum(ones[dy:dy + h, dx:dx + w] for dy in range(3) for dx in range(3))
    return s / cnt[None, :, :, None]


if __name__ == "__main__":
    key = jax.random.PRNGKey(0)
    kx, kp = jax.random.split(key)
    N, C, H, W = 2, 4, 16, 16
    x = jax.random.normal(kx, (N, C, H, W), jnp.float32)

    operations = ['nor_conv_3x3', 'nor_conv_1x1', 'avg_pool_3x3']
    cell = CellDAG(C, operations, kp)

    out = jax.block_until_ready(cell(x))
    assert out.shape == (N, C, H, W), out.shape

    # pure-JAX reference of the same chain
    h = jnp.transpose(x, (0, 2, 3, 1))
    for op, w in zip(operations, cell.params):
        if op == 'nor_conv_3x3':
            h = _ref_relu_conv_bn(h, w, 3)
        elif op == 'nor_conv_1x1':
            h = _ref_relu_conv_bn(h, w, 1)
        elif op == 'avg_pool_3x3':
            h = _ref_avg_pool(h)
        elif op == 'none':
            h = jnp.zeros_like(h)
        # skip_connect: passthrough
    ref = jnp.transpose(h, (0, 3, 1, 2))
    err = float(jnp.max(jnp.abs(out - ref)))
    assert err < 5e-3, f"max abs error {err}"

    # exercise the remaining ops (identity / zero) on a second cell
    cell2 = CellDAG(C, ['skip_connect', 'avg_pool_3x3', 'none'], kp)
    out2 = jax.block_until_ready(cell2(x))
    assert out2.shape == (N, C, H, W)
    assert float(jnp.max(jnp.abs(out2))) == 0.0

    print("KERNEL_OK")
</pallas_src>

<mosaic_0001>
module attributes {stable_mosaic.version = 11 : i64} {
  func.func @kernel(%arg0: i32, %arg1: memref<1x290x4xbf16, #tpu.memory_space<vmem>>, %arg2: memref<9x4x4xbf16, #tpu.memory_space<vmem>>, %arg3: memref<256x3xf32, #tpu.memory_space<vmem>>, %arg4: memref<1x256x4xf32, #tpu.memory_space<vmem>>, %arg5: memref<1x2x4xf32, #tpu.memory_space<vmem>>) attributes {dimension_semantics = [#tpu.dimension_semantics<parallel>], iteration_bounds = array<i64: 2>, scalar_prefetch = 0 : i64, scratch_operands = 0 : i64, tpu.core_type = #tpu.core_type<tc>, window_params = [{transform_indices = @transform_0, window_bounds = array<i64: 1, 290, 4>}, {pipeline_mode = #tpu.pipeline_mode<synchronous>, transform_indices = @transform_1, window_bounds = array<i64: 9, 4, 4>}, {pipeline_mode = #tpu.pipeline_mode<synchronous>, transform_indices = @transform_2, window_bounds = array<i64: 256, 3>}, {transform_indices = @transform_3, window_bounds = array<i64: 1, 256, 4>}, {transform_indices = @transform_4, window_bounds = array<i64: 1, 2, 4>}]} {
    %cst = arith.constant 0.000000e+00 : f32
    %0 = vector.broadcast %cst : f32 to vector<256x4xf32>
    %c0 = arith.constant 0 : index
    %c0_0 = arith.constant 0 : index
    %c0_1 = arith.constant 0 : index
    %1 = vector.load %arg1[%c0, %c0_0, %c0_1] : memref<1x290x4xbf16, #tpu.memory_space<vmem>>, vector<1x256x4xbf16>
    %2 = vector.shape_cast %1 : vector<1x256x4xbf16> to vector<256x4xbf16>
    %cst_2 = arith.constant 0.000000e+00 : bf16
    %3 = vector.broadcast %cst_2 : bf16 to vector<256x4xbf16>
    %4 = arith.maximumf %2, %3 : vector<256x4xbf16>
    %c0_3 = arith.constant 0 : index
    %c0_4 = arith.constant 0 : index
    %c0_5 = arith.constant 0 : index
    %5 = vector.load %arg2[%c0_3, %c0_4, %c0_5] : memref<9x4x4xbf16, #tpu.memory_space<vmem>>, vector<1x4x4xbf16>
    %6 = vector.shape_cast %5 : vector<1x4x4xbf16> to vector<4x4xbf16>
    %cst_6 = arith.constant dense<0.000000e+00> : vector<256x4xf32>
    %7 = tpu.matmul %4, %6, %cst_6 {dimension_numbers = #tpu.dot_dimension_numbers<[1], [0], [0], [1], [0, 0, 1, 1], [], []>} : vector<256x4xbf16>, vector<4x4xbf16>, vector<256x4xf32> -> vector<256x4xf32>
    %c0_7 = arith.constant 0 : index
    %c0_8 = arith.constant 0 : index
    %8 = vector.load %arg3[%c0_7, %c0_8] : memref<256x3xf32, #tpu.memory_space<vmem>>, vector<256x1xf32>
    %9 = vector.broadcast %8 : vector<256x1xf32> to vector<256x4xf32>
    %10 = arith.mulf %7, %9 : vector<256x4xf32>
    %11 = arith.addf %0, %10 : vector<256x4xf32>
    %c0_9 = arith.constant 0 : index
    %c1 = arith.constant 1 : index
    %c0_10 = arith.constant 0 : index
    %12 = vector.load %arg1[%c0_9, %c1, %c0_10] : memref<1x290x4xbf16, #tpu.memory_space<vmem>>, vector<1x256x4xbf16>
    %13 = vector.shape_cast %12 : vector<1x256x4xbf16> to vector<256x4xbf16>
    %cst_11 = arith.constant 0.000000e+00 : bf16
    %14 = vector.broadcast %cst_11 : bf16 to vector<256x4xbf16>
    %15 = arith.maximumf %13, %14 : vector<256x4xbf16>
    %c1_12 = arith.constant 1 : index
    %c0_13 = arith.constant 0 : index
    %c0_14 = arith.constant 0 : index
    %16 = vector.load %arg2[%c1_12, %c0_13, %c0_14] : memref<9x4x4xbf16, #tpu.memory_space<vmem>>, vector<1x4x4xbf16>
    %17 = vector.shape_cast %16 : vector<1x4x4xbf16> to vector<4x4xbf16>
    %cst_15 = arith.constant dense<0.000000e+00> : vector<256x4xf32>
    %18 = tpu.matmul %15, %17, %cst_15 {dimension_numbers = #tpu.dot_dimension_numbers<[1], [0], [0], [1], [0, 0, 1, 1], [], []>} : vector<256x4xbf16>, vector<4x4xbf16>, vector<256x4xf32> -> vector<256x4xf32>
    %c0_16 = arith.constant 0 : index
    %c1_17 = arith.constant 1 : index
    %19 = vector.load %arg3[%c0_16, %c1_17] : memref<256x3xf32, #tpu.memory_space<vmem>>, vector<256x1xf32>
    %20 = vector.broadcast %19 : vector<256x1xf32> to vector<256x4xf32>
    %21 = arith.mulf %18, %20 : vector<256x4xf32>
    %22 = arith.addf %11, %21 : vector<256x4xf32>
    %c0_18 = arith.constant 0 : index
    %c2 = arith.constant 2 : index
    %c0_19 = arith.constant 0 : index
    %23 = vector.load %arg1[%c0_18, %c2, %c0_19] : memref<1x290x4xbf16, #tpu.memory_space<vmem>>, vector<1x256x4xbf16>
    %24 = vector.shape_cast %23 : vector<1x256x4xbf16> to vector<256x4xbf16>
    %cst_20 = arith.constant 0.000000e+00 : bf16
    %25 = vector.broadcast %cst_20 : bf16 to vector<256x4xbf16>
    %26 = arith.maximumf %24, %25 : vector<256x4xbf16>
    %c2_21 = arith.constant 2 : index
    %c0_22 = arith.constant 0 : index
    %c0_23 = arith.constant 0 : index
    %27 = vector.load %arg2[%c2_21, %c0_22, %c0_23] : memref<9x4x4xbf16, #tpu.memory_space<vmem>>, vector<1x4x4xbf16>
    %28 = vector.shape_cast %27 : vector<1x4x4xbf16> to vector<4x4xbf16>
    %cst_24 = arith.constant dense<0.000000e+00> : vector<256x4xf32>
    %29 = tpu.matmul %26, %28, %cst_24 {dimension_numbers = #tpu.dot_dimension_numbers<[1], [0], [0], [1], [0, 0, 1, 1], [], []>} : vector<256x4xbf16>, vector<4x4xbf16>, vector<256x4xf32> -> vector<256x4xf32>
    %c0_25 = arith.constant 0 : index
    %c2_26 = arith.constant 2 : index
    %30 = vector.load %arg3[%c0_25, %c2_26] : memref<256x3xf32, #tpu.memory_space<vmem>>, vector<256x1xf32>
    %31 = vector.broadcast %30 : vector<256x1xf32> to vector<256x4xf32>
    %32 = arith.mulf %29, %31 : vector<256x4xf32>
    %33 = arith.addf %22, %32 : vector<256x4xf32>
    %c0_27 = arith.constant 0 : index
    %c16 = arith.constant 16 : index
    %c0_28 = arith.constant 0 : index
    %34 = vector.load %arg1[%c0_27, %c16, %c0_28] : memref<1x290x4xbf16, #tpu.memory_space<vmem>>, vector<1x256x4xbf16>
    %35 = vector.shape_cast %34 : vector<1x256x4xbf16> to vector<256x4xbf16>
    %cst_29 = arith.constant 0.000000e+00 : bf16
    %36 = vector.broadcast %cst_29 : bf16 to vector<256x4xbf16>
    %37 = arith.maximumf %35, %36 : vector<256x4xbf16>
    %c3 = arith.constant 3 : index
    %c0_30 = arith.constant 0 : index
    %c0_31 = arith.constant 0 : index
    %38 = vector.load %arg2[%c3, %c0_30, %c0_31] : memref<9x4x4xbf16, #tpu.memory_space<vmem>>, vector<1x4x4xbf16>
    %39 = vector.shape_cast %38 : vector<1x4x4xbf16> to vector<4x4xbf16>
    %cst_32 = arith.constant dense<0.000000e+00> : vector<256x4xf32>
    %40 = tpu.matmul %37, %39, %cst_32 {dimension_numbers = #tpu.dot_dimension_numbers<[1], [0], [0], [1], [0, 0, 1, 1], [], []>} : vector<256x4xbf16>, vector<4x4xbf16>, vector<256x4xf32> -> vector<256x4xf32>
    %c0_33 = arith.constant 0 : index
    %c0_34 = arith.constant 0 : index
    %41 = vector.load %arg3[%c0_33, %c0_34] : memref<256x3xf32, #tpu.memory_space<vmem>>, vector<256x1xf32>
    %42 = vector.broadcast %41 : vector<256x1xf32> to vector<256x4xf32>
    %43 = arith.mulf %40, %42 : vector<256x4xf32>
    %44 = arith.addf %33, %43 : vector<256x4xf32>
    %c0_35 = arith.constant 0 : index
    %c17 = arith.constant 17 : index
    %c0_36 = arith.constant 0 : index
    %45 = vector.load %arg1[%c0_35, %c17, %c0_36] : memref<1x290x4xbf16, #tpu.memory_space<vmem>>, vector<1x256x4xbf16>
    %46 = vector.shape_cast %45 : vector<1x256x4xbf16> to vector<256x4xbf16>
    %cst_37 = arith.constant 0.000000e+00 : bf16
    %47 = vector.broadcast %cst_37 : bf16 to vector<256x4xbf16>
    %48 = arith.maximumf %46, %47 : vector<256x4xbf16>
    %c4 = arith.constant 4 : index
    %c0_38 = arith.constant 0 : index
    %c0_39 = arith.constant 0 : index
    %49 = vector.load %arg2[%c4, %c0_38, %c0_39] : memref<9x4x4xbf16, #tpu.memory_space<vmem>>, vector<1x4x4xbf16>
    %50 = vector.shape_cast %49 : vector<1x4x4xbf16> to vector<4x4xbf16>
    %cst_40 = arith.constant dense<0.000000e+00> : vector<256x4xf32>
    %51 = tpu.matmul %48, %50, %cst_40 {dimension_numbers = #tpu.dot_dimension_numbers<[1], [0], [0], [1], [0, 0, 1, 1], [], []>} : vector<256x4xbf16>, vector<4x4xbf16>, vector<256x4xf32> -> vector<256x4xf32>
    %c0_41 = arith.constant 0 : index
    %c1_42 = arith.constant 1 : index
    %52 = vector.load %arg3[%c0_41, %c1_42] : memref<256x3xf32, #tpu.memory_space<vmem>>, vector<256x1xf32>
    %53 = vector.broadcast %52 : vector<256x1xf32> to vector<256x4xf32>
    %54 = arith.mulf %51, %53 : vector<256x4xf32>
    %55 = arith.addf %44, %54 : vector<256x4xf32>
    %c0_43 = arith.constant 0 : index
    %c18 = arith.constant 18 : index
    %c0_44 = arith.constant 0 : index
    %56 = vector.load %arg1[%c0_43, %c18, %c0_44] : memref<1x290x4xbf16, #tpu.memory_space<vmem>>, vector<1x256x4xbf16>
    %57 = vector.shape_cast %56 : vector<1x256x4xbf16> to vector<256x4xbf16>
    %cst_45 = arith.constant 0.000000e+00 : bf16
    %58 = vector.broadcast %cst_45 : bf16 to vector<256x4xbf16>
    %59 = arith.maximumf %57, %58 : vector<256x4xbf16>
    %c5 = arith.constant 5 : index
    %c0_46 = arith.constant 0 : index
    %c0_47 = arith.constant 0 : index
    %60 = vector.load %arg2[%c5, %c0_46, %c0_47] : memref<9x4x4xbf16, #tpu.memory_space<vmem>>, vector<1x4x4xbf16>
    %61 = vector.shape_cast %60 : vector<1x4x4xbf16> to vector<4x4xbf16>
    %cst_48 = arith.constant dense<0.000000e+00> : vector<256x4xf32>
    %62 = tpu.matmul %59, %61, %cst_48 {dimension_numbers = #tpu.dot_dimension_numbers<[1], [0], [0], [1], [0, 0, 1, 1], [], []>} : vector<256x4xbf16>, vector<4x4xbf16>, vector<256x4xf32> -> vector<256x4xf32>
    %c0_49 = arith.constant 0 : index
    %c2_50 = arith.constant 2 : index
    %63 = vector.load %arg3[%c0_49, %c2_50] : memref<256x3xf32, #tpu.memory_space<vmem>>, vector<256x1xf32>
    %64 = vector.broadcast %63 : vector<256x1xf32> to vector<256x4xf32>
    %65 = arith.mulf %62, %64 : vector<256x4xf32>
    %66 = arith.addf %55, %65 : vector<256x4xf32>
    %c0_51 = arith.constant 0 : index
    %c32 = arith.constant 32 : index
    %c0_52 = arith.constant 0 : index
    %67 = vector.load %arg1[%c0_51, %c32, %c0_52] : memref<1x290x4xbf16, #tpu.memory_space<vmem>>, vector<1x256x4xbf16>
    %68 = vector.shape_cast %67 : vector<1x256x4xbf16> to vector<256x4xbf16>
    %cst_53 = arith.constant 0.000000e+00 : bf16
    %69 = vector.broadcast %cst_53 : bf16 to vector<256x4xbf16>
    %70 = arith.maximumf %68, %69 : vector<256x4xbf16>
    %c6 = arith.constant 6 : index
    %c0_54 = arith.constant 0 : index
    %c0_55 = arith.constant 0 : index
    %71 = vector.load %arg2[%c6, %c0_54, %c0_55] : memref<9x4x4xbf16, #tpu.memory_space<vmem>>, vector<1x4x4xbf16>
    %72 = vector.shape_cast %71 : vector<1x4x4xbf16> to vector<4x4xbf16>
    %cst_56 = arith.constant dense<0.000000e+00> : vector<256x4xf32>
    %73 = tpu.matmul %70, %72, %cst_56 {dimension_numbers = #tpu.dot_dimension_numbers<[1], [0], [0], [1], [0, 0, 1, 1], [], []>} : vector<256x4xbf16>, vector<4x4xbf16>, vector<256x4xf32> -> vector<256x4xf32>
    %c0_57 = arith.constant 0 : index
    %c0_58 = arith.constant 0 : index
    %74 = vector.load %arg3[%c0_57, %c0_58] : memref<256x3xf32, #tpu.memory_space<vmem>>, vector<256x1xf32>
    %75 = vector.broadcast %74 : vector<256x1xf32> to vector<256x4xf32>
    %76 = arith.mulf %73, %75 : vector<256x4xf32>
    %77 = arith.addf %66, %76 : vector<256x4xf32>
    %c0_59 = arith.constant 0 : index
    %c33 = arith.constant 33 : index
    %c0_60 = arith.constant 0 : index
    %78 = vector.load %arg1[%c0_59, %c33, %c0_60] : memref<1x290x4xbf16, #tpu.memory_space<vmem>>, vector<1x256x4xbf16>
    %79 = vector.shape_cast %78 : vector<1x256x4xbf16> to vector<256x4xbf16>
    %cst_61 = arith.constant 0.000000e+00 : bf16
    %80 = vector.broadcast %cst_61 : bf16 to vector<256x4xbf16>
    %81 = arith.maximumf %79, %80 : vector<256x4xbf16>
    %c7 = arith.constant 7 : index
    %c0_62 = arith.constant 0 : index
    %c0_63 = arith.constant 0 : index
    %82 = vector.load %arg2[%c7, %c0_62, %c0_63] : memref<9x4x4xbf16, #tpu.memory_space<vmem>>, vector<1x4x4xbf16>
    %83 = vector.shape_cast %82 : vector<1x4x4xbf16> to vector<4x4xbf16>
    %cst_64 = arith.constant dense<0.000000e+00> : vector<256x4xf32>
    %84 = tpu.matmul %81, %83, %cst_64 {dimension_numbers = #tpu.dot_dimension_numbers<[1], [0], [0], [1], [0, 0, 1, 1], [], []>} : vector<256x4xbf16>, vector<4x4xbf16>, vector<256x4xf32> -> vector<256x4xf32>
    %c0_65 = arith.constant 0 : index
    %c1_66 = arith.constant 1 : index
    %85 = vector.load %arg3[%c0_65, %c1_66] : memref<256x3xf32, #tpu.memory_space<vmem>>, vector<256x1xf32>
    %86 = vector.broadcast %85 : vector<256x1xf32> to vector<256x4xf32>
    %87 = arith.mulf %84, %86 : vector<256x4xf32>
    %88 = arith.addf %77, %87 : vector<256x4xf32>
    %c0_67 = arith.constant 0 : index
    %c34 = arith.constant 34 : index
    %c0_68 = arith.constant 0 : index
    %89 = vector.load %arg1[%c0_67, %c34, %c0_68] : memref<1x290x4xbf16, #tpu.memory_space<vmem>>, vector<1x256x4xbf16>
    %90 = vector.shape_cast %89 : vector<1x256x4xbf16> to vector<256x4xbf16>
    %cst_69 = arith.constant 0.000000e+00 : bf16
    %91 = vector.broadcast %cst_69 : bf16 to vector<256x4xbf16>
    %92 = arith.maximumf %90, %91 : vector<256x4xbf16>
    %c8 = arith.constant 8 : index
    %c0_70 = arith.constant 0 : index
    %c0_71 = arith.constant 0 : index
    %93 = vector.load %arg2[%c8, %c0_70, %c0_71] : memref<9x4x4xbf16, #tpu.memory_space<vmem>>, vector<1x4x4xbf16>
    %94 = vector.shape_cast %93 : vector<1x4x4xbf16> to vector<4x4xbf16>
    %cst_72 = arith.constant dense<0.000000e+00> : vector<256x4xf32>
    %95 = tpu.matmul %92, %94, %cst_72 {dimension_numbers = #tpu.dot_dimension_numbers<[1], [0], [0], [1], [0, 0, 1, 1], [], []>} : vector<256x4xbf16>, vector<4x4xbf16>, vector<256x4xf32> -> vector<256x4xf32>
    %c0_73 = arith.constant 0 : index
    %c2_74 = arith.constant 2 : index
    %96 = vector.load %arg3[%c0_73, %c2_74] : memref<256x3xf32, #tpu.memory_space<vmem>>, vector<256x1xf32>
    %97 = vector.broadcast %96 : vector<256x1xf32> to vector<256x4xf32>
    %98 = arith.mulf %95, %97 : vector<256x4xf32>
    %99 = arith.addf %88, %98 : vector<256x4xf32>
    %c0_75 = arith.constant 0 : index
    %c0_76 = arith.constant 0 : index
    %c0_77 = arith.constant 0 : index
    %100 = vector.load %arg4[%c0_75, %c0_76, %c0_77] : memref<1x256x4xf32, #tpu.memory_space<vmem>>, vector<1x256x4xf32>
    %101 = vector.shape_cast %100 : vector<1x256x4xf32> to vector<256x4xf32>
    %102 = vector.shape_cast %99 : vector<256x4xf32> to vector<1x256x4xf32>
    tpu.vector_store %arg4[%c0_75, %c0_76, %c0_77], %102 {strides = array<i32>} : memref<1x256x4xf32, #tpu.memory_space<vmem>>, vector<1x256x4xf32>,
    %cst_78 = arith.constant dense<0.000000e+00> : vector<4xf32>
    %103 = vector.multi_reduction <add>, %99, %cst_78 [0] : vector<256x4xf32> to vector<4xf32>
    %104 = vector.shape_cast %103 : vector<4xf32> to vector<1x4xf32>
    %c0_79 = arith.constant 0 : index
    %c0_80 = arith.constant 0 : index
    %c0_81 = arith.constant 0 : index
    %105 = vector.load %arg5[%c0_79, %c0_80, %c0_81] : memref<1x2x4xf32, #tpu.memory_space<vmem>>, vector<1x1x4xf32>
    %106 = vector.shape_cast %105 : vector<1x1x4xf32> to vector<1x4xf32>
    %107 = vector.shape_cast %104 : vector<1x4xf32> to vector<1x1x4xf32>
    tpu.vector_store %arg5[%c0_79, %c0_80, %c0_81], %107 {strides = array<i32>} : memref<1x2x4xf32, #tpu.memory_space<vmem>>, vector<1x1x4xf32>,
    %108 = arith.mulf %99, %99 : vector<256x4xf32>
    %cst_82 = arith.constant dense<0.000000e+00> : vector<4xf32>
    %109 = vector.multi_reduction <add>, %108, %cst_82 [0] : vector<256x4xf32> to vector<4xf32>
    %110 = vector.shape_cast %109 : vector<4xf32> to vector<1x4xf32>
    %c0_83 = arith.constant 0 : index
    %c1_84 = arith.constant 1 : index
    %c0_85 = arith.constant 0 : index
    %111 = vector.load %arg5[%c0_83, %c1_84, %c0_85] : memref<1x2x4xf32, #tpu.memory_space<vmem>>, vector<1x1x4xf32>
    %112 = vector.shape_cast %111 : vector<1x1x4xf32> to vector<1x4xf32>
    %113 = vector.shape_cast %110 : vector<1x4xf32> to vector<1x1x4xf32>
    tpu.vector_store %arg5[%c0_83, %c1_84, %c0_85], %113 {strides = array<i32>} : memref<1x2x4xf32, #tpu.memory_space<vmem>>, vector<1x1x4xf32>,
    return
  }
  func.func @transform_0(%arg0: i32) -> (i32, i32, i32) {
    %c0_i32 = arith.constant 0 : i32
    %c0_i32_0 = arith.constant 0 : i32
    %c0_i32_1 = arith.constant 0 : i32
    return %arg0, %c0_i32, %c0_i32_0 : i32, i32, i32
  }
  func.func @transform_1(%arg0: i32) -> (i32, i32, i32) {
    %c0_i32 = arith.constant 0 : i32
    %c0_i32_0 = arith.constant 0 : i32
    %c0_i32_1 = arith.constant 0 : i32
    %c0_i32_2 = arith.constant 0 : i32
    return %c0_i32, %c0_i32_0, %c0_i32_1 : i32, i32, i32
  }
  func.func @transform_2(%arg0: i32) -> (i32, i32) {
    %c0_i32 = arith.constant 0 : i32
    %c0_i32_0 = arith.constant 0 : i32
    %c0_i32_1 = arith.constant 0 : i32
    return %c0_i32, %c0_i32_0 : i32, i32
  }
  func.func @transform_3(%arg0: i32) -> (i32, i32, i32) {
    %c0_i32 = arith.constant 0 : i32
    %c0_i32_0 = arith.constant 0 : i32
    %c0_i32_1 = arith.constant 0 : i32
    return %arg0, %c0_i32, %c0_i32_0 : i32, i32, i32
  }
  func.func @transform_4(%arg0: i32) -> (i32, i32, i32) {
    %c0_i32 = arith.constant 0 : i32
    %c0_i32_0 = arith.constant 0 : i32
    %c0_i32_1 = arith.constant 0 : i32
    return %arg0, %c0_i32, %c0_i32_0 : i32, i32, i32
  }
}

module attributes {stable_mosaic.version = 11 : i64} {
  func.func @_bn_norm_kernel(%arg0: i32, %arg1: memref<512x4xf32, #tpu.memory_space<vmem>>, %arg2: memref<1x4xf32, #tpu.memory_space<vmem>>, %arg3: memref<1x4xf32, #tpu.memory_space<vmem>>, %arg4: memref<512x4xf32, #tpu.memory_space<vmem>>) attributes {dimension_semantics = [#tpu.dimension_semantics<parallel>], iteration_bounds = array<i64: 1>, scalar_prefetch = 0 : i64, scratch_operands = 0 : i64, tpu.core_type = #tpu.core_type<tc>, window_params = [{transform_indices = @transform_0, window_bounds = array<i64: 512, 4>}, {pipeline_mode = #tpu.pipeline_mode<synchronous>, transform_indices = @transform_1, window_bounds = array<i64: 1, 4>}, {pipeline_mode = #tpu.pipeline_mode<synchronous>, transform_indices = @transform_2, window_bounds = array<i64: 1, 4>}, {transform_indices = @transform_3, window_bounds = array<i64: 512, 4>}]} {
    %c0 = arith.constant 0 : index
    %c0_0 = arith.constant 0 : index
    %0 = vector.load %arg1[%c0, %c0_0] : memref<512x4xf32, #tpu.memory_space<vmem>>, vector<512x4xf32>
    %c0_1 = arith.constant 0 : index
    %c0_2 = arith.constant 0 : index
    %1 = vector.load %arg2[%c0_1, %c0_2] : memref<1x4xf32, #tpu.memory_space<vmem>>, vector<1x4xf32>
    %2 = vector.broadcast %1 : vector<1x4xf32> to vector<512x4xf32>
    %3 = arith.mulf %0, %2 : vector<512x4xf32>
    %c0_3 = arith.constant 0 : index
    %c0_4 = arith.constant 0 : index
    %4 = vector.load %arg3[%c0_3, %c0_4] : memref<1x4xf32, #tpu.memory_space<vmem>>, vector<1x4xf32>
    %5 = vector.broadcast %4 : vector<1x4xf32> to vector<512x4xf32>
    %6 = arith.addf %3, %5 : vector<512x4xf32>
    %c0_5 = arith.constant 0 : index
    %c0_6 = arith.constant 0 : index
    %7 = vector.load %arg4[%c0_5, %c0_6] : memref<512x4xf32, #tpu.memory_space<vmem>>, vector<512x4xf32>
    tpu.vector_store %arg4[%c0_5, %c0_6], %6 {strides = array<i32>} : memref<512x4xf32, #tpu.memory_space<vmem>>, vector<512x4xf32>,
    return
  }
  func.func @transform_0(%arg0: i32) -> (i32, i32) {
    %c0_i32 = arith.constant 0 : i32
    %c0_i32_0 = arith.constant 0 : i32
    return %arg0, %c0_i32 : i32, i32
  }
  func.func @transform_1(%arg0: i32) -> (i32, i32) {
    %c0_i32 = arith.constant 0 : i32
    %c0_i32_0 = arith.constant 0 : i32
    %c0_i32_1 = arith.constant 0 : i32
    return %c0_i32, %c0_i32_0 : i32, i32
  }
  func.func @transform_2(%arg0: i32) -> (i32, i32) {
    %c0_i32 = arith.constant 0 : i32
    %c0_i32_0 = arith.constant 0 : i32
    %c0_i32_1 = arith.constant 0 : i32
    return %c0_i32, %c0_i32_0 : i32, i32
  }
  func.func @transform_3(%arg0: i32) -> (i32, i32) {
    %c0_i32 = arith.constant 0 : i32
    %c0_i32_0 = arith.constant 0 : i32
    return %arg0, %c0_i32 : i32, i32
  }
}

module attributes {stable_mosaic.version = 11 : i64} {
  func.func @kernel(%arg0: i32, %arg1: memref<1x256x4xbf16, #tpu.memory_space<vmem>>, %arg2: memref<1x4x4xbf16, #tpu.memory_space<vmem>>, %arg3: memref<256x1xf32, #tpu.memory_space<vmem>>, %arg4: memref<1x256x4xf32, #tpu.memory_space<vmem>>, %arg5: memref<1x2x4xf32, #tpu.memory_space<vmem>>) attributes {dimension_semantics = [#tpu.dimension_semantics<parallel>], iteration_bounds = array<i64: 2>, scalar_prefetch = 0 : i64, scratch_operands = 0 : i64, tpu.core_type = #tpu.core_type<tc>, window_params = [{transform_indices = @transform_0, window_bounds = array<i64: 1, 256, 4>}, {pipeline_mode = #tpu.pipeline_mode<synchronous>, transform_indices = @transform_1, window_bounds = array<i64: 1, 4, 4>}, {pipeline_mode = #tpu.pipeline_mode<synchronous>, transform_indices = @transform_2, window_bounds = array<i64: 256, 1>}, {transform_indices = @transform_3, window_bounds = array<i64: 1, 256, 4>}, {transform_indices = @transform_4, window_bounds = array<i64: 1, 2, 4>}]} {
    %cst = arith.constant 0.000000e+00 : f32
    %0 = vector.broadcast %cst : f32 to vector<256x4xf32>
    %c0 = arith.constant 0 : index
    %c0_0 = arith.constant 0 : index
    %c0_1 = arith.constant 0 : index
    %1 = vector.load %arg1[%c0, %c0_0, %c0_1] : memref<1x256x4xbf16, #tpu.memory_space<vmem>>, vector<1x256x4xbf16>
    %2 = vector.shape_cast %1 : vector<1x256x4xbf16> to vector<256x4xbf16>
    %cst_2 = arith.constant 0.000000e+00 : bf16
    %3 = vector.broadcast %cst_2 : bf16 to vector<256x4xbf16>
    %4 = arith.maximumf %2, %3 : vector<256x4xbf16>
    %c0_3 = arith.constant 0 : index
    %c0_4 = arith.constant 0 : index
    %c0_5 = arith.constant 0 : index
    %5 = vector.load %arg2[%c0_3, %c0_4, %c0_5] : memref<1x4x4xbf16, #tpu.memory_space<vmem>>, vector<1x4x4xbf16>
    %6 = vector.shape_cast %5 : vector<1x4x4xbf16> to vector<4x4xbf16>
    %cst_6 = arith.constant dense<0.000000e+00> : vector<256x4xf32>
    %7 = tpu.matmul %4, %6, %cst_6 {dimension_numbers = #tpu.dot_dimension_numbers<[1], [0], [0], [1], [0, 0, 1, 1], [], []>} : vector<256x4xbf16>, vector<4x4xbf16>, vector<256x4xf32> -> vector<256x4xf32>
    %c0_7 = arith.constant 0 : index
    %c0_8 = arith.constant 0 : index
    %8 = vector.load %arg3[%c0_7, %c0_8] : memref<256x1xf32, #tpu.memory_space<vmem>>, vector<256x1xf32>
    %9 = vector.broadcast %8 : vector<256x1xf32> to vector<256x4xf32>
    %10 = arith.mulf %7, %9 : vector<256x4xf32>
    %11 = arith.addf %0, %10 : vector<256x4xf32>
    %c0_9 = arith.constant 0 : index
    %c0_10 = arith.constant 0 : index
    %c0_11 = arith.constant 0 : index
    %12 = vector.load %arg4[%c0_9, %c0_10, %c0_11] : memref<1x256x4xf32, #tpu.memory_space<vmem>>, vector<1x256x4xf32>
    %13 = vector.shape_cast %12 : vector<1x256x4xf32> to vector<256x4xf32>
    %14 = vector.shape_cast %11 : vector<256x4xf32> to vector<1x256x4xf32>
    tpu.vector_store %arg4[%c0_9, %c0_10, %c0_11], %14 {strides = array<i32>} : memref<1x256x4xf32, #tpu.memory_space<vmem>>, vector<1x256x4xf32>,
    %cst_12 = arith.constant dense<0.000000e+00> : vector<4xf32>
    %15 = vector.multi_reduction <add>, %11, %cst_12 [0] : vector<256x4xf32> to vector<4xf32>
    %16 = vector.shape_cast %15 : vector<4xf32> to vector<1x4xf32>
    %c0_13 = arith.constant 0 : index
    %c0_14 = arith.constant 0 : index
    %c0_15 = arith.constant 0 : index
    %17 = vector.load %arg5[%c0_13, %c0_14, %c0_15] : memref<1x2x4xf32, #tpu.memory_space<vmem>>, vector<1x1x4xf32>
    %18 = vector.shape_cast %17 : vector<1x1x4xf32> to vector<1x4xf32>
    %19 = vector.shape_cast %16 : vector<1x4xf32> to vector<1x1x4xf32>
    tpu.vector_store %arg5[%c0_13, %c0_14, %c0_15], %19 {strides = array<i32>} : memref<1x2x4xf32, #tpu.memory_space<vmem>>, vector<1x1x4xf32>,
    %20 = arith.mulf %11, %11 : vector<256x4xf32>
    %cst_16 = arith.constant dense<0.000000e+00> : vector<4xf32>
    %21 = vector.multi_reduction <add>, %20, %cst_16 [0] : vector<256x4xf32> to vector<4xf32>
    %22 = vector.shape_cast %21 : vector<4xf32> to vector<1x4xf32>
    %c0_17 = arith.constant 0 : index
    %c1 = arith.constant 1 : index
    %c0_18 = arith.constant 0 : index
    %23 = vector.load %arg5[%c0_17, %c1, %c0_18] : memref<1x2x4xf32, #tpu.memory_space<vmem>>, vector<1x1x4xf32>
    %24 = vector.shape_cast %23 : vector<1x1x4xf32> to vector<1x4xf32>
    %25 = vector.shape_cast %22 : vector<1x4xf32> to vector<1x1x4xf32>
    tpu.vector_store %arg5[%c0_17, %c1, %c0_18], %25 {strides = array<i32>} : memref<1x2x4xf32, #tpu.memory_space<vmem>>, vector<1x1x4xf32>,
    return
  }
  func.func @transform_0(%arg0: i32) -> (i32, i32, i32) {
    %c0_i32 = arith.constant 0 : i32
    %c0_i32_0 = arith.constant 0 : i32
    %c0_i32_1 = arith.constant 0 : i32
    return %arg0, %c0_i32, %c0_i32_0 : i32, i32, i32
  }
  func.func @transform_1(%arg0: i32) -> (i32, i32, i32) {
    %c0_i32 = arith.constant 0 : i32
    %c0_i32_0 = arith.constant 0 : i32
    %c0_i32_1 = arith.constant 0 : i32
    %c0_i32_2 = arith.constant 0 : i32
    return %c0_i32, %c0_i32_0, %c0_i32_1 : i32, i32, i32
  }
  func.func @transform_2(%arg0: i32) -> (i32, i32) {
    %c0_i32 = arith.constant 0 : i32
    %c0_i32_0 = arith.constant 0 : i32
    %c0_i32_1 = arith.constant 0 : i32
    return %c0_i32, %c0_i32_0 : i32, i32
  }
  func.func @transform_3(%arg0: i32) -> (i32, i32, i32) {
    %c0_i32 = arith.constant 0 : i32
    %c0_i32_0 = arith.constant 0 : i32
    %c0_i32_1 = arith.constant 0 : i32
    return %arg0, %c0_i32, %c0_i32_0 : i32, i32, i32
  }
  func.func @transform_4(%arg0: i32) -> (i32, i32, i32) {
    %c0_i32 = arith.constant 0 : i32
    %c0_i32_0 = arith.constant 0 : i32
    %c0_i32_1 = arith.constant 0 : i32
    return %arg0, %c0_i32, %c0_i32_0 : i32, i32, i32
  }
}

module attributes {stable_mosaic.version = 11 : i64} {
  func.func @kernel(%arg0: i32, %arg1: memref<1x290x4xf32, #tpu.memory_space<vmem>>, %arg2: memref<256x3xf32, #tpu.memory_space<vmem>>, %arg3: memref<256x1xf32, #tpu.memory_space<vmem>>, %arg4: memref<1x256x4xf32, #tpu.memory_space<vmem>>) attributes {dimension_semantics = [#tpu.dimension_semantics<parallel>], iteration_bounds = array<i64: 2>, scalar_prefetch = 0 : i64, scratch_operands = 0 : i64, tpu.core_type = #tpu.core_type<tc>, window_params = [{transform_indices = @transform_0, window_bounds = array<i64: 1, 290, 4>}, {pipeline_mode = #tpu.pipeline_mode<synchronous>, transform_indices = @transform_1, window_bounds = array<i64: 256, 3>}, {pipeline_mode = #tpu.pipeline_mode<synchronous>, transform_indices = @transform_2, window_bounds = array<i64: 256, 1>}, {transform_indices = @transform_3, window_bounds = array<i64: 1, 256, 4>}]} {
    %cst = arith.constant 0.000000e+00 : f32
    %0 = vector.broadcast %cst : f32 to vector<256x4xf32>
    %c0 = arith.constant 0 : index
    %c0_0 = arith.constant 0 : index
    %c0_1 = arith.constant 0 : index
    %1 = vector.load %arg1[%c0, %c0_0, %c0_1] : memref<1x290x4xf32, #tpu.memory_space<vmem>>, vector<1x256x4xf32>
    %2 = vector.shape_cast %1 : vector<1x256x4xf32> to vector<256x4xf32>
    %c0_2 = arith.constant 0 : index
    %c0_3 = arith.constant 0 : index
    %3 = vector.load %arg2[%c0_2, %c0_3] : memref<256x3xf32, #tpu.memory_space<vmem>>, vector<256x1xf32>
    %4 = vector.broadcast %3 : vector<256x1xf32> to vector<256x4xf32>
    %5 = arith.mulf %2, %4 : vector<256x4xf32>
    %6 = arith.addf %0, %5 : vector<256x4xf32>
    %c0_4 = arith.constant 0 : index
    %c1 = arith.constant 1 : index
    %c0_5 = arith.constant 0 : index
    %7 = vector.load %arg1[%c0_4, %c1, %c0_5] : memref<1x290x4xf32, #tpu.memory_space<vmem>>, vector<1x256x4xf32>
    %8 = vector.shape_cast %7 : vector<1x256x4xf32> to vector<256x4xf32>
    %c0_6 = arith.constant 0 : index
    %c1_7 = arith.constant 1 : index
    %9 = vector.load %arg2[%c0_6, %c1_7] : memref<256x3xf32, #tpu.memory_space<vmem>>, vector<256x1xf32>
    %10 = vector.broadcast %9 : vector<256x1xf32> to vector<256x4xf32>
    %11 = arith.mulf %8, %10 : vector<256x4xf32>
    %12 = arith.addf %6, %11 : vector<256x4xf32>
    %c0_8 = arith.constant 0 : index
    %c2 = arith.constant 2 : index
    %c0_9 = arith.constant 0 : index
    %13 = vector.load %arg1[%c0_8, %c2, %c0_9] : memref<1x290x4xf32, #tpu.memory_space<vmem>>, vector<1x256x4xf32>
    %14 = vector.shape_cast %13 : vector<1x256x4xf32> to vector<256x4xf32>
    %c0_10 = arith.constant 0 : index
    %c2_11 = arith.constant 2 : index
    %15 = vector.load %arg2[%c0_10, %c2_11] : memref<256x3xf32, #tpu.memory_space<vmem>>, vector<256x1xf32>
    %16 = vector.broadcast %15 : vector<256x1xf32> to vector<256x4xf32>
    %17 = arith.mulf %14, %16 : vector<256x4xf32>
    %18 = arith.addf %12, %17 : vector<256x4xf32>
    %c0_12 = arith.constant 0 : index
    %c16 = arith.constant 16 : index
    %c0_13 = arith.constant 0 : index
    %19 = vector.load %arg1[%c0_12, %c16, %c0_13] : memref<1x290x4xf32, #tpu.memory_space<vmem>>, vector<1x256x4xf32>
    %20 = vector.shape_cast %19 : vector<1x256x4xf32> to vector<256x4xf32>
    %c0_14 = arith.constant 0 : index
    %c0_15 = arith.constant 0 : index
    %21 = vector.load %arg2[%c0_14, %c0_15] : memref<256x3xf32, #tpu.memory_space<vmem>>, vector<256x1xf32>
    %22 = vector.broadcast %21 : vector<256x1xf32> to vector<256x4xf32>
    %23 = arith.mulf %20, %22 : vector<256x4xf32>
    %24 = arith.addf %18, %23 : vector<256x4xf32>
    %c0_16 = arith.constant 0 : index
    %c17 = arith.constant 17 : index
    %c0_17 = arith.constant 0 : index
    %25 = vector.load %arg1[%c0_16, %c17, %c0_17] : memref<1x290x4xf32, #tpu.memory_space<vmem>>, vector<1x256x4xf32>
    %26 = vector.shape_cast %25 : vector<1x256x4xf32> to vector<256x4xf32>
    %c0_18 = arith.constant 0 : index
    %c1_19 = arith.constant 1 : index
    %27 = vector.load %arg2[%c0_18, %c1_19] : memref<256x3xf32, #tpu.memory_space<vmem>>, vector<256x1xf32>
    %28 = vector.broadcast %27 : vector<256x1xf32> to vector<256x4xf32>
    %29 = arith.mulf %26, %28 : vector<256x4xf32>
    %30 = arith.addf %24, %29 : vector<256x4xf32>
    %c0_20 = arith.constant 0 : index
    %c18 = arith.constant 18 : index
    %c0_21 = arith.constant 0 : index
    %31 = vector.load %arg1[%c0_20, %c18, %c0_21] : memref<1x290x4xf32, #tpu.memory_space<vmem>>, vector<1x256x4xf32>
    %32 = vector.shape_cast %31 : vector<1x256x4xf32> to vector<256x4xf32>
    %c0_22 = arith.constant 0 : index
    %c2_23 = arith.constant 2 : index
    %33 = vector.load %arg2[%c0_22, %c2_23] : memref<256x3xf32, #tpu.memory_space<vmem>>, vector<256x1xf32>
    %34 = vector.broadcast %33 : vector<256x1xf32> to vector<256x4xf32>
    %35 = arith.mulf %32, %34 : vector<256x4xf32>
    %36 = arith.addf %30, %35 : vector<256x4xf32>
    %c0_24 = arith.constant 0 : index
    %c32 = arith.constant 32 : index
    %c0_25 = arith.constant 0 : index
    %37 = vector.load %arg1[%c0_24, %c32, %c0_25] : memref<1x290x4xf32, #tpu.memory_space<vmem>>, vector<1x256x4xf32>
    %38 = vector.shape_cast %37 : vector<1x256x4xf32> to vector<256x4xf32>
    %c0_26 = arith.constant 0 : index
    %c0_27 = arith.constant 0 : index
    %39 = vector.load %arg2[%c0_26, %c0_27] : memref<256x3xf32, #tpu.memory_space<vmem>>, vector<256x1xf32>
    %40 = vector.broadcast %39 : vector<256x1xf32> to vector<256x4xf32>
    %41 = arith.mulf %38, %40 : vector<256x4xf32>
    %42 = arith.addf %36, %41 : vector<256x4xf32>
    %c0_28 = arith.constant 0 : index
    %c33 = arith.constant 33 : index
    %c0_29 = arith.constant 0 : index
    %43 = vector.load %arg1[%c0_28, %c33, %c0_29] : memref<1x290x4xf32, #tpu.memory_space<vmem>>, vector<1x256x4xf32>
    %44 = vector.shape_cast %43 : vector<1x256x4xf32> to vector<256x4xf32>
    %c0_30 = arith.constant 0 : index
    %c1_31 = arith.constant 1 : index
    %45 = vector.load %arg2[%c0_30, %c1_31] : memref<256x3xf32, #tpu.memory_space<vmem>>, vector<256x1xf32>
    %46 = vector.broadcast %45 : vector<256x1xf32> to vector<256x4xf32>
    %47 = arith.mulf %44, %46 : vector<256x4xf32>
    %48 = arith.addf %42, %47 : vector<256x4xf32>
    %c0_32 = arith.constant 0 : index
    %c34 = arith.constant 34 : index
    %c0_33 = arith.constant 0 : index
    %49 = vector.load %arg1[%c0_32, %c34, %c0_33] : memref<1x290x4xf32, #tpu.memory_space<vmem>>, vector<1x256x4xf32>
    %50 = vector.shape_cast %49 : vector<1x256x4xf32> to vector<256x4xf32>
    %c0_34 = arith.constant 0 : index
    %c2_35 = arith.constant 2 : index
    %51 = vector.load %arg2[%c0_34, %c2_35] : memref<256x3xf32, #tpu.memory_space<vmem>>, vector<256x1xf32>
    %52 = vector.broadcast %51 : vector<256x1xf32> to vector<256x4xf32>
    %53 = arith.mulf %50, %52 : vector<256x4xf32>
    %54 = arith.addf %48, %53 : vector<256x4xf32>
    %c0_36 = arith.constant 0 : index
    %c0_37 = arith.constant 0 : index
    %55 = vector.load %arg3[%c0_36, %c0_37] : memref<256x1xf32, #tpu.memory_space<vmem>>, vector<256x1xf32>
    %56 = vector.shape_cast %55 : vector<256x1xf32> to vector<256x1xf32>
    %57 = vector.broadcast %56 : vector<256x1xf32> to vector<256x4xf32>
    %58 = arith.mulf %54, %57 : vector<256x4xf32>
    %c0_38 = arith.constant 0 : index
    %c0_39 = arith.constant 0 : index
    %c0_40 = arith.constant 0 : index
    %59 = vector.load %arg4[%c0_38, %c0_39, %c0_40] : memref<1x256x4xf32, #tpu.memory_space<vmem>>, vector<1x256x4xf32>
    %60 = vector.shape_cast %59 : vector<1x256x4xf32> to vector<256x4xf32>
    %61 = vector.shape_cast %58 : vector<256x4xf32> to vector<1x256x4xf32>
    tpu.vector_store %arg4[%c0_38, %c0_39, %c0_40], %61 {strides = array<i32>} : memref<1x256x4xf32, #tpu.memory_space<vmem>>, vector<1x256x4xf32>,
    return
  }
  func.func @transform_0(%arg0: i32) -> (i32, i32, i32) {
    %c0_i32 = arith.constant 0 : i32
    %c0_i32_0 = arith.constant 0 : i32
    %c0_i32_1 = arith.constant 0 : i32
    return %arg0, %c0_i32, %c0_i32_0 : i32, i32, i32
  }
  func.func @transform_1(%arg0: i32) -> (i32, i32) {
    %c0_i32 = arith.constant 0 : i32
    %c0_i32_0 = arith.constant 0 : i32
    %c0_i32_1 = arith.constant 0 : i32
    return %c0_i32, %c0_i32_0 : i32, i32
  }
  func.func @transform_2(%arg0: i32) -> (i32, i32) {
    %c0_i32 = arith.constant 0 : i32
    %c0_i32_0 = arith.constant 0 : i32
    %c0_i32_1 = arith.constant 0 : i32
    return %c0_i32, %c0_i32_0 : i32, i32
  }
  func.func @transform_3(%arg0: i32) -> (i32, i32, i32) {
    %c0_i32 = arith.constant 0 : i32
    %c0_i32_0 = arith.constant 0 : i32
    %c0_i32_1 = arith.constant 0 : i32
    return %arg0, %c0_i32, %c0_i32_0 : i32, i32, i32
  }
}

</mosaic_0001>

<llo_original>
// kernel: _forward_impl.6
$region0: #{_forward_impl.6}
  #allocation0 [shape = 'u32[]', space=smem, size = 0x4, offset = 0x4, fixed_abs, tag = 'smem constant byte address 0x4 - core index']
  #allocation1 [shape = 'u32[144,128]{1,0:T(1,128)}', space=vmem, size = 0x12000, scoped, tag = 'internal scratch']
  %s0 = inlined_call_operand.vmem [shape: f32[512,4], index: 0, kind: input, shape index: {}]
  %s1 = inlined_call_operand.vmem [shape: f32[1,4], index: 1, kind: input, shape index: {}]
  %s2 = inlined_call_operand.vmem [shape: f32[1,4], index: 2, kind: input, shape index: {}]
  %s3 = inlined_call_operand.vmem [shape: f32[512,4], index: 3, kind: output, shape index: {}]
  %s4 = sld [smem:[#allocation0]]
  $region22: #{_forward_impl.6} parent=0
    _
  %s6 = ssub.s32 1, %s4
  %s7 = scalar_select 0, %s6, %s4
  // Predicated region
  $region2: #{_forward_impl.6} parent=0 // pred_check
    _
  $region3: #{_forward_impl.6} parent=0 // pred_check_branch
    %9 = sbr.rel (0) target = $region5
  $region4: #{_forward_impl.6} parent=0 // pred_region
    _
  $region5: #{_forward_impl.6} parent=0 // pred_fallthru
    _
  // Predicated region
  $region6: #{_forward_impl.6} parent=0 // pred_check
    _
  $region7: #{_forward_impl.6} parent=0 // pred_check_branch
    %11 = sbr.rel (0) target = $region9
  $region8: #{_forward_impl.6} parent=0 // pred_region
    _
  $region9: #{_forward_impl.6} parent=0 // pred_fallthru
    _
  // Predicated region
  $region10: #{_forward_impl.6} parent=0 // pred_check
    _
  $region11: #{_forward_impl.6} parent=0 // pred_check_branch
    %13 = sbr.rel (0) target = $region13
  $region12: #{_forward_impl.6} parent=0 // pred_region
    _
  $region13: #{_forward_impl.6} parent=0 // pred_fallthru
    _
  %v14 = vld [vmem:[%s0] sm:$0xff]
  %v15 = vld [vmem:[%s0 + $0x8] sm:$0xff]
  %v16 = vld [vmem:[%s0 + $0x10] sm:$0xff]
  %v17 = vld [vmem:[%s0 + $0x18] sm:$0xff]
  %v18 = vld [vmem:[%s0 + $0x20] sm:$0xff]
  %v19 = vld [vmem:[%s0 + $0x28] sm:$0xff]
  %v20 = vld [vmem:[%s0 + $0x30] sm:$0xff]
  %v21 = vld [vmem:[%s0 + $0x38] sm:$0xff]
  %v22 = vld [vmem:[%s0 + $0x40] sm:$0xff]
  %v23 = vld [vmem:[%s0 + $0x48] sm:$0xff]
  %v24 = vld [vmem:[%s0 + $0x50] sm:$0xff]
  %v25 = vld [vmem:[%s0 + $0x58] sm:$0xff]
  %v26 = vld [vmem:[%s0 + $0x60] sm:$0xff]
  %v27 = vld [vmem:[%s0 + $0x68] sm:$0xff]
  %v28 = vld [vmem:[%s0 + $0x70] sm:$0xff]
  %v29 = vld [vmem:[%s0 + $0x78] sm:$0xff]
  %v30 = vld [vmem:[%s0 + $0x80] sm:$0xff]
  %v31 = vld [vmem:[%s0 + $0x88] sm:$0xff]
  %v32 = vld [vmem:[%s0 + $0x90] sm:$0xff]
  %v33 = vld [vmem:[%s0 + $0x98] sm:$0xff]
  %v34 = vld [vmem:[%s0 + $0xa0] sm:$0xff]
  %v35 = vld [vmem:[%s0 + $0xa8] sm:$0xff]
  %v36 = vld [vmem:[%s0 + $0xb0] sm:$0xff]
  %v37 = vld [vmem:[%s0 + $0xb8] sm:$0xff]
  %v38 = vld [vmem:[%s0 + $0xc0] sm:$0xff]
  %v39 = vld [vmem:[%s0 + $0xc8] sm:$0xff]
  %v40 = vld [vmem:[%s0 + $0xd0] sm:$0xff]
  %v41 = vld [vmem:[%s0 + $0xd8] sm:$0xff]
  %v42 = vld [vmem:[%s0 + $0xe0] sm:$0xff]
  %v43 = vld [vmem:[%s0 + $0xe8] sm:$0xff]
  %v44 = vld [vmem:[%s0 + $0xf0] sm:$0xff]
  %v45 = vld [vmem:[%s0 + $0xf8] sm:$0xff]
  %v46 = vld [vmem:[%s0 + $0x100] sm:$0xff]
  %v47 = vld [vmem:[%s0 + $0x108] sm:$0xff]
  %v48 = vld [vmem:[%s0 + $0x110] sm:$0xff]
  %v49 = vld [vmem:[%s0 + $0x118] sm:$0xff]
  %v50 = vld [vmem:[%s0 + $0x120] sm:$0xff]
  %v51 = vld [vmem:[%s0 + $0x128] sm:$0xff]
  %v52 = vld [vmem:[%s0 + $0x130] sm:$0xff]
  %v53 = vld [vmem:[%s0 + $0x138] sm:$0xff]
  %v54 = vld [vmem:[%s0 + $0x140] sm:$0xff]
  %v55 = vld [vmem:[%s0 + $0x148] sm:$0xff]
  %v56 = vld [vmem:[%s0 + $0x150] sm:$0xff]
  %v57 = vld [vmem:[%s0 + $0x158] sm:$0xff]
  %v58 = vld [vmem:[%s0 + $0x160] sm:$0xff]
  %v59 = vld [vmem:[%s0 + $0x168] sm:$0xff]
  %v60 = vld [vmem:[%s0 + $0x170] sm:$0xff]
  %v61 = vld [vmem:[%s0 + $0x178] sm:$0xff]
  %v62 = vld [vmem:[%s0 + $0x180] sm:$0xff]
  %v63 = vld [vmem:[%s0 + $0x188] sm:$0xff]
  %v64 = vld [vmem:[%s0 + $0x190] sm:$0xff]
  %v65 = vld [vmem:[%s0 + $0x198] sm:$0xff]
  %v66 = vld [vmem:[%s0 + $0x1a0] sm:$0xff]
  %v67 = vld [vmem:[%s0 + $0x1a8] sm:$0xff]
  %v68 = vld [vmem:[%s0 + $0x1b0] sm:$0xff]
  %v69 = vld [vmem:[%s0 + $0x1b8] sm:$0xff]
  %v70 = vld [vmem:[%s0 + $0x1c0] sm:$0xff]
  %v71 = vld [vmem:[%s0 + $0x1c8] sm:$0xff]
  %v72 = vld [vmem:[%s0 + $0x1d0] sm:$0xff]
  %v73 = vld [vmem:[%s0 + $0x1d8] sm:$0xff]
  %v74 = vld [vmem:[%s0 + $0x1e0] sm:$0xff]
  %v75 = vld [vmem:[%s0 + $0x1e8] sm:$0xff]
  %v76 = vld [vmem:[%s0 + $0x1f0] sm:$0xff]
  %v77 = vld [vmem:[%s0 + $0x1f8] sm:$0xff]
  %v78 = vld [vmem:[%s1] sm:$0x1]
  %v80 = vlaneseq
  %v81 = vshrl.u32 %v80, 7
  %v82 = vsub.s32 0, %v81
  %v83 = vrot.slane %v78, %v82
  %v85 = vmul.f32 %v14, %v83
  %v86 = vmul.f32 %v15, %v83
  %v87 = vmul.f32 %v16, %v83
  %v88 = vmul.f32 %v17, %v83
  %v89 = vmul.f32 %v18, %v83
  %v90 = vmul.f32 %v19, %v83
  %v91 = vmul.f32 %v20, %v83
  %v92 = vmul.f32 %v21, %v83
  %v93 = vmul.f32 %v22, %v83
  %v94 = vmul.f32 %v23, %v83
  %v95 = vmul.f32 %v24, %v83
  %v96 = vmul.f32 %v25, %v83
  %v97 = vmul.f32 %v26, %v83
  %v98 = vmul.f32 %v27, %v83
  %v99 = vmul.f32 %v28, %v83
  %v100 = vmul.f32 %v29, %v83
  %v101 = vmul.f32 %v30, %v83
  %v102 = vmul.f32 %v31, %v83
  %v103 = vmul.f32 %v32, %v83
  %v104 = vmul.f32 %v33, %v83
  %v105 = vmul.f32 %v34, %v83
  %v106 = vmul.f32 %v35, %v83
  %v107 = vmul.f32 %v36, %v83
  %v108 = vmul.f32 %v37, %v83
  %v109 = vmul.f32 %v38, %v83
  %v110 = vmul.f32 %v39, %v83
  %v111 = vmul.f32 %v40, %v83
  %v112 = vmul.f32 %v41, %v83
  %v113 = vmul.f32 %v42, %v83
  %v114 = vmul.f32 %v43, %v83
  %v115 = vmul.f32 %v44, %v83
  %v116 = vmul.f32 %v45, %v83
  %v117 = vmul.f32 %v46, %v83
  %v118 = vmul.f32 %v47, %v83
  %v119 = vmul.f32 %v48, %v83
  %v120 = vmul.f32 %v49, %v83
  %v121 = vmul.f32 %v50, %v83
  %v122 = vmul.f32 %v51, %v83
  %v123 = vmul.f32 %v52, %v83
  %v124 = vmul.f32 %v53, %v83
  %v125 = vmul.f32 %v54, %v83
  %v126 = vmul.f32 %v55, %v83
  %v127 = vmul.f32 %v56, %v83
  %v128 = vmul.f32 %v57, %v83
  %v129 = vmul.f32 %v58, %v83
  %v130 = vmul.f32 %v59, %v83
  %v131 = vmul.f32 %v60, %v83
  %v132 = vmul.f32 %v61, %v83
  %v133 = vmul.f32 %v62, %v83
  %v134 = vmul.f32 %v63, %v83
  %v135 = vmul.f32 %v64, %v83
  %v136 = vmul.f32 %v65, %v83
  %v137 = vmul.f32 %v66, %v83
  %v138 = vmul.f32 %v67, %v83
  %v139 = vmul.f32 %v68, %v83
  %v140 = vmul.f32 %v69, %v83
  %v141 = vmul.f32 %v70, %v83
  %v142 = vmul.f32 %v71, %v83
  %v143 = vmul.f32 %v72, %v83
  %v144 = vmul.f32 %v73, %v83
  %v145 = vmul.f32 %v74, %v83
  %v146 = vmul.f32 %v75, %v83
  %v147 = vmul.f32 %v76, %v83
  %v148 = vmul.f32 %v77, %v83
  %v149 = vld [vmem:[%s2] sm:$0x1]
  %v151 = vlaneseq
  %v152 = vshrl.u32 %v151, 7
  %v153 = vsub.s32 0, %v152
  %v154 = vrot.slane %v149, %v153
  %v156 = vadd.f32 %v85, %v154
  %v157 = vadd.f32 %v86, %v154
  %v158 = vadd.f32 %v87, %v154
  %v159 = vadd.f32 %v88, %v154
  %v160 = vadd.f32 %v89, %v154
  %v161 = vadd.f32 %v90, %v154
  %v162 = vadd.f32 %v91, %v154
  %v163 = vadd.f32 %v92, %v154
  %v164 = vadd.f32 %v93, %v154
  %v165 = vadd.f32 %v94, %v154
  %v166 = vadd.f32 %v95, %v154
  %v167 = vadd.f32 %v96, %v154
  %v168 = vadd.f32 %v97, %v154
  %v169 = vadd.f32 %v98, %v154
  %v170 = vadd.f32 %v99, %v154
  %v171 = vadd.f32 %v100, %v154
  %v172 = vadd.f32 %v101, %v154
  %v173 = vadd.f32 %v102, %v154
  %v174 = vadd.f32 %v103, %v154
  %v175 = vadd.f32 %v104, %v154
  %v176 = vadd.f32 %v105, %v154
  %v177 = vadd.f32 %v106, %v154
  %v178 = vadd.f32 %v107, %v154
  %v179 = vadd.f32 %v108, %v154
  %v180 = vadd.f32 %v109, %v154
  %v181 = vadd.f32 %v110, %v154
  %v182 = vadd.f32 %v111, %v154
  %v183 = vadd.f32 %v112, %v154
  %v184 = vadd.f32 %v113, %v154
  %v185 = vadd.f32 %v114, %v154
  %v186 = vadd.f32 %v115, %v154
  %v187 = vadd.f32 %v116, %v154
  %v188 = vadd.f32 %v117, %v154
  %v189 = vadd.f32 %v118, %v154
  %v190 = vadd.f32 %v119, %v154
  %v191 = vadd.f32 %v120, %v154
  %v192 = vadd.f32 %v121, %v154
  %v193 = vadd.f32 %v122, %v154
  %v194 = vadd.f32 %v123, %v154
  %v195 = vadd.f32 %v124, %v154
  %v196 = vadd.f32 %v125, %v154
  %v197 = vadd.f32 %v126, %v154
  %v198 = vadd.f32 %v127, %v154
  %v199 = vadd.f32 %v128, %v154
  %v200 = vadd.f32 %v129, %v154
  %v201 = vadd.f32 %v130, %v154
  %v202 = vadd.f32 %v131, %v154
  %v203 = vadd.f32 %v132, %v154
  %v204 = vadd.f32 %v133, %v154
  %v205 = vadd.f32 %v134, %v154
  %v206 = vadd.f32 %v135, %v154
  %v207 = vadd.f32 %v136, %v154
  %v208 = vadd.f32 %v137, %v154
  %v209 = vadd.f32 %v138, %v154
  %v210 = vadd.f32 %v139, %v154
  %v211 = vadd.f32 %v140, %v154
  %v212 = vadd.f32 %v141, %v154
  %v213 = vadd.f32 %v142, %v154
  %v214 = vadd.f32 %v143, %v154
  %v215 = vadd.f32 %v144, %v154
  %v216 = vadd.f32 %v145, %v154
  %v217 = vadd.f32 %v146, %v154
  %v218 = vadd.f32 %v147, %v154
  %v219 = vadd.f32 %v148, %v154
  %vm220 = vcmask 31744
  %221 = vst.msk [vmem:[%s3] sm:$0xff] %vm220, %v156
  %222 = vst.msk [vmem:[%s3 + $0x8] sm:$0xff] %vm220, %v157
  %223 = vst.msk [vmem:[%s3 + $0x10] sm:$0xff] %vm220, %v158
  %224 = vst.msk [vmem:[%s3 + $0x18] sm:$0xff] %vm220, %v159
  %225 = vst.msk [vmem:[%s3 + $0x20] sm:$0xff] %vm220, %v160
  %226 = vst.msk [vmem:[%s3 + $0x28] sm:$0xff] %vm220, %v161
  %227 = vst.msk [vmem:[%s3 + $0x30] sm:$0xff] %vm220, %v162
  %228 = vst.msk [vmem:[%s3 + $0x38] sm:$0xff] %vm220, %v163
  %229 = vst.msk [vmem:[%s3 + $0x40] sm:$0xff] %vm220, %v164
  %230 = vst.msk [vmem:[%s3 + $0x48] sm:$0xff] %vm220, %v165
  %231 = vst.msk [vmem:[%s3 + $0x50] sm:$0xff] %vm220, %v166
  %232 = vst.msk [vmem:[%s3 + $0x58] sm:$0xff] %vm220, %v167
  %233 = vst.msk [vmem:[%s3 + $0x60] sm:$0xff] %vm220, %v168
  %234 = vst.msk [vmem:[%s3 + $0x68] sm:$0xff] %vm220, %v169
  %235 = vst.msk [vmem:[%s3 + $0x70] sm:$0xff] %vm220, %v170
  %236 = vst.msk [vmem:[%s3 + $0x78] sm:$0xff] %vm220, %v171
  %237 = vst.msk [vmem:[%s3 + $0x80] sm:$0xff] %vm220, %v172
  %238 = vst.msk [vmem:[%s3 + $0x88] sm:$0xff] %vm220, %v173
  %239 = vst.msk [vmem:[%s3 + $0x90] sm:$0xff] %vm220, %v174
  %240 = vst.msk [vmem:[%s3 + $0x98] sm:$0xff] %vm220, %v175
  %241 = vst.msk [vmem:[%s3 + $0xa0] sm:$0xff] %vm220, %v176
  %242 = vst.msk [vmem:[%s3 + $0xa8] sm:$0xff] %vm220, %v177
  %243 = vst.msk [vmem:[%s3 + $0xb0] sm:$0xff] %vm220, %v178
  %244 = vst.msk [vmem:[%s3 + $0xb8] sm:$0xff] %vm220, %v179
  %245 = vst.msk [vmem:[%s3 + $0xc0] sm:$0xff] %vm220, %v180
  %246 = vst.msk [vmem:[%s3 + $0xc8] sm:$0xff] %vm220, %v181
  %247 = vst.msk [vmem:[%s3 + $0xd0] sm:$0xff] %vm220, %v182
  %248 = vst.msk [vmem:[%s3 + $0xd8] sm:$0xff] %vm220, %v183
  %249 = vst.msk [vmem:[%s3 + $0xe0] sm:$0xff] %vm220, %v184
  %250 = vst.msk [vmem:[%s3 + $0xe8] sm:$0xff] %vm220, %v185
  %251 = vst.msk [vmem:[%s3 + $0xf0] sm:$0xff] %vm220, %v186
  %252 = vst.msk [vmem:[%s3 + $0xf8] sm:$0xff] %vm220, %v187
  %253 = vst.msk [vmem:[%s3 + $0x100] sm:$0xff] %vm220, %v188
  %254 = vst.msk [vmem:[%s3 + $0x108] sm:$0xff] %vm220, %v189
  %255 = vst.msk [vmem:[%s3 + $0x110] sm:$0xff] %vm220, %v190
  %256 = vst.msk [vmem:[%s3 + $0x118] sm:$0xff] %vm220, %v191
  %257 = vst.msk [vmem:[%s3 + $0x120] sm:$0xff] %vm220, %v192
  %258 = vst.msk [vmem:[%s3 + $0x128] sm:$0xff] %vm220, %v193
  %259 = vst.msk [vmem:[%s3 + $0x130] sm:$0xff] %vm220, %v194
  %260 = vst.msk [vmem:[%s3 + $0x138] sm:$0xff] %vm220, %v195
  %261 = vst.msk [vmem:[%s3 + $0x140] sm:$0xff] %vm220, %v196
  %262 = vst.msk [vmem:[%s3 + $0x148] sm:$0xff] %vm220, %v197
  %263 = vst.msk [vmem:[%s3 + $0x150] sm:$0xff] %vm220, %v198
  %264 = vst.msk [vmem:[%s3 + $0x158] sm:$0xff] %vm220, %v199
  %265 = vst.msk [vmem:[%s3 + $0x160] sm:$0xff] %vm220, %v200
  %266 = vst.msk [vmem:[%s3 + $0x168] sm:$0xff] %vm220, %v201
  %267 = vst.msk [vmem:[%s3 + $0x170] sm:$0xff] %vm220, %v202
  %268 = vst.msk [vmem:[%s3 + $0x178] sm:$0xff] %vm220, %v203
  %269 = vst.msk [vmem:[%s3 + $0x180] sm:$0xff] %vm220, %v204
  %270 = vst.msk [vmem:[%s3 + $0x188] sm:$0xff] %vm220, %v205
  %271 = vst.msk [vmem:[%s3 + $0x190] sm:$0xff] %vm220, %v206
  %272 = vst.msk [vmem:[%s3 + $0x198] sm:$0xff] %vm220, %v207
  %273 = vst.msk [vmem:[%s3 + $0x1a0] sm:$0xff] %vm220, %v208
  %274 = vst.msk [vmem:[%s3 + $0x1a8] sm:$0xff] %vm220, %v209
  %275 = vst.msk [vmem:[%s3 + $0x1b0] sm:$0xff] %vm220, %v210
  %276 = vst.msk [vmem:[%s3 + $0x1b8] sm:$0xff] %vm220, %v211
  %277 = vst.msk [vmem:[%s3 + $0x1c0] sm:$0xff] %vm220, %v212
  %278 = vst.msk [vmem:[%s3 + $0x1c8] sm:$0xff] %vm220, %v213
  %279 = vst.msk [vmem:[%s3 + $0x1d0] sm:$0xff] %vm220, %v214
  %280 = vst.msk [vmem:[%s3 + $0x1d8] sm:$0xff] %vm220, %v215
  %281 = vst.msk [vmem:[%s3 + $0x1e0] sm:$0xff] %vm220, %v216
  %282 = vst.msk [vmem:[%s3 + $0x1e8] sm:$0xff] %vm220, %v217
  %283 = vst.msk [vmem:[%s3 + $0x1f0] sm:$0xff] %vm220, %v218
  %284 = vst.msk [vmem:[%s3 + $0x1f8] sm:$0xff] %vm220, %v219
  // Predicated region
  $region14: #{_forward_impl.6} parent=0 // pred_check
    _
  $region15: #{_forward_impl.6} parent=0 // pred_check_branch
    %286 = sbr.rel (0) target = $region17
  $region16: #{_forward_impl.6} parent=0 // pred_region
    _
  $region17: #{_forward_impl.6} parent=0 // pred_fallthru
    _
  // Predicated region
  $region18: #{_forward_impl.6} parent=0 // pred_check
    _
  $region19: #{_forward_impl.6} parent=0 // pred_check_branch
    %288 = sbr.rel (0) target = $region21
  $region20: #{_forward_impl.6} parent=0 // pred_region
    _
  $region21: #{_forward_impl.6} parent=0 // pred_fallthru
    _

// kernel: _forward_impl.7
$region0: #{_forward_impl.7}
  #allocation0 [shape = 'u32[]', space=smem, size = 0x4, offset = 0x4, fixed_abs, tag = 'smem constant byte address 0x4 - core index']
  #allocation1 [shape = 'u32[144,128]{1,0:T(1,128)}', space=vmem, size = 0x12000, scoped, tag = 'internal scratch']
  %s0 = inlined_call_operand.vmem [shape: bf16[2,256,4], index: 0, kind: input, shape index: {}]
  %s1 = inlined_call_operand.vmem [shape: bf16[1,4,4], index: 1, kind: input, shape index: {}]
  %s2 = inlined_call_operand.vmem [shape: f32[256,1], index: 2, kind: input, shape index: {}]
  %s3 = inlined_call_operand.vmem [shape: f32[2,256,4], index: 3, kind: output, shape index: {0}]
  %s4 = inlined_call_operand.vmem [shape: f32[2,2,4], index: 4, kind: output, shape index: {1}]
  %5 = xla_tuple %s3, %s4
  %s6 = sld [smem:[#allocation0]]
  $region53: #{_forward_impl.7} parent=0
    _
  %s8 = ssub.s32 1, %s6
  %s9 = scalar_select 0, %s8, %s6
  loop: start=0, step=1, limit=4
  $region2: #{_forward_impl.7} parent=0 // loop_pre_header
    _
  $region3: #{_forward_impl.7} parent=0 // loop_header
    %s11 = sphi 0, %s15
    %p12 = scmp.ge.s32.totalorder %s11, 4
    %s21 = sphi 0, %s23
    %s24 = sphi 0, %s21
    %s25 = sphi 0, %s24
    %s41 = sphi 0, %s25
    %s45 = sphi 0, %s45
    %s47 = sphi 0, %s45
    %s48 = sphi 0, %s47
    %s62 = sphi 0, %s48
    %s66 = sphi 0, %s66
    %s68 = sphi 0, %s66
    %s69 = sphi 0, %s68
    %s83 = sphi 0, %s69
    %s89 = sphi 0, %s91
    %s92 = sphi 0, %s89
    %s93 = sphi 0, %s92
    %s109 = sphi 0, %s93
    %s115 = sphi 0, %s117
    %s118 = sphi 0, %s115
    %s119 = sphi 0, %s118
    %s135 = sphi 0, %s119
  $region4: #{_forward_impl.7} parent=0 // loop_header_branch
    %14 = sbr.rel (%p12) target = $region8
  $region5: #{_forward_impl.7} parent=0 // loop_body
    %s16 = ssub.s32 %s11, 1
    %s17 = ssub.s32 %s11, 2
    %s18 = sadd.s32 %s11, 1
    %s19 = ssub.s32 %s11, %s18
    %p20 = scmp.eq.s32.totalorder %s19, 0
    %s22 = sadd.s32 %s21, 1
    %s23 = scalar_select %p20, %s21, %s22
    %p26 = pneg %p20
    %p27 = scmp.eq.s32.totalorder %s11, 1
    %p28 = por %p26, %p27
    %p29 = scmp.ne.s32.totalorder %s21, %s24
    %p30 = scmp.eq.s32.totalorder %s11, 0
    %p31 = por %p29, %p30
    %p32 = scmp.ne.s32.totalorder %s21, %s24
    %p33 = scmp.eq.s32.totalorder %s16, 1
    %p34 = por %p32, %p33
    %p35 = scmp.ne.s32.totalorder %s24, %s25
    %p36 = scmp.eq.s32.totalorder %s16, 0
    %p37 = por %p35, %p36
    %p38 = scmp.ne.s32.totalorder %s24, %s25
    %p39 = scmp.eq.s32.totalorder %s17, 1
    %p40 = por %p38, %p39
    %p42 = scmp.ne.s32.totalorder %s25, %s41
    %p43 = scmp.eq.s32.totalorder %s17, 0
    %p44 = por %p42, %p43
    %s46 = sadd.s32 %s45, 1
    %p49 = scmp.eq.s32.totalorder %s11, 1
    %p50 = scmp.ne.s32.totalorder %s45, %s47
    %p51 = scmp.eq.s32.totalorder %s11, 0
    %p52 = por %p50, %p51
    %p53 = scmp.ne.s32.totalorder %s45, %s47
    %p54 = scmp.eq.s32.totalorder %s16, 1
    %p55 = por %p53, %p54
    %p56 = scmp.ne.s32.totalorder %s47, %s48
    %p57 = scmp.eq.s32.totalorder %s16, 0
    %p58 = por %p56, %p57
    %p59 = scmp.ne.s32.totalorder %s47, %s48
    %p60 = scmp.eq.s32.totalorder %s17, 1
    %p61 = por %p59, %p60
    %p63 = scmp.ne.s32.totalorder %s48, %s62
    %p64 = scmp.eq.s32.totalorder %s17, 0
    %p65 = por %p63, %p64
    %s67 = sadd.s32 %s66, 1
    %p70 = scmp.eq.s32.totalorder %s11, 1
    %p71 = scmp.ne.s32.totalorder %s66, %s68
    %p72 = scmp.eq.s32.totalorder %s11, 0
    %p73 = por %p71, %p72
    %p74 = scmp.ne.s32.totalorder %s66, %s68
    %p75 = scmp.eq.s32.totalorder %s16, 1
    %p76 = por %p74, %p75
    %p77 = scmp.ne.s32.totalorder %s68, %s69
    %p78 = scmp.eq.s32.totalorder %s16, 0
    %p79 = por %p77, %p78
    %p80 = scmp.ne.s32.totalorder %s68, %s69
    %p81 = scmp.eq.s32.totalorder %s17, 1
    %p82 = por %p80, %p81
    %p84 = scmp.ne.s32.totalorder %s69, %s83
    %p85 = scmp.eq.s32.totalorder %s17, 0
    %p86 = por %p84, %p85
    %s87 = ssub.s32 %s11, %s18
    %p88 = scmp.eq.s32.totalorder %s87, 0
    %s90 = sadd.s32 %s89, 1
    %s91 = scalar_select %p88, %s89, %s90
    %p94 = pneg %p88
    %p95 = scmp.eq.s32.totalorder %s11, 1
    %p96 = por %p94, %p95
    %p97 = scmp.ne.s32.totalorder %s89, %s92
    %p98 = scmp.eq.s32.totalorder %s11, 0
    %p99 = por %p97, %p98
    %p100 = scmp.ne.s32.totalorder %s89, %s92
    %p101 = scmp.eq.s32.totalorder %s16, 1
    %p102 = por %p100, %p101
    %p103 = scmp.ne.s32.totalorder %s92, %s93
    %p104 = scmp.eq.s32.totalorder %s16, 0
    %p105 = por %p103, %p104
    %p106 = scmp.ne.s32.totalorder %s92, %s93
    %p107 = scmp.eq.s32.totalorder %s17, 1
    %p108 = por %p106, %p107
    %p110 = scmp.ne.s32.totalorder %s93, %s109
    %p111 = scmp.eq.s32.totalorder %s17, 0
    %p112 = por %p110, %p111
    %s113 = ssub.s32 %s11, %s18
    %p114 = scmp.eq.s32.totalorder %s113, 0
    %s116 = sadd.s32 %s115, 1
    %s117 = scalar_select %p114, %s115, %s116
    %p120 = pneg %p114
    %p121 = scmp.eq.s32.totalorder %s11, 1
    %p122 = por %p120, %p121
    %p123 = scmp.ne.s32.totalorder %s115, %s118
    %p124 = scmp.eq.s32.totalorder %s11, 0
    %p125 = por %p123, %p124
    %p126 = scmp.ne.s32.totalorder %s115, %s118
    %p127 = scmp.eq.s32.totalorder %s16, 1
    %p128 = por %p126, %p127
    %p129 = scmp.ne.s32.totalorder %s118, %s119
    %p130 = scmp.eq.s32.totalorder %s16, 0
    %p131 = por %p129, %p130
    %p132 = scmp.ne.s32.totalorder %s118, %s119
    %p133 = scmp.eq.s32.totalorder %s17, 1
    %p134 = por %p132, %p133
    %p136 = scmp.ne.s32.totalorder %s119, %s135
    %p137 = scmp.eq.s32.totalorder %s17, 0
    %p138 = por %p136, %p137
    %p139 = scmp.le.s32.totalorder 1, %s11
    %p140 = scmp.lt.s32.totalorder %s11, 3
    %p141 = pnand %p139, %p140
    %p142 = pneg %p141
    // Predicated region
    $region9: #{_forward_impl.7} parent=5 // pred_check
      _
    $region10: #{_forward_impl.7} parent=5 // pred_check_branch
      %144 = sbr.rel (%p141) target = $region12
    $region11: #{_forward_impl.7} parent=5 // pred_region
      %s145 = ssub.s32 %s11, 1
      // Predicated region
      $region13: #{_forward_impl.7} parent=11 // pred_check
        %p146 = pneg %p58
      $region14: #{_forward_impl.7} parent=11 // pred_check_branch
        %148 = sbr.rel (%p146) target = $region16
      $region15: #{_forward_impl.7} parent=11 // pred_region
        _
      $region16: #{_forward_impl.7} parent=11 // pred_fallthru
        _
      // Predicated region
      $region17: #{_forward_impl.7} parent=11 // pred_check
        %p149 = pneg %p79
      $region18: #{_forward_impl.7} parent=11 // pred_check_branch
        %151 = sbr.rel (%p149) target = $region20
      $region19: #{_forward_impl.7} parent=11 // pred_region
        _
      $region20: #{_forward_impl.7} parent=11 // pred_fallthru
        _
    $region12: #{_forward_impl.7} parent=5 // pred_fallthru
      _
    %p152 = scmp.lt.s32.totalorder %s11, 2
    // Predicated region
    $region21: #{_forward_impl.7} parent=5 // pred_check
      %p153 = pneg %p152
    $region22: #{_forward_impl.7} parent=5 // pred_check_branch
      %155 = sbr.rel (%p153) target = $region24
    $region23: #{_forward_impl.7} parent=5 // pred_region
      // Predicated region
      $region25: #{_forward_impl.7} parent=23 // pred_check
        %p156 = pneg %p31
      $region26: #{_forward_impl.7} parent=23 // pred_check_branch
        %158 = sbr.rel (%p156) target = $region28
      $region27: #{_forward_impl.7} parent=23 // pred_region
        %p159 = scmp.lt.s32.totalorder %s11, 1
        %s160 = scalar_select %p159, %s11, 1
        %s161 = smul.addr %s160, 32
        %s162 = smul.addr %s161, 4
        %s163 = scalar_lea.vmem %s0, %s162
      $region28: #{_forward_impl.7} parent=23 // pred_fallthru
        _
    $region24: #{_forward_impl.7} parent=5 // pred_fallthru
      _
    %p164 = scmp.le.s32.totalorder 1, %s11
    %p165 = scmp.lt.s32.totalorder %s11, 3
    %p166 = pnand %p164, %p165
    %p167 = pneg %p166
    // Predicated region
    $region29: #{_forward_impl.7} parent=5 // pred_check
      _
    $region30: #{_forward_impl.7} parent=5 // pred_check_branch
      %169 = sbr.rel (%p166) target = $region32
    $region31: #{_forward_impl.7} parent=5 // pred_region
      %s170 = ssub.s32 %s11, 1
      %p171 = scmp.lt.s32.totalorder %s16, 1
      %s172 = scalar_select %p171, %s16, 1
      %s173 = smul.addr %s172, 32
      %s174 = smul.addr %s173, 4
      %s175 = scalar_lea.vmem %s0, %s174
      %p176 = pneg %p37
      %p177 = pneg %p34
      %p178 = pneg %p58
      %p179 = pneg %p55
      %p180 = pneg %p79
      %p181 = pneg %p76
      %p182 = pneg %p105
      %p183 = pneg %p102
      %p184 = scmp.lt.s32.totalorder %s16, 1
      %s185 = scalar_select %p184, %s16, 1
      %s186 = smul.addr %s185, 32
      %s187 = smul.addr %s186, 8
      %s188 = scalar_lea.vmem %s3, %s187
      %p189 = pneg %p131
      %p190 = pneg %p128
      %p191 = scmp.lt.s32.totalorder %s16, 1
      %s192 = scalar_select %p191, %s16, 1
      %s193 = smul.addr %s192, 2
      %s194 = scalar_lea.vmem %s4, %s193
      %p195 = scmp.lt.s32.totalorder %s16, 1
      %s196 = scalar_select %p195, %s16, 1
      %s197 = smul.addr %s196, 32
      %s198 = smul.addr %s197, 4
      %s199 = scalar_lea.vmem %s0, %s198
      %p200 = scmp.lt.s32.totalorder %s16, 1
      %s201 = scalar_select %p200, %s16, 1
      %s202 = smul.addr %s201, 32
      %s203 = smul.addr %s202, 8
      %s204 = scalar_lea.vmem %s3, %s203
      %p205 = scmp.lt.s32.totalorder %s16, 1
      %s206 = scalar_select %p205, %s16, 1
      %s207 = smul.addr %s206, 2
      %s208 = scalar_lea.vmem %s4, %s207
      %v210 = vld [vmem:[%s199] sm:$0xf]
      %v211 = vld [vmem:[%s199 + $0x4] sm:$0xf]
      %v212 = vld [vmem:[%s199 + $0x8] sm:$0xf]
      %v213 = vld [vmem:[%s199 + $0xc] sm:$0xf]
      %v214 = vld [vmem:[%s199 + $0x10] sm:$0xf]
      %v215 = vld [vmem:[%s199 + $0x14] sm:$0xf]
      %v216 = vld [vmem:[%s199 + $0x18] sm:$0xf]
      %v217 = vld [vmem:[%s199 + $0x1c] sm:$0xf]
      %v218 = vld [vmem:[%s199 + $0x20] sm:$0xf]
      %v219 = vld [vmem:[%s199 + $0x24] sm:$0xf]
      %v220 = vld [vmem:[%s199 + $0x28] sm:$0xf]
      %v221 = vld [vmem:[%s199 + $0x2c] sm:$0xf]
      %v222 = vld [vmem:[%s199 + $0x30] sm:$0xf]
      %v223 = vld [vmem:[%s199 + $0x34] sm:$0xf]
      %v224 = vld [vmem:[%s199 + $0x38] sm:$0xf]
      %v225 = vld [vmem:[%s199 + $0x3c] sm:$0xf]
      %v226 = vld [vmem:[%s199 + $0x40] sm:$0xf]
      %v227 = vld [vmem:[%s199 + $0x44] sm:$0xf]
      %v228 = vld [vmem:[%s199 + $0x48] sm:$0xf]
      %v229 = vld [vmem:[%s199 + $0x4c] sm:$0xf]
      %v230 = vld [vmem:[%s199 + $0x50] sm:$0xf]
      %v231 = vld [vmem:[%s199 + $0x54] sm:$0xf]
      %v232 = vld [vmem:[%s199 + $0x58] sm:$0xf]
      %v233 = vld [vmem:[%s199 + $0x5c] sm:$0xf]
      %v234 = vld [vmem:[%s199 + $0x60] sm:$0xf]
      %v235 = vld [vmem:[%s199 + $0x64] sm:$0xf]
      %v236 = vld [vmem:[%s199 + $0x68] sm:$0xf]
      %v237 = vld [vmem:[%s199 + $0x6c] sm:$0xf]
      %v238 = vld [vmem:[%s199 + $0x70] sm:$0xf]
      %v239 = vld [vmem:[%s199 + $0x74] sm:$0xf]
      %v240 = vld [vmem:[%s199 + $0x78] sm:$0xf]
      %v241 = vld [vmem:[%s199 + $0x7c] sm:$0xf]
      %v242 = vmax.bf16 %v210, 0
      %v243 = vmax.bf16 %v211, 0
      %v244 = vmax.bf16 %v212, 0
      %v245 = vmax.bf16 %v213, 0
      %v246 = vmax.bf16 %v214, 0
      %v247 = vmax.bf16 %v215, 0
      %v248 = vmax.bf16 %v216, 0
      %v249 = vmax.bf16 %v217, 0
      %v250 = vmax.bf16 %v218, 0
      %v251 = vmax.bf16 %v219, 0
      %v252 = vmax.bf16 %v220, 0
      %v253 = vmax.bf16 %v221, 0
      %v254 = vmax.bf16 %v222, 0
      %v255 = vmax.bf16 %v223, 0
      %v256 = vmax.bf16 %v224, 0
      %v257 = vmax.bf16 %v225, 0
      %v258 = vmax.bf16 %v226, 0
      %v259 = vmax.bf16 %v227, 0
      %v260 = vmax.bf16 %v228, 0
      %v261 = vmax.bf16 %v229, 0
      %v262 = vmax.bf16 %v230, 0
      %v263 = vmax.bf16 %v231, 0
      %v264 = vmax.bf16 %v232, 0
      %v265 = vmax.bf16 %v233, 0
      %v266 = vmax.bf16 %v234, 0
      %v267 = vmax.bf16 %v235, 0
      %v268 = vmax.bf16 %v236, 0
      %v269 = vmax.bf16 %v237, 0
      %v270 = vmax.bf16 %v238, 0
      %v271 = vmax.bf16 %v239, 0
      %v272 = vmax.bf16 %v240, 0
      %v273 = vmax.bf16 %v241, 0
      %v274 = vld [vmem:[%s1] sm:$0x3]
      %v307 = vunpack.c.l.b16 %v242
      %v308 = vunpack.c.l.b16 %v243
      %v309 = vunpack.c.l.b16 %v244
      %v310 = vunpack.c.l.b16 %v245
      %v311 = vunpack.c.l.b16 %v246
      %v312 = vunpack.c.l.b16 %v247
      %v313 = vunpack.c.l.b16 %v248
      %v314 = vunpack.c.l.b16 %v249
      %v315 = vunpack.c.l.b16 %v250
      %v316 = vunpack.c.l.b16 %v251
      %v317 = vunpack.c.l.b16 %v252
      %v318 = vunpack.c.l.b16 %v253
      %v319 = vunpack.c.l.b16 %v254
      %v320 = vunpack.c.l.b16 %v255
      %v321 = vunpack.c.l.b16 %v256
      %v322 = vunpack.c.l.b16 %v257
      %v323 = vunpack.c.l.b16 %v258
      %v324 = vunpack.c.l.b16 %v259
      %v325 = vunpack.c.l.b16 %v260
      %v326 = vunpack.c.l.b16 %v261
      %v327 = vunpack.c.l.b16 %v262
      %v328 = vunpack.c.l.b16 %v263
      %v329 = vunpack.c.l.b16 %v264
      %v330 = vunpack.c.l.b16 %v265
      %v331 = vunpack.c.l.b16 %v266
      %v332 = vunpack.c.l.b16 %v267
      %v333 = vunpack.c.l.b16 %v268
      %v334 = vunpack.c.l.b16 %v269
      %v335 = vunpack.c.l.b16 %v270
      %v336 = vunpack.c.l.b16 %v271
      %v337 = vunpack.c.l.b16 %v272
      %v338 = vunpack.c.l.b16 %v273
      %v339 = vpack.c.b16 %v308, %v307
      %v340 = vpack.c.b16 %v310, %v309
      %v341 = vpack.c.b16 %v312, %v311
      %v342 = vpack.c.b16 %v314, %v313
      %v343 = vpack.c.b16 %v316, %v315
      %v344 = vpack.c.b16 %v318, %v317
      %v345 = vpack.c.b16 %v320, %v319
      %v346 = vpack.c.b16 %v322, %v321
      %v347 = vpack.c.b16 %v324, %v323
      %v348 = vpack.c.b16 %v326, %v325
      %v349 = vpack.c.b16 %v328, %v327
      %v350 = vpack.c.b16 %v330, %v329
      %v351 = vpack.c.b16 %v332, %v331
      %v352 = vpack.c.b16 %v334, %v333
      %v353 = vpack.c.b16 %v336, %v335
      %v354 = vpack.c.b16 %v338, %v337
      %vm355 = vcmask 31744
      %v357 = vsel %vm355, %v339, 0
      %v360 = vsel %vm355, %v340, 0
      %v363 = vsel %vm355, %v341, 0
      %v366 = vsel %vm355, %v342, 0
      %v369 = vsel %vm355, %v343, 0
      %v372 = vsel %vm355, %v344, 0
      %v375 = vsel %vm355, %v345, 0
      %v378 = vsel %vm355, %v346, 0
      %v381 = vsel %vm355, %v347, 0
      %v384 = vsel %vm355, %v348, 0
      %v387 = vsel %vm355, %v349, 0
      %v390 = vsel %vm355, %v350, 0
      %v393 = vsel %vm355, %v351, 0
      %v396 = vsel %vm355, %v352, 0
      %v399 = vsel %vm355, %v353, 0
      %v402 = vsel %vm355, %v354, 0
      %vm404 = vcmask 1041408
      %v406 = vsel %vm404, %v274, 0
      %408 = vmatprep.subr.bf16.mxu0 0
      %409 = vmatpush1.bf16.msra.mxu0 %v406
      %410 = vmatprep.subr.bf16.mxu0 0
      %411 = vmatpush1.bf16.msra.mxu0 0
      %412 = vmatprep.subr.bf16.mxu0 0
      %413 = vmatpush1.bf16.msra.mxu0 0
      %414 = vmatprep.subr.bf16.mxu0 0
      %415 = vmatpush1.bf16.msra.mxu0 0
      %416 = vmatprep.subr.bf16.mxu0 0
      %417 = vmatpush1.bf16.msra.mxu0 0
      %418 = vmatprep.subr.bf16.mxu0 0
      %419 = vmatpush1.bf16.msra.mxu0 0
      %420 = vmatprep.subr.bf16.mxu0 0
      %421 = vmatpush1.bf16.msra.mxu0 0
      %422 = vmatprep.subr.bf16.mxu0 0
      %423 = vmatpush1.bf16.msra.mxu0 0
      %424 = vmatprep.subr.bf16.mxu0 0
      %425 = vmatpush1.bf16.msra.mxu0 0
      %426 = vmatprep.subr.bf16.mxu0 0
      %427 = vmatpush1.bf16.msra.mxu0 0
      %428 = vmatprep.subr.bf16.mxu0 0
      %429 = vmatpush1.bf16.msra.mxu0 0
      %430 = vmatprep.subr.bf16.mxu0 0
      %431 = vmatpush1.bf16.msra.mxu0 0
      %432 = vmatprep.subr.bf16.mxu0 0
      %433 = vmatpush1.bf16.msra.mxu0 0
      %434 = vmatprep.subr.bf16.mxu0 0
      %435 = vmatpush1.bf16.msra.mxu0 0
      %436 = vmatprep.subr.bf16.mxu0 0
      %437 = vmatpush1.bf16.msra.mxu0 0
      %438 = vmatprep.subr.bf16.mxu0 0
      %439 = vmatpush1.bf16.msra.mxu0 0
      %440 = vmatprep.mubr.bf16.mxu0 0
      %441 = vmatmul.mubr.bf16.gmra.mrb[0].mxu0 %v357
      %v442 = vpop.f32.mrb[0].mxu0
      %v443 = vadd.f32 0.0, %v442
      %v444 = vpop.f32.mrb[0].mxu0
      %v445 = vpop.f32.mrb[0].mxu0
      %v446 = vadd.f32 0.0, %v445
      %v447 = vpop.f32.mrb[0].mxu0
      %448 = vmatprep.mubr.bf16.mxu0 0
      %449 = vmatmul.mubr.bf16.gmra.mrb[0].mxu0 %v360
      %v450 = vpop.f32.mrb[0].mxu0
      %v451 = vadd.f32 0.0, %v450
      %v452 = vpop.f32.mrb[0].mxu0
      %v453 = vpop.f32.mrb[0].mxu0
      %v454 = vadd.f32 0.0, %v453
      %v455 = vpop.f32.mrb[0].mxu0
      %456 = vmatprep.mubr.bf16.mxu0 0
      %457 = vmatmul.mubr.bf16.gmra.mrb[0].mxu0 %v363
      %v458 = vpop.f32.mrb[0].mxu0
      %v459 = vadd.f32 0.0, %v458
      %v460 = vpop.f32.mrb[0].mxu0
      %v461 = vpop.f32.mrb[0].mxu0
      %v462 = vadd.f32 0.0, %v461
      %v463 = vpop.f32.mrb[0].mxu0
      %464 = vmatprep.mubr.bf16.mxu0 0
      %465 = vmatmul.mubr.bf16.gmra.mrb[0].mxu0 %v366
      %v466 = vpop.f32.mrb[0].mxu0
      %v467 = vadd.f32 0.0, %v466
      %v468 = vpop.f32.mrb[0].mxu0
      %v469 = vpop.f32.mrb[0].mxu0
      %v470 = vadd.f32 0.0, %v469
      %v471 = vpop.f32.mrb[0].mxu0
      %472 = vmatprep.mubr.bf16.mxu0 0
      %473 = vmatmul.mubr.bf16.gmra.mrb[0].mxu0 %v369
      %v474 = vpop.f32.mrb[0].mxu0
      %v475 = vadd.f32 0.0, %v474
      %v476 = vpop.f32.mrb[0].mxu0
      %v477 = vpop.f32.mrb[0].mxu0
      %v478 = vadd.f32 0.0, %v477
      %v479 = vpop.f32.mrb[0].mxu0
      %480 = vmatprep.mubr.bf16.mxu0 0
      %481 = vmatmul.mubr.bf16.gmra.mrb[0].mxu0 %v372
      %v482 = vpop.f32.mrb[0].mxu0
      %v483 = vadd.f32 0.0, %v482
      %v484 = vpop.f32.mrb[0].mxu0
      %v485 = vpop.f32.mrb[0].mxu0
      %v486 = vadd.f32 0.0, %v485
      %v487 = vpop.f32.mrb[0].mxu0
      %488 = vmatprep.mubr.bf16.mxu0 0
      %489 = vmatmul.mubr.bf16.gmra.mrb[0].mxu0 %v375
      %v490 = vpop.f32.mrb[0].mxu0
      %v491 = vadd.f32 0.0, %v490
      %v492 = vpop.f32.mrb[0].mxu0
      %v493 = vpop.f32.mrb[0].mxu0
      %v494 = vadd.f32 0.0, %v493
      %v495 = vpop.f32.mrb[0].mxu0
      %496 = vmatprep.mubr.bf16.mxu0 0
      %497 = vmatmul.mubr.bf16.gmra.mrb[0].mxu0 %v378
      %v498 = vpop.f32.mrb[0].mxu0
      %v499 = vadd.f32 0.0, %v498
      %v500 = vpop.f32.mrb[0].mxu0
      %v501 = vpop.f32.mrb[0].mxu0
      %v502 = vadd.f32 0.0, %v501
      %v503 = vpop.f32.mrb[0].mxu0
      %504 = vmatprep.mubr.bf16.mxu0 0
      %505 = vmatmul.mubr.bf16.gmra.mrb[0].mxu0 %v381
      %v506 = vpop.f32.mrb[0].mxu0
      %v507 = vadd.f32 0.0, %v506
      %v508 = vpop.f32.mrb[0].mxu0
      %v509 = vpop.f32.mrb[0].mxu0
      %v510 = vadd.f32 0.0, %v509
      %v511 = vpop.f32.mrb[0].mxu0
      %512 = vmatprep.mubr.bf16.mxu0 0
      %513 = vmatmul.mubr.bf16.gmra.mrb[0].mxu0 %v384
      %v514 = vpop.f32.mrb[0].mxu0
      %v515 = vadd.f32 0.0, %v514
      %v516 = vpop.f32.mrb[0].mxu0
      %v517 = vpop.f32.mrb[0].mxu0
      %v518 = vadd.f32 0.0, %v517
      %v519 = vpop.f32.mrb[0].mxu0
      %520 = vmatprep.mubr.bf16.mxu0 0
      %521 = vmatmul.mubr.bf16.gmra.mrb[0].mxu0 %v387
      %v522 = vpop.f32.mrb[0].mxu0
      %v523 = vadd.f32 0.0, %v522
      %v524 = vpop.f32.mrb[0].mxu0
      %v525 = vpop.f32.mrb[0].mxu0
      %v526 = vadd.f32 0.0, %v525
      %v527 = vpop.f32.mrb[0].mxu0
      %528 = vmatprep.mubr.bf16.mxu0 0
      %529 = vmatmul.mubr.bf16.gmra.mrb[0].mxu0 %v390
      %v530 = vpop.f32.mrb[0].mxu0
      %v531 = vadd.f32 0.0, %v530
      %v532 = vpop.f32.mrb[0].mxu0
      %v533 = vpop.f32.mrb[0].mxu0
      %v534 = vadd.f32 0.0, %v533
      %v535 = vpop.f32.mrb[0].mxu0
      %536 = vmatprep.mubr.bf16.mxu0 0
      %537 = vmatmul.mubr.bf16.gmra.mrb[0].mxu0 %v393
      %v538 = vpop.f32.mrb[0].mxu0
      %v539 = vadd.f32 0.0, %v538
      %v540 = vpop.f32.mrb[0].mxu0
      %v541 = vpop.f32.mrb[0].mxu0
      %v542 = vadd.f32 0.0, %v541
      %v543 = vpop.f32.mrb[0].mxu0
      %544 = vmatprep.mubr.bf16.mxu0 0
      %545 = vmatmul.mubr.bf16.gmra.mrb[0].mxu0 %v396
      %v546 = vpop.f32.mrb[0].mxu0
      %v547 = vadd.f32 0.0, %v546
      %v548 = vpop.f32.mrb[0].mxu0
      %v549 = vpop.f32.mrb[0].mxu0
      %v550 = vadd.f32 0.0, %v549
      %v551 = vpop.f32.mrb[0].mxu0
      %552 = vmatprep.mubr.bf16.mxu0 0
      %553 = vmatmul.mubr.bf16.gmra.mrb[0].mxu0 %v399
      %v554 = vpop.f32.mrb[0].mxu0
      %v555 = vadd.f32 0.0, %v554
      %v556 = vpop.f32.mrb[0].mxu0
      %v557 = vpop.f32.mrb[0].mxu0
      %v558 = vadd.f32 0.0, %v557
      %v559 = vpop.f32.mrb[0].mxu0
      %560 = vmatprep.mubr.bf16.mxu0 0
      %561 = vmatmul.mubr.bf16.gmra.mrb[0].mxu0 %v402
      %v562 = vpop.f32.mrb[0].mxu0
      %v563 = vadd.f32 0.0, %v562
      %v564 = vpop.f32.mrb[0].mxu0
      %v565 = vpop.f32.mrb[0].mxu0
      %v566 = vadd.f32 0.0, %v565
      %v567 = vpop.f32.mrb[0].mxu0
      %568 = vdwg.mxu0
      %v569 = vld [vmem:[%s2] sm:$0xff]
      %v570 = vld [vmem:[%s2 + $0x8] sm:$0xff]
      %v571 = vld [vmem:[%s2 + $0x10] sm:$0xff]
      %v572 = vld [vmem:[%s2 + $0x18] sm:$0xff]
      %v573 = vld [vmem:[%s2 + $0x20] sm:$0xff]
      %v574 = vld [vmem:[%s2 + $0x28] sm:$0xff]
      %v575 = vld [vmem:[%s2 + $0x30] sm:$0xff]
      %v576 = vld [vmem:[%s2 + $0x38] sm:$0xff]
      %v577 = vld [vmem:[%s2 + $0x40] sm:$0xff]
      %v578 = vld [vmem:[%s2 + $0x48] sm:$0xff]
      %v579 = vld [vmem:[%s2 + $0x50] sm:$0xff]
      %v580 = vld [vmem:[%s2 + $0x58] sm:$0xff]
      %v581 = vld [vmem:[%s2 + $0x60] sm:$0xff]
      %v582 = vld [vmem:[%s2 + $0x68] sm:$0xff]
      %v583 = vld [vmem:[%s2 + $0x70] sm:$0xff]
      %v584 = vld [vmem:[%s2 + $0x78] sm:$0xff]
      %v585 = vld [vmem:[%s2 + $0x80] sm:$0xff]
      %v586 = vld [vmem:[%s2 + $0x88] sm:$0xff]
      %v587 = vld [vmem:[%s2 + $0x90] sm:$0xff]
      %v588 = vld [vmem:[%s2 + $0x98] sm:$0xff]
      %v589 = vld [vmem:[%s2 + $0xa0] sm:$0xff]
      %v590 = vld [vmem:[%s2 + $0xa8] sm:$0xff]
      %v591 = vld [vmem:[%s2 + $0xb0] sm:$0xff]
      %v592 = vld [vmem:[%s2 + $0xb8] sm:$0xff]
      %v593 = vld [vmem:[%s2 + $0xc0] sm:$0xff]
      %v594 = vld [vmem:[%s2 + $0xc8] sm:$0xff]
      %v595 = vld [vmem:[%s2 + $0xd0] sm:$0xff]
      %v596 = vld [vmem:[%s2 + $0xd8] sm:$0xff]
      %v597 = vld [vmem:[%s2 + $0xe0] sm:$0xff]
      %v598 = vld [vmem:[%s2 + $0xe8] sm:$0xff]
      %v599 = vld [vmem:[%s2 + $0xf0] sm:$0xff]
      %v600 = vld [vmem:[%s2 + $0xf8] sm:$0xff]
      %602 = vset.pattern.permute.xlu0 0
      %603 = vperm.xlu0 %602, %v569
      %v604 = vpop.permute.xlu0 %603
      %607 = vset.pattern.permute.xlu0 0
      %608 = vperm.xlu0 %607, %v570
      %v609 = vpop.permute.xlu0 %608
      %612 = vset.pattern.permute.xlu0 0
      %613 = vperm.xlu0 %612, %v571
      %v614 = vpop.permute.xlu0 %613
      %617 = vset.pattern.permute.xlu0 0
      %618 = vperm.xlu0 %617, %v572
      %v619 = vpop.permute.xlu0 %618
      %622 = vset.pattern.permute.xlu0 0
      %623 = vperm.xlu0 %622, %v573
      %v624 = vpop.permute.xlu0 %623
      %627 = vset.pattern.permute.xlu0 0
      %628 = vperm.xlu0 %627, %v574
      %v629 = vpop.permute.xlu0 %628
      %632 = vset.pattern.permute.xlu0 0
      %633 = vperm.xlu0 %632, %v575
      %v634 = vpop.permute.xlu0 %633
      %637 = vset.pattern.permute.xlu0 0
      %638 = vperm.xlu0 %637, %v576
      %v639 = vpop.permute.xlu0 %638
      %642 = vset.pattern.permute.xlu0 0
      %643 = vperm.xlu0 %642, %v577
      %v644 = vpop.permute.xlu0 %643
      %647 = vset.pattern.permute.xlu0 0
      %648 = vperm.xlu0 %647, %v578
      %v649 = vpop.permute.xlu0 %648
      %652 = vset.pattern.permute.xlu0 0
      %653 = vperm.xlu0 %652, %v579
      %v654 = vpop.permute.xlu0 %653
      %657 = vset.pattern.permute.xlu0 0
      %658 = vperm.xlu0 %657, %v580
      %v659 = vpop.permute.xlu0 %658
      %662 = vset.pattern.permute.xlu0 0
      %663 = vperm.xlu0 %662, %v581
      %v664 = vpop.permute.xlu0 %663
      %667 = vset.pattern.permute.xlu0 0
      %668 = vperm.xlu0 %667, %v582
      %v669 = vpop.permute.xlu0 %668
      %672 = vset.pattern.permute.xlu0 0
      %673 = vperm.xlu0 %672, %v583
      %v674 = vpop.permute.xlu0 %673
      %677 = vset.pattern.permute.xlu0 0
      %678 = vperm.xlu0 %677, %v584
      %v679 = vpop.permute.xlu0 %678
      %682 = vset.pattern.permute.xlu0 0
      %683 = vperm.xlu0 %682, %v585
      %v684 = vpop.permute.xlu0 %683
      %687 = vset.pattern.permute.xlu0 0
      %688 = vperm.xlu0 %687, %v586
      %v689 = vpop.permute.xlu0 %688
      %692 = vset.pattern.permute.xlu0 0
      %693 = vperm.xlu0 %692, %v587
      %v694 = vpop.permute.xlu0 %693
      %697 = vset.pattern.permute.xlu0 0
      %698 = vperm.xlu0 %697, %v588
      %v699 = vpop.permute.xlu0 %698
      %702 = vset.pattern.permute.xlu0 0
      %703 = vperm.xlu0 %702, %v589
      %v704 = vpop.permute.xlu0 %703
      %707 = vset.pattern.permute.xlu0 0
      %708 = vperm.xlu0 %707, %v590
      %v709 = vpop.permute.xlu0 %708
      %712 = vset.pattern.permute.xlu0 0
      %713 = vperm.xlu0 %712, %v591
      %v714 = vpop.permute.xlu0 %713
      %717 = vset.pattern.permute.xlu0 0
      %718 = vperm.xlu0 %717, %v592
      %v719 = vpop.permute.xlu0 %718
      %722 = vset.pattern.permute.xlu0 0
      %723 = vperm.xlu0 %722, %v593
      %v724 = vpop.permute.xlu0 %723
      %727 = vset.pattern.permute.xlu0 0
      %728 = vperm.xlu0 %727, %v594
      %v729 = vpop.permute.xlu0 %728
      %732 = vset.pattern.permute.xlu0 0
      %733 = vperm.xlu0 %732, %v595
      %v734 = vpop.permute.xlu0 %733
      %737 = vset.pattern.permute.xlu0 0
      %738 = vperm.xlu0 %737, %v596
      %v739 = vpop.permute.xlu0 %738
      %742 = vset.pattern.permute.xlu0 0
      %743 = vperm.xlu0 %742, %v597
      %v744 = vpop.permute.xlu0 %743
      %747 = vset.pattern.permute.xlu0 0
      %748 = vperm.xlu0 %747, %v598
      %v749 = vpop.permute.xlu0 %748
      %752 = vset.pattern.permute.xlu0 0
      %753 = vperm.xlu0 %752, %v599
      %v754 = vpop.permute.xlu0 %753
      %757 = vset.pattern.permute.xlu0 0
      %758 = vperm.xlu0 %757, %v600
      %v759 = vpop.permute.xlu0 %758
      %v761 = vmul.f32 %v443, %v604
      %v762 = vmul.f32 %v446, %v609
      %v763 = vmul.f32 %v451, %v614
      %v764 = vmul.f32 %v454, %v619
      %v765 = vmul.f32 %v459, %v624
      %v766 = vmul.f32 %v462, %v629
      %v767 = vmul.f32 %v467, %v634
      %v768 = vmul.f32 %v470, %v639
      %v769 = vmul.f32 %v475, %v644
      %v770 = vmul.f32 %v478, %v649
      %v771 = vmul.f32 %v483, %v654
      %v772 = vmul.f32 %v486, %v659
      %v773 = vmul.f32 %v491, %v664
      %v774 = vmul.f32 %v494, %v669
      %v775 = vmul.f32 %v499, %v674
      %v776 = vmul.f32 %v502, %v679
      %v777 = vmul.f32 %v507, %v684
      %v778 = vmul.f32 %v510, %v689
      %v779 = vmul.f32 %v515, %v694
      %v780 = vmul.f32 %v518, %v699
      %v781 = vmul.f32 %v523, %v704
      %v782 = vmul.f32 %v526, %v709
      %v783 = vmul.f32 %v531, %v714
      %v784 = vmul.f32 %v534, %v719
      %v785 = vmul.f32 %v539, %v724
      %v786 = vmul.f32 %v542, %v729
      %v787 = vmul.f32 %v547, %v734
      %v788 = vmul.f32 %v550, %v739
      %v789 = vmul.f32 %v555, %v744
      %v790 = vmul.f32 %v558, %v749
      %v791 = vmul.f32 %v563, %v754
      %v792 = vmul.f32 %v566, %v759
      %v793 = vadd.f32 %v761, 0.0
      %v794 = vadd.f32 %v762, 0.0
      %v795 = vadd.f32 %v763, 0.0
      %v796 = vadd.f32 %v764, 0.0
      %v797 = vadd.f32 %v765, 0.0
      %v798 = vadd.f32 %v766, 0.0
      %v799 = vadd.f32 %v767, 0.0
      %v800 = vadd.f32 %v768, 0.0
      %v801 = vadd.f32 %v769, 0.0
      %v802 = vadd.f32 %v770, 0.0
      %v803 = vadd.f32 %v771, 0.0
      %v804 = vadd.f32 %v772, 0.0
      %v805 = vadd.f32 %v773, 0.0
      %v806 = vadd.f32 %v774, 0.0
      %v807 = vadd.f32 %v775, 0.0
      %v808 = vadd.f32 %v776, 0.0
      %v809 = vadd.f32 %v777, 0.0
      %v810 = vadd.f32 %v778, 0.0
      %v811 = vadd.f32 %v779, 0.0
      %v812 = vadd.f32 %v780, 0.0
      %v813 = vadd.f32 %v781, 0.0
      %v814 = vadd.f32 %v782, 0.0
      %v815 = vadd.f32 %v783, 0.0
      %v816 = vadd.f32 %v784, 0.0
      %v817 = vadd.f32 %v785, 0.0
      %v818 = vadd.f32 %v786, 0.0
      %v819 = vadd.f32 %v787, 0.0
      %v820 = vadd.f32 %v788, 0.0
      %v821 = vadd.f32 %v789, 0.0
      %v822 = vadd.f32 %v790, 0.0
      %v823 = vadd.f32 %v791, 0.0
      %v824 = vadd.f32 %v792, 0.0
      %825 = vst.msk [vmem:[%s204] sm:$0xff] %vm355, %v793
      %826 = vst.msk [vmem:[%s204 + $0x8] sm:$0xff] %vm355, %v794
      %827 = vst.msk [vmem:[%s204 + $0x10] sm:$0xff] %vm355, %v795
      %828 = vst.msk [vmem:[%s204 + $0x18] sm:$0xff] %vm355, %v796
      %829 = vst.msk [vmem:[%s204 + $0x20] sm:$0xff] %vm355, %v797
      %830 = vst.msk [vmem:[%s204 + $0x28] sm:$0xff] %vm355, %v798
      %831 = vst.msk [vmem:[%s204 + $0x30] sm:$0xff] %vm355, %v799
      %832 = vst.msk [vmem:[%s204 + $0x38] sm:$0xff] %vm355, %v800
      %833 = vst.msk [vmem:[%s204 + $0x40] sm:$0xff] %vm355, %v801
      %834 = vst.msk [vmem:[%s204 + $0x48] sm:$0xff] %vm355, %v802
      %835 = vst.msk [vmem:[%s204 + $0x50] sm:$0xff] %vm355, %v803
      %836 = vst.msk [vmem:[%s204 + $0x58] sm:$0xff] %vm355, %v804
      %837 = vst.msk [vmem:[%s204 + $0x60] sm:$0xff] %vm355, %v805
      %838 = vst.msk [vmem:[%s204 + $0x68] sm:$0xff] %vm355, %v806
      %839 = vst.msk [vmem:[%s204 + $0x70] sm:$0xff] %vm355, %v807
      %840 = vst.msk [vmem:[%s204 + $0x78] sm:$0xff] %vm355, %v808
      %841 = vst.msk [vmem:[%s204 + $0x80] sm:$0xff] %vm355, %v809
      %842 = vst.msk [vmem:[%s204 + $0x88] sm:$0xff] %vm355, %v810
      %843 = vst.msk [vmem:[%s204 + $0x90] sm:$0xff] %vm355, %v811
      %844 = vst.msk [vmem:[%s204 + $0x98] sm:$0xff] %vm355, %v812
      %845 = vst.msk [vmem:[%s204 + $0xa0] sm:$0xff] %vm355, %v813
      %846 = vst.msk [vmem:[%s204 + $0xa8] sm:$0xff] %vm355, %v814
      %847 = vst.msk [vmem:[%s204 + $0xb0] sm:$0xff] %vm355, %v815
      %848 = vst.msk [vmem:[%s204 + $0xb8] sm:$0xff] %vm355, %v816
      %849 = vst.msk [vmem:[%s204 + $0xc0] sm:$0xff] %vm355, %v817
      %850 = vst.msk [vmem:[%s204 + $0xc8] sm:$0xff] %vm355, %v818
      %851 = vst.msk [vmem:[%s204 + $0xd0] sm:$0xff] %vm355, %v819
      %852 = vst.msk [vmem:[%s204 + $0xd8] sm:$0xff] %vm355, %v820
      %853 = vst.msk [vmem:[%s204 + $0xe0] sm:$0xff] %vm355, %v821
      %854 = vst.msk [vmem:[%s204 + $0xe8] sm:$0xff] %vm355, %v822
      %855 = vst.msk [vmem:[%s204 + $0xf0] sm:$0xff] %vm355, %v823
      %856 = vst.msk [vmem:[%s204 + $0xf8] sm:$0xff] %vm355, %v824
      %v857 = vsel %vm355, %v793, 0.0
      %v858 = vsel %vm355, %v794, 0.0
      %v859 = vadd.f32 %v857, %v858
      %v860 = vsel %vm355, %v795, 0.0
      %v861 = vadd.f32 %v859, %v860
      %v862 = vsel %vm355, %v796, 0.0
      %v863 = vadd.f32 %v861, %v862
      %v864 = vsel %vm355, %v797, 0.0
      %v865 = vadd.f32 %v863, %v864
      %v866 = vsel %vm355, %v798, 0.0
      %v867 = vadd.f32 %v865, %v866
      %v868 = vsel %vm355, %v799, 0.0
      %v869 = vadd.f32 %v867, %v868
      %v870 = vsel %vm355, %v800, 0.0
      %v871 = vadd.f32 %v869, %v870
      %v872 = vsel %vm355, %v801, 0.0
      %v873 = vadd.f32 %v871, %v872
      %v874 = vsel %vm355, %v802, 0.0
      %v875 = vadd.f32 %v873, %v874
      %v876 = vsel %vm355, %v803, 0.0
      %v877 = vadd.f32 %v875, %v876
      %v878 = vsel %vm355, %v804, 0.0
      %v879 = vadd.f32 %v877, %v878
      %v880 = vsel %vm355, %v805, 0.0
      %v881 = vadd.f32 %v879, %v880
      %v882 = vsel %vm355, %v806, 0.0
      %v883 = vadd.f32 %v881, %v882
      %v884 = vsel %vm355, %v807, 0.0
      %v885 = vadd.f32 %v883, %v884
      %v886 = vsel %vm355, %v808, 0.0
      %v887 = vadd.f32 %v885, %v886
      %v888 = vsel %vm355, %v809, 0.0
      %v889 = vadd.f32 %v887, %v888
      %v890 = vsel %vm355, %v810, 0.0
      %v891 = vadd.f32 %v889, %v890
      %v892 = vsel %vm355, %v811, 0.0
      %v893 = vadd.f32 %v891, %v892
      %v894 = vsel %vm355, %v812, 0.0
      %v895 = vadd.f32 %v893, %v894
      %v896 = vsel %vm355, %v813, 0.0
      %v897 = vadd.f32 %v895, %v896
      %v898 = vsel %vm355, %v814, 0.0
      %v899 = vadd.f32 %v897, %v898
      %v900 = vsel %vm355, %v815, 0.0
      %v901 = vadd.f32 %v899, %v900
      %v902 = vsel %vm355, %v816, 0.0
      %v903 = vadd.f32 %v901, %v902
      %v904 = vsel %vm355, %v817, 0.0
      %v905 = vadd.f32 %v903, %v904
      %v906 = vsel %vm355, %v818, 0.0
      %v907 = vadd.f32 %v905, %v906
      %v908 = vsel %vm355, %v819, 0.0
      %v909 = vadd.f32 %v907, %v908
      %v910 = vsel %vm355, %v820, 0.0
      %v911 = vadd.f32 %v909, %v910
      %v912 = vsel %vm355, %v821, 0.0
      %v913 = vadd.f32 %v911, %v912
      %v914 = vsel %vm355, %v822, 0.0
      %v915 = vadd.f32 %v913, %v914
      %v916 = vsel %vm355, %v823, 0.0
      %v917 = vadd.f32 %v915, %v916
      %v918 = vsel %vm355, %v824, 0.0
      %v919 = vadd.f32 %v917, %v918
      %v920 = vrot.slane %v919, 4
      %v921 = vadd.f32 %v919, %v920
      %v922 = vrot.slane %v921, 2
      %v923 = vadd.f32 %v921, %v922
      %v924 = vrot.slane %v923, 1
      %v925 = vadd.f32 %v923, %v924
      %vm926 = vcmask 24576
      %927 = vst.msk [vmem:[%s208] sm:$0x1] %vm926, %v925
      %v928 = vmul.f32 %v793, %v793
      %v929 = vmul.f32 %v794, %v794
      %v930 = vmul.f32 %v795, %v795
      %v931 = vmul.f32 %v796, %v796
      %v932 = vmul.f32 %v797, %v797
      %v933 = vmul.f32 %v798, %v798
      %v934 = vmul.f32 %v799, %v799
      %v935 = vmul.f32 %v800, %v800
      %v936 = vmul.f32 %v801, %v801
      %v937 = vmul.f32 %v802, %v802
      %v938 = vmul.f32 %v803, %v803
      %v939 = vmul.f32 %v804, %v804
      %v940 = vmul.f32 %v805, %v805
      %v941 = vmul.f32 %v806, %v806
      %v942 = vmul.f32 %v807, %v807
      %v943 = vmul.f32 %v808, %v808
      %v944 = vmul.f32 %v809, %v809
      %v945 = vmul.f32 %v810, %v810
      %v946 = vmul.f32 %v811, %v811
      %v947 = vmul.f32 %v812, %v812
      %v948 = vmul.f32 %v813, %v813
      %v949 = vmul.f32 %v814, %v814
      %v950 = vmul.f32 %v815, %v815
      %v951 = vmul.f32 %v816, %v816
      %v952 = vmul.f32 %v817, %v817
      %v953 = vmul.f32 %v818, %v818
      %v954 = vmul.f32 %v819, %v819
      %v955 = vmul.f32 %v820, %v820
      %v956 = vmul.f32 %v821, %v821
      %v957 = vmul.f32 %v822, %v822
      %v958 = vmul.f32 %v823, %v823
      %v959 = vmul.f32 %v824, %v824
      %v960 = vsel %vm355, %v928, 0.0
      %v961 = vsel %vm355, %v929, 0.0
      %v962 = vadd.f32 %v960, %v961
      %v963 = vsel %vm355, %v930, 0.0
      %v964 = vadd.f32 %v962, %v963
      %v965 = vsel %vm355, %v931, 0.0
      %v966 = vadd.f32 %v964, %v965
      %v967 = vsel %vm355, %v932, 0.0
      %v968 = vadd.f32 %v966, %v967
      %v969 = vsel %vm355, %v933, 0.0
      %v970 = vadd.f32 %v968, %v969
      %v971 = vsel %vm355, %v934, 0.0
      %v972 = vadd.f32 %v970, %v971
      %v973 = vsel %vm355, %v935, 0.0
      %v974 = vadd.f32 %v972, %v973
      %v975 = vsel %vm355, %v936, 0.0
      %v976 = vadd.f32 %v974, %v975
      %v977 = vsel %vm355, %v937, 0.0
      %v978 = vadd.f32 %v976, %v977
      %v979 = vsel %vm355, %v938, 0.0
      %v980 = vadd.f32 %v978, %v979
      %v981 = vsel %vm355, %v939, 0.0
      %v982 = vadd.f32 %v980, %v981
      %v983 = vsel %vm355, %v940, 0.0
      %v984 = vadd.f32 %v982, %v983
      %v985 = vsel %vm355, %v941, 0.0
      %v986 = vadd.f32 %v984, %v985
      %v987 = vsel %vm355, %v942, 0.0
      %v988 = vadd.f32 %v986, %v987
      %v989 = vsel %vm355, %v943, 0.0
      %v990 = vadd.f32 %v988, %v989
      %v991 = vsel %vm355, %v944, 0.0
      %v992 = vadd.f32 %v990, %v991
      %v993 = vsel %vm355, %v945, 0.0
      %v994 = vadd.f32 %v992, %v993
      %v995 = vsel %vm355, %v946, 0.0
      %v996 = vadd.f32 %v994, %v995
      %v997 = vsel %vm355, %v947, 0.0
      %v998 = vadd.f32 %v996, %v997
      %v999 = vsel %vm355, %v948, 0.0
      %v1000 = vadd.f32 %v998, %v999
      %v1001 = vsel %vm355, %v949, 0.0
      %v1002 = vadd.f32 %v1000, %v1001
      %v1003 = vsel %vm355, %v950, 0.0
      %v1004 = vadd.f32 %v1002, %v1003
      %v1005 = vsel %vm355, %v951, 0.0
      %v1006 = vadd.f32 %v1004, %v1005
      %v1007 = vsel %vm355, %v952, 0.0
      %v1008 = vadd.f32 %v1006, %v1007
      %v1009 = vsel %vm355, %v953, 0.0
      %v1010 = vadd.f32 %v1008, %v1009
      %v1011 = vsel %vm355, %v954, 0.0
      %v1012 = vadd.f32 %v1010, %v1011
      %v1013 = vsel %vm355, %v955, 0.0
      %v1014 = vadd.f32 %v1012, %v1013
      %v1015 = vsel %vm355, %v956, 0.0
      %v1016 = vadd.f32 %v1014, %v1015
      %v1017 = vsel %vm355, %v957, 0.0
      %v1018 = vadd.f32 %v1016, %v1017
      %v1019 = vsel %vm355, %v958, 0.0
      %v1020 = vadd.f32 %v1018, %v1019
      %v1021 = vsel %vm355, %v959, 0.0
      %v1022 = vadd.f32 %v1020, %v1021
      %v1023 = vrot.slane %v1022, 4
      %v1024 = vadd.f32 %v1022, %v1023
      %v1025 = vrot.slane %v1024, 2
      %v1026 = vadd.f32 %v1024, %v1025
      %v1027 = vrot.slane %v1026, 1
      %v1028 = vadd.f32 %v1026, %v1027
      %1029 = vst.msk [vmem:[%s208 + $0x1] sm:$0x1] %vm926, %v1028
      %p1030 = scmp.lt.s32.totalorder %s16, 1
      %s1031 = scalar_select %p1030, %s16, 1
      %s1032 = smul.addr %s1031, 32
      %s1033 = smul.addr %s1032, 8
      %s1034 = scalar_lea.vmem %s3, %s1033
      %p1035 = scmp.lt.s32.totalorder %s16, 1
      %s1036 = scalar_select %p1035, %s16, 1
      %s1037 = smul.addr %s1036, 2
      %s1038 = scalar_lea.vmem %s4, %s1037
      // Predicated region
      $region33: #{_forward_impl.7} parent=31 // pred_check
        %p1039 = pneg %p102
      $region34: #{_forward_impl.7} parent=31 // pred_check_branch
        %1041 = sbr.rel (%p1039) target = $region36
      $region35: #{_forward_impl.7} parent=31 // pred_region
        _
      $region36: #{_forward_impl.7} parent=31 // pred_fallthru
        _
      // Predicated region
      $region37: #{_forward_impl.7} parent=31 // pred_check
        %p1042 = pneg %p128
      $region38: #{_forward_impl.7} parent=31 // pred_check_branch
        %1044 = sbr.rel (%p1042) target = $region40
      $region39: #{_forward_impl.7} parent=31 // pred_region
        _
      $region40: #{_forward_impl.7} parent=31 // pred_fallthru
        _
    $region32: #{_forward_impl.7} parent=5 // pred_fallthru
      _
    %p1045 = scmp.le.s32.totalorder 2, %s11
    // Predicated region
    $region41: #{_forward_impl.7} parent=5 // pred_check
      %p1046 = pneg %p1045
    $region42: #{_forward_impl.7} parent=5 // pred_check_branch
      %1048 = sbr.rel (%p1046) target = $region44
    $region43: #{_forward_impl.7} parent=5 // pred_region
      %s1049 = ssub.s32 %s11, 2
      // Predicated region
      $region45: #{_forward_impl.7} parent=43 // pred_check
        %p1050 = pneg %p108
      $region46: #{_forward_impl.7} parent=43 // pred_check_branch
        %1052 = sbr.rel (%p1050) target = $region48
      $region47: #{_forward_impl.7} parent=43 // pred_region
        %p1053 = scmp.lt.s32.totalorder %s17, 1
        %s1054 = scalar_select %p1053, %s17, 1
        %s1055 = smul.addr %s1054, 32
        %s1056 = smul.addr %s1055, 8
        %s1057 = scalar_lea.vmem %s3, %s1056
      $region48: #{_forward_impl.7} parent=43 // pred_fallthru
        _
      // Predicated region
      $region49: #{_forward_impl.7} parent=43 // pred_check
        %p1058 = pneg %p134
      $region50: #{_forward_impl.7} parent=43 // pred_check_branch
        %1060 = sbr.rel (%p1058) target = $region52
      $region51: #{_forward_impl.7} parent=43 // pred_region
        %p1061 = scmp.lt.s32.totalorder %s17, 1
        %s1062 = scalar_select %p1061, %s17, 1
        %s1063 = smul.addr %s1062, 2
        %s1064 = scalar_lea.vmem %s4, %s1063
      $region52: #{_forward_impl.7} parent=43 // pred_fallthru
        _
    $region44: #{_forward_impl.7} parent=5 // pred_fallthru
      _
  $region6: #{_forward_impl.7} parent=0 // loop_footer
    %s15 = sadd.s32 1, %s11
  $region7: #{_forward_impl.7} parent=0 // loop_footer_branch
    %10 = sbr.rel target = $region3
  $region8: #{_forward_impl.7} parent=0 // loop_exit
    _

// kernel: _forward_impl.9
$region0: #{_forward_impl.9}
  #allocation0 [shape = 'u32[]', space=smem, size = 0x4, offset = 0x4, fixed_abs, tag = 'smem constant byte address 0x4 - core index']
  #allocation1 [shape = 'u32[144,128]{1,0:T(1,128)}', space=vmem, size = 0x12000, scoped, tag = 'internal scratch']
  %s0 = inlined_call_operand.vmem [shape: f32[2,290,4], index: 0, kind: input, shape index: {}]
  %s1 = inlined_call_operand.vmem [shape: f32[256,3], index: 1, kind: input, shape index: {}]
  %s2 = inlined_call_operand.vmem [shape: f32[256,1], index: 2, kind: input, shape index: {}]
  %s3 = inlined_call_operand.vmem [shape: f32[2,256,4], index: 3, kind: output, shape index: {}]
  %s4 = sld [smem:[#allocation0]]
  $region45: #{_forward_impl.9} parent=0
    _
  %s6 = ssub.s32 1, %s4
  %s7 = scalar_select 0, %s6, %s4
  loop: start=0, step=1, limit=4
  $region2: #{_forward_impl.9} parent=0 // loop_pre_header
    _
  $region3: #{_forward_impl.9} parent=0 // loop_header
    %s9 = sphi 0, %s13
    %p10 = scmp.ge.s32.totalorder %s9, 4
    %s19 = sphi 0, %s21
    %s22 = sphi 0, %s19
    %s23 = sphi 0, %s22
    %s39 = sphi 0, %s23
    %s43 = sphi 0, %s43
    %s45 = sphi 0, %s43
    %s46 = sphi 0, %s45
    %s60 = sphi 0, %s46
    %s64 = sphi 0, %s64
    %s66 = sphi 0, %s64
    %s67 = sphi 0, %s66
    %s81 = sphi 0, %s67
    %s87 = sphi 0, %s89
    %s90 = sphi 0, %s87
    %s91 = sphi 0, %s90
    %s107 = sphi 0, %s91
  $region4: #{_forward_impl.9} parent=0 // loop_header_branch
    %12 = sbr.rel (%p10) target = $region8
  $region5: #{_forward_impl.9} parent=0 // loop_body
    %s14 = ssub.s32 %s9, 1
    %s15 = ssub.s32 %s9, 2
    %s16 = sadd.s32 %s9, 1
    %s17 = ssub.s32 %s9, %s16
    %p18 = scmp.eq.s32.totalorder %s17, 0
    %s20 = sadd.s32 %s19, 1
    %s21 = scalar_select %p18, %s19, %s20
    %p24 = pneg %p18
    %p25 = scmp.eq.s32.totalorder %s9, 1
    %p26 = por %p24, %p25
    %p27 = scmp.ne.s32.totalorder %s19, %s22
    %p28 = scmp.eq.s32.totalorder %s9, 0
    %p29 = por %p27, %p28
    %p30 = scmp.ne.s32.totalorder %s19, %s22
    %p31 = scmp.eq.s32.totalorder %s14, 1
    %p32 = por %p30, %p31
    %p33 = scmp.ne.s32.totalorder %s22, %s23
    %p34 = scmp.eq.s32.totalorder %s14, 0
    %p35 = por %p33, %p34
    %p36 = scmp.ne.s32.totalorder %s22, %s23
    %p37 = scmp.eq.s32.totalorder %s15, 1
    %p38 = por %p36, %p37
    %p40 = scmp.ne.s32.totalorder %s23, %s39
    %p41 = scmp.eq.s32.totalorder %s15, 0
    %p42 = por %p40, %p41
    %s44 = sadd.s32 %s43, 1
    %p47 = scmp.eq.s32.totalorder %s9, 1
    %p48 = scmp.ne.s32.totalorder %s43, %s45
    %p49 = scmp.eq.s32.totalorder %s9, 0
    %p50 = por %p48, %p49
    %p51 = scmp.ne.s32.totalorder %s43, %s45
    %p52 = scmp.eq.s32.totalorder %s14, 1
    %p53 = por %p51, %p52
    %p54 = scmp.ne.s32.totalorder %s45, %s46
    %p55 = scmp.eq.s32.totalorder %s14, 0
    %p56 = por %p54, %p55
    %p57 = scmp.ne.s32.totalorder %s45, %s46
    %p58 = scmp.eq.s32.totalorder %s15, 1
    %p59 = por %p57, %p58
    %p61 = scmp.ne.s32.totalorder %s46, %s60
    %p62 = scmp.eq.s32.totalorder %s15, 0
    %p63 = por %p61, %p62
    %s65 = sadd.s32 %s64, 1
    %p68 = scmp.eq.s32.totalorder %s9, 1
    %p69 = scmp.ne.s32.totalorder %s64, %s66
    %p70 = scmp.eq.s32.totalorder %s9, 0
    %p71 = por %p69, %p70
    %p72 = scmp.ne.s32.totalorder %s64, %s66
    %p73 = scmp.eq.s32.totalorder %s14, 1
    %p74 = por %p72, %p73
    %p75 = scmp.ne.s32.totalorder %s66, %s67
    %p76 = scmp.eq.s32.totalorder %s14, 0
    %p77 = por %p75, %p76
    %p78 = scmp.ne.s32.totalorder %s66, %s67
    %p79 = scmp.eq.s32.totalorder %s15, 1
    %p80 = por %p78, %p79
    %p82 = scmp.ne.s32.totalorder %s67, %s81
    %p83 = scmp.eq.s32.totalorder %s15, 0
    %p84 = por %p82, %p83
    %s85 = ssub.s32 %s9, %s16
    %p86 = scmp.eq.s32.totalorder %s85, 0
    %s88 = sadd.s32 %s87, 1
    %s89 = scalar_select %p86, %s87, %s88
    %p92 = pneg %p86
    %p93 = scmp.eq.s32.totalorder %s9, 1
    %p94 = por %p92, %p93
    %p95 = scmp.ne.s32.totalorder %s87, %s90
    %p96 = scmp.eq.s32.totalorder %s9, 0
    %p97 = por %p95, %p96
    %p98 = scmp.ne.s32.totalorder %s87, %s90
    %p99 = scmp.eq.s32.totalorder %s14, 1
    %p100 = por %p98, %p99
    %p101 = scmp.ne.s32.totalorder %s90, %s91
    %p102 = scmp.eq.s32.totalorder %s14, 0
    %p103 = por %p101, %p102
    %p104 = scmp.ne.s32.totalorder %s90, %s91
    %p105 = scmp.eq.s32.totalorder %s15, 1
    %p106 = por %p104, %p105
    %p108 = scmp.ne.s32.totalorder %s91, %s107
    %p109 = scmp.eq.s32.totalorder %s15, 0
    %p110 = por %p108, %p109
    %p111 = scmp.le.s32.totalorder 1, %s9
    %p112 = scmp.lt.s32.totalorder %s9, 3
    %p113 = pnand %p111, %p112
    %p114 = pneg %p113
    // Predicated region
    $region9: #{_forward_impl.9} parent=5 // pred_check
      _
    $region10: #{_forward_impl.9} parent=5 // pred_check_branch
      %116 = sbr.rel (%p113) target = $region12
    $region11: #{_forward_impl.9} parent=5 // pred_region
      %s117 = ssub.s32 %s9, 1
      // Predicated region
      $region13: #{_forward_impl.9} parent=11 // pred_check
        %p118 = pneg %p56
      $region14: #{_forward_impl.9} parent=11 // pred_check_branch
        %120 = sbr.rel (%p118) target = $region16
      $region15: #{_forward_impl.9} parent=11 // pred_region
        _
      $region16: #{_forward_impl.9} parent=11 // pred_fallthru
        _
      // Predicated region
      $region17: #{_forward_impl.9} parent=11 // pred_check
        %p121 = pneg %p77
      $region18: #{_forward_impl.9} parent=11 // pred_check_branch
        %123 = sbr.rel (%p121) target = $region20
      $region19: #{_forward_impl.9} parent=11 // pred_region
        _
      $region20: #{_forward_impl.9} parent=11 // pred_fallthru
        _
    $region12: #{_forward_impl.9} parent=5 // pred_fallthru
      _
    %p124 = scmp.lt.s32.totalorder %s9, 2
    // Predicated region
    $region21: #{_forward_impl.9} parent=5 // pred_check
      %p125 = pneg %p124
    $region22: #{_forward_impl.9} parent=5 // pred_check_branch
      %127 = sbr.rel (%p125) target = $region24
    $region23: #{_forward_impl.9} parent=5 // pred_region
      // Predicated region
      $region25: #{_forward_impl.9} parent=23 // pred_check
        %p128 = pneg %p29
      $region26: #{_forward_impl.9} parent=23 // pred_check_branch
        %130 = sbr.rel (%p128) target = $region28
      $region27: #{_forward_impl.9} parent=23 // pred_region
        %p131 = scmp.lt.s32.totalorder %s9, 1
        %s132 = scalar_select %p131, %s9, 1
        %s133 = smul.addr %s132, 37
        %s134 = smul.addr %s133, 8
        %s135 = scalar_lea.vmem %s0, %s134
      $region28: #{_forward_impl.9} parent=23 // pred_fallthru
        _
    $region24: #{_forward_impl.9} parent=5 // pred_fallthru
      _
    %p136 = scmp.le.s32.totalorder 1, %s9
    %p137 = scmp.lt.s32.totalorder %s9, 3
    %p138 = pnand %p136, %p137
    %p139 = pneg %p138
    // Predicated region
    $region29: #{_forward_impl.9} parent=5 // pred_check
      _
    $region30: #{_forward_impl.9} parent=5 // pred_check_branch
      %141 = sbr.rel (%p138) target = $region32
    $region31: #{_forward_impl.9} parent=5 // pred_region
      %s142 = ssub.s32 %s9, 1
      %p143 = scmp.lt.s32.totalorder %s14, 1
      %s144 = scalar_select %p143, %s14, 1
      %s145 = smul.addr %s144, 37
      %s146 = smul.addr %s145, 8
      %s147 = scalar_lea.vmem %s0, %s146
      %p148 = pneg %p35
      %p149 = pneg %p32
      %p150 = pneg %p56
      %p151 = pneg %p53
      %p152 = pneg %p77
      %p153 = pneg %p74
      %p154 = pneg %p103
      %p155 = pneg %p100
      %p156 = scmp.lt.s32.totalorder %s14, 1
      %s157 = scalar_select %p156, %s14, 1
      %s158 = smul.addr %s157, 32
      %s159 = smul.addr %s158, 8
      %s160 = scalar_lea.vmem %s3, %s159
      %p161 = scmp.lt.s32.totalorder %s14, 1
      %s162 = scalar_select %p161, %s14, 1
      %s163 = smul.addr %s162, 37
      %s164 = smul.addr %s163, 8
      %s165 = scalar_lea.vmem %s0, %s164
      %p166 = scmp.lt.s32.totalorder %s14, 1
      %s167 = scalar_select %p166, %s14, 1
      %s168 = smul.addr %s167, 32
      %s169 = smul.addr %s168, 8
      %s170 = scalar_lea.vmem %s3, %s169
      %v171 = vld [vmem:[%s165] sm:$0xff]
      %v172 = vld [vmem:[%s165 + $0x8] sm:$0xff]
      %v173 = vld [vmem:[%s165 + $0x10] sm:$0xff]
      %v174 = vld [vmem:[%s165 + $0x18] sm:$0xff]
      %v175 = vld [vmem:[%s165 + $0x20] sm:$0xff]
      %v176 = vld [vmem:[%s165 + $0x28] sm:$0xff]
      %v177 = vld [vmem:[%s165 + $0x30] sm:$0xff]
      %v178 = vld [vmem:[%s165 + $0x38] sm:$0xff]
      %v179 = vld [vmem:[%s165 + $0x40] sm:$0xff]
      %v180 = vld [vmem:[%s165 + $0x48] sm:$0xff]
      %v181 = vld [vmem:[%s165 + $0x50] sm:$0xff]
      %v182 = vld [vmem:[%s165 + $0x58] sm:$0xff]
      %v183 = vld [vmem:[%s165 + $0x60] sm:$0xff]
      %v184 = vld [vmem:[%s165 + $0x68] sm:$0xff]
      %v185 = vld [vmem:[%s165 + $0x70] sm:$0xff]
      %v186 = vld [vmem:[%s165 + $0x78] sm:$0xff]
      %v187 = vld [vmem:[%s165 + $0x80] sm:$0xff]
      %v188 = vld [vmem:[%s165 + $0x88] sm:$0xff]
      %v189 = vld [vmem:[%s165 + $0x90] sm:$0xff]
      %v190 = vld [vmem:[%s165 + $0x98] sm:$0xff]
      %v191 = vld [vmem:[%s165 + $0xa0] sm:$0xff]
      %v192 = vld [vmem:[%s165 + $0xa8] sm:$0xff]
      %v193 = vld [vmem:[%s165 + $0xb0] sm:$0xff]
      %v194 = vld [vmem:[%s165 + $0xb8] sm:$0xff]
      %v195 = vld [vmem:[%s165 + $0xc0] sm:$0xff]
      %v196 = vld [vmem:[%s165 + $0xc8] sm:$0xff]
      %v197 = vld [vmem:[%s165 + $0xd0] sm:$0xff]
      %v198 = vld [vmem:[%s165 + $0xd8] sm:$0xff]
      %v199 = vld [vmem:[%s165 + $0xe0] sm:$0xff]
      %v200 = vld [vmem:[%s165 + $0xe8] sm:$0xff]
      %v201 = vld [vmem:[%s165 + $0xf0] sm:$0xff]
      %v202 = vld [vmem:[%s165 + $0xf8] sm:$0xff]
      %v203 = vld [vmem:[%s1] sm:$0xff]
      %v204 = vld [vmem:[%s1 + $0x8] sm:$0xff]
      %v205 = vld [vmem:[%s1 + $0x10] sm:$0xff]
      %v206 = vld [vmem:[%s1 + $0x18] sm:$0xff]
      %v207 = vld [vmem:[%s1 + $0x20] sm:$0xff]
      %v208 = vld [vmem:[%s1 + $0x28] sm:$0xff]
      %v209 = vld [vmem:[%s1 + $0x30] sm:$0xff]
      %v210 = vld [vmem:[%s1 + $0x38] sm:$0xff]
      %v211 = vld [vmem:[%s1 + $0x40] sm:$0xff]
      %v212 = vld [vmem:[%s1 + $0x48] sm:$0xff]
      %v213 = vld [vmem:[%s1 + $0x50] sm:$0xff]
      %v214 = vld [vmem:[%s1 + $0x58] sm:$0xff]
      %v215 = vld [vmem:[%s1 + $0x60] sm:$0xff]
      %v216 = vld [vmem:[%s1 + $0x68] sm:$0xff]
      %v217 = vld [vmem:[%s1 + $0x70] sm:$0xff]
      %v218 = vld [vmem:[%s1 + $0x78] sm:$0xff]
      %v219 = vld [vmem:[%s1 + $0x80] sm:$0xff]
      %v220 = vld [vmem:[%s1 + $0x88] sm:$0xff]
      %v221 = vld [vmem:[%s1 + $0x90] sm:$0xff]
      %v222 = vld [vmem:[%s1 + $0x98] sm:$0xff]
      %v223 = vld [vmem:[%s1 + $0xa0] sm:$0xff]
      %v224 = vld [vmem:[%s1 + $0xa8] sm:$0xff]
      %v225 = vld [vmem:[%s1 + $0xb0] sm:$0xff]
      %v226 = vld [vmem:[%s1 + $0xb8] sm:$0xff]
      %v227 = vld [vmem:[%s1 + $0xc0] sm:$0xff]
      %v228 = vld [vmem:[%s1 + $0xc8] sm:$0xff]
      %v229 = vld [vmem:[%s1 + $0xd0] sm:$0xff]
      %v230 = vld [vmem:[%s1 + $0xd8] sm:$0xff]
      %v231 = vld [vmem:[%s1 + $0xe0] sm:$0xff]
      %v232 = vld [vmem:[%s1 + $0xe8] sm:$0xff]
      %v233 = vld [vmem:[%s1 + $0xf0] sm:$0xff]
      %v234 = vld [vmem:[%s1 + $0xf8] sm:$0xff]
      %236 = vset.pattern.permute.xlu0 0
      %237 = vperm.xlu0 %236, %v203
      %v238 = vpop.permute.xlu0 %237
      %241 = vset.pattern.permute.xlu0 0
      %242 = vperm.xlu0 %241, %v204
      %v243 = vpop.permute.xlu0 %242
      %246 = vset.pattern.permute.xlu0 0
      %247 = vperm.xlu0 %246, %v205
      %v248 = vpop.permute.xlu0 %247
      %251 = vset.pattern.permute.xlu0 0
      %252 = vperm.xlu0 %251, %v206
      %v253 = vpop.permute.xlu0 %252
      %256 = vset.pattern.permute.xlu0 0
      %257 = vperm.xlu0 %256, %v207
      %v258 = vpop.permute.xlu0 %257
      %261 = vset.pattern.permute.xlu0 0
      %262 = vperm.xlu0 %261, %v208
      %v263 = vpop.permute.xlu0 %262
      %266 = vset.pattern.permute.xlu0 0
      %267 = vperm.xlu0 %266, %v209
      %v268 = vpop.permute.xlu0 %267
      %271 = vset.pattern.permute.xlu0 0
      %272 = vperm.xlu0 %271, %v210
      %v273 = vpop.permute.xlu0 %272
      %276 = vset.pattern.permute.xlu0 0
      %277 = vperm.xlu0 %276, %v211
      %v278 = vpop.permute.xlu0 %277
      %281 = vset.pattern.permute.xlu0 0
      %282 = vperm.xlu0 %281, %v212
      %v283 = vpop.permute.xlu0 %282
      %286 = vset.pattern.permute.xlu0 0
      %287 = vperm.xlu0 %286, %v213
      %v288 = vpop.permute.xlu0 %287
      %291 = vset.pattern.permute.xlu0 0
      %292 = vperm.xlu0 %291, %v214
      %v293 = vpop.permute.xlu0 %292
      %296 = vset.pattern.permute.xlu0 0
      %297 = vperm.xlu0 %296, %v215
      %v298 = vpop.permute.xlu0 %297
      %301 = vset.pattern.permute.xlu0 0
      %302 = vperm.xlu0 %301, %v216
      %v303 = vpop.permute.xlu0 %302
      %306 = vset.pattern.permute.xlu0 0
      %307 = vperm.xlu0 %306, %v217
      %v308 = vpop.permute.xlu0 %307
      %311 = vset.pattern.permute.xlu0 0
      %312 = vperm.xlu0 %311, %v218
      %v313 = vpop.permute.xlu0 %312
      %316 = vset.pattern.permute.xlu0 0
      %317 = vperm.xlu0 %316, %v219
      %v318 = vpop.permute.xlu0 %317
      %321 = vset.pattern.permute.xlu0 0
      %322 = vperm.xlu0 %321, %v220
      %v323 = vpop.permute.xlu0 %322
      %326 = vset.pattern.permute.xlu0 0
      %327 = vperm.xlu0 %326, %v221
      %v328 = vpop.permute.xlu0 %327
      %331 = vset.pattern.permute.xlu0 0
      %332 = vperm.xlu0 %331, %v222
      %v333 = vpop.permute.xlu0 %332
      %336 = vset.pattern.permute.xlu0 0
      %337 = vperm.xlu0 %336, %v223
      %v338 = vpop.permute.xlu0 %337
      %341 = vset.pattern.permute.xlu0 0
      %342 = vperm.xlu0 %341, %v224
      %v343 = vpop.permute.xlu0 %342
      %346 = vset.pattern.permute.xlu0 0
      %347 = vperm.xlu0 %346, %v225
      %v348 = vpop.permute.xlu0 %347
      %351 = vset.pattern.permute.xlu0 0
      %352 = vperm.xlu0 %351, %v226
      %v353 = vpop.permute.xlu0 %352
      %356 = vset.pattern.permute.xlu0 0
      %357 = vperm.xlu0 %356, %v227
      %v358 = vpop.permute.xlu0 %357
      %361 = vset.pattern.permute.xlu0 0
      %362 = vperm.xlu0 %361, %v228
      %v363 = vpop.permute.xlu0 %362
      %366 = vset.pattern.permute.xlu0 0
      %367 = vperm.xlu0 %366, %v229
      %v368 = vpop.permute.xlu0 %367
      %371 = vset.pattern.permute.xlu0 0
      %372 = vperm.xlu0 %371, %v230
      %v373 = vpop.permute.xlu0 %372
      %376 = vset.pattern.permute.xlu0 0
      %377 = vperm.xlu0 %376, %v231
      %v378 = vpop.permute.xlu0 %377
      %381 = vset.pattern.permute.xlu0 0
      %382 = vperm.xlu0 %381, %v232
      %v383 = vpop.permute.xlu0 %382
      %386 = vset.pattern.permute.xlu0 0
      %387 = vperm.xlu0 %386, %v233
      %v388 = vpop.permute.xlu0 %387
      %391 = vset.pattern.permute.xlu0 0
      %392 = vperm.xlu0 %391, %v234
      %v393 = vpop.permute.xlu0 %392
      %v395 = vmul.f32 %v171, %v238
      %v396 = vmul.f32 %v172, %v243
      %v397 = vmul.f32 %v173, %v248
      %v398 = vmul.f32 %v174, %v253
      %v399 = vmul.f32 %v175, %v258
      %v400 = vmul.f32 %v176, %v263
      %v401 = vmul.f32 %v177, %v268
      %v402 = vmul.f32 %v178, %v273
      %v403 = vmul.f32 %v179, %v278
      %v404 = vmul.f32 %v180, %v283
      %v405 = vmul.f32 %v181, %v288
      %v406 = vmul.f32 %v182, %v293
      %v407 = vmul.f32 %v183, %v298
      %v408 = vmul.f32 %v184, %v303
      %v409 = vmul.f32 %v185, %v308
      %v410 = vmul.f32 %v186, %v313
      %v411 = vmul.f32 %v187, %v318
      %v412 = vmul.f32 %v188, %v323
      %v413 = vmul.f32 %v189, %v328
      %v414 = vmul.f32 %v190, %v333
      %v415 = vmul.f32 %v191, %v338
      %v416 = vmul.f32 %v192, %v343
      %v417 = vmul.f32 %v193, %v348
      %v418 = vmul.f32 %v194, %v353
      %v419 = vmul.f32 %v195, %v358
      %v420 = vmul.f32 %v196, %v363
      %v421 = vmul.f32 %v197, %v368
      %v422 = vmul.f32 %v198, %v373
      %v423 = vmul.f32 %v199, %v378
      %v424 = vmul.f32 %v200, %v383
      %v425 = vmul.f32 %v201, %v388
      %v426 = vmul.f32 %v202, %v393
      %v427 = vadd.f32 %v395, 0.0
      %v428 = vadd.f32 %v396, 0.0
      %v429 = vadd.f32 %v397, 0.0
      %v430 = vadd.f32 %v398, 0.0
      %v431 = vadd.f32 %v399, 0.0
      %v432 = vadd.f32 %v400, 0.0
      %v433 = vadd.f32 %v401, 0.0
      %v434 = vadd.f32 %v402, 0.0
      %v435 = vadd.f32 %v403, 0.0
      %v436 = vadd.f32 %v404, 0.0
      %v437 = vadd.f32 %v405, 0.0
      %v438 = vadd.f32 %v406, 0.0
      %v439 = vadd.f32 %v407, 0.0
      %v440 = vadd.f32 %v408, 0.0
      %v441 = vadd.f32 %v409, 0.0
      %v442 = vadd.f32 %v410, 0.0
      %v443 = vadd.f32 %v411, 0.0
      %v444 = vadd.f32 %v412, 0.0
      %v445 = vadd.f32 %v413, 0.0
      %v446 = vadd.f32 %v414, 0.0
      %v447 = vadd.f32 %v415, 0.0
      %v448 = vadd.f32 %v416, 0.0
      %v449 = vadd.f32 %v417, 0.0
      %v450 = vadd.f32 %v418, 0.0
      %v451 = vadd.f32 %v419, 0.0
      %v452 = vadd.f32 %v420, 0.0
      %v453 = vadd.f32 %v421, 0.0
      %v454 = vadd.f32 %v422, 0.0
      %v455 = vadd.f32 %v423, 0.0
      %v456 = vadd.f32 %v424, 0.0
      %v457 = vadd.f32 %v425, 0.0
      %v458 = vadd.f32 %v426, 0.0
      %v459 = vld [vmem:[%s165 + $0x1] sm:$0xff]
      %v460 = vld [vmem:[%s165 + $0x9] sm:$0xff]
      %v461 = vld [vmem:[%s165 + $0x11] sm:$0xff]
      %v462 = vld [vmem:[%s165 + $0x19] sm:$0xff]
      %v463 = vld [vmem:[%s165 + $0x21] sm:$0xff]
      %v464 = vld [vmem:[%s165 + $0x29] sm:$0xff]
      %v465 = vld [vmem:[%s165 + $0x31] sm:$0xff]
      %v466 = vld [vmem:[%s165 + $0x39] sm:$0xff]
      %v467 = vld [vmem:[%s165 + $0x41] sm:$0xff]
      %v468 = vld [vmem:[%s165 + $0x49] sm:$0xff]
      %v469 = vld [vmem:[%s165 + $0x51] sm:$0xff]
      %v470 = vld [vmem:[%s165 + $0x59] sm:$0xff]
      %v471 = vld [vmem:[%s165 + $0x61] sm:$0xff]
      %v472 = vld [vmem:[%s165 + $0x69] sm:$0xff]
      %v473 = vld [vmem:[%s165 + $0x71] sm:$0xff]
      %v474 = vld [vmem:[%s165 + $0x79] sm:$0xff]
      %v475 = vld [vmem:[%s165 + $0x81] sm:$0xff]
      %v476 = vld [vmem:[%s165 + $0x89] sm:$0xff]
      %v477 = vld [vmem:[%s165 + $0x91] sm:$0xff]
      %v478 = vld [vmem:[%s165 + $0x99] sm:$0xff]
      %v479 = vld [vmem:[%s165 + $0xa1] sm:$0xff]
      %v480 = vld [vmem:[%s165 + $0xa9] sm:$0xff]
      %v481 = vld [vmem:[%s165 + $0xb1] sm:$0xff]
      %v482 = vld [vmem:[%s165 + $0xb9] sm:$0xff]
      %v483 = vld [vmem:[%s165 + $0xc1] sm:$0xff]
      %v484 = vld [vmem:[%s165 + $0xc9] sm:$0xff]
      %v485 = vld [vmem:[%s165 + $0xd1] sm:$0xff]
      %v486 = vld [vmem:[%s165 + $0xd9] sm:$0xff]
      %v487 = vld [vmem:[%s165 + $0xe1] sm:$0xff]
      %v488 = vld [vmem:[%s165 + $0xe9] sm:$0xff]
      %v489 = vld [vmem:[%s165 + $0xf1] sm:$0xff]
      %v490 = vld [vmem:[%s165 + $0xf9] sm:$0xff]
      %491 = vset.pattern.permute.xlu0 1
      %492 = vperm.xlu0 %491, %v203
      %v493 = vpop.permute.xlu0 %492
      %495 = vset.pattern.permute.xlu0 1
      %496 = vperm.xlu0 %495, %v204
      %v497 = vpop.permute.xlu0 %496
      %499 = vset.pattern.permute.xlu0 1
      %500 = vperm.xlu0 %499, %v205
      %v501 = vpop.permute.xlu0 %500
      %503 = vset.pattern.permute.xlu0 1
      %504 = vperm.xlu0 %503, %v206
      %v505 = vpop.permute.xlu0 %504
      %507 = vset.pattern.permute.xlu0 1
      %508 = vperm.xlu0 %507, %v207
      %v509 = vpop.permute.xlu0 %508
      %511 = vset.pattern.permute.xlu0 1
      %512 = vperm.xlu0 %511, %v208
      %v513 = vpop.permute.xlu0 %512
      %515 = vset.pattern.permute.xlu0 1
      %516 = vperm.xlu0 %515, %v209
      %v517 = vpop.permute.xlu0 %516
      %519 = vset.pattern.permute.xlu0 1
      %520 = vperm.xlu0 %519, %v210
      %v521 = vpop.permute.xlu0 %520
      %523 = vset.pattern.permute.xlu0 1
      %524 = vperm.xlu0 %523, %v211
      %v525 = vpop.permute.xlu0 %524
      %527 = vset.pattern.permute.xlu0 1
      %528 = vperm.xlu0 %527, %v212
      %v529 = vpop.permute.xlu0 %528
      %531 = vset.pattern.permute.xlu0 1
      %532 = vperm.xlu0 %531, %v213
      %v533 = vpop.permute.xlu0 %532
      %535 = vset.pattern.permute.xlu0 1
      %536 = vperm.xlu0 %535, %v214
      %v537 = vpop.permute.xlu0 %536
      %539 = vset.pattern.permute.xlu0 1
      %540 = vperm.xlu0 %539, %v215
      %v541 = vpop.permute.xlu0 %540
      %543 = vset.pattern.permute.xlu0 1
      %544 = vperm.xlu0 %543, %v216
      %v545 = vpop.permute.xlu0 %544
      %547 = vset.pattern.permute.xlu0 1
      %548 = vperm.xlu0 %547, %v217
      %v549 = vpop.permute.xlu0 %548
      %551 = vset.pattern.permute.xlu0 1
      %552 = vperm.xlu0 %551, %v218
      %v553 = vpop.permute.xlu0 %552
      %555 = vset.pattern.permute.xlu0 1
      %556 = vperm.xlu0 %555, %v219
      %v557 = vpop.permute.xlu0 %556
      %559 = vset.pattern.permute.xlu0 1
      %560 = vperm.xlu0 %559, %v220
      %v561 = vpop.permute.xlu0 %560
      %563 = vset.pattern.permute.xlu0 1
      %564 = vperm.xlu0 %563, %v221
      %v565 = vpop.permute.xlu0 %564
      %567 = vset.pattern.permute.xlu0 1
      %568 = vperm.xlu0 %567, %v222
      %v569 = vpop.permute.xlu0 %568
      %571 = vset.pattern.permute.xlu0 1
      %572 = vperm.xlu0 %571, %v223
      %v573 = vpop.permute.xlu0 %572
      %575 = vset.pattern.permute.xlu0 1
      %576 = vperm.xlu0 %575, %v224
      %v577 = vpop.permute.xlu0 %576
      %579 = vset.pattern.permute.xlu0 1
      %580 = vperm.xlu0 %579, %v225
      %v581 = vpop.permute.xlu0 %580
      %583 = vset.pattern.permute.xlu0 1
      %584 = vperm.xlu0 %583, %v226
      %v585 = vpop.permute.xlu0 %584
      %587 = vset.pattern.permute.xlu0 1
      %588 = vperm.xlu0 %587, %v227
      %v589 = vpop.permute.xlu0 %588
      %591 = vset.pattern.permute.xlu0 1
      %592 = vperm.xlu0 %591, %v228
      %v593 = vpop.permute.xlu0 %592
      %595 = vset.pattern.permute.xlu0 1
      %596 = vperm.xlu0 %595, %v229
      %v597 = vpop.permute.xlu0 %596
      %599 = vset.pattern.permute.xlu0 1
      %600 = vperm.xlu0 %599, %v230
      %v601 = vpop.permute.xlu0 %600
      %603 = vset.pattern.permute.xlu0 1
      %604 = vperm.xlu0 %603, %v231
      %v605 = vpop.permute.xlu0 %604
      %607 = vset.pattern.permute.xlu0 1
      %608 = vperm.xlu0 %607, %v232
      %v609 = vpop.permute.xlu0 %608
      %611 = vset.pattern.permute.xlu0 1
      %612 = vperm.xlu0 %611, %v233
      %v613 = vpop.permute.xlu0 %612
      %615 = vset.pattern.permute.xlu0 1
      %616 = vperm.xlu0 %615, %v234
      %v617 = vpop.permute.xlu0 %616
      %v619 = vmul.f32 %v459, %v493
      %v620 = vmul.f32 %v460, %v497
      %v621 = vmul.f32 %v461, %v501
      %v622 = vmul.f32 %v462, %v505
      %v623 = vmul.f32 %v463, %v509
      %v624 = vmul.f32 %v464, %v513
      %v625 = vmul.f32 %v465, %v517
      %v626 = vmul.f32 %v466, %v521
      %v627 = vmul.f32 %v467, %v525
      %v628 = vmul.f32 %v468, %v529
      %v629 = vmul.f32 %v469, %v533
      %v630 = vmul.f32 %v470, %v537
      %v631 = vmul.f32 %v471, %v541
      %v632 = vmul.f32 %v472, %v545
      %v633 = vmul.f32 %v473, %v549
      %v634 = vmul.f32 %v474, %v553
      %v635 = vmul.f32 %v475, %v557
      %v636 = vmul.f32 %v476, %v561
      %v637 = vmul.f32 %v477, %v565
      %v638 = vmul.f32 %v478, %v569
      %v639 = vmul.f32 %v479, %v573
      %v640 = vmul.f32 %v480, %v577
      %v641 = vmul.f32 %v481, %v581
      %v642 = vmul.f32 %v482, %v585
      %v643 = vmul.f32 %v483, %v589
      %v644 = vmul.f32 %v484, %v593
      %v645 = vmul.f32 %v485, %v597
      %v646 = vmul.f32 %v486, %v601
      %v647 = vmul.f32 %v487, %v605
      %v648 = vmul.f32 %v488, %v609
      %v649 = vmul.f32 %v489, %v613
      %v650 = vmul.f32 %v490, %v617
      %v651 = vadd.f32 %v427, %v619
      %v652 = vadd.f32 %v428, %v620
      %v653 = vadd.f32 %v429, %v621
      %v654 = vadd.f32 %v430, %v622
      %v655 = vadd.f32 %v431, %v623
      %v656 = vadd.f32 %v432, %v624
      %v657 = vadd.f32 %v433, %v625
      %v658 = vadd.f32 %v434, %v626
      %v659 = vadd.f32 %v435, %v627
      %v660 = vadd.f32 %v436, %v628
      %v661 = vadd.f32 %v437, %v629
      %v662 = vadd.f32 %v438, %v630
      %v663 = vadd.f32 %v439, %v631
      %v664 = vadd.f32 %v440, %v632
      %v665 = vadd.f32 %v441, %v633
      %v666 = vadd.f32 %v442, %v634
      %v667 = vadd.f32 %v443, %v635
      %v668 = vadd.f32 %v444, %v636
      %v669 = vadd.f32 %v445, %v637
      %v670 = vadd.f32 %v446, %v638
      %v671 = vadd.f32 %v447, %v639
      %v672 = vadd.f32 %v448, %v640
      %v673 = vadd.f32 %v449, %v641
      %v674 = vadd.f32 %v450, %v642
      %v675 = vadd.f32 %v451, %v643
      %v676 = vadd.f32 %v452, %v644
      %v677 = vadd.f32 %v453, %v645
      %v678 = vadd.f32 %v454, %v646
      %v679 = vadd.f32 %v455, %v647
      %v680 = vadd.f32 %v456, %v648
      %v681 = vadd.f32 %v457, %v649
      %v682 = vadd.f32 %v458, %v650
      %v683 = vld [vmem:[%s165 + $0x2] sm:$0xff]
      %v684 = vld [vmem:[%s165 + $0xa] sm:$0xff]
      %v685 = vld [vmem:[%s165 + $0x12] sm:$0xff]
      %v686 = vld [vmem:[%s165 + $0x1a] sm:$0xff]
      %v687 = vld [vmem:[%s165 + $0x22] sm:$0xff]
      %v688 = vld [vmem:[%s165 + $0x2a] sm:$0xff]
      %v689 = vld [vmem:[%s165 + $0x32] sm:$0xff]
      %v690 = vld [vmem:[%s165 + $0x3a] sm:$0xff]
      %v691 = vld [vmem:[%s165 + $0x42] sm:$0xff]
      %v692 = vld [vmem:[%s165 + $0x4a] sm:$0xff]
      %v693 = vld [vmem:[%s165 + $0x52] sm:$0xff]
      %v694 = vld [vmem:[%s165 + $0x5a] sm:$0xff]
      %v695 = vld [vmem:[%s165 + $0x62] sm:$0xff]
      %v696 = vld [vmem:[%s165 + $0x6a] sm:$0xff]
      %v697 = vld [vmem:[%s165 + $0x72] sm:$0xff]
      %v698 = vld [vmem:[%s165 + $0x7a] sm:$0xff]
      %v699 = vld [vmem:[%s165 + $0x82] sm:$0xff]
      %v700 = vld [vmem:[%s165 + $0x8a] sm:$0xff]
      %v701 = vld [vmem:[%s165 + $0x92] sm:$0xff]
      %v702 = vld [vmem:[%s165 + $0x9a] sm:$0xff]
      %v703 = vld [vmem:[%s165 + $0xa2] sm:$0xff]
      %v704 = vld [vmem:[%s165 + $0xaa] sm:$0xff]
      %v705 = vld [vmem:[%s165 + $0xb2] sm:$0xff]
      %v706 = vld [vmem:[%s165 + $0xba] sm:$0xff]
      %v707 = vld [vmem:[%s165 + $0xc2] sm:$0xff]
      %v708 = vld [vmem:[%s165 + $0xca] sm:$0xff]
      %v709 = vld [vmem:[%s165 + $0xd2] sm:$0xff]
      %v710 = vld [vmem:[%s165 + $0xda] sm:$0xff]
      %v711 = vld [vmem:[%s165 + $0xe2] sm:$0xff]
      %v712 = vld [vmem:[%s165 + $0xea] sm:$0xff]
      %v713 = vld [vmem:[%s165 + $0xf2] sm:$0xff]
      %v714 = vld [vmem:[%s165 + $0xfa] sm:$0xff]
      %715 = vset.pattern.permute.xlu0 2
      %716 = vperm.xlu0 %715, %v203
      %v717 = vpop.permute.xlu0 %716
      %719 = vset.pattern.permute.xlu0 2
      %720 = vperm.xlu0 %719, %v204
      %v721 = vpop.permute.xlu0 %720
      %723 = vset.pattern.permute.xlu0 2
      %724 = vperm.xlu0 %723, %v205
      %v725 = vpop.permute.xlu0 %724
      %727 = vset.pattern.permute.xlu0 2
      %728 = vperm.xlu0 %727, %v206
      %v729 = vpop.permute.xlu0 %728
      %731 = vset.pattern.permute.xlu0 2
      %732 = vperm.xlu0 %731, %v207
      %v733 = vpop.permute.xlu0 %732
      %735 = vset.pattern.permute.xlu0 2
      %736 = vperm.xlu0 %735, %v208
      %v737 = vpop.permute.xlu0 %736
      %739 = vset.pattern.permute.xlu0 2
      %740 = vperm.xlu0 %739, %v209
      %v741 = vpop.permute.xlu0 %740
      %743 = vset.pattern.permute.xlu0 2
      %744 = vperm.xlu0 %743, %v210
      %v745 = vpop.permute.xlu0 %744
      %747 = vset.pattern.permute.xlu0 2
      %748 = vperm.xlu0 %747, %v211
      %v749 = vpop.permute.xlu0 %748
      %751 = vset.pattern.permute.xlu0 2
      %752 = vperm.xlu0 %751, %v212
      %v753 = vpop.permute.xlu0 %752
      %755 = vset.pattern.permute.xlu0 2
      %756 = vperm.xlu0 %755, %v213
      %v757 = vpop.permute.xlu0 %756
      %759 = vset.pattern.permute.xlu0 2
      %760 = vperm.xlu0 %759, %v214
      %v761 = vpop.permute.xlu0 %760
      %763 = vset.pattern.permute.xlu0 2
      %764 = vperm.xlu0 %763, %v215
      %v765 = vpop.permute.xlu0 %764
      %767 = vset.pattern.permute.xlu0 2
      %768 = vperm.xlu0 %767, %v216
      %v769 = vpop.permute.xlu0 %768
      %771 = vset.pattern.permute.xlu0 2
      %772 = vperm.xlu0 %771, %v217
      %v773 = vpop.permute.xlu0 %772
      %775 = vset.pattern.permute.xlu0 2
      %776 = vperm.xlu0 %775, %v218
      %v777 = vpop.permute.xlu0 %776
      %779 = vset.pattern.permute.xlu0 2
      %780 = vperm.xlu0 %779, %v219
      %v781 = vpop.permute.xlu0 %780
      %783 = vset.pattern.permute.xlu0 2
      %784 = vperm.xlu0 %783, %v220
      %v785 = vpop.permute.xlu0 %784
      %787 = vset.pattern.permute.xlu0 2
      %788 = vperm.xlu0 %787, %v221
      %v789 = vpop.permute.xlu0 %788
      %791 = vset.pattern.permute.xlu0 2
      %792 = vperm.xlu0 %791, %v222
      %v793 = vpop.permute.xlu0 %792
      %795 = vset.pattern.permute.xlu0 2
      %796 = vperm.xlu0 %795, %v223
      %v797 = vpop.permute.xlu0 %796
      %799 = vset.pattern.permute.xlu0 2
      %800 = vperm.xlu0 %799, %v224
      %v801 = vpop.permute.xlu0 %800
      %803 = vset.pattern.permute.xlu0 2
      %804 = vperm.xlu0 %803, %v225
      %v805 = vpop.permute.xlu0 %804
      %807 = vset.pattern.permute.xlu0 2
      %808 = vperm.xlu0 %807, %v226
      %v809 = vpop.permute.xlu0 %808
      %811 = vset.pattern.permute.xlu0 2
      %812 = vperm.xlu0 %811, %v227
      %v813 = vpop.permute.xlu0 %812
      %815 = vset.pattern.permute.xlu0 2
      %816 = vperm.xlu0 %815, %v228
      %v817 = vpop.permute.xlu0 %816
      %819 = vset.pattern.permute.xlu0 2
      %820 = vperm.xlu0 %819, %v229
      %v821 = vpop.permute.xlu0 %820
      %823 = vset.pattern.permute.xlu0 2
      %824 = vperm.xlu0 %823, %v230
      %v825 = vpop.permute.xlu0 %824
      %827 = vset.pattern.permute.xlu0 2
      %828 = vperm.xlu0 %827, %v231
      %v829 = vpop.permute.xlu0 %828
      %831 = vset.pattern.permute.xlu0 2
      %832 = vperm.xlu0 %831, %v232
      %v833 = vpop.permute.xlu0 %832
      %835 = vset.pattern.permute.xlu0 2
      %836 = vperm.xlu0 %835, %v233
      %v837 = vpop.permute.xlu0 %836
      %839 = vset.pattern.permute.xlu0 2
      %840 = vperm.xlu0 %839, %v234
      %v841 = vpop.permute.xlu0 %840
      %v843 = vmul.f32 %v683, %v717
      %v844 = vmul.f32 %v684, %v721
      %v845 = vmul.f32 %v685, %v725
      %v846 = vmul.f32 %v686, %v729
      %v847 = vmul.f32 %v687, %v733
      %v848 = vmul.f32 %v688, %v737
      %v849 = vmul.f32 %v689, %v741
      %v850 = vmul.f32 %v690, %v745
      %v851 = vmul.f32 %v691, %v749
      %v852 = vmul.f32 %v692, %v753
      %v853 = vmul.f32 %v693, %v757
      %v854 = vmul.f32 %v694, %v761
      %v855 = vmul.f32 %v695, %v765
      %v856 = vmul.f32 %v696, %v769
      %v857 = vmul.f32 %v697, %v773
      %v858 = vmul.f32 %v698, %v777
      %v859 = vmul.f32 %v699, %v781
      %v860 = vmul.f32 %v700, %v785
      %v861 = vmul.f32 %v701, %v789
      %v862 = vmul.f32 %v702, %v793
      %v863 = vmul.f32 %v703, %v797
      %v864 = vmul.f32 %v704, %v801
      %v865 = vmul.f32 %v705, %v805
      %v866 = vmul.f32 %v706, %v809
      %v867 = vmul.f32 %v707, %v813
      %v868 = vmul.f32 %v708, %v817
      %v869 = vmul.f32 %v709, %v821
      %v870 = vmul.f32 %v710, %v825
      %v871 = vmul.f32 %v711, %v829
      %v872 = vmul.f32 %v712, %v833
      %v873 = vmul.f32 %v713, %v837
      %v874 = vmul.f32 %v714, %v841
      %v875 = vadd.f32 %v651, %v843
      %v876 = vadd.f32 %v652, %v844
      %v877 = vadd.f32 %v653, %v845
      %v878 = vadd.f32 %v654, %v846
      %v879 = vadd.f32 %v655, %v847
      %v880 = vadd.f32 %v656, %v848
      %v881 = vadd.f32 %v657, %v849
      %v882 = vadd.f32 %v658, %v850
      %v883 = vadd.f32 %v659, %v851
      %v884 = vadd.f32 %v660, %v852
      %v885 = vadd.f32 %v661, %v853
      %v886 = vadd.f32 %v662, %v854
      %v887 = vadd.f32 %v663, %v855
      %v888 = vadd.f32 %v664, %v856
      %v889 = vadd.f32 %v665, %v857
      %v890 = vadd.f32 %v666, %v858
      %v891 = vadd.f32 %v667, %v859
      %v892 = vadd.f32 %v668, %v860
      %v893 = vadd.f32 %v669, %v861
      %v894 = vadd.f32 %v670, %v862
      %v895 = vadd.f32 %v671, %v863
      %v896 = vadd.f32 %v672, %v864
      %v897 = vadd.f32 %v673, %v865
      %v898 = vadd.f32 %v674, %v866
      %v899 = vadd.f32 %v675, %v867
      %v900 = vadd.f32 %v676, %v868
      %v901 = vadd.f32 %v677, %v869
      %v902 = vadd.f32 %v678, %v870
      %v903 = vadd.f32 %v679, %v871
      %v904 = vadd.f32 %v680, %v872
      %v905 = vadd.f32 %v681, %v873
      %v906 = vadd.f32 %v682, %v874
      %v907 = vld [vmem:[%s165 + $0x10] sm:$0xff]
      %v908 = vld [vmem:[%s165 + $0x18] sm:$0xff]
      %v909 = vld [vmem:[%s165 + $0x20] sm:$0xff]
      %v910 = vld [vmem:[%s165 + $0x28] sm:$0xff]
      %v911 = vld [vmem:[%s165 + $0x30] sm:$0xff]
      %v912 = vld [vmem:[%s165 + $0x38] sm:$0xff]
      %v913 = vld [vmem:[%s165 + $0x40] sm:$0xff]
      %v914 = vld [vmem:[%s165 + $0x48] sm:$0xff]
      %v915 = vld [vmem:[%s165 + $0x50] sm:$0xff]
      %v916 = vld [vmem:[%s165 + $0x58] sm:$0xff]
      %v917 = vld [vmem:[%s165 + $0x60] sm:$0xff]
      %v918 = vld [vmem:[%s165 + $0x68] sm:$0xff]
      %v919 = vld [vmem:[%s165 + $0x70] sm:$0xff]
      %v920 = vld [vmem:[%s165 + $0x78] sm:$0xff]
      %v921 = vld [vmem:[%s165 + $0x80] sm:$0xff]
      %v922 = vld [vmem:[%s165 + $0x88] sm:$0xff]
      %v923 = vld [vmem:[%s165 + $0x90] sm:$0xff]
      %v924 = vld [vmem:[%s165 + $0x98] sm:$0xff]
      %v925 = vld [vmem:[%s165 + $0xa0] sm:$0xff]
      %v926 = vld [vmem:[%s165 + $0xa8] sm:$0xff]
      %v927 = vld [vmem:[%s165 + $0xb0] sm:$0xff]
      %v928 = vld [vmem:[%s165 + $0xb8] sm:$0xff]
      %v929 = vld [vmem:[%s165 + $0xc0] sm:$0xff]
      %v930 = vld [vmem:[%s165 + $0xc8] sm:$0xff]
      %v931 = vld [vmem:[%s165 + $0xd0] sm:$0xff]
      %v932 = vld [vmem:[%s165 + $0xd8] sm:$0xff]
      %v933 = vld [vmem:[%s165 + $0xe0] sm:$0xff]
      %v934 = vld [vmem:[%s165 + $0xe8] sm:$0xff]
      %v935 = vld [vmem:[%s165 + $0xf0] sm:$0xff]
      %v936 = vld [vmem:[%s165 + $0xf8] sm:$0xff]
      %v937 = vld [vmem:[%s165 + $0x100] sm:$0xff]
      %v938 = vld [vmem:[%s165 + $0x108] sm:$0xff]
      %v939 = vmul.f32 %v907, %v238
      %v940 = vmul.f32 %v908, %v243
      %v941 = vmul.f32 %v909, %v248
      %v942 = vmul.f32 %v910, %v253
      %v943 = vmul.f32 %v911, %v258
      %v944 = vmul.f32 %v912, %v263
      %v945 = vmul.f32 %v913, %v268
      %v946 = vmul.f32 %v914, %v273
      %v947 = vmul.f32 %v915, %v278
      %v948 = vmul.f32 %v916, %v283
      %v949 = vmul.f32 %v917, %v288
      %v950 = vmul.f32 %v918, %v293
      %v951 = vmul.f32 %v919, %v298
      %v952 = vmul.f32 %v920, %v303
      %v953 = vmul.f32 %v921, %v308
      %v954 = vmul.f32 %v922, %v313
      %v955 = vmul.f32 %v923, %v318
      %v956 = vmul.f32 %v924, %v323
      %v957 = vmul.f32 %v925, %v328
      %v958 = vmul.f32 %v926, %v333
      %v959 = vmul.f32 %v927, %v338
      %v960 = vmul.f32 %v928, %v343
      %v961 = vmul.f32 %v929, %v348
      %v962 = vmul.f32 %v930, %v353
      %v963 = vmul.f32 %v931, %v358
      %v964 = vmul.f32 %v932, %v363
      %v965 = vmul.f32 %v933, %v368
      %v966 = vmul.f32 %v934, %v373
      %v967 = vmul.f32 %v935, %v378
      %v968 = vmul.f32 %v936, %v383
      %v969 = vmul.f32 %v937, %v388
      %v970 = vmul.f32 %v938, %v393
      %v971 = vadd.f32 %v875, %v939
      %v972 = vadd.f32 %v876, %v940
      %v973 = vadd.f32 %v877, %v941
      %v974 = vadd.f32 %v878, %v942
      %v975 = vadd.f32 %v879, %v943
      %v976 = vadd.f32 %v880, %v944
      %v977 = vadd.f32 %v881, %v945
      %v978 = vadd.f32 %v882, %v946
      %v979 = vadd.f32 %v883, %v947
      %v980 = vadd.f32 %v884, %v948
      %v981 = vadd.f32 %v885, %v949
      %v982 = vadd.f32 %v886, %v950
      %v983 = vadd.f32 %v887, %v951
      %v984 = vadd.f32 %v888, %v952
      %v985 = vadd.f32 %v889, %v953
      %v986 = vadd.f32 %v890, %v954
      %v987 = vadd.f32 %v891, %v955
      %v988 = vadd.f32 %v892, %v956
      %v989 = vadd.f32 %v893, %v957
      %v990 = vadd.f32 %v894, %v958
      %v991 = vadd.f32 %v895, %v959
      %v992 = vadd.f32 %v896, %v960
      %v993 = vadd.f32 %v897, %v961
      %v994 = vadd.f32 %v898, %v962
      %v995 = vadd.f32 %v899, %v963
      %v996 = vadd.f32 %v900, %v964
      %v997 = vadd.f32 %v901, %v965
      %v998 = vadd.f32 %v902, %v966
      %v999 = vadd.f32 %v903, %v967
      %v1000 = vadd.f32 %v904, %v968
      %v1001 = vadd.f32 %v905, %v969
      %v1002 = vadd.f32 %v906, %v970
      %v1003 = vld [vmem:[%s165 + $0x11] sm:$0xff]
      %v1004 = vld [vmem:[%s165 + $0x19] sm:$0xff]
      %v1005 = vld [vmem:[%s165 + $0x21] sm:$0xff]
      %v1006 = vld [vmem:[%s165 + $0x29] sm:$0xff]
      %v1007 = vld [vmem:[%s165 + $0x31] sm:$0xff]
      %v1008 = vld [vmem:[%s165 + $0x39] sm:$0xff]
      %v1009 = vld [vmem:[%s165 + $0x41] sm:$0xff]
      %v1010 = vld [vmem:[%s165 + $0x49] sm:$0xff]
      %v1011 = vld [vmem:[%s165 + $0x51] sm:$0xff]
      %v1012 = vld [vmem:[%s165 + $0x59] sm:$0xff]
      %v1013 = vld [vmem:[%s165 + $0x61] sm:$0xff]
      %v1014 = vld [vmem:[%s165 + $0x69] sm:$0xff]
      %v1015 = vld [vmem:[%s165 + $0x71] sm:$0xff]
      %v1016 = vld [vmem:[%s165 + $0x79] sm:$0xff]
      %v1017 = vld [vmem:[%s165 + $0x81] sm:$0xff]
      %v1018 = vld [vmem:[%s165 + $0x89] sm:$0xff]
      %v1019 = vld [vmem:[%s165 + $0x91] sm:$0xff]
      %v1020 = vld [vmem:[%s165 + $0x99] sm:$0xff]
      %v1021 = vld [vmem:[%s165 + $0xa1] sm:$0xff]
      %v1022 = vld [vmem:[%s165 + $0xa9] sm:$0xff]
      %v1023 = vld [vmem:[%s165 + $0xb1] sm:$0xff]
      %v1024 = vld [vmem:[%s165 + $0xb9] sm:$0xff]
      %v1025 = vld [vmem:[%s165 + $0xc1] sm:$0xff]
      %v1026 = vld [vmem:[%s165 + $0xc9] sm:$0xff]
      %v1027 = vld [vmem:[%s165 + $0xd1] sm:$0xff]
      %v1028 = vld [vmem:[%s165 + $0xd9] sm:$0xff]
      %v1029 = vld [vmem:[%s165 + $0xe1] sm:$0xff]
      %v1030 = vld [vmem:[%s165 + $0xe9] sm:$0xff]
      %v1031 = vld [vmem:[%s165 + $0xf1] sm:$0xff]
      %v1032 = vld [vmem:[%s165 + $0xf9] sm:$0xff]
      %v1033 = vld [vmem:[%s165 + $0x101] sm:$0xff]
      %v1034 = vld [vmem:[%s165 + $0x109] sm:$0xff]
      %v1035 = vmul.f32 %v1003, %v493
      %v1036 = vmul.f32 %v1004, %v497
      %v1037 = vmul.f32 %v1005, %v501
      %v1038 = vmul.f32 %v1006, %v505
      %v1039 = vmul.f32 %v1007, %v509
      %v1040 = vmul.f32 %v1008, %v513
      %v1041 = vmul.f32 %v1009, %v517
      %v1042 = vmul.f32 %v1010, %v521
      %v1043 = vmul.f32 %v1011, %v525
      %v1044 = vmul.f32 %v1012, %v529
      %v1045 = vmul.f32 %v1013, %v533
      %v1046 = vmul.f32 %v1014, %v537
      %v1047 = vmul.f32 %v1015, %v541
      %v1048 = vmul.f32 %v1016, %v545
      %v1049 = vmul.f32 %v1017, %v549
      %v1050 = vmul.f32 %v1018, %v553
      %v1051 = vmul.f32 %v1019, %v557
      %v1052 = vmul.f32 %v1020, %v561
      %v1053 = vmul.f32 %v1021, %v565
      %v1054 = vmul.f32 %v1022, %v569
      %v1055 = vmul.f32 %v1023, %v573
      %v1056 = vmul.f32 %v1024, %v577
      %v1057 = vmul.f32 %v1025, %v581
      %v1058 = vmul.f32 %v1026, %v585
      %v1059 = vmul.f32 %v1027, %v589
      %v1060 = vmul.f32 %v1028, %v593
      %v1061 = vmul.f32 %v1029, %v597
      %v1062 = vmul.f32 %v1030, %v601
      %v1063 = vmul.f32 %v1031, %v605
      %v1064 = vmul.f32 %v1032, %v609
      %v1065 = vmul.f32 %v1033, %v613
      %v1066 = vmul.f32 %v1034, %v617
      %v1067 = vadd.f32 %v971, %v1035
      %v1068 = vadd.f32 %v972, %v1036
      %v1069 = vadd.f32 %v973, %v1037
      %v1070 = vadd.f32 %v974, %v1038
      %v1071 = vadd.f32 %v975, %v1039
      %v1072 = vadd.f32 %v976, %v1040
      %v1073 = vadd.f32 %v977, %v1041
      %v1074 = vadd.f32 %v978, %v1042
      %v1075 = vadd.f32 %v979, %v1043
      %v1076 = vadd.f32 %v980, %v1044
      %v1077 = vadd.f32 %v981, %v1045
      %v1078 = vadd.f32 %v982, %v1046
      %v1079 = vadd.f32 %v983, %v1047
      %v1080 = vadd.f32 %v984, %v1048
      %v1081 = vadd.f32 %v985, %v1049
      %v1082 = vadd.f32 %v986, %v1050
      %v1083 = vadd.f32 %v987, %v1051
      %v1084 = vadd.f32 %v988, %v1052
      %v1085 = vadd.f32 %v989, %v1053
      %v1086 = vadd.f32 %v990, %v1054
      %v1087 = vadd.f32 %v991, %v1055
      %v1088 = vadd.f32 %v992, %v1056
      %v1089 = vadd.f32 %v993, %v1057
      %v1090 = vadd.f32 %v994, %v1058
      %v1091 = vadd.f32 %v995, %v1059
      %v1092 = vadd.f32 %v996, %v1060
      %v1093 = vadd.f32 %v997, %v1061
      %v1094 = vadd.f32 %v998, %v1062
      %v1095 = vadd.f32 %v999, %v1063
      %v1096 = vadd.f32 %v1000, %v1064
      %v1097 = vadd.f32 %v1001, %v1065
      %v1098 = vadd.f32 %v1002, %v1066
      %v1099 = vld [vmem:[%s165 + $0x12] sm:$0xff]
      %v1100 = vld [vmem:[%s165 + $0x1a] sm:$0xff]
      %v1101 = vld [vmem:[%s165 + $0x22] sm:$0xff]
      %v1102 = vld [vmem:[%s165 + $0x2a] sm:$0xff]
      %v1103 = vld [vmem:[%s165 + $0x32] sm:$0xff]
      %v1104 = vld [vmem:[%s165 + $0x3a] sm:$0xff]
      %v1105 = vld [vmem:[%s165 + $0x42] sm:$0xff]
      %v1106 = vld [vmem:[%s165 + $0x4a] sm:$0xff]
      %v1107 = vld [vmem:[%s165 + $0x52] sm:$0xff]
      %v1108 = vld [vmem:[%s165 + $0x5a] sm:$0xff]
      %v1109 = vld [vmem:[%s165 + $0x62] sm:$0xff]
      %v1110 = vld [vmem:[%s165 + $0x6a] sm:$0xff]
      %v1111 = vld [vmem:[%s165 + $0x72] sm:$0xff]
      %v1112 = vld [vmem:[%s165 + $0x7a] sm:$0xff]
      %v1113 = vld [vmem:[%s165 + $0x82] sm:$0xff]
      %v1114 = vld [vmem:[%s165 + $0x8a] sm:$0xff]
      %v1115 = vld [vmem:[%s165 + $0x92] sm:$0xff]
      %v1116 = vld [vmem:[%s165 + $0x9a] sm:$0xff]
      %v1117 = vld [vmem:[%s165 + $0xa2] sm:$0xff]
      %v1118 = vld [vmem:[%s165 + $0xaa] sm:$0xff]
      %v1119 = vld [vmem:[%s165 + $0xb2] sm:$0xff]
      %v1120 = vld [vmem:[%s165 + $0xba] sm:$0xff]
      %v1121 = vld [vmem:[%s165 + $0xc2] sm:$0xff]
      %v1122 = vld [vmem:[%s165 + $0xca] sm:$0xff]
      %v1123 = vld [vmem:[%s165 + $0xd2] sm:$0xff]
      %v1124 = vld [vmem:[%s165 + $0xda] sm:$0xff]
      %v1125 = vld [vmem:[%s165 + $0xe2] sm:$0xff]
      %v1126 = vld [vmem:[%s165 + $0xea] sm:$0xff]
      %v1127 = vld [vmem:[%s165 + $0xf2] sm:$0xff]
      %v1128 = vld [vmem:[%s165 + $0xfa] sm:$0xff]
      %v1129 = vld [vmem:[%s165 + $0x102] sm:$0xff]
      %v1130 = vld [vmem:[%s165 + $0x10a] sm:$0xff]
      %v1131 = vmul.f32 %v1099, %v717
      %v1132 = vmul.f32 %v1100, %v721
      %v1133 = vmul.f32 %v1101, %v725
      %v1134 = vmul.f32 %v1102, %v729
      %v1135 = vmul.f32 %v1103, %v733
      %v1136 = vmul.f32 %v1104, %v737
      %v1137 = vmul.f32 %v1105, %v741
      %v1138 = vmul.f32 %v1106, %v745
      %v1139 = vmul.f32 %v1107, %v749
      %v1140 = vmul.f32 %v1108, %v753
      %v1141 = vmul.f32 %v1109, %v757
      %v1142 = vmul.f32 %v1110, %v761
      %v1143 = vmul.f32 %v1111, %v765
      %v1144 = vmul.f32 %v1112, %v769
      %v1145 = vmul.f32 %v1113, %v773
      %v1146 = vmul.f32 %v1114, %v777
      %v1147 = vmul.f32 %v1115, %v781
      %v1148 = vmul.f32 %v1116, %v785
      %v1149 = vmul.f32 %v1117, %v789
      %v1150 = vmul.f32 %v1118, %v793
      %v1151 = vmul.f32 %v1119, %v797
      %v1152 = vmul.f32 %v1120, %v801
      %v1153 = vmul.f32 %v1121, %v805
      %v1154 = vmul.f32 %v1122, %v809
      %v1155 = vmul.f32 %v1123, %v813
      %v1156 = vmul.f32 %v1124, %v817
      %v1157 = vmul.f32 %v1125, %v821
      %v1158 = vmul.f32 %v1126, %v825
      %v1159 = vmul.f32 %v1127, %v829
      %v1160 = vmul.f32 %v1128, %v833
      %v1161 = vmul.f32 %v1129, %v837
      %v1162 = vmul.f32 %v1130, %v841
      %v1163 = vadd.f32 %v1067, %v1131
      %v1164 = vadd.f32 %v1068, %v1132
      %v1165 = vadd.f32 %v1069, %v1133
      %v1166 = vadd.f32 %v1070, %v1134
      %v1167 = vadd.f32 %v1071, %v1135
      %v1168 = vadd.f32 %v1072, %v1136
      %v1169 = vadd.f32 %v1073, %v1137
      %v1170 = vadd.f32 %v1074, %v1138
      %v1171 = vadd.f32 %v1075, %v1139
      %v1172 = vadd.f32 %v1076, %v1140
      %v1173 = vadd.f32 %v1077, %v1141
      %v1174 = vadd.f32 %v1078, %v1142
      %v1175 = vadd.f32 %v1079, %v1143
      %v1176 = vadd.f32 %v1080, %v1144
      %v1177 = vadd.f32 %v1081, %v1145
      %v1178 = vadd.f32 %v1082, %v1146
      %v1179 = vadd.f32 %v1083, %v1147
      %v1180 = vadd.f32 %v1084, %v1148
      %v1181 = vadd.f32 %v1085, %v1149
      %v1182 = vadd.f32 %v1086, %v1150
      %v1183 = vadd.f32 %v1087, %v1151
      %v1184 = vadd.f32 %v1088, %v1152
      %v1185 = vadd.f32 %v1089, %v1153
      %v1186 = vadd.f32 %v1090, %v1154
      %v1187 = vadd.f32 %v1091, %v1155
      %v1188 = vadd.f32 %v1092, %v1156
      %v1189 = vadd.f32 %v1093, %v1157
      %v1190 = vadd.f32 %v1094, %v1158
      %v1191 = vadd.f32 %v1095, %v1159
      %v1192 = vadd.f32 %v1096, %v1160
      %v1193 = vadd.f32 %v1097, %v1161
      %v1194 = vadd.f32 %v1098, %v1162
      %v1195 = vld [vmem:[%s165 + $0x110] sm:$0xff]
      %v1196 = vld [vmem:[%s165 + $0x118] sm:$0xff]
      %v1197 = vmul.f32 %v909, %v238
      %v1198 = vmul.f32 %v910, %v243
      %v1199 = vmul.f32 %v911, %v248
      %v1200 = vmul.f32 %v912, %v253
      %v1201 = vmul.f32 %v913, %v258
      %v1202 = vmul.f32 %v914, %v263
      %v1203 = vmul.f32 %v915, %v268
      %v1204 = vmul.f32 %v916, %v273
      %v1205 = vmul.f32 %v917, %v278
      %v1206 = vmul.f32 %v918, %v283
      %v1207 = vmul.f32 %v919, %v288
      %v1208 = vmul.f32 %v920, %v293
      %v1209 = vmul.f32 %v921, %v298
      %v1210 = vmul.f32 %v922, %v303
      %v1211 = vmul.f32 %v923, %v308
      %v1212 = vmul.f32 %v924, %v313
      %v1213 = vmul.f32 %v925, %v318
      %v1214 = vmul.f32 %v926, %v323
      %v1215 = vmul.f32 %v927, %v328
      %v1216 = vmul.f32 %v928, %v333
      %v1217 = vmul.f32 %v929, %v338
      %v1218 = vmul.f32 %v930, %v343
      %v1219 = vmul.f32 %v931, %v348
      %v1220 = vmul.f32 %v932, %v353
      %v1221 = vmul.f32 %v933, %v358
      %v1222 = vmul.f32 %v934, %v363
      %v1223 = vmul.f32 %v935, %v368
      %v1224 = vmul.f32 %v936, %v373
      %v1225 = vmul.f32 %v937, %v378
      %v1226 = vmul.f32 %v938, %v383
      %v1227 = vmul.f32 %v1195, %v388
      %v1228 = vmul.f32 %v1196, %v393
      %v1229 = vadd.f32 %v1163, %v1197
      %v1230 = vadd.f32 %v1164, %v1198
      %v1231 = vadd.f32 %v1165, %v1199
      %v1232 = vadd.f32 %v1166, %v1200
      %v1233 = vadd.f32 %v1167, %v1201
      %v1234 = vadd.f32 %v1168, %v1202
      %v1235 = vadd.f32 %v1169, %v1203
      %v1236 = vadd.f32 %v1170, %v1204
      %v1237 = vadd.f32 %v1171, %v1205
      %v1238 = vadd.f32 %v1172, %v1206
      %v1239 = vadd.f32 %v1173, %v1207
      %v1240 = vadd.f32 %v1174, %v1208
      %v1241 = vadd.f32 %v1175, %v1209
      %v1242 = vadd.f32 %v1176, %v1210
      %v1243 = vadd.f32 %v1177, %v1211
      %v1244 = vadd.f32 %v1178, %v1212
      %v1245 = vadd.f32 %v1179, %v1213
      %v1246 = vadd.f32 %v1180, %v1214
      %v1247 = vadd.f32 %v1181, %v1215
      %v1248 = vadd.f32 %v1182, %v1216
      %v1249 = vadd.f32 %v1183, %v1217
      %v1250 = vadd.f32 %v1184, %v1218
      %v1251 = vadd.f32 %v1185, %v1219
      %v1252 = vadd.f32 %v1186, %v1220
      %v1253 = vadd.f32 %v1187, %v1221
      %v1254 = vadd.f32 %v1188, %v1222
      %v1255 = vadd.f32 %v1189, %v1223
      %v1256 = vadd.f32 %v1190, %v1224
      %v1257 = vadd.f32 %v1191, %v1225
      %v1258 = vadd.f32 %v1192, %v1226
      %v1259 = vadd.f32 %v1193, %v1227
      %v1260 = vadd.f32 %v1194, %v1228
      %v1261 = vld [vmem:[%s165 + $0x111] sm:$0xff]
      %v1262 = vld [vmem:[%s165 + $0x119] sm:$0xff]
      %v1263 = vmul.f32 %v1005, %v493
      %v1264 = vmul.f32 %v1006, %v497
      %v1265 = vmul.f32 %v1007, %v501
      %v1266 = vmul.f32 %v1008, %v505
      %v1267 = vmul.f32 %v1009, %v509
      %v1268 = vmul.f32 %v1010, %v513
      %v1269 = vmul.f32 %v1011, %v517
      %v1270 = vmul.f32 %v1012, %v521
      %v1271 = vmul.f32 %v1013, %v525
      %v1272 = vmul.f32 %v1014, %v529
      %v1273 = vmul.f32 %v1015, %v533
      %v1274 = vmul.f32 %v1016, %v537
      %v1275 = vmul.f32 %v1017, %v541
      %v1276 = vmul.f32 %v1018, %v545
      %v1277 = vmul.f32 %v1019, %v549
      %v1278 = vmul.f32 %v1020, %v553
      %v1279 = vmul.f32 %v1021, %v557
      %v1280 = vmul.f32 %v1022, %v561
      %v1281 = vmul.f32 %v1023, %v565
      %v1282 = vmul.f32 %v1024, %v569
      %v1283 = vmul.f32 %v1025, %v573
      %v1284 = vmul.f32 %v1026, %v577
      %v1285 = vmul.f32 %v1027, %v581
      %v1286 = vmul.f32 %v1028, %v585
      %v1287 = vmul.f32 %v1029, %v589
      %v1288 = vmul.f32 %v1030, %v593
      %v1289 = vmul.f32 %v1031, %v597
      %v1290 = vmul.f32 %v1032, %v601
      %v1291 = vmul.f32 %v1033, %v605
      %v1292 = vmul.f32 %v1034, %v609
      %v1293 = vmul.f32 %v1261, %v613
      %v1294 = vmul.f32 %v1262, %v617
      %v1295 = vadd.f32 %v1229, %v1263
      %v1296 = vadd.f32 %v1230, %v1264
      %v1297 = vadd.f32 %v1231, %v1265
      %v1298 = vadd.f32 %v1232, %v1266
      %v1299 = vadd.f32 %v1233, %v1267
      %v1300 = vadd.f32 %v1234, %v1268
      %v1301 = vadd.f32 %v1235, %v1269
      %v1302 = vadd.f32 %v1236, %v1270
      %v1303 = vadd.f32 %v1237, %v1271
      %v1304 = vadd.f32 %v1238, %v1272
      %v1305 = vadd.f32 %v1239, %v1273
      %v1306 = vadd.f32 %v1240, %v1274
      %v1307 = vadd.f32 %v1241, %v1275
      %v1308 = vadd.f32 %v1242, %v1276
      %v1309 = vadd.f32 %v1243, %v1277
      %v1310 = vadd.f32 %v1244, %v1278
      %v1311 = vadd.f32 %v1245, %v1279
      %v1312 = vadd.f32 %v1246, %v1280
      %v1313 = vadd.f32 %v1247, %v1281
      %v1314 = vadd.f32 %v1248, %v1282
      %v1315 = vadd.f32 %v1249, %v1283
      %v1316 = vadd.f32 %v1250, %v1284
      %v1317 = vadd.f32 %v1251, %v1285
      %v1318 = vadd.f32 %v1252, %v1286
      %v1319 = vadd.f32 %v1253, %v1287
      %v1320 = vadd.f32 %v1254, %v1288
      %v1321 = vadd.f32 %v1255, %v1289
      %v1322 = vadd.f32 %v1256, %v1290
      %v1323 = vadd.f32 %v1257, %v1291
      %v1324 = vadd.f32 %v1258, %v1292
      %v1325 = vadd.f32 %v1259, %v1293
      %v1326 = vadd.f32 %v1260, %v1294
      %v1327 = vld [vmem:[%s165 + $0x112] sm:$0xff]
      %v1328 = vld [vmem:[%s165 + $0x11a] sm:$0xff]
      %v1329 = vmul.f32 %v1101, %v717
      %v1330 = vmul.f32 %v1102, %v721
      %v1331 = vmul.f32 %v1103, %v725
      %v1332 = vmul.f32 %v1104, %v729
      %v1333 = vmul.f32 %v1105, %v733
      %v1334 = vmul.f32 %v1106, %v737
      %v1335 = vmul.f32 %v1107, %v741
      %v1336 = vmul.f32 %v1108, %v745
      %v1337 = vmul.f32 %v1109, %v749
      %v1338 = vmul.f32 %v1110, %v753
      %v1339 = vmul.f32 %v1111, %v757
      %v1340 = vmul.f32 %v1112, %v761
      %v1341 = vmul.f32 %v1113, %v765
      %v1342 = vmul.f32 %v1114, %v769
      %v1343 = vmul.f32 %v1115, %v773
      %v1344 = vmul.f32 %v1116, %v777
      %v1345 = vmul.f32 %v1117, %v781
      %v1346 = vmul.f32 %v1118, %v785
      %v1347 = vmul.f32 %v1119, %v789
      %v1348 = vmul.f32 %v1120, %v793
      %v1349 = vmul.f32 %v1121, %v797
      %v1350 = vmul.f32 %v1122, %v801
      %v1351 = vmul.f32 %v1123, %v805
      %v1352 = vmul.f32 %v1124, %v809
      %v1353 = vmul.f32 %v1125, %v813
      %v1354 = vmul.f32 %v1126, %v817
      %v1355 = vmul.f32 %v1127, %v821
      %v1356 = vmul.f32 %v1128, %v825
      %v1357 = vmul.f32 %v1129, %v829
      %v1358 = vmul.f32 %v1130, %v833
      %v1359 = vmul.f32 %v1327, %v837
      %v1360 = vmul.f32 %v1328, %v841
      %v1361 = vadd.f32 %v1295, %v1329
      %v1362 = vadd.f32 %v1296, %v1330
      %v1363 = vadd.f32 %v1297, %v1331
      %v1364 = vadd.f32 %v1298, %v1332
      %v1365 = vadd.f32 %v1299, %v1333
      %v1366 = vadd.f32 %v1300, %v1334
      %v1367 = vadd.f32 %v1301, %v1335
      %v1368 = vadd.f32 %v1302, %v1336
      %v1369 = vadd.f32 %v1303, %v1337
      %v1370 = vadd.f32 %v1304, %v1338
      %v1371 = vadd.f32 %v1305, %v1339
      %v1372 = vadd.f32 %v1306, %v1340
      %v1373 = vadd.f32 %v1307, %v1341
      %v1374 = vadd.f32 %v1308, %v1342
      %v1375 = vadd.f32 %v1309, %v1343
      %v1376 = vadd.f32 %v1310, %v1344
      %v1377 = vadd.f32 %v1311, %v1345
      %v1378 = vadd.f32 %v1312, %v1346
      %v1379 = vadd.f32 %v1313, %v1347
      %v1380 = vadd.f32 %v1314, %v1348
      %v1381 = vadd.f32 %v1315, %v1349
      %v1382 = vadd.f32 %v1316, %v1350
      %v1383 = vadd.f32 %v1317, %v1351
      %v1384 = vadd.f32 %v1318, %v1352
      %v1385 = vadd.f32 %v1319, %v1353
      %v1386 = vadd.f32 %v1320, %v1354
      %v1387 = vadd.f32 %v1321, %v1355
      %v1388 = vadd.f32 %v1322, %v1356
      %v1389 = vadd.f32 %v1323, %v1357
      %v1390 = vadd.f32 %v1324, %v1358
      %v1391 = vadd.f32 %v1325, %v1359
      %v1392 = vadd.f32 %v1326, %v1360
      %v1393 = vld [vmem:[%s2] sm:$0xff]
      %v1394 = vld [vmem:[%s2 + $0x8] sm:$0xff]
      %v1395 = vld [vmem:[%s2 + $0x10] sm:$0xff]
      %v1396 = vld [vmem:[%s2 + $0x18] sm:$0xff]
      %v1397 = vld [vmem:[%s2 + $0x20] sm:$0xff]
      %v1398 = vld [vmem:[%s2 + $0x28] sm:$0xff]
      %v1399 = vld [vmem:[%s2 + $0x30] sm:$0xff]
      %v1400 = vld [vmem:[%s2 + $0x38] sm:$0xff]
      %v1401 = vld [vmem:[%s2 + $0x40] sm:$0xff]
      %v1402 = vld [vmem:[%s2 + $0x48] sm:$0xff]
      %v1403 = vld [vmem:[%s2 + $0x50] sm:$0xff]
      %v1404 = vld [vmem:[%s2 + $0x58] sm:$0xff]
      %v1405 = vld [vmem:[%s2 + $0x60] sm:$0xff]
      %v1406 = vld [vmem:[%s2 + $0x68] sm:$0xff]
      %v1407 = vld [vmem:[%s2 + $0x70] sm:$0xff]
      %v1408 = vld [vmem:[%s2 + $0x78] sm:$0xff]
      %v1409 = vld [vmem:[%s2 + $0x80] sm:$0xff]
      %v1410 = vld [vmem:[%s2 + $0x88] sm:$0xff]
      %v1411 = vld [vmem:[%s2 + $0x90] sm:$0xff]
      %v1412 = vld [vmem:[%s2 + $0x98] sm:$0xff]
      %v1413 = vld [vmem:[%s2 + $0xa0] sm:$0xff]
      %v1414 = vld [vmem:[%s2 + $0xa8] sm:$0xff]
      %v1415 = vld [vmem:[%s2 + $0xb0] sm:$0xff]
      %v1416 = vld [vmem:[%s2 + $0xb8] sm:$0xff]
      %v1417 = vld [vmem:[%s2 + $0xc0] sm:$0xff]
      %v1418 = vld [vmem:[%s2 + $0xc8] sm:$0xff]
      %v1419 = vld [vmem:[%s2 + $0xd0] sm:$0xff]
      %v1420 = vld [vmem:[%s2 + $0xd8] sm:$0xff]
      %v1421 = vld [vmem:[%s2 + $0xe0] sm:$0xff]
      %v1422 = vld [vmem:[%s2 + $0xe8] sm:$0xff]
      %v1423 = vld [vmem:[%s2 + $0xf0] sm:$0xff]
      %v1424 = vld [vmem:[%s2 + $0xf8] sm:$0xff]
      %1426 = vset.pattern.permute.xlu0 0
      %1427 = vperm.xlu0 %1426, %v1393
      %v1428 = vpop.permute.xlu0 %1427
      %1431 = vset.pattern.permute.xlu0 0
      %1432 = vperm.xlu0 %1431, %v1394
      %v1433 = vpop.permute.xlu0 %1432
      %1436 = vset.pattern.permute.xlu0 0
      %1437 = vperm.xlu0 %1436, %v1395
      %v1438 = vpop.permute.xlu0 %1437
      %1441 = vset.pattern.permute.xlu0 0
      %1442 = vperm.xlu0 %1441, %v1396
      %v1443 = vpop.permute.xlu0 %1442
      %1446 = vset.pattern.permute.xlu0 0
      %1447 = vperm.xlu0 %1446, %v1397
      %v1448 = vpop.permute.xlu0 %1447
      %1451 = vset.pattern.permute.xlu0 0
      %1452 = vperm.xlu0 %1451, %v1398
      %v1453 = vpop.permute.xlu0 %1452
      %1456 = vset.pattern.permute.xlu0 0
      %1457 = vperm.xlu0 %1456, %v1399
      %v1458 = vpop.permute.xlu0 %1457
      %1461 = vset.pattern.permute.xlu0 0
      %1462 = vperm.xlu0 %1461, %v1400
      %v1463 = vpop.permute.xlu0 %1462
      %1466 = vset.pattern.permute.xlu0 0
      %1467 = vperm.xlu0 %1466, %v1401
      %v1468 = vpop.permute.xlu0 %1467
      %1471 = vset.pattern.permute.xlu0 0
      %1472 = vperm.xlu0 %1471, %v1402
      %v1473 = vpop.permute.xlu0 %1472
      %1476 = vset.pattern.permute.xlu0 0
      %1477 = vperm.xlu0 %1476, %v1403
      %v1478 = vpop.permute.xlu0 %1477
      %1481 = vset.pattern.permute.xlu0 0
      %1482 = vperm.xlu0 %1481, %v1404
      %v1483 = vpop.permute.xlu0 %1482
      %1486 = vset.pattern.permute.xlu0 0
      %1487 = vperm.xlu0 %1486, %v1405
      %v1488 = vpop.permute.xlu0 %1487
      %1491 = vset.pattern.permute.xlu0 0
      %1492 = vperm.xlu0 %1491, %v1406
      %v1493 = vpop.permute.xlu0 %1492
      %1496 = vset.pattern.permute.xlu0 0
      %1497 = vperm.xlu0 %1496, %v1407
      %v1498 = vpop.permute.xlu0 %1497
      %1501 = vset.pattern.permute.xlu0 0
      %1502 = vperm.xlu0 %1501, %v1408
      %v1503 = vpop.permute.xlu0 %1502
      %1506 = vset.pattern.permute.xlu0 0
      %1507 = vperm.xlu0 %1506, %v1409
      %v1508 = vpop.permute.xlu0 %1507
      %1511 = vset.pattern.permute.xlu0 0
      %1512 = vperm.xlu0 %1511, %v1410
      %v1513 = vpop.permute.xlu0 %1512
      %1516 = vset.pattern.permute.xlu0 0
      %1517 = vperm.xlu0 %1516, %v1411
      %v1518 = vpop.permute.xlu0 %1517
      %1521 = vset.pattern.permute.xlu0 0
      %1522 = vperm.xlu0 %1521, %v1412
      %v1523 = vpop.permute.xlu0 %1522
      %1526 = vset.pattern.permute.xlu0 0
      %1527 = vperm.xlu0 %1526, %v1413
      %v1528 = vpop.permute.xlu0 %1527
      %1531 = vset.pattern.permute.xlu0 0
      %1532 = vperm.xlu0 %1531, %v1414
      %v1533 = vpop.permute.xlu0 %1532
      %1536 = vset.pattern.permute.xlu0 0
      %1537 = vperm.xlu0 %1536, %v1415
      %v1538 = vpop.permute.xlu0 %1537
      %1541 = vset.pattern.permute.xlu0 0
      %1542 = vperm.xlu0 %1541, %v1416
      %v1543 = vpop.permute.xlu0 %1542
      %1546 = vset.pattern.permute.xlu0 0
      %1547 = vperm.xlu0 %1546, %v1417
      %v1548 = vpop.permute.xlu0 %1547
      %1551 = vset.pattern.permute.xlu0 0
      %1552 = vperm.xlu0 %1551, %v1418
      %v1553 = vpop.permute.xlu0 %1552
      %1556 = vset.pattern.permute.xlu0 0
      %1557 = vperm.xlu0 %1556, %v1419
      %v1558 = vpop.permute.xlu0 %1557
      %1561 = vset.pattern.permute.xlu0 0
      %1562 = vperm.xlu0 %1561, %v1420
      %v1563 = vpop.permute.xlu0 %1562
      %1566 = vset.pattern.permute.xlu0 0
      %1567 = vperm.xlu0 %1566, %v1421
      %v1568 = vpop.permute.xlu0 %1567
      %1571 = vset.pattern.permute.xlu0 0
      %1572 = vperm.xlu0 %1571, %v1422
      %v1573 = vpop.permute.xlu0 %1572
      %1576 = vset.pattern.permute.xlu0 0
      %1577 = vperm.xlu0 %1576, %v1423
      %v1578 = vpop.permute.xlu0 %1577
      %1581 = vset.pattern.permute.xlu0 0
      %1582 = vperm.xlu0 %1581, %v1424
      %v1583 = vpop.permute.xlu0 %1582
      %v1585 = vmul.f32 %v1361, %v1428
      %v1586 = vmul.f32 %v1362, %v1433
      %v1587 = vmul.f32 %v1363, %v1438
      %v1588 = vmul.f32 %v1364, %v1443
      %v1589 = vmul.f32 %v1365, %v1448
      %v1590 = vmul.f32 %v1366, %v1453
      %v1591 = vmul.f32 %v1367, %v1458
      %v1592 = vmul.f32 %v1368, %v1463
      %v1593 = vmul.f32 %v1369, %v1468
      %v1594 = vmul.f32 %v1370, %v1473
      %v1595 = vmul.f32 %v1371, %v1478
      %v1596 = vmul.f32 %v1372, %v1483
      %v1597 = vmul.f32 %v1373, %v1488
      %v1598 = vmul.f32 %v1374, %v1493
      %v1599 = vmul.f32 %v1375, %v1498
      %v1600 = vmul.f32 %v1376, %v1503
      %v1601 = vmul.f32 %v1377, %v1508
      %v1602 = vmul.f32 %v1378, %v1513
      %v1603 = vmul.f32 %v1379, %v1518
      %v1604 = vmul.f32 %v1380, %v1523
      %v1605 = vmul.f32 %v1381, %v1528
      %v1606 = vmul.f32 %v1382, %v1533
      %v1607 = vmul.f32 %v1383, %v1538
      %v1608 = vmul.f32 %v1384, %v1543
      %v1609 = vmul.f32 %v1385, %v1548
      %v1610 = vmul.f32 %v1386, %v1553
      %v1611 = vmul.f32 %v1387, %v1558
      %v1612 = vmul.f32 %v1388, %v1563
      %v1613 = vmul.f32 %v1389, %v1568
      %v1614 = vmul.f32 %v1390, %v1573
      %v1615 = vmul.f32 %v1391, %v1578
      %v1616 = vmul.f32 %v1392, %v1583
      %vm1617 = vcmask 31744
      %1618 = vst.msk [vmem:[%s170] sm:$0xff] %vm1617, %v1585
      %1619 = vst.msk [vmem:[%s170 + $0x8] sm:$0xff] %vm1617, %v1586
      %1620 = vst.msk [vmem:[%s170 + $0x10] sm:$0xff] %vm1617, %v1587
      %1621 = vst.msk [vmem:[%s170 + $0x18] sm:$0xff] %vm1617, %v1588
      %1622 = vst.msk [vmem:[%s170 + $0x20] sm:$0xff] %vm1617, %v1589
      %1623 = vst.msk [vmem:[%s170 + $0x28] sm:$0xff] %vm1617, %v1590
      %1624 = vst.msk [vmem:[%s170 + $0x30] sm:$0xff] %vm1617, %v1591
      %1625 = vst.msk [vmem:[%s170 + $0x38] sm:$0xff] %vm1617, %v1592
      %1626 = vst.msk [vmem:[%s170 + $0x40] sm:$0xff] %vm1617, %v1593
      %1627 = vst.msk [vmem:[%s170 + $0x48] sm:$0xff] %vm1617, %v1594
      %1628 = vst.msk [vmem:[%s170 + $0x50] sm:$0xff] %vm1617, %v1595
      %1629 = vst.msk [vmem:[%s170 + $0x58] sm:$0xff] %vm1617, %v1596
      %1630 = vst.msk [vmem:[%s170 + $0x60] sm:$0xff] %vm1617, %v1597
      %1631 = vst.msk [vmem:[%s170 + $0x68] sm:$0xff] %vm1617, %v1598
      %1632 = vst.msk [vmem:[%s170 + $0x70] sm:$0xff] %vm1617, %v1599
      %1633 = vst.msk [vmem:[%s170 + $0x78] sm:$0xff] %vm1617, %v1600
      %1634 = vst.msk [vmem:[%s170 + $0x80] sm:$0xff] %vm1617, %v1601
      %1635 = vst.msk [vmem:[%s170 + $0x88] sm:$0xff] %vm1617, %v1602
      %1636 = vst.msk [vmem:[%s170 + $0x90] sm:$0xff] %vm1617, %v1603
      %1637 = vst.msk [vmem:[%s170 + $0x98] sm:$0xff] %vm1617, %v1604
      %1638 = vst.msk [vmem:[%s170 + $0xa0] sm:$0xff] %vm1617, %v1605
      %1639 = vst.msk [vmem:[%s170 + $0xa8] sm:$0xff] %vm1617, %v1606
      %1640 = vst.msk [vmem:[%s170 + $0xb0] sm:$0xff] %vm1617, %v1607
      %1641 = vst.msk [vmem:[%s170 + $0xb8] sm:$0xff] %vm1617, %v1608
      %1642 = vst.msk [vmem:[%s170 + $0xc0] sm:$0xff] %vm1617, %v1609
      %1643 = vst.msk [vmem:[%s170 + $0xc8] sm:$0xff] %vm1617, %v1610
      %1644 = vst.msk [vmem:[%s170 + $0xd0] sm:$0xff] %vm1617, %v1611
      %1645 = vst.msk [vmem:[%s170 + $0xd8] sm:$0xff] %vm1617, %v1612
      %1646 = vst.msk [vmem:[%s170 + $0xe0] sm:$0xff] %vm1617, %v1613
      %1647 = vst.msk [vmem:[%s170 + $0xe8] sm:$0xff] %vm1617, %v1614
      %1648 = vst.msk [vmem:[%s170 + $0xf0] sm:$0xff] %vm1617, %v1615
      %1649 = vst.msk [vmem:[%s170 + $0xf8] sm:$0xff] %vm1617, %v1616
      %p1650 = scmp.lt.s32.totalorder %s14, 1
      %s1651 = scalar_select %p1650, %s14, 1
      %s1652 = smul.addr %s1651, 32
      %s1653 = smul.addr %s1652, 8
      %s1654 = scalar_lea.vmem %s3, %s1653
      // Predicated region
      $region33: #{_forward_impl.9} parent=31 // pred_check
        %p1655 = pneg %p100
      $region34: #{_forward_impl.9} parent=31 // pred_check_branch
        %1657 = sbr.rel (%p1655) target = $region36
      $region35: #{_forward_impl.9} parent=31 // pred_region
        _
      $region36: #{_forward_impl.9} parent=31 // pred_fallthru
        _
    $region32: #{_forward_impl.9} parent=5 // pred_fallthru
      _
    %p1658 = scmp.le.s32.totalorder 2, %s9
    // Predicated region
    $region37: #{_forward_impl.9} parent=5 // pred_check
      %p1659 = pneg %p1658
    $region38: #{_forward_impl.9} parent=5 // pred_check_branch
      %1661 = sbr.rel (%p1659) target = $region40
    $region39: #{_forward_impl.9} parent=5 // pred_region
      %s1662 = ssub.s32 %s9, 2
      // Predicated region
      $region41: #{_forward_impl.9} parent=39 // pred_check
        %p1663 = pneg %p106
      $region42: #{_forward_impl.9} parent=39 // pred_check_branch
        %1665 = sbr.rel (%p1663) target = $region44
      $region43: #{_forward_impl.9} parent=39 // pred_region
        %p1666 = scmp.lt.s32.totalorder %s15, 1
        %s1667 = scalar_select %p1666, %s15, 1
        %s1668 = smul.addr %s1667, 32
        %s1669 = smul.addr %s1668, 8
        %s1670 = scalar_lea.vmem %s3, %s1669
      $region44: #{_forward_impl.9} parent=39 // pred_fallthru
        _
    $region40: #{_forward_impl.9} parent=5 // pred_fallthru
      _
  $region6: #{_forward_impl.9} parent=0 // loop_footer
    %s13 = sadd.s32 1, %s9
  $region7: #{_forward_impl.9} parent=0 // loop_footer_branch
    %8 = sbr.rel target = $region3
  $region8: #{_forward_impl.9} parent=0 // loop_exit
    _

// kernel: _forward_impl.5
$region0: #{_forward_impl.5}
  #allocation0 [shape = 'u32[]', space=smem, size = 0x4, offset = 0x4, fixed_abs, tag = 'smem constant byte address 0x4 - core index']
  #allocation1 [shape = 'u32[144,128]{1,0:T(1,128)}', space=vmem, size = 0x12000, scoped, tag = 'internal scratch']
  %s0 = inlined_call_operand.vmem [shape: bf16[2,290,4], index: 0, kind: input, shape index: {}]
  %s1 = inlined_call_operand.vmem [shape: bf16[9,4,4], index: 1, kind: input, shape index: {}]
  %s2 = inlined_call_operand.vmem [shape: f32[256,3], index: 2, kind: input, shape index: {}]
  %s3 = inlined_call_operand.vmem [shape: f32[2,256,4], index: 3, kind: output, shape index: {0}]
  %s4 = inlined_call_operand.vmem [shape: f32[2,2,4], index: 4, kind: output, shape index: {1}]
  %5 = xla_tuple %s3, %s4
  %s6 = sld [smem:[#allocation0]]
  $region53: #{_forward_impl.5} parent=0
    _
  %s8 = ssub.s32 1, %s6
  %s9 = scalar_select 0, %s8, %s6
  loop: start=0, step=1, limit=4
  $region2: #{_forward_impl.5} parent=0 // loop_pre_header
    _
  $region3: #{_forward_impl.5} parent=0 // loop_header
    %s11 = sphi 0, %s15
    %p12 = scmp.ge.s32.totalorder %s11, 4
    %s21 = sphi 0, %s23
    %s24 = sphi 0, %s21
    %s25 = sphi 0, %s24
    %s41 = sphi 0, %s25
    %s45 = sphi 0, %s45
    %s47 = sphi 0, %s45
    %s48 = sphi 0, %s47
    %s62 = sphi 0, %s48
    %s66 = sphi 0, %s66
    %s68 = sphi 0, %s66
    %s69 = sphi 0, %s68
    %s83 = sphi 0, %s69
    %s89 = sphi 0, %s91
    %s92 = sphi 0, %s89
    %s93 = sphi 0, %s92
    %s109 = sphi 0, %s93
    %s115 = sphi 0, %s117
    %s118 = sphi 0, %s115
    %s119 = sphi 0, %s118
    %s135 = sphi 0, %s119
  $region4: #{_forward_impl.5} parent=0 // loop_header_branch
    %14 = sbr.rel (%p12) target = $region8
  $region5: #{_forward_impl.5} parent=0 // loop_body
    %s16 = ssub.s32 %s11, 1
    %s17 = ssub.s32 %s11, 2
    %s18 = sadd.s32 %s11, 1
    %s19 = ssub.s32 %s11, %s18
    %p20 = scmp.eq.s32.totalorder %s19, 0
    %s22 = sadd.s32 %s21, 1
    %s23 = scalar_select %p20, %s21, %s22
    %p26 = pneg %p20
    %p27 = scmp.eq.s32.totalorder %s11, 1
    %p28 = por %p26, %p27
    %p29 = scmp.ne.s32.totalorder %s21, %s24
    %p30 = scmp.eq.s32.totalorder %s11, 0
    %p31 = por %p29, %p30
    %p32 = scmp.ne.s32.totalorder %s21, %s24
    %p33 = scmp.eq.s32.totalorder %s16, 1
    %p34 = por %p32, %p33
    %p35 = scmp.ne.s32.totalorder %s24, %s25
    %p36 = scmp.eq.s32.totalorder %s16, 0
    %p37 = por %p35, %p36
    %p38 = scmp.ne.s32.totalorder %s24, %s25
    %p39 = scmp.eq.s32.totalorder %s17, 1
    %p40 = por %p38, %p39
    %p42 = scmp.ne.s32.totalorder %s25, %s41
    %p43 = scmp.eq.s32.totalorder %s17, 0
    %p44 = por %p42, %p43
    %s46 = sadd.s32 %s45, 1
    %p49 = scmp.eq.s32.totalorder %s11, 1
    %p50 = scmp.ne.s32.totalorder %s45, %s47
    %p51 = scmp.eq.s32.totalorder %s11, 0
    %p52 = por %p50, %p51
    %p53 = scmp.ne.s32.totalorder %s45, %s47
    %p54 = scmp.eq.s32.totalorder %s16, 1
    %p55 = por %p53, %p54
    %p56 = scmp.ne.s32.totalorder %s47, %s48
    %p57 = scmp.eq.s32.totalorder %s16, 0
    %p58 = por %p56, %p57
    %p59 = scmp.ne.s32.totalorder %s47, %s48
    %p60 = scmp.eq.s32.totalorder %s17, 1
    %p61 = por %p59, %p60
    %p63 = scmp.ne.s32.totalorder %s48, %s62
    %p64 = scmp.eq.s32.totalorder %s17, 0
    %p65 = por %p63, %p64
    %s67 = sadd.s32 %s66, 1
    %p70 = scmp.eq.s32.totalorder %s11, 1
    %p71 = scmp.ne.s32.totalorder %s66, %s68
    %p72 = scmp.eq.s32.totalorder %s11, 0
    %p73 = por %p71, %p72
    %p74 = scmp.ne.s32.totalorder %s66, %s68
    %p75 = scmp.eq.s32.totalorder %s16, 1
    %p76 = por %p74, %p75
    %p77 = scmp.ne.s32.totalorder %s68, %s69
    %p78 = scmp.eq.s32.totalorder %s16, 0
    %p79 = por %p77, %p78
    %p80 = scmp.ne.s32.totalorder %s68, %s69
    %p81 = scmp.eq.s32.totalorder %s17, 1
    %p82 = por %p80, %p81
    %p84 = scmp.ne.s32.totalorder %s69, %s83
    %p85 = scmp.eq.s32.totalorder %s17, 0
    %p86 = por %p84, %p85
    %s87 = ssub.s32 %s11, %s18
    %p88 = scmp.eq.s32.totalorder %s87, 0
    %s90 = sadd.s32 %s89, 1
    %s91 = scalar_select %p88, %s89, %s90
    %p94 = pneg %p88
    %p95 = scmp.eq.s32.totalorder %s11, 1
    %p96 = por %p94, %p95
    %p97 = scmp.ne.s32.totalorder %s89, %s92
    %p98 = scmp.eq.s32.totalorder %s11, 0
    %p99 = por %p97, %p98
    %p100 = scmp.ne.s32.totalorder %s89, %s92
    %p101 = scmp.eq.s32.totalorder %s16, 1
    %p102 = por %p100, %p101
    %p103 = scmp.ne.s32.totalorder %s92, %s93
    %p104 = scmp.eq.s32.totalorder %s16, 0
    %p105 = por %p103, %p104
    %p106 = scmp.ne.s32.totalorder %s92, %s93
    %p107 = scmp.eq.s32.totalorder %s17, 1
    %p108 = por %p106, %p107
    %p110 = scmp.ne.s32.totalorder %s93, %s109
    %p111 = scmp.eq.s32.totalorder %s17, 0
    %p112 = por %p110, %p111
    %s113 = ssub.s32 %s11, %s18
    %p114 = scmp.eq.s32.totalorder %s113, 0
    %s116 = sadd.s32 %s115, 1
    %s117 = scalar_select %p114, %s115, %s116
    %p120 = pneg %p114
    %p121 = scmp.eq.s32.totalorder %s11, 1
    %p122 = por %p120, %p121
    %p123 = scmp.ne.s32.totalorder %s115, %s118
    %p124 = scmp.eq.s32.totalorder %s11, 0
    %p125 = por %p123, %p124
    %p126 = scmp.ne.s32.totalorder %s115, %s118
    %p127 = scmp.eq.s32.totalorder %s16, 1
    %p128 = por %p126, %p127
    %p129 = scmp.ne.s32.totalorder %s118, %s119
    %p130 = scmp.eq.s32.totalorder %s16, 0
    %p131 = por %p129, %p130
    %p132 = scmp.ne.s32.totalorder %s118, %s119
    %p133 = scmp.eq.s32.totalorder %s17, 1
    %p134 = por %p132, %p133
    %p136 = scmp.ne.s32.totalorder %s119, %s135
    %p137 = scmp.eq.s32.totalorder %s17, 0
    %p138 = por %p136, %p137
    %p139 = scmp.le.s32.totalorder 1, %s11
    %p140 = scmp.lt.s32.totalorder %s11, 3
    %p141 = pnand %p139, %p140
    %p142 = pneg %p141
    // Predicated region
    $region9: #{_forward_impl.5} parent=5 // pred_check
      _
    $region10: #{_forward_impl.5} parent=5 // pred_check_branch
      %144 = sbr.rel (%p141) target = $region12
    $region11: #{_forward_impl.5} parent=5 // pred_region
      %s145 = ssub.s32 %s11, 1
      // Predicated region
      $region13: #{_forward_impl.5} parent=11 // pred_check
        %p146 = pneg %p58
      $region14: #{_forward_impl.5} parent=11 // pred_check_branch
        %148 = sbr.rel (%p146) target = $region16
      $region15: #{_forward_impl.5} parent=11 // pred_region
        _
      $region16: #{_forward_impl.5} parent=11 // pred_fallthru
        _
      // Predicated region
      $region17: #{_forward_impl.5} parent=11 // pred_check
        %p149 = pneg %p79
      $region18: #{_forward_impl.5} parent=11 // pred_check_branch
        %151 = sbr.rel (%p149) target = $region20
      $region19: #{_forward_impl.5} parent=11 // pred_region
        _
      $region20: #{_forward_impl.5} parent=11 // pred_fallthru
        _
    $region12: #{_forward_impl.5} parent=5 // pred_fallthru
      _
    %p152 = scmp.lt.s32.totalorder %s11, 2
    // Predicated region
    $region21: #{_forward_impl.5} parent=5 // pred_check
      %p153 = pneg %p152
    $region22: #{_forward_impl.5} parent=5 // pred_check_branch
      %155 = sbr.rel (%p153) target = $region24
    $region23: #{_forward_impl.5} parent=5 // pred_region
      // Predicated region
      $region25: #{_forward_impl.5} parent=23 // pred_check
        %p156 = pneg %p31
      $region26: #{_forward_impl.5} parent=23 // pred_check_branch
        %158 = sbr.rel (%p156) target = $region28
      $region27: #{_forward_impl.5} parent=23 // pred_region
        %p159 = scmp.lt.s32.totalorder %s11, 1
        %s160 = scalar_select %p159, %s11, 1
        %s161 = smul.addr %s160, 37
        %s162 = smul.addr %s161, 4
        %s163 = scalar_lea.vmem %s0, %s162
      $region28: #{_forward_impl.5} parent=23 // pred_fallthru
        _
    $region24: #{_forward_impl.5} parent=5 // pred_fallthru
      _
    %p164 = scmp.le.s32.totalorder 1, %s11
    %p165 = scmp.lt.s32.totalorder %s11, 3
    %p166 = pnand %p164, %p165
    %p167 = pneg %p166
    // Predicated region
    $region29: #{_forward_impl.5} parent=5 // pred_check
      _
    $region30: #{_forward_impl.5} parent=5 // pred_check_branch
      %169 = sbr.rel (%p166) target = $region32
    $region31: #{_forward_impl.5} parent=5 // pred_region
      %s170 = ssub.s32 %s11, 1
      %p171 = scmp.lt.s32.totalorder %s16, 1
      %s172 = scalar_select %p171, %s16, 1
      %s173 = smul.addr %s172, 37
      %s174 = smul.addr %s173, 4
      %s175 = scalar_lea.vmem %s0, %s174
      %p176 = pneg %p37
      %p177 = pneg %p34
      %p178 = pneg %p58
      %p179 = pneg %p55
      %p180 = pneg %p79
      %p181 = pneg %p76
      %p182 = pneg %p105
      %p183 = pneg %p102
      %p184 = scmp.lt.s32.totalorder %s16, 1
      %s185 = scalar_select %p184, %s16, 1
      %s186 = smul.addr %s185, 32
      %s187 = smul.addr %s186, 8
      %s188 = scalar_lea.vmem %s3, %s187
      %p189 = pneg %p131
      %p190 = pneg %p128
      %p191 = scmp.lt.s32.totalorder %s16, 1
      %s192 = scalar_select %p191, %s16, 1
      %s193 = smul.addr %s192, 2
      %s194 = scalar_lea.vmem %s4, %s193
      %p195 = scmp.lt.s32.totalorder %s16, 1
      %s196 = scalar_select %p195, %s16, 1
      %s197 = smul.addr %s196, 37
      %s198 = smul.addr %s197, 4
      %s199 = scalar_lea.vmem %s0, %s198
      %p200 = scmp.lt.s32.totalorder %s16, 1
      %s201 = scalar_select %p200, %s16, 1
      %s202 = smul.addr %s201, 32
      %s203 = smul.addr %s202, 8
      %s204 = scalar_lea.vmem %s3, %s203
      %p205 = scmp.lt.s32.totalorder %s16, 1
      %s206 = scalar_select %p205, %s16, 1
      %s207 = smul.addr %s206, 2
      %s208 = scalar_lea.vmem %s4, %s207
      %v210 = vld [vmem:[%s199] sm:$0xf]
      %v211 = vld [vmem:[%s199 + $0x4] sm:$0xf]
      %v212 = vld [vmem:[%s199 + $0x8] sm:$0xf]
      %v213 = vld [vmem:[%s199 + $0xc] sm:$0xf]
      %v214 = vld [vmem:[%s199 + $0x10] sm:$0xf]
      %v215 = vld [vmem:[%s199 + $0x14] sm:$0xf]
      %v216 = vld [vmem:[%s199 + $0x18] sm:$0xf]
      %v217 = vld [vmem:[%s199 + $0x1c] sm:$0xf]
      %v218 = vld [vmem:[%s199 + $0x20] sm:$0xf]
      %v219 = vld [vmem:[%s199 + $0x24] sm:$0xf]
      %v220 = vld [vmem:[%s199 + $0x28] sm:$0xf]
      %v221 = vld [vmem:[%s199 + $0x2c] sm:$0xf]
      %v222 = vld [vmem:[%s199 + $0x30] sm:$0xf]
      %v223 = vld [vmem:[%s199 + $0x34] sm:$0xf]
      %v224 = vld [vmem:[%s199 + $0x38] sm:$0xf]
      %v225 = vld [vmem:[%s199 + $0x3c] sm:$0xf]
      %v226 = vld [vmem:[%s199 + $0x40] sm:$0xf]
      %v227 = vld [vmem:[%s199 + $0x44] sm:$0xf]
      %v228 = vld [vmem:[%s199 + $0x48] sm:$0xf]
      %v229 = vld [vmem:[%s199 + $0x4c] sm:$0xf]
      %v230 = vld [vmem:[%s199 + $0x50] sm:$0xf]
      %v231 = vld [vmem:[%s199 + $0x54] sm:$0xf]
      %v232 = vld [vmem:[%s199 + $0x58] sm:$0xf]
      %v233 = vld [vmem:[%s199 + $0x5c] sm:$0xf]
      %v234 = vld [vmem:[%s199 + $0x60] sm:$0xf]
      %v235 = vld [vmem:[%s199 + $0x64] sm:$0xf]
      %v236 = vld [vmem:[%s199 + $0x68] sm:$0xf]
      %v237 = vld [vmem:[%s199 + $0x6c] sm:$0xf]
      %v238 = vld [vmem:[%s199 + $0x70] sm:$0xf]
      %v239 = vld [vmem:[%s199 + $0x74] sm:$0xf]
      %v240 = vld [vmem:[%s199 + $0x78] sm:$0xf]
      %v241 = vld [vmem:[%s199 + $0x7c] sm:$0xf]
      %v242 = vmax.bf16 %v210, 0
      %v243 = vmax.bf16 %v211, 0
      %v244 = vmax.bf16 %v212, 0
      %v245 = vmax.bf16 %v213, 0
      %v246 = vmax.bf16 %v214, 0
      %v247 = vmax.bf16 %v215, 0
      %v248 = vmax.bf16 %v216, 0
      %v249 = vmax.bf16 %v217, 0
      %v250 = vmax.bf16 %v218, 0
      %v251 = vmax.bf16 %v219, 0
      %v252 = vmax.bf16 %v220, 0
      %v253 = vmax.bf16 %v221, 0
      %v254 = vmax.bf16 %v222, 0
      %v255 = vmax.bf16 %v223, 0
      %v256 = vmax.bf16 %v224, 0
      %v257 = vmax.bf16 %v225, 0
      %v258 = vmax.bf16 %v226, 0
      %v259 = vmax.bf16 %v227, 0
      %v260 = vmax.bf16 %v228, 0
      %v261 = vmax.bf16 %v229, 0
      %v262 = vmax.bf16 %v230, 0
      %v263 = vmax.bf16 %v231, 0
      %v264 = vmax.bf16 %v232, 0
      %v265 = vmax.bf16 %v233, 0
      %v266 = vmax.bf16 %v234, 0
      %v267 = vmax.bf16 %v235, 0
      %v268 = vmax.bf16 %v236, 0
      %v269 = vmax.bf16 %v237, 0
      %v270 = vmax.bf16 %v238, 0
      %v271 = vmax.bf16 %v239, 0
      %v272 = vmax.bf16 %v240, 0
      %v273 = vmax.bf16 %v241, 0
      %v274 = vld [vmem:[%s1] sm:$0x3]
      %v307 = vunpack.c.l.b16 %v242
      %v308 = vunpack.c.l.b16 %v243
      %v309 = vunpack.c.l.b16 %v244
      %v310 = vunpack.c.l.b16 %v245
      %v311 = vunpack.c.l.b16 %v246
      %v312 = vunpack.c.l.b16 %v247
      %v313 = vunpack.c.l.b16 %v248
      %v314 = vunpack.c.l.b16 %v249
      %v315 = vunpack.c.l.b16 %v250
      %v316 = vunpack.c.l.b16 %v251
      %v317 = vunpack.c.l.b16 %v252
      %v318 = vunpack.c.l.b16 %v253
      %v319 = vunpack.c.l.b16 %v254
      %v320 = vunpack.c.l.b16 %v255
      %v321 = vunpack.c.l.b16 %v256
      %v322 = vunpack.c.l.b16 %v257
      %v323 = vunpack.c.l.b16 %v258
      %v324 = vunpack.c.l.b16 %v259
      %v325 = vunpack.c.l.b16 %v260
      %v326 = vunpack.c.l.b16 %v261
      %v327 = vunpack.c.l.b16 %v262
      %v328 = vunpack.c.l.b16 %v263
      %v329 = vunpack.c.l.b16 %v264
      %v330 = vunpack.c.l.b16 %v265
      %v331 = vunpack.c.l.b16 %v266
      %v332 = vunpack.c.l.b16 %v267
      %v333 = vunpack.c.l.b16 %v268
      %v334 = vunpack.c.l.b16 %v269
      %v335 = vunpack.c.l.b16 %v270
      %v336 = vunpack.c.l.b16 %v271
      %v337 = vunpack.c.l.b16 %v272
      %v338 = vunpack.c.l.b16 %v273
      %v339 = vpack.c.b16 %v308, %v307
      %v340 = vpack.c.b16 %v310, %v309
      %v341 = vpack.c.b16 %v312, %v311
      %v342 = vpack.c.b16 %v314, %v313
      %v343 = vpack.c.b16 %v316, %v315
      %v344 = vpack.c.b16 %v318, %v317
      %v345 = vpack.c.b16 %v320, %v319
      %v346 = vpack.c.b16 %v322, %v321
      %v347 = vpack.c.b16 %v324, %v323
      %v348 = vpack.c.b16 %v326, %v325
      %v349 = vpack.c.b16 %v328, %v327
      %v350 = vpack.c.b16 %v330, %v329
      %v351 = vpack.c.b16 %v332, %v331
      %v352 = vpack.c.b16 %v334, %v333
      %v353 = vpack.c.b16 %v336, %v335
      %v354 = vpack.c.b16 %v338, %v337
      %vm355 = vcmask 31744
      %v357 = vsel %vm355, %v339, 0
      %v360 = vsel %vm355, %v340, 0
      %v363 = vsel %vm355, %v341, 0
      %v366 = vsel %vm355, %v342, 0
      %v369 = vsel %vm355, %v343, 0
      %v372 = vsel %vm355, %v344, 0
      %v375 = vsel %vm355, %v345, 0
      %v378 = vsel %vm355, %v346, 0
      %v381 = vsel %vm355, %v347, 0
      %v384 = vsel %vm355, %v348, 0
      %v387 = vsel %vm355, %v349, 0
      %v390 = vsel %vm355, %v350, 0
      %v393 = vsel %vm355, %v351, 0
      %v396 = vsel %vm355, %v352, 0
      %v399 = vsel %vm355, %v353, 0
      %v402 = vsel %vm355, %v354, 0
      %vm404 = vcmask 1041408
      %v406 = vsel %vm404, %v274, 0
      %408 = vmatprep.subr.bf16.mxu0 0
      %409 = vmatpush1.bf16.msra.mxu0 %v406
      %410 = vmatprep.subr.bf16.mxu0 0
      %411 = vmatpush1.bf16.msra.mxu0 0
      %412 = vmatprep.subr.bf16.mxu0 0
      %413 = vmatpush1.bf16.msra.mxu0 0
      %414 = vmatprep.subr.bf16.mxu0 0
      %415 = vmatpush1.bf16.msra.mxu0 0
      %416 = vmatprep.subr.bf16.mxu0 0
      %417 = vmatpush1.bf16.msra.mxu0 0
      %418 = vmatprep.subr.bf16.mxu0 0
      %419 = vmatpush1.bf16.msra.mxu0 0
      %420 = vmatprep.subr.bf16.mxu0 0
      %421 = vmatpush1.bf16.msra.mxu0 0
      %422 = vmatprep.subr.bf16.mxu0 0
      %423 = vmatpush1.bf16.msra.mxu0 0
      %424 = vmatprep.subr.bf16.mxu0 0
      %425 = vmatpush1.bf16.msra.mxu0 0
      %426 = vmatprep.subr.bf16.mxu0 0
      %427 = vmatpush1.bf16.msra.mxu0 0
      %428 = vmatprep.subr.bf16.mxu0 0
      %429 = vmatpush1.bf16.msra.mxu0 0
      %430 = vmatprep.subr.bf16.mxu0 0
      %431 = vmatpush1.bf16.msra.mxu0 0
      %432 = vmatprep.subr.bf16.mxu0 0
      %433 = vmatpush1.bf16.msra.mxu0 0
      %434 = vmatprep.subr.bf16.mxu0 0
      %435 = vmatpush1.bf16.msra.mxu0 0
      %436 = vmatprep.subr.bf16.mxu0 0
      %437 = vmatpush1.bf16.msra.mxu0 0
      %438 = vmatprep.subr.bf16.mxu0 0
      %439 = vmatpush1.bf16.msra.mxu0 0
      %440 = vmatprep.mubr.bf16.mxu0 0
      %441 = vmatmul.mubr.bf16.gmra.mrb[0].mxu0 %v357
      %v442 = vpop.f32.mrb[0].mxu0
      %v443 = vadd.f32 0.0, %v442
      %v444 = vpop.f32.mrb[0].mxu0
      %v445 = vpop.f32.mrb[0].mxu0
      %v446 = vadd.f32 0.0, %v445
      %v447 = vpop.f32.mrb[0].mxu0
      %448 = vmatprep.mubr.bf16.mxu0 0
      %449 = vmatmul.mubr.bf16.gmra.mrb[0].mxu0 %v360
      %v450 = vpop.f32.mrb[0].mxu0
      %v451 = vadd.f32 0.0, %v450
      %v452 = vpop.f32.mrb[0].mxu0
      %v453 = vpop.f32.mrb[0].mxu0
      %v454 = vadd.f32 0.0, %v453
      %v455 = vpop.f32.mrb[0].mxu0
      %456 = vmatprep.mubr.bf16.mxu0 0
      %457 = vmatmul.mubr.bf16.gmra.mrb[0].mxu0 %v363
      %v458 = vpop.f32.mrb[0].mxu0
      %v459 = vadd.f32 0.0, %v458
      %v460 = vpop.f32.mrb[0].mxu0
      %v461 = vpop.f32.mrb[0].mxu0
      %v462 = vadd.f32 0.0, %v461
      %v463 = vpop.f32.mrb[0].mxu0
      %464 = vmatprep.mubr.bf16.mxu0 0
      %465 = vmatmul.mubr.bf16.gmra.mrb[0].mxu0 %v366
      %v466 = vpop.f32.mrb[0].mxu0
      %v467 = vadd.f32 0.0, %v466
      %v468 = vpop.f32.mrb[0].mxu0
      %v469 = vpop.f32.mrb[0].mxu0
      %v470 = vadd.f32 0.0, %v469
      %v471 = vpop.f32.mrb[0].mxu0
      %472 = vmatprep.mubr.bf16.mxu0 0
      %473 = vmatmul.mubr.bf16.gmra.mrb[0].mxu0 %v369
      %v474 = vpop.f32.mrb[0].mxu0
      %v475 = vadd.f32 0.0, %v474
      %v476 = vpop.f32.mrb[0].mxu0
      %v477 = vpop.f32.mrb[0].mxu0
      %v478 = vadd.f32 0.0, %v477
      %v479 = vpop.f32.mrb[0].mxu0
      %480 = vmatprep.mubr.bf16.mxu0 0
      %481 = vmatmul.mubr.bf16.gmra.mrb[0].mxu0 %v372
      %v482 = vpop.f32.mrb[0].mxu0
      %v483 = vadd.f32 0.0, %v482
      %v484 = vpop.f32.mrb[0].mxu0
      %v485 = vpop.f32.mrb[0].mxu0
      %v486 = vadd.f32 0.0, %v485
      %v487 = vpop.f32.mrb[0].mxu0
      %488 = vmatprep.mubr.bf16.mxu0 0
      %489 = vmatmul.mubr.bf16.gmra.mrb[0].mxu0 %v375
      %v490 = vpop.f32.mrb[0].mxu0
      %v491 = vadd.f32 0.0, %v490
      %v492 = vpop.f32.mrb[0].mxu0
      %v493 = vpop.f32.mrb[0].mxu0
      %v494 = vadd.f32 0.0, %v493
      %v495 = vpop.f32.mrb[0].mxu0
      %496 = vmatprep.mubr.bf16.mxu0 0
      %497 = vmatmul.mubr.bf16.gmra.mrb[0].mxu0 %v378
      %v498 = vpop.f32.mrb[0].mxu0
      %v499 = vadd.f32 0.0, %v498
      %v500 = vpop.f32.mrb[0].mxu0
      %v501 = vpop.f32.mrb[0].mxu0
      %v502 = vadd.f32 0.0, %v501
      %v503 = vpop.f32.mrb[0].mxu0
      %504 = vmatprep.mubr.bf16.mxu0 0
      %505 = vmatmul.mubr.bf16.gmra.mrb[0].mxu0 %v381
      %v506 = vpop.f32.mrb[0].mxu0
      %v507 = vadd.f32 0.0, %v506
      %v508 = vpop.f32.mrb[0].mxu0
      %v509 = vpop.f32.mrb[0].mxu0
      %v510 = vadd.f32 0.0, %v509
      %v511 = vpop.f32.mrb[0].mxu0
      %512 = vmatprep.mubr.bf16.mxu0 0
      %513 = vmatmul.mubr.bf16.gmra.mrb[0].mxu0 %v384
      %v514 = vpop.f32.mrb[0].mxu0
      %v515 = vadd.f32 0.0, %v514
      %v516 = vpop.f32.mrb[0].mxu0
      %v517 = vpop.f32.mrb[0].mxu0
      %v518 = vadd.f32 0.0, %v517
      %v519 = vpop.f32.mrb[0].mxu0
      %520 = vmatprep.mubr.bf16.mxu0 0
      %521 = vmatmul.mubr.bf16.gmra.mrb[0].mxu0 %v387
      %v522 = vpop.f32.mrb[0].mxu0
      %v523 = vadd.f32 0.0, %v522
      %v524 = vpop.f32.mrb[0].mxu0
      %v525 = vpop.f32.mrb[0].mxu0
      %v526 = vadd.f32 0.0, %v525
      %v527 = vpop.f32.mrb[0].mxu0
      %528 = vmatprep.mubr.bf16.mxu0 0
      %529 = vmatmul.mubr.bf16.gmra.mrb[0].mxu0 %v390
      %v530 = vpop.f32.mrb[0].mxu0
      %v531 = vadd.f32 0.0, %v530
      %v532 = vpop.f32.mrb[0].mxu0
      %v533 = vpop.f32.mrb[0].mxu0
      %v534 = vadd.f32 0.0, %v533
      %v535 = vpop.f32.mrb[0].mxu0
      %536 = vmatprep.mubr.bf16.mxu0 0
      %537 = vmatmul.mubr.bf16.gmra.mrb[0].mxu0 %v393
      %v538 = vpop.f32.mrb[0].mxu0
      %v539 = vadd.f32 0.0, %v538
      %v540 = vpop.f32.mrb[0].mxu0
      %v541 = vpop.f32.mrb[0].mxu0
      %v542 = vadd.f32 0.0, %v541
      %v543 = vpop.f32.mrb[0].mxu0
      %544 = vmatprep.mubr.bf16.mxu0 0
      %545 = vmatmul.mubr.bf16.gmra.mrb[0].mxu0 %v396
      %v546 = vpop.f32.mrb[0].mxu0
      %v547 = vadd.f32 0.0, %v546
      %v548 = vpop.f32.mrb[0].mxu0
      %v549 = vpop.f32.mrb[0].mxu0
      %v550 = vadd.f32 0.0, %v549
      %v551 = vpop.f32.mrb[0].mxu0
      %552 = vmatprep.mubr.bf16.mxu0 0
      %553 = vmatmul.mubr.bf16.gmra.mrb[0].mxu0 %v399
      %v554 = vpop.f32.mrb[0].mxu0
      %v555 = vadd.f32 0.0, %v554
      %v556 = vpop.f32.mrb[0].mxu0
      %v557 = vpop.f32.mrb[0].mxu0
      %v558 = vadd.f32 0.0, %v557
      %v559 = vpop.f32.mrb[0].mxu0
      %560 = vmatprep.mubr.bf16.mxu0 0
      %561 = vmatmul.mubr.bf16.gmra.mrb[0].mxu0 %v402
      %v562 = vpop.f32.mrb[0].mxu0
      %v563 = vadd.f32 0.0, %v562
      %v564 = vpop.f32.mrb[0].mxu0
      %v565 = vpop.f32.mrb[0].mxu0
      %v566 = vadd.f32 0.0, %v565
      %v567 = vpop.f32.mrb[0].mxu0
      %568 = vdwg.mxu0
      %v569 = vld [vmem:[%s2] sm:$0xff]
      %v570 = vld [vmem:[%s2 + $0x8] sm:$0xff]
      %v571 = vld [vmem:[%s2 + $0x10] sm:$0xff]
      %v572 = vld [vmem:[%s2 + $0x18] sm:$0xff]
      %v573 = vld [vmem:[%s2 + $0x20] sm:$0xff]
      %v574 = vld [vmem:[%s2 + $0x28] sm:$0xff]
      %v575 = vld [vmem:[%s2 + $0x30] sm:$0xff]
      %v576 = vld [vmem:[%s2 + $0x38] sm:$0xff]
      %v577 = vld [vmem:[%s2 + $0x40] sm:$0xff]
      %v578 = vld [vmem:[%s2 + $0x48] sm:$0xff]
      %v579 = vld [vmem:[%s2 + $0x50] sm:$0xff]
      %v580 = vld [vmem:[%s2 + $0x58] sm:$0xff]
      %v581 = vld [vmem:[%s2 + $0x60] sm:$0xff]
      %v582 = vld [vmem:[%s2 + $0x68] sm:$0xff]
      %v583 = vld [vmem:[%s2 + $0x70] sm:$0xff]
      %v584 = vld [vmem:[%s2 + $0x78] sm:$0xff]
      %v585 = vld [vmem:[%s2 + $0x80] sm:$0xff]
      %v586 = vld [vmem:[%s2 + $0x88] sm:$0xff]
      %v587 = vld [vmem:[%s2 + $0x90] sm:$0xff]
      %v588 = vld [vmem:[%s2 + $0x98] sm:$0xff]
      %v589 = vld [vmem:[%s2 + $0xa0] sm:$0xff]
      %v590 = vld [vmem:[%s2 + $0xa8] sm:$0xff]
      %v591 = vld [vmem:[%s2 + $0xb0] sm:$0xff]
      %v592 = vld [vmem:[%s2 + $0xb8] sm:$0xff]
      %v593 = vld [vmem:[%s2 + $0xc0] sm:$0xff]
      %v594 = vld [vmem:[%s2 + $0xc8] sm:$0xff]
      %v595 = vld [vmem:[%s2 + $0xd0] sm:$0xff]
      %v596 = vld [vmem:[%s2 + $0xd8] sm:$0xff]
      %v597 = vld [vmem:[%s2 + $0xe0] sm:$0xff]
      %v598 = vld [vmem:[%s2 + $0xe8] sm:$0xff]
      %v599 = vld [vmem:[%s2 + $0xf0] sm:$0xff]
      %v600 = vld [vmem:[%s2 + $0xf8] sm:$0xff]
      %602 = vset.pattern.permute.xlu0 0
      %603 = vperm.xlu0 %602, %v569
      %v604 = vpop.permute.xlu0 %603
      %607 = vset.pattern.permute.xlu0 0
      %608 = vperm.xlu0 %607, %v570
      %v609 = vpop.permute.xlu0 %608
      %612 = vset.pattern.permute.xlu0 0
      %613 = vperm.xlu0 %612, %v571
      %v614 = vpop.permute.xlu0 %613
      %617 = vset.pattern.permute.xlu0 0
      %618 = vperm.xlu0 %617, %v572
      %v619 = vpop.permute.xlu0 %618
      %622 = vset.pattern.permute.xlu0 0
      %623 = vperm.xlu0 %622, %v573
      %v624 = vpop.permute.xlu0 %623
      %627 = vset.pattern.permute.xlu0 0
      %628 = vperm.xlu0 %627, %v574
      %v629 = vpop.permute.xlu0 %628
      %632 = vset.pattern.permute.xlu0 0
      %633 = vperm.xlu0 %632, %v575
      %v634 = vpop.permute.xlu0 %633
      %637 = vset.pattern.permute.xlu0 0
      %638 = vperm.xlu0 %637, %v576
      %v639 = vpop.permute.xlu0 %638
      %642 = vset.pattern.permute.xlu0 0
      %643 = vperm.xlu0 %642, %v577
      %v644 = vpop.permute.xlu0 %643
      %647 = vset.pattern.permute.xlu0 0
      %648 = vperm.xlu0 %647, %v578
      %v649 = vpop.permute.xlu0 %648
      %652 = vset.pattern.permute.xlu0 0
      %653 = vperm.xlu0 %652, %v579
      %v654 = vpop.permute.xlu0 %653
      %657 = vset.pattern.permute.xlu0 0
      %658 = vperm.xlu0 %657, %v580
      %v659 = vpop.permute.xlu0 %658
      %662 = vset.pattern.permute.xlu0 0
      %663 = vperm.xlu0 %662, %v581
      %v664 = vpop.permute.xlu0 %663
      %667 = vset.pattern.permute.xlu0 0
      %668 = vperm.xlu0 %667, %v582
      %v669 = vpop.permute.xlu0 %668
      %672 = vset.pattern.permute.xlu0 0
      %673 = vperm.xlu0 %672, %v583
      %v674 = vpop.permute.xlu0 %673
      %677 = vset.pattern.permute.xlu0 0
      %678 = vperm.xlu0 %677, %v584
      %v679 = vpop.permute.xlu0 %678
      %682 = vset.pattern.permute.xlu0 0
      %683 = vperm.xlu0 %682, %v585
      %v684 = vpop.permute.xlu0 %683
      %687 = vset.pattern.permute.xlu0 0
      %688 = vperm.xlu0 %687, %v586
      %v689 = vpop.permute.xlu0 %688
      %692 = vset.pattern.permute.xlu0 0
      %693 = vperm.xlu0 %692, %v587
      %v694 = vpop.permute.xlu0 %693
      %697 = vset.pattern.permute.xlu0 0
      %698 = vperm.xlu0 %697, %v588
      %v699 = vpop.permute.xlu0 %698
      %702 = vset.pattern.permute.xlu0 0
      %703 = vperm.xlu0 %702, %v589
      %v704 = vpop.permute.xlu0 %703
      %707 = vset.pattern.permute.xlu0 0
      %708 = vperm.xlu0 %707, %v590
      %v709 = vpop.permute.xlu0 %708
      %712 = vset.pattern.permute.xlu0 0
      %713 = vperm.xlu0 %712, %v591
      %v714 = vpop.permute.xlu0 %713
      %717 = vset.pattern.permute.xlu0 0
      %718 = vperm.xlu0 %717, %v592
      %v719 = vpop.permute.xlu0 %718
      %722 = vset.pattern.permute.xlu0 0
      %723 = vperm.xlu0 %722, %v593
      %v724 = vpop.permute.xlu0 %723
      %727 = vset.pattern.permute.xlu0 0
      %728 = vperm.xlu0 %727, %v594
      %v729 = vpop.permute.xlu0 %728
      %732 = vset.pattern.permute.xlu0 0
      %733 = vperm.xlu0 %732, %v595
      %v734 = vpop.permute.xlu0 %733
      %737 = vset.pattern.permute.xlu0 0
      %738 = vperm.xlu0 %737, %v596
      %v739 = vpop.permute.xlu0 %738
      %742 = vset.pattern.permute.xlu0 0
      %743 = vperm.xlu0 %742, %v597
      %v744 = vpop.permute.xlu0 %743
      %747 = vset.pattern.permute.xlu0 0
      %748 = vperm.xlu0 %747, %v598
      %v749 = vpop.permute.xlu0 %748
      %752 = vset.pattern.permute.xlu0 0
      %753 = vperm.xlu0 %752, %v599
      %v754 = vpop.permute.xlu0 %753
      %757 = vset.pattern.permute.xlu0 0
      %758 = vperm.xlu0 %757, %v600
      %v759 = vpop.permute.xlu0 %758
      %v761 = vmul.f32 %v443, %v604
      %v762 = vmul.f32 %v446, %v609
      %v763 = vmul.f32 %v451, %v614
      %v764 = vmul.f32 %v454, %v619
      %v765 = vmul.f32 %v459, %v624
      %v766 = vmul.f32 %v462, %v629
      %v767 = vmul.f32 %v467, %v634
      %v768 = vmul.f32 %v470, %v639
      %v769 = vmul.f32 %v475, %v644
      %v770 = vmul.f32 %v478, %v649
      %v771 = vmul.f32 %v483, %v654
      %v772 = vmul.f32 %v486, %v659
      %v773 = vmul.f32 %v491, %v664
      %v774 = vmul.f32 %v494, %v669
      %v775 = vmul.f32 %v499, %v674
      %v776 = vmul.f32 %v502, %v679
      %v777 = vmul.f32 %v507, %v684
      %v778 = vmul.f32 %v510, %v689
      %v779 = vmul.f32 %v515, %v694
      %v780 = vmul.f32 %v518, %v699
      %v781 = vmul.f32 %v523, %v704
      %v782 = vmul.f32 %v526, %v709
      %v783 = vmul.f32 %v531, %v714
      %v784 = vmul.f32 %v534, %v719
      %v785 = vmul.f32 %v539, %v724
      %v786 = vmul.f32 %v542, %v729
      %v787 = vmul.f32 %v547, %v734
      %v788 = vmul.f32 %v550, %v739
      %v789 = vmul.f32 %v555, %v744
      %v790 = vmul.f32 %v558, %v749
      %v791 = vmul.f32 %v563, %v754
      %v792 = vmul.f32 %v566, %v759
      %v793 = vadd.f32 %v761, 0.0
      %v794 = vadd.f32 %v762, 0.0
      %v795 = vadd.f32 %v763, 0.0
      %v796 = vadd.f32 %v764, 0.0
      %v797 = vadd.f32 %v765, 0.0
      %v798 = vadd.f32 %v766, 0.0
      %v799 = vadd.f32 %v767, 0.0
      %v800 = vadd.f32 %v768, 0.0
      %v801 = vadd.f32 %v769, 0.0
      %v802 = vadd.f32 %v770, 0.0
      %v803 = vadd.f32 %v771, 0.0
      %v804 = vadd.f32 %v772, 0.0
      %v805 = vadd.f32 %v773, 0.0
      %v806 = vadd.f32 %v774, 0.0
      %v807 = vadd.f32 %v775, 0.0
      %v808 = vadd.f32 %v776, 0.0
      %v809 = vadd.f32 %v777, 0.0
      %v810 = vadd.f32 %v778, 0.0
      %v811 = vadd.f32 %v779, 0.0
      %v812 = vadd.f32 %v780, 0.0
      %v813 = vadd.f32 %v781, 0.0
      %v814 = vadd.f32 %v782, 0.0
      %v815 = vadd.f32 %v783, 0.0
      %v816 = vadd.f32 %v784, 0.0
      %v817 = vadd.f32 %v785, 0.0
      %v818 = vadd.f32 %v786, 0.0
      %v819 = vadd.f32 %v787, 0.0
      %v820 = vadd.f32 %v788, 0.0
      %v821 = vadd.f32 %v789, 0.0
      %v822 = vadd.f32 %v790, 0.0
      %v823 = vadd.f32 %v791, 0.0
      %v824 = vadd.f32 %v792, 0.0
      %v825 = vld [vmem:[%s199] sm:$0xf]
      %v826 = vld [vmem:[%s199 + $0x4] sm:$0xf]
      %v827 = vld [vmem:[%s199 + $0x8] sm:$0xf]
      %v828 = vld [vmem:[%s199 + $0xc] sm:$0xf]
      %v829 = vld [vmem:[%s199 + $0x10] sm:$0xf]
      %v830 = vld [vmem:[%s199 + $0x14] sm:$0xf]
      %v831 = vld [vmem:[%s199 + $0x18] sm:$0xf]
      %v832 = vld [vmem:[%s199 + $0x1c] sm:$0xf]
      %v833 = vld [vmem:[%s199 + $0x20] sm:$0xf]
      %v834 = vld [vmem:[%s199 + $0x24] sm:$0xf]
      %v835 = vld [vmem:[%s199 + $0x28] sm:$0xf]
      %v836 = vld [vmem:[%s199 + $0x2c] sm:$0xf]
      %v837 = vld [vmem:[%s199 + $0x30] sm:$0xf]
      %v838 = vld [vmem:[%s199 + $0x34] sm:$0xf]
      %v839 = vld [vmem:[%s199 + $0x38] sm:$0xf]
      %v840 = vld [vmem:[%s199 + $0x3c] sm:$0xf]
      %v841 = vld [vmem:[%s199 + $0x40] sm:$0xf]
      %v842 = vld [vmem:[%s199 + $0x44] sm:$0xf]
      %v843 = vld [vmem:[%s199 + $0x48] sm:$0xf]
      %v844 = vld [vmem:[%s199 + $0x4c] sm:$0xf]
      %v845 = vld [vmem:[%s199 + $0x50] sm:$0xf]
      %v846 = vld [vmem:[%s199 + $0x54] sm:$0xf]
      %v847 = vld [vmem:[%s199 + $0x58] sm:$0xf]
      %v848 = vld [vmem:[%s199 + $0x5c] sm:$0xf]
      %v849 = vld [vmem:[%s199 + $0x60] sm:$0xf]
      %v850 = vld [vmem:[%s199 + $0x64] sm:$0xf]
      %v851 = vld [vmem:[%s199 + $0x68] sm:$0xf]
      %v852 = vld [vmem:[%s199 + $0x6c] sm:$0xf]
      %v853 = vld [vmem:[%s199 + $0x70] sm:$0xf]
      %v854 = vld [vmem:[%s199 + $0x74] sm:$0xf]
      %v855 = vld [vmem:[%s199 + $0x78] sm:$0xf]
      %v856 = vld [vmem:[%s199 + $0x7c] sm:$0xf]
      %v857 = vld [vmem:[%s199 + $0x80] sm:$0x1]
      %v858 = vmax.bf16 %v825, 0
      %v859 = vmax.bf16 %v826, 0
      %v860 = vmax.bf16 %v827, 0
      %v861 = vmax.bf16 %v828, 0
      %v862 = vmax.bf16 %v829, 0
      %v863 = vmax.bf16 %v830, 0
      %v864 = vmax.bf16 %v831, 0
      %v865 = vmax.bf16 %v832, 0
      %v866 = vmax.bf16 %v833, 0
      %v867 = vmax.bf16 %v834, 0
      %v868 = vmax.bf16 %v835, 0
      %v869 = vmax.bf16 %v836, 0
      %v870 = vmax.bf16 %v837, 0
      %v871 = vmax.bf16 %v838, 0
      %v872 = vmax.bf16 %v839, 0
      %v873 = vmax.bf16 %v840, 0
      %v874 = vmax.bf16 %v841, 0
      %v875 = vmax.bf16 %v842, 0
      %v876 = vmax.bf16 %v843, 0
      %v877 = vmax.bf16 %v844, 0
      %v878 = vmax.bf16 %v845, 0
      %v879 = vmax.bf16 %v846, 0
      %v880 = vmax.bf16 %v847, 0
      %v881 = vmax.bf16 %v848, 0
      %v882 = vmax.bf16 %v849, 0
      %v883 = vmax.bf16 %v850, 0
      %v884 = vmax.bf16 %v851, 0
      %v885 = vmax.bf16 %v852, 0
      %v886 = vmax.bf16 %v853, 0
      %v887 = vmax.bf16 %v854, 0
      %v888 = vmax.bf16 %v855, 0
      %v889 = vmax.bf16 %v856, 0
      %v890 = vmax.bf16 %v857, 0
      %s891 = scalar_lea.vmem %s1, 2
      %v892 = vld [vmem:[%s891] sm:$0x3]
      %v926 = vunpack.c.l.b16 %v858
      %v927 = vunpack.c.l.b16 %v859
      %v928 = vunpack.c.l.b16 %v860
      %v929 = vunpack.c.l.b16 %v861
      %v930 = vunpack.c.l.b16 %v862
      %v931 = vunpack.c.l.b16 %v863
      %v932 = vunpack.c.l.b16 %v864
      %v933 = vunpack.c.l.b16 %v865
      %v934 = vunpack.c.l.b16 %v866
      %v935 = vunpack.c.l.b16 %v867
      %v936 = vunpack.c.l.b16 %v868
      %v937 = vunpack.c.l.b16 %v869
      %v938 = vunpack.c.l.b16 %v870
      %v939 = vunpack.c.l.b16 %v871
      %v940 = vunpack.c.l.b16 %v872
      %v941 = vunpack.c.l.b16 %v873
      %v942 = vunpack.c.l.b16 %v874
      %v943 = vunpack.c.l.b16 %v875
      %v944 = vunpack.c.l.b16 %v876
      %v945 = vunpack.c.l.b16 %v877
      %v946 = vunpack.c.l.b16 %v878
      %v947 = vunpack.c.l.b16 %v879
      %v948 = vunpack.c.l.b16 %v880
      %v949 = vunpack.c.l.b16 %v881
      %v950 = vunpack.c.l.b16 %v882
      %v951 = vunpack.c.l.b16 %v883
      %v952 = vunpack.c.l.b16 %v884
      %v953 = vunpack.c.l.b16 %v885
      %v954 = vunpack.c.l.b16 %v886
      %v955 = vunpack.c.l.b16 %v887
      %v956 = vunpack.c.l.b16 %v888
      %v957 = vunpack.c.l.b16 %v889
      %v958 = vunpack.c.l.b16 %v890
      %v959 = vpack.c.b16 %v927, %v926
      %v960 = vpack.c.b16 %v929, %v928
      %v961 = vpack.c.b16 %v931, %v930
      %v962 = vpack.c.b16 %v933, %v932
      %v963 = vpack.c.b16 %v935, %v934
      %v964 = vpack.c.b16 %v937, %v936
      %v965 = vpack.c.b16 %v939, %v938
      %v966 = vpack.c.b16 %v941, %v940
      %v967 = vpack.c.b16 %v943, %v942
      %v968 = vpack.c.b16 %v945, %v944
      %v969 = vpack.c.b16 %v947, %v946
      %v970 = vpack.c.b16 %v949, %v948
      %v971 = vpack.c.b16 %v951, %v950
      %v972 = vpack.c.b16 %v953, %v952
      %v973 = vpack.c.b16 %v955, %v954
      %v974 = vpack.c.b16 %v957, %v956
      %v975 = vpack.c.b16 %v958, %v958
      %vm976 = vsmask.f32 7424
      %v978 = vshrl.u32 %v959, 16
      %v980 = vshll.u32 %v959, 16
      %v982 = vrot.slane %v980, 1
      %v983 = vor.u32 %v978, %v982
      %v985 = vshll.u32 %v960, 16
      %v987 = vrot.slane %v985, 1
      %v988 = vsel %vm976, %v983, %v987
      %v989 = vshrl.u32 %v960, 16
      %v991 = vor.u32 %v989, %v987
      %v993 = vshll.u32 %v961, 16
      %v995 = vrot.slane %v993, 1
      %v996 = vsel %vm976, %v991, %v995
      %v997 = vshrl.u32 %v961, 16
      %v999 = vor.u32 %v997, %v995
      %v1001 = vshll.u32 %v962, 16
      %v1003 = vrot.slane %v1001, 1
      %v1004 = vsel %vm976, %v999, %v1003
      %v1005 = vshrl.u32 %v962, 16
      %v1007 = vor.u32 %v1005, %v1003
      %v1009 = vshll.u32 %v963, 16
      %v1011 = vrot.slane %v1009, 1
      %v1012 = vsel %vm976, %v1007, %v1011
      %v1013 = vshrl.u32 %v963, 16
      %v1015 = vor.u32 %v1013, %v1011
      %v1017 = vshll.u32 %v964, 16
      %v1019 = vrot.slane %v1017, 1
      %v1020 = vsel %vm976, %v1015, %v1019
      %v1021 = vshrl.u32 %v964, 16
      %v1023 = vor.u32 %v1021, %v1019
      %v1025 = vshll.u32 %v965, 16
      %v1027 = vrot.slane %v1025, 1
      %v1028 = vsel %vm976, %v1023, %v1027
      %v1029 = vshrl.u32 %v965, 16
      %v1031 = vor.u32 %v1029, %v1027
      %v1033 = vshll.u32 %v966, 16
      %v1035 = vrot.slane %v1033, 1
      %v1036 = vsel %vm976, %v1031, %v1035
      %v1037 = vshrl.u32 %v966, 16
      %v1039 = vor.u32 %v1037, %v1035
      %v1041 = vshll.u32 %v967, 16
      %v1043 = vrot.slane %v1041, 1
      %v1044 = vsel %vm976, %v1039, %v1043
      %v1045 = vshrl.u32 %v967, 16
      %v1047 = vor.u32 %v1045, %v1043
      %v1049 = vshll.u32 %v968, 16
      %v1051 = vrot.slane %v1049, 1
      %v1052 = vsel %vm976, %v1047, %v1051
      %v1053 = vshrl.u32 %v968, 16
      %v1055 = vor.u32 %v1053, %v1051
      %v1057 = vshll.u32 %v969, 16
      %v1059 = vrot.slane %v1057, 1
      %v1060 = vsel %vm976, %v1055, %v1059
      %v1061 = vshrl.u32 %v969, 16
      %v1063 = vor.u32 %v1061, %v1059
      %v1065 = vshll.u32 %v970, 16
      %v1067 = vrot.slane %v1065, 1
      %v1068 = vsel %vm976, %v1063, %v1067
      %v1069 = vshrl.u32 %v970, 16
      %v1071 = vor.u32 %v1069, %v1067
      %v1073 = vshll.u32 %v971, 16
      %v1075 = vrot.slane %v1073, 1
      %v1076 = vsel %vm976, %v1071, %v1075
      %v1077 = vshrl.u32 %v971, 16
      %v1079 = vor.u32 %v1077, %v1075
      %v1081 = vshll.u32 %v972, 16
      %v1083 = vrot.slane %v1081, 1
      %v1084 = vsel %vm976, %v1079, %v1083
      %v1085 = vshrl.u32 %v972, 16
      %v1087 = vor.u32 %v1085, %v1083
      %v1089 = vshll.u32 %v973, 16
      %v1091 = vrot.slane %v1089, 1
      %v1092 = vsel %vm976, %v1087, %v1091
      %v1093 = vshrl.u32 %v973, 16
      %v1095 = vor.u32 %v1093, %v1091
      %v1097 = vshll.u32 %v974, 16
      %v1099 = vrot.slane %v1097, 1
      %v1100 = vsel %vm976, %v1095, %v1099
      %v1101 = vshrl.u32 %v974, 16
      %v1103 = vor.u32 %v1101, %v1099
      %v1105 = vshll.u32 %v975, 16
      %v1107 = vrot.slane %v1105, 1
      %v1108 = vsel %vm976, %v1103, %v1107
      %v1110 = vsel %vm355, %v988, 0
      %v1113 = vsel %vm355, %v996, 0
      %v1116 = vsel %vm355, %v1004, 0
      %v1119 = vsel %vm355, %v1012, 0
      %v1122 = vsel %vm355, %v1020, 0
      %v1125 = vsel %vm355, %v1028, 0
      %v1128 = vsel %vm355, %v1036, 0
      %v1131 = vsel %vm355, %v1044, 0
      %v1134 = vsel %vm355, %v1052, 0
      %v1137 = vsel %vm355, %v1060, 0
      %v1140 = vsel %vm355, %v1068, 0
      %v1143 = vsel %vm355, %v1076, 0
      %v1146 = vsel %vm355, %v1084, 0
      %v1149 = vsel %vm355, %v1092, 0
      %v1152 = vsel %vm355, %v1100, 0
      %v1155 = vsel %vm355, %v1108, 0
      %v1158 = vsel %vm404, %v892, 0
      %1160 = vmatprep.subr.bf16.mxu0 0
      %1161 = vmatpush1.bf16.msra.mxu0 %v1158
      %1162 = vmatprep.subr.bf16.mxu0 0
      %1163 = vmatpush1.bf16.msra.mxu0 0
      %1164 = vmatprep.subr.bf16.mxu0 0
      %1165 = vmatpush1.bf16.msra.mxu0 0
      %1166 = vmatprep.subr.bf16.mxu0 0
      %1167 = vmatpush1.bf16.msra.mxu0 0
      %1168 = vmatprep.subr.bf16.mxu0 0
      %1169 = vmatpush1.bf16.msra.mxu0 0
      %1170 = vmatprep.subr.bf16.mxu0 0
      %1171 = vmatpush1.bf16.msra.mxu0 0
      %1172 = vmatprep.subr.bf16.mxu0 0
      %1173 = vmatpush1.bf16.msra.mxu0 0
      %1174 = vmatprep.subr.bf16.mxu0 0
      %1175 = vmatpush1.bf16.msra.mxu0 0
      %1176 = vmatprep.subr.bf16.mxu0 0
      %1177 = vmatpush1.bf16.msra.mxu0 0
      %1178 = vmatprep.subr.bf16.mxu0 0
      %1179 = vmatpush1.bf16.msra.mxu0 0
      %1180 = vmatprep.subr.bf16.mxu0 0
      %1181 = vmatpush1.bf16.msra.mxu0 0
      %1182 = vmatprep.subr.bf16.mxu0 0
      %1183 = vmatpush1.bf16.msra.mxu0 0
      %1184 = vmatprep.subr.bf16.mxu0 0
      %1185 = vmatpush1.bf16.msra.mxu0 0
      %1186 = vmatprep.subr.bf16.mxu0 0
      %1187 = vmatpush1.bf16.msra.mxu0 0
      %1188 = vmatprep.subr.bf16.mxu0 0
      %1189 = vmatpush1.bf16.msra.mxu0 0
      %1190 = vmatprep.subr.bf16.mxu0 0
      %1191 = vmatpush1.bf16.msra.mxu0 0
      %1192 = vmatprep.mubr.bf16.mxu0 0
      %1193 = vmatmul.mubr.bf16.gmra.mrb[0].mxu0 %v1110
      %v1194 = vpop.f32.mrb[0].mxu0
      %v1195 = vadd.f32 0.0, %v1194
      %v1196 = vpop.f32.mrb[0].mxu0
      %v1197 = vpop.f32.mrb[0].mxu0
      %v1198 = vadd.f32 0.0, %v1197
      %v1199 = vpop.f32.mrb[0].mxu0
      %1200 = vmatprep.mubr.bf16.mxu0 0
      %1201 = vmatmul.mubr.bf16.gmra.mrb[0].mxu0 %v1113
      %v1202 = vpop.f32.mrb[0].mxu0
      %v1203 = vadd.f32 0.0, %v1202
      %v1204 = vpop.f32.mrb[0].mxu0
      %v1205 = vpop.f32.mrb[0].mxu0
      %v1206 = vadd.f32 0.0, %v1205
      %v1207 = vpop.f32.mrb[0].mxu0
      %1208 = vmatprep.mubr.bf16.mxu0 0
      %1209 = vmatmul.mubr.bf16.gmra.mrb[0].mxu0 %v1116
      %v1210 = vpop.f32.mrb[0].mxu0
      %v1211 = vadd.f32 0.0, %v1210
      %v1212 = vpop.f32.mrb[0].mxu0
      %v1213 = vpop.f32.mrb[0].mxu0
      %v1214 = vadd.f32 0.0, %v1213
      %v1215 = vpop.f32.mrb[0].mxu0
      %1216 = vmatprep.mubr.bf16.mxu0 0
      %1217 = vmatmul.mubr.bf16.gmra.mrb[0].mxu0 %v1119
      %v1218 = vpop.f32.mrb[0].mxu0
      %v1219 = vadd.f32 0.0, %v1218
      %v1220 = vpop.f32.mrb[0].mxu0
      %v1221 = vpop.f32.mrb[0].mxu0
      %v1222 = vadd.f32 0.0, %v1221
      %v1223 = vpop.f32.mrb[0].mxu0
      %1224 = vmatprep.mubr.bf16.mxu0 0
      %1225 = vmatmul.mubr.bf16.gmra.mrb[0].mxu0 %v1122
      %v1226 = vpop.f32.mrb[0].mxu0
      %v1227 = vadd.f32 0.0, %v1226
      %v1228 = vpop.f32.mrb[0].mxu0
      %v1229 = vpop.f32.mrb[0].mxu0
      %v1230 = vadd.f32 0.0, %v1229
      %v1231 = vpop.f32.mrb[0].mxu0
      %1232 = vmatprep.mubr.bf16.mxu0 0
      %1233 = vmatmul.mubr.bf16.gmra.mrb[0].mxu0 %v1125
      %v1234 = vpop.f32.mrb[0].mxu0
      %v1235 = vadd.f32 0.0, %v1234
      %v1236 = vpop.f32.mrb[0].mxu0
      %v1237 = vpop.f32.mrb[0].mxu0
      %v1238 = vadd.f32 0.0, %v1237
      %v1239 = vpop.f32.mrb[0].mxu0
      %1240 = vmatprep.mubr.bf16.mxu0 0
      %1241 = vmatmul.mubr.bf16.gmra.mrb[0].mxu0 %v1128
      %v1242 = vpop.f32.mrb[0].mxu0
      %v1243 = vadd.f32 0.0, %v1242
      %v1244 = vpop.f32.mrb[0].mxu0
      %v1245 = vpop.f32.mrb[0].mxu0
      %v1246 = vadd.f32 0.0, %v1245
      %v1247 = vpop.f32.mrb[0].mxu0
      %1248 = vmatprep.mubr.bf16.mxu0 0
      %1249 = vmatmul.mubr.bf16.gmra.mrb[0].mxu0 %v1131
      %v1250 = vpop.f32.mrb[0].mxu0
      %v1251 = vadd.f32 0.0, %v1250
      %v1252 = vpop.f32.mrb[0].mxu0
      %v1253 = vpop.f32.mrb[0].mxu0
      %v1254 = vadd.f32 0.0, %v1253
      %v1255 = vpop.f32.mrb[0].mxu0
      %1256 = vmatprep.mubr.bf16.mxu0 0
      %1257 = vmatmul.mubr.bf16.gmra.mrb[0].mxu0 %v1134
      %v1258 = vpop.f32.mrb[0].mxu0
      %v1259 = vadd.f32 0.0, %v1258
      %v1260 = vpop.f32.mrb[0].mxu0
      %v1261 = vpop.f32.mrb[0].mxu0
      %v1262 = vadd.f32 0.0, %v1261
      %v1263 = vpop.f32.mrb[0].mxu0
      %1264 = vmatprep.mubr.bf16.mxu0 0
      %1265 = vmatmul.mubr.bf16.gmra.mrb[0].mxu0 %v1137
      %v1266 = vpop.f32.mrb[0].mxu0
      %v1267 = vadd.f32 0.0, %v1266
      %v1268 = vpop.f32.mrb[0].mxu0
      %v1269 = vpop.f32.mrb[0].mxu0
      %v1270 = vadd.f32 0.0, %v1269
      %v1271 = vpop.f32.mrb[0].mxu0
      %1272 = vmatprep.mubr.bf16.mxu0 0
      %1273 = vmatmul.mubr.bf16.gmra.mrb[0].mxu0 %v1140
      %v1274 = vpop.f32.mrb[0].mxu0
      %v1275 = vadd.f32 0.0, %v1274
      %v1276 = vpop.f32.mrb[0].mxu0
      %v1277 = vpop.f32.mrb[0].mxu0
      %v1278 = vadd.f32 0.0, %v1277
      %v1279 = vpop.f32.mrb[0].mxu0
      %1280 = vmatprep.mubr.bf16.mxu0 0
      %1281 = vmatmul.mubr.bf16.gmra.mrb[0].mxu0 %v1143
      %v1282 = vpop.f32.mrb[0].mxu0
      %v1283 = vadd.f32 0.0, %v1282
      %v1284 = vpop.f32.mrb[0].mxu0
      %v1285 = vpop.f32.mrb[0].mxu0
      %v1286 = vadd.f32 0.0, %v1285
      %v1287 = vpop.f32.mrb[0].mxu0
      %1288 = vmatprep.mubr.bf16.mxu0 0
      %1289 = vmatmul.mubr.bf16.gmra.mrb[0].mxu0 %v1146
      %v1290 = vpop.f32.mrb[0].mxu0
      %v1291 = vadd.f32 0.0, %v1290
      %v1292 = vpop.f32.mrb[0].mxu0
      %v1293 = vpop.f32.mrb[0].mxu0
      %v1294 = vadd.f32 0.0, %v1293
      %v1295 = vpop.f32.mrb[0].mxu0
      %1296 = vmatprep.mubr.bf16.mxu0 0
      %1297 = vmatmul.mubr.bf16.gmra.mrb[0].mxu0 %v1149
      %v1298 = vpop.f32.mrb[0].mxu0
      %v1299 = vadd.f32 0.0, %v1298
      %v1300 = vpop.f32.mrb[0].mxu0
      %v1301 = vpop.f32.mrb[0].mxu0
      %v1302 = vadd.f32 0.0, %v1301
      %v1303 = vpop.f32.mrb[0].mxu0
      %1304 = vmatprep.mubr.bf16.mxu0 0
      %1305 = vmatmul.mubr.bf16.gmra.mrb[0].mxu0 %v1152
      %v1306 = vpop.f32.mrb[0].mxu0
      %v1307 = vadd.f32 0.0, %v1306
      %v1308 = vpop.f32.mrb[0].mxu0
      %v1309 = vpop.f32.mrb[0].mxu0
      %v1310 = vadd.f32 0.0, %v1309
      %v1311 = vpop.f32.mrb[0].mxu0
      %1312 = vmatprep.mubr.bf16.mxu0 0
      %1313 = vmatmul.mubr.bf16.gmra.mrb[0].mxu0 %v1155
      %v1314 = vpop.f32.mrb[0].mxu0
      %v1315 = vadd.f32 0.0, %v1314
      %v1316 = vpop.f32.mrb[0].mxu0
      %v1317 = vpop.f32.mrb[0].mxu0
      %v1318 = vadd.f32 0.0, %v1317
      %v1319 = vpop.f32.mrb[0].mxu0
      %1320 = vdwg.mxu0
      %1321 = vset.pattern.permute.xlu0 1
      %1322 = vperm.xlu0 %1321, %v569
      %v1323 = vpop.permute.xlu0 %1322
      %1325 = vset.pattern.permute.xlu0 1
      %1326 = vperm.xlu0 %1325, %v570
      %v1327 = vpop.permute.xlu0 %1326
      %1329 = vset.pattern.permute.xlu0 1
      %1330 = vperm.xlu0 %1329, %v571
      %v1331 = vpop.permute.xlu0 %1330
      %1333 = vset.pattern.permute.xlu0 1
      %1334 = vperm.xlu0 %1333, %v572
      %v1335 = vpop.permute.xlu0 %1334
      %1337 = vset.pattern.permute.xlu0 1
      %1338 = vperm.xlu0 %1337, %v573
      %v1339 = vpop.permute.xlu0 %1338
      %1341 = vset.pattern.permute.xlu0 1
      %1342 = vperm.xlu0 %1341, %v574
      %v1343 = vpop.permute.xlu0 %1342
      %1345 = vset.pattern.permute.xlu0 1
      %1346 = vperm.xlu0 %1345, %v575
      %v1347 = vpop.permute.xlu0 %1346
      %1349 = vset.pattern.permute.xlu0 1
      %1350 = vperm.xlu0 %1349, %v576
      %v1351 = vpop.permute.xlu0 %1350
      %1353 = vset.pattern.permute.xlu0 1
      %1354 = vperm.xlu0 %1353, %v577
      %v1355 = vpop.permute.xlu0 %1354
      %1357 = vset.pattern.permute.xlu0 1
      %1358 = vperm.xlu0 %1357, %v578
      %v1359 = vpop.permute.xlu0 %1358
      %1361 = vset.pattern.permute.xlu0 1
      %1362 = vperm.xlu0 %1361, %v579
      %v1363 = vpop.permute.xlu0 %1362
      %1365 = vset.pattern.permute.xlu0 1
      %1366 = vperm.xlu0 %1365, %v580
      %v1367 = vpop.permute.xlu0 %1366
      %1369 = vset.pattern.permute.xlu0 1
      %1370 = vperm.xlu0 %1369, %v581
      %v1371 = vpop.permute.xlu0 %1370
      %1373 = vset.pattern.permute.xlu0 1
      %1374 = vperm.xlu0 %1373, %v582
      %v1375 = vpop.permute.xlu0 %1374
      %1377 = vset.pattern.permute.xlu0 1
      %1378 = vperm.xlu0 %1377, %v583
      %v1379 = vpop.permute.xlu0 %1378
      %1381 = vset.pattern.permute.xlu0 1
      %1382 = vperm.xlu0 %1381, %v584
      %v1383 = vpop.permute.xlu0 %1382
      %1385 = vset.pattern.permute.xlu0 1
      %1386 = vperm.xlu0 %1385, %v585
      %v1387 = vpop.permute.xlu0 %1386
      %1389 = vset.pattern.permute.xlu0 1
      %1390 = vperm.xlu0 %1389, %v586
      %v1391 = vpop.permute.xlu0 %1390
      %1393 = vset.pattern.permute.xlu0 1
      %1394 = vperm.xlu0 %1393, %v587
      %v1395 = vpop.permute.xlu0 %1394
      %1397 = vset.pattern.permute.xlu0 1
      %1398 = vperm.xlu0 %1397, %v588
      %v1399 = vpop.permute.xlu0 %1398
      %1401 = vset.pattern.permute.xlu0 1
      %1402 = vperm.xlu0 %1401, %v589
      %v1403 = vpop.permute.xlu0 %1402
      %1405 = vset.pattern.permute.xlu0 1
      %1406 = vperm.xlu0 %1405, %v590
      %v1407 = vpop.permute.xlu0 %1406
      %1409 = vset.pattern.permute.xlu0 1
      %1410 = vperm.xlu0 %1409, %v591
      %v1411 = vpop.permute.xlu0 %1410
      %1413 = vset.pattern.permute.xlu0 1
      %1414 = vperm.xlu0 %1413, %v592
      %v1415 = vpop.permute.xlu0 %1414
      %1417 = vset.pattern.permute.xlu0 1
      %1418 = vperm.xlu0 %1417, %v593
      %v1419 = vpop.permute.xlu0 %1418
      %1421 = vset.pattern.permute.xlu0 1
      %1422 = vperm.xlu0 %1421, %v594
      %v1423 = vpop.permute.xlu0 %1422
      %1425 = vset.pattern.permute.xlu0 1
      %1426 = vperm.xlu0 %1425, %v595
      %v1427 = vpop.permute.xlu0 %1426
      %1429 = vset.pattern.permute.xlu0 1
      %1430 = vperm.xlu0 %1429, %v596
      %v1431 = vpop.permute.xlu0 %1430
      %1433 = vset.pattern.permute.xlu0 1
      %1434 = vperm.xlu0 %1433, %v597
      %v1435 = vpop.permute.xlu0 %1434
      %1437 = vset.pattern.permute.xlu0 1
      %1438 = vperm.xlu0 %1437, %v598
      %v1439 = vpop.permute.xlu0 %1438
      %1441 = vset.pattern.permute.xlu0 1
      %1442 = vperm.xlu0 %1441, %v599
      %v1443 = vpop.permute.xlu0 %1442
      %1445 = vset.pattern.permute.xlu0 1
      %1446 = vperm.xlu0 %1445, %v600
      %v1447 = vpop.permute.xlu0 %1446
      %v1449 = vmul.f32 %v1195, %v1323
      %v1450 = vmul.f32 %v1198, %v1327
      %v1451 = vmul.f32 %v1203, %v1331
      %v1452 = vmul.f32 %v1206, %v1335
      %v1453 = vmul.f32 %v1211, %v1339
      %v1454 = vmul.f32 %v1214, %v1343
      %v1455 = vmul.f32 %v1219, %v1347
      %v1456 = vmul.f32 %v1222, %v1351
      %v1457 = vmul.f32 %v1227, %v1355
      %v1458 = vmul.f32 %v1230, %v1359
      %v1459 = vmul.f32 %v1235, %v1363
      %v1460 = vmul.f32 %v1238, %v1367
      %v1461 = vmul.f32 %v1243, %v1371
      %v1462 = vmul.f32 %v1246, %v1375
      %v1463 = vmul.f32 %v1251, %v1379
      %v1464 = vmul.f32 %v1254, %v1383
      %v1465 = vmul.f32 %v1259, %v1387
      %v1466 = vmul.f32 %v1262, %v1391
      %v1467 = vmul.f32 %v1267, %v1395
      %v1468 = vmul.f32 %v1270, %v1399
      %v1469 = vmul.f32 %v1275, %v1403
      %v1470 = vmul.f32 %v1278, %v1407
      %v1471 = vmul.f32 %v1283, %v1411
      %v1472 = vmul.f32 %v1286, %v1415
      %v1473 = vmul.f32 %v1291, %v1419
      %v1474 = vmul.f32 %v1294, %v1423
      %v1475 = vmul.f32 %v1299, %v1427
      %v1476 = vmul.f32 %v1302, %v1431
      %v1477 = vmul.f32 %v1307, %v1435
      %v1478 = vmul.f32 %v1310, %v1439
      %v1479 = vmul.f32 %v1315, %v1443
      %v1480 = vmul.f32 %v1318, %v1447
      %v1481 = vadd.f32 %v793, %v1449
      %v1482 = vadd.f32 %v794, %v1450
      %v1483 = vadd.f32 %v795, %v1451
      %v1484 = vadd.f32 %v796, %v1452
      %v1485 = vadd.f32 %v797, %v1453
      %v1486 = vadd.f32 %v798, %v1454
      %v1487 = vadd.f32 %v799, %v1455
      %v1488 = vadd.f32 %v800, %v1456
      %v1489 = vadd.f32 %v801, %v1457
      %v1490 = vadd.f32 %v802, %v1458
      %v1491 = vadd.f32 %v803, %v1459
      %v1492 = vadd.f32 %v804, %v1460
      %v1493 = vadd.f32 %v805, %v1461
      %v1494 = vadd.f32 %v806, %v1462
      %v1495 = vadd.f32 %v807, %v1463
      %v1496 = vadd.f32 %v808, %v1464
      %v1497 = vadd.f32 %v809, %v1465
      %v1498 = vadd.f32 %v810, %v1466
      %v1499 = vadd.f32 %v811, %v1467
      %v1500 = vadd.f32 %v812, %v1468
      %v1501 = vadd.f32 %v813, %v1469
      %v1502 = vadd.f32 %v814, %v1470
      %v1503 = vadd.f32 %v815, %v1471
      %v1504 = vadd.f32 %v816, %v1472
      %v1505 = vadd.f32 %v817, %v1473
      %v1506 = vadd.f32 %v818, %v1474
      %v1507 = vadd.f32 %v819, %v1475
      %v1508 = vadd.f32 %v820, %v1476
      %v1509 = vadd.f32 %v821, %v1477
      %v1510 = vadd.f32 %v822, %v1478
      %v1511 = vadd.f32 %v823, %v1479
      %v1512 = vadd.f32 %v824, %v1480
      %v1513 = vld [vmem:[%s199] sm:$0xe]
      %v1514 = vmax.bf16 %v1513, 0
      %s1515 = scalar_lea.vmem %s1, 4
      %v1516 = vld [vmem:[%s1515] sm:$0x3]
      %v1518 = vunpack.c.l.b16 %v1514
      %v1519 = vpack.c.b16 %v927, %v1518
      %vm1520 = vcmask 1046528
      %v1521 = vrot.slane %v1519, 1
      %v1522 = vrot.slane %v960, 1
      %v1523 = vsel %vm1520, %v1521, %v1522
      %v1524 = vrot.slane %v961, 1
      %v1525 = vsel %vm1520, %v1522, %v1524
      %v1526 = vrot.slane %v962, 1
      %v1527 = vsel %vm1520, %v1524, %v1526
      %v1528 = vrot.slane %v963, 1
      %v1529 = vsel %vm1520, %v1526, %v1528
      %v1530 = vrot.slane %v964, 1
      %v1531 = vsel %vm1520, %v1528, %v1530
      %v1532 = vrot.slane %v965, 1
      %v1533 = vsel %vm1520, %v1530, %v1532
      %v1534 = vrot.slane %v966, 1
      %v1535 = vsel %vm1520, %v1532, %v1534
      %v1536 = vrot.slane %v967, 1
      %v1537 = vsel %vm1520, %v1534, %v1536
      %v1538 = vrot.slane %v968, 1
      %v1539 = vsel %vm1520, %v1536, %v1538
      %v1540 = vrot.slane %v969, 1
      %v1541 = vsel %vm1520, %v1538, %v1540
      %v1542 = vrot.slane %v970, 1
      %v1543 = vsel %vm1520, %v1540, %v1542
      %v1544 = vrot.slane %v971, 1
      %v1545 = vsel %vm1520, %v1542, %v1544
      %v1546 = vrot.slane %v972, 1
      %v1547 = vsel %vm1520, %v1544, %v1546
      %v1548 = vrot.slane %v973, 1
      %v1549 = vsel %vm1520, %v1546, %v1548
      %v1550 = vrot.slane %v974, 1
      %v1551 = vsel %vm1520, %v1548, %v1550
      %v1552 = vrot.slane %v975, 1
      %v1553 = vsel %vm1520, %v1550, %v1552
      %v1555 = vsel %vm355, %v1523, 0
      %v1558 = vsel %vm355, %v1525, 0
      %v1561 = vsel %vm355, %v1527, 0
      %v1564 = vsel %vm355, %v1529, 0
      %v1567 = vsel %vm355, %v1531, 0
      %v1570 = vsel %vm355, %v1533, 0
      %v1573 = vsel %vm355, %v1535, 0
      %v1576 = vsel %vm355, %v1537, 0
      %v1579 = vsel %vm355, %v1539, 0
      %v1582 = vsel %vm355, %v1541, 0
      %v1585 = vsel %vm355, %v1543, 0
      %v1588 = vsel %vm355, %v1545, 0
      %v1591 = vsel %vm355, %v1547, 0
      %v1594 = vsel %vm355, %v1549, 0
      %v1597 = vsel %vm355, %v1551, 0
      %v1600 = vsel %vm355, %v1553, 0
      %v1603 = vsel %vm404, %v1516, 0
      %1605 = vmatprep.subr.bf16.mxu0 0
      %1606 = vmatpush1.bf16.msra.mxu0 %v1603
      %1607 = vmatprep.subr.bf16.mxu0 0
      %1608 = vmatpush1.bf16.msra.mxu0 0
      %1609 = vmatprep.subr.bf16.mxu0 0
      %1610 = vmatpush1.bf16.msra.mxu0 0
      %1611 = vmatprep.subr.bf16.mxu0 0
      %1612 = vmatpush1.bf16.msra.mxu0 0
      %1613 = vmatprep.subr.bf16.mxu0 0
      %1614 = vmatpush1.bf16.msra.mxu0 0
      %1615 = vmatprep.subr.bf16.mxu0 0
      %1616 = vmatpush1.bf16.msra.mxu0 0
      %1617 = vmatprep.subr.bf16.mxu0 0
      %1618 = vmatpush1.bf16.msra.mxu0 0
      %1619 = vmatprep.subr.bf16.mxu0 0
      %1620 = vmatpush1.bf16.msra.mxu0 0
      %1621 = vmatprep.subr.bf16.mxu0 0
      %1622 = vmatpush1.bf16.msra.mxu0 0
      %1623 = vmatprep.subr.bf16.mxu0 0
      %1624 = vmatpush1.bf16.msra.mxu0 0
      %1625 = vmatprep.subr.bf16.mxu0 0
      %1626 = vmatpush1.bf16.msra.mxu0 0
      %1627 = vmatprep.subr.bf16.mxu0 0
      %1628 = vmatpush1.bf16.msra.mxu0 0
      %1629 = vmatprep.subr.bf16.mxu0 0
      %1630 = vmatpush1.bf16.msra.mxu0 0
      %1631 = vmatprep.subr.bf16.mxu0 0
      %1632 = vmatpush1.bf16.msra.mxu0 0
      %1633 = vmatprep.subr.bf16.mxu0 0
      %1634 = vmatpush1.bf16.msra.mxu0 0
      %1635 = vmatprep.subr.bf16.mxu0 0
      %1636 = vmatpush1.bf16.msra.mxu0 0
      %1637 = vmatprep.mubr.bf16.mxu0 0
      %1638 = vmatmul.mubr.bf16.gmra.mrb[0].mxu0 %v1555
      %v1639 = vpop.f32.mrb[0].mxu0
      %v1640 = vadd.f32 0.0, %v1639
      %v1641 = vpop.f32.mrb[0].mxu0
      %v1642 = vpop.f32.mrb[0].mxu0
      %v1643 = vadd.f32 0.0, %v1642
      %v1644 = vpop.f32.mrb[0].mxu0
      %1645 = vmatprep.mubr.bf16.mxu0 0
      %1646 = vmatmul.mubr.bf16.gmra.mrb[0].mxu0 %v1558
      %v1647 = vpop.f32.mrb[0].mxu0
      %v1648 = vadd.f32 0.0, %v1647
      %v1649 = vpop.f32.mrb[0].mxu0
      %v1650 = vpop.f32.mrb[0].mxu0
      %v1651 = vadd.f32 0.0, %v1650
      %v1652 = vpop.f32.mrb[0].mxu0
      %1653 = vmatprep.mubr.bf16.mxu0 0
      %1654 = vmatmul.mubr.bf16.gmra.mrb[0].mxu0 %v1561
      %v1655 = vpop.f32.mrb[0].mxu0
      %v1656 = vadd.f32 0.0, %v1655
      %v1657 = vpop.f32.mrb[0].mxu0
      %v1658 = vpop.f32.mrb[0].mxu0
      %v1659 = vadd.f32 0.0, %v1658
      %v1660 = vpop.f32.mrb[0].mxu0
      %1661 = vmatprep.mubr.bf16.mxu0 0
      %1662 = vmatmul.mubr.bf16.gmra.mrb[0].mxu0 %v1564
      %v1663 = vpop.f32.mrb[0].mxu0
      %v1664 = vadd.f32 0.0, %v1663
      %v1665 = vpop.f32.mrb[0].mxu0
      %v1666 = vpop.f32.mrb[0].mxu0
      %v1667 = vadd.f32 0.0, %v1666
      %v1668 = vpop.f32.mrb[0].mxu0
      %1669 = vmatprep.mubr.bf16.mxu0 0
      %1670 = vmatmul.mubr.bf16.gmra.mrb[0].mxu0 %v1567
      %v1671 = vpop.f32.mrb[0].mxu0
      %v1672 = vadd.f32 0.0, %v1671
      %v1673 = vpop.f32.mrb[0].mxu0
      %v1674 = vpop.f32.mrb[0].mxu0
      %v1675 = vadd.f32 0.0, %v1674
      %v1676 = vpop.f32.mrb[0].mxu0
      %1677 = vmatprep.mubr.bf16.mxu0 0
      %1678 = vmatmul.mubr.bf16.gmra.mrb[0].mxu0 %v1570
      %v1679 = vpop.f32.mrb[0].mxu0
      %v1680 = vadd.f32 0.0, %v1679
      %v1681 = vpop.f32.mrb[0].mxu0
      %v1682 = vpop.f32.mrb[0].mxu0
      %v1683 = vadd.f32 0.0, %v1682
      %v1684 = vpop.f32.mrb[0].mxu0
      %1685 = vmatprep.mubr.bf16.mxu0 0
      %1686 = vmatmul.mubr.bf16.gmra.mrb[0].mxu0 %v1573
      %v1687 = vpop.f32.mrb[0].mxu0
      %v1688 = vadd.f32 0.0, %v1687
      %v1689 = vpop.f32.mrb[0].mxu0
      %v1690 = vpop.f32.mrb[0].mxu0
      %v1691 = vadd.f32 0.0, %v1690
      %v1692 = vpop.f32.mrb[0].mxu0
      %1693 = vmatprep.mubr.bf16.mxu0 0
      %1694 = vmatmul.mubr.bf16.gmra.mrb[0].mxu0 %v1576
      %v1695 = vpop.f32.mrb[0].mxu0
      %v1696 = vadd.f32 0.0, %v1695
      %v1697 = vpop.f32.mrb[0].mxu0
      %v1698 = vpop.f32.mrb[0].mxu0
      %v1699 = vadd.f32 0.0, %v1698
      %v1700 = vpop.f32.mrb[0].mxu0
      %1701 = vmatprep.mubr.bf16.mxu0 0
      %1702 = vmatmul.mubr.bf16.gmra.mrb[0].mxu0 %v1579
      %v1703 = vpop.f32.mrb[0].mxu0
      %v1704 = vadd.f32 0.0, %v1703
      %v1705 = vpop.f32.mrb[0].mxu0
      %v1706 = vpop.f32.mrb[0].mxu0
      %v1707 = vadd.f32 0.0, %v1706
      %v1708 = vpop.f32.mrb[0].mxu0
      %1709 = vmatprep.mubr.bf16.mxu0 0
      %1710 = vmatmul.mubr.bf16.gmra.mrb[0].mxu0 %v1582
      %v1711 = vpop.f32.mrb[0].mxu0
      %v1712 = vadd.f32 0.0, %v1711
      %v1713 = vpop.f32.mrb[0].mxu0
      %v1714 = vpop.f32.mrb[0].mxu0
      %v1715 = vadd.f32 0.0, %v1714
      %v1716 = vpop.f32.mrb[0].mxu0
      %1717 = vmatprep.mubr.bf16.mxu0 0
      %1718 = vmatmul.mubr.bf16.gmra.mrb[0].mxu0 %v1585
      %v1719 = vpop.f32.mrb[0].mxu0
      %v1720 = vadd.f32 0.0, %v1719
      %v1721 = vpop.f32.mrb[0].mxu0
      %v1722 = vpop.f32.mrb[0].mxu0
      %v1723 = vadd.f32 0.0, %v1722
      %v1724 = vpop.f32.mrb[0].mxu0
      %1725 = vmatprep.mubr.bf16.mxu0 0
      %1726 = vmatmul.mubr.bf16.gmra.mrb[0].mxu0 %v1588
      %v1727 = vpop.f32.mrb[0].mxu0
      %v1728 = vadd.f32 0.0, %v1727
      %v1729 = vpop.f32.mrb[0].mxu0
      %v1730 = vpop.f32.mrb[0].mxu0
      %v1731 = vadd.f32 0.0, %v1730
      %v1732 = vpop.f32.mrb[0].mxu0
      %1733 = vmatprep.mubr.bf16.mxu0 0
      %1734 = vmatmul.mubr.bf16.gmra.mrb[0].mxu0 %v1591
      %v1735 = vpop.f32.mrb[0].mxu0
      %v1736 = vadd.f32 0.0, %v1735
      %v1737 = vpop.f32.mrb[0].mxu0
      %v1738 = vpop.f32.mrb[0].mxu0
      %v1739 = vadd.f32 0.0, %v1738
      %v1740 = vpop.f32.mrb[0].mxu0
      %1741 = vmatprep.mubr.bf16.mxu0 0
      %1742 = vmatmul.mubr.bf16.gmra.mrb[0].mxu0 %v1594
      %v1743 = vpop.f32.mrb[0].mxu0
      %v1744 = vadd.f32 0.0, %v1743
      %v1745 = vpop.f32.mrb[0].mxu0
      %v1746 = vpop.f32.mrb[0].mxu0
      %v1747 = vadd.f32 0.0, %v1746
      %v1748 = vpop.f32.mrb[0].mxu0
      %1749 = vmatprep.mubr.bf16.mxu0 0
      %1750 = vmatmul.mubr.bf16.gmra.mrb[0].mxu0 %v1597
      %v1751 = vpop.f32.mrb[0].mxu0
      %v1752 = vadd.f32 0.0, %v1751
      %v1753 = vpop.f32.mrb[0].mxu0
      %v1754 = vpop.f32.mrb[0].mxu0
      %v1755 = vadd.f32 0.0, %v1754
      %v1756 = vpop.f32.mrb[0].mxu0
      %1757 = vmatprep.mubr.bf16.mxu0 0
      %1758 = vmatmul.mubr.bf16.gmra.mrb[0].mxu0 %v1600
      %v1759 = vpop.f32.mrb[0].mxu0
      %v1760 = vadd.f32 0.0, %v1759
      %v1761 = vpop.f32.mrb[0].mxu0
      %v1762 = vpop.f32.mrb[0].mxu0
      %v1763 = vadd.f32 0.0, %v1762
      %v1764 = vpop.f32.mrb[0].mxu0
      %1765 = vdwg.mxu0
      %1766 = vset.pattern.permute.xlu0 2
      %1767 = vperm.xlu0 %1766, %v569
      %v1768 = vpop.permute.xlu0 %1767
      %1770 = vset.pattern.permute.xlu0 2
      %1771 = vperm.xlu0 %1770, %v570
      %v1772 = vpop.permute.xlu0 %1771
      %1774 = vset.pattern.permute.xlu0 2
      %1775 = vperm.xlu0 %1774, %v571
      %v1776 = vpop.permute.xlu0 %1775
      %1778 = vset.pattern.permute.xlu0 2
      %1779 = vperm.xlu0 %1778, %v572
      %v1780 = vpop.permute.xlu0 %1779
      %1782 = vset.pattern.permute.xlu0 2
      %1783 = vperm.xlu0 %1782, %v573
      %v1784 = vpop.permute.xlu0 %1783
      %1786 = vset.pattern.permute.xlu0 2
      %1787 = vperm.xlu0 %1786, %v574
      %v1788 = vpop.permute.xlu0 %1787
      %1790 = vset.pattern.permute.xlu0 2
      %1791 = vperm.xlu0 %1790, %v575
      %v1792 = vpop.permute.xlu0 %1791
      %1794 = vset.pattern.permute.xlu0 2
      %1795 = vperm.xlu0 %1794, %v576
      %v1796 = vpop.permute.xlu0 %1795
      %1798 = vset.pattern.permute.xlu0 2
      %1799 = vperm.xlu0 %1798, %v577
      %v1800 = vpop.permute.xlu0 %1799
      %1802 = vset.pattern.permute.xlu0 2
      %1803 = vperm.xlu0 %1802, %v578
      %v1804 = vpop.permute.xlu0 %1803
      %1806 = vset.pattern.permute.xlu0 2
      %1807 = vperm.xlu0 %1806, %v579
      %v1808 = vpop.permute.xlu0 %1807
      %1810 = vset.pattern.permute.xlu0 2
      %1811 = vperm.xlu0 %1810, %v580
      %v1812 = vpop.permute.xlu0 %1811
      %1814 = vset.pattern.permute.xlu0 2
      %1815 = vperm.xlu0 %1814, %v581
      %v1816 = vpop.permute.xlu0 %1815
      %1818 = vset.pattern.permute.xlu0 2
      %1819 = vperm.xlu0 %1818, %v582
      %v1820 = vpop.permute.xlu0 %1819
      %1822 = vset.pattern.permute.xlu0 2
      %1823 = vperm.xlu0 %1822, %v583
      %v1824 = vpop.permute.xlu0 %1823
      %1826 = vset.pattern.permute.xlu0 2
      %1827 = vperm.xlu0 %1826, %v584
      %v1828 = vpop.permute.xlu0 %1827
      %1830 = vset.pattern.permute.xlu0 2
      %1831 = vperm.xlu0 %1830, %v585
      %v1832 = vpop.permute.xlu0 %1831
      %1834 = vset.pattern.permute.xlu0 2
      %1835 = vperm.xlu0 %1834, %v586
      %v1836 = vpop.permute.xlu0 %1835
      %1838 = vset.pattern.permute.xlu0 2
      %1839 = vperm.xlu0 %1838, %v587
      %v1840 = vpop.permute.xlu0 %1839
      %1842 = vset.pattern.permute.xlu0 2
      %1843 = vperm.xlu0 %1842, %v588
      %v1844 = vpop.permute.xlu0 %1843
      %1846 = vset.pattern.permute.xlu0 2
      %1847 = vperm.xlu0 %1846, %v589
      %v1848 = vpop.permute.xlu0 %1847
      %1850 = vset.pattern.permute.xlu0 2
      %1851 = vperm.xlu0 %1850, %v590
      %v1852 = vpop.permute.xlu0 %1851
      %1854 = vset.pattern.permute.xlu0 2
      %1855 = vperm.xlu0 %1854, %v591
      %v1856 = vpop.permute.xlu0 %1855
      %1858 = vset.pattern.permute.xlu0 2
      %1859 = vperm.xlu0 %1858, %v592
      %v1860 = vpop.permute.xlu0 %1859
      %1862 = vset.pattern.permute.xlu0 2
      %1863 = vperm.xlu0 %1862, %v593
      %v1864 = vpop.permute.xlu0 %1863
      %1866 = vset.pattern.permute.xlu0 2
      %1867 = vperm.xlu0 %1866, %v594
      %v1868 = vpop.permute.xlu0 %1867
      %1870 = vset.pattern.permute.xlu0 2
      %1871 = vperm.xlu0 %1870, %v595
      %v1872 = vpop.permute.xlu0 %1871
      %1874 = vset.pattern.permute.xlu0 2
      %1875 = vperm.xlu0 %1874, %v596
      %v1876 = vpop.permute.xlu0 %1875
      %1878 = vset.pattern.permute.xlu0 2
      %1879 = vperm.xlu0 %1878, %v597
      %v1880 = vpop.permute.xlu0 %1879
      %1882 = vset.pattern.permute.xlu0 2
      %1883 = vperm.xlu0 %1882, %v598
      %v1884 = vpop.permute.xlu0 %1883
      %1886 = vset.pattern.permute.xlu0 2
      %1887 = vperm.xlu0 %1886, %v599
      %v1888 = vpop.permute.xlu0 %1887
      %1890 = vset.pattern.permute.xlu0 2
      %1891 = vperm.xlu0 %1890, %v600
      %v1892 = vpop.permute.xlu0 %1891
      %v1894 = vmul.f32 %v1640, %v1768
      %v1895 = vmul.f32 %v1643, %v1772
      %v1896 = vmul.f32 %v1648, %v1776
      %v1897 = vmul.f32 %v1651, %v1780
      %v1898 = vmul.f32 %v1656, %v1784
      %v1899 = vmul.f32 %v1659, %v1788
      %v1900 = vmul.f32 %v1664, %v1792
      %v1901 = vmul.f32 %v1667, %v1796
      %v1902 = vmul.f32 %v1672, %v1800
      %v1903 = vmul.f32 %v1675, %v1804
      %v1904 = vmul.f32 %v1680, %v1808
      %v1905 = vmul.f32 %v1683, %v1812
      %v1906 = vmul.f32 %v1688, %v1816
      %v1907 = vmul.f32 %v1691, %v1820
      %v1908 = vmul.f32 %v1696, %v1824
      %v1909 = vmul.f32 %v1699, %v1828
      %v1910 = vmul.f32 %v1704, %v1832
      %v1911 = vmul.f32 %v1707, %v1836
      %v1912 = vmul.f32 %v1712, %v1840
      %v1913 = vmul.f32 %v1715, %v1844
      %v1914 = vmul.f32 %v1720, %v1848
      %v1915 = vmul.f32 %v1723, %v1852
      %v1916 = vmul.f32 %v1728, %v1856
      %v1917 = vmul.f32 %v1731, %v1860
      %v1918 = vmul.f32 %v1736, %v1864
      %v1919 = vmul.f32 %v1739, %v1868
      %v1920 = vmul.f32 %v1744, %v1872
      %v1921 = vmul.f32 %v1747, %v1876
      %v1922 = vmul.f32 %v1752, %v1880
      %v1923 = vmul.f32 %v1755, %v1884
      %v1924 = vmul.f32 %v1760, %v1888
      %v1925 = vmul.f32 %v1763, %v1892
      %v1926 = vadd.f32 %v1481, %v1894
      %v1927 = vadd.f32 %v1482, %v1895
      %v1928 = vadd.f32 %v1483, %v1896
      %v1929 = vadd.f32 %v1484, %v1897
      %v1930 = vadd.f32 %v1485, %v1898
      %v1931 = vadd.f32 %v1486, %v1899
      %v1932 = vadd.f32 %v1487, %v1900
      %v1933 = vadd.f32 %v1488, %v1901
      %v1934 = vadd.f32 %v1489, %v1902
      %v1935 = vadd.f32 %v1490, %v1903
      %v1936 = vadd.f32 %v1491, %v1904
      %v1937 = vadd.f32 %v1492, %v1905
      %v1938 = vadd.f32 %v1493, %v1906
      %v1939 = vadd.f32 %v1494, %v1907
      %v1940 = vadd.f32 %v1495, %v1908
      %v1941 = vadd.f32 %v1496, %v1909
      %v1942 = vadd.f32 %v1497, %v1910
      %v1943 = vadd.f32 %v1498, %v1911
      %v1944 = vadd.f32 %v1499, %v1912
      %v1945 = vadd.f32 %v1500, %v1913
      %v1946 = vadd.f32 %v1501, %v1914
      %v1947 = vadd.f32 %v1502, %v1915
      %v1948 = vadd.f32 %v1503, %v1916
      %v1949 = vadd.f32 %v1504, %v1917
      %v1950 = vadd.f32 %v1505, %v1918
      %v1951 = vadd.f32 %v1506, %v1919
      %v1952 = vadd.f32 %v1507, %v1920
      %v1953 = vadd.f32 %v1508, %v1921
      %v1954 = vadd.f32 %v1509, %v1922
      %v1955 = vadd.f32 %v1510, %v1923
      %v1956 = vadd.f32 %v1511, %v1924
      %v1957 = vadd.f32 %v1512, %v1925
      %v1958 = vld [vmem:[%s199 + $0x8] sm:$0xf]
      %v1959 = vld [vmem:[%s199 + $0xc] sm:$0xf]
      %v1960 = vld [vmem:[%s199 + $0x10] sm:$0xf]
      %v1961 = vld [vmem:[%s199 + $0x14] sm:$0xf]
      %v1962 = vld [vmem:[%s199 + $0x18] sm:$0xf]
      %v1963 = vld [vmem:[%s199 + $0x1c] sm:$0xf]
      %v1964 = vld [vmem:[%s199 + $0x20] sm:$0xf]
      %v1965 = vld [vmem:[%s199 + $0x24] sm:$0xf]
      %v1966 = vld [vmem:[%s199 + $0x28] sm:$0xf]
      %v1967 = vld [vmem:[%s199 + $0x2c] sm:$0xf]
      %v1968 = vld [vmem:[%s199 + $0x30] sm:$0xf]
      %v1969 = vld [vmem:[%s199 + $0x34] sm:$0xf]
      %v1970 = vld [vmem:[%s199 + $0x38] sm:$0xf]
      %v1971 = vld [vmem:[%s199 + $0x3c] sm:$0xf]
      %v1972 = vld [vmem:[%s199 + $0x40] sm:$0xf]
      %v1973 = vld [vmem:[%s199 + $0x44] sm:$0xf]
      %v1974 = vld [vmem:[%s199 + $0x48] sm:$0xf]
      %v1975 = vld [vmem:[%s199 + $0x4c] sm:$0xf]
      %v1976 = vld [vmem:[%s199 + $0x50] sm:$0xf]
      %v1977 = vld [vmem:[%s199 + $0x54] sm:$0xf]
      %v1978 = vld [vmem:[%s199 + $0x58] sm:$0xf]
      %v1979 = vld [vmem:[%s199 + $0x5c] sm:$0xf]
      %v1980 = vld [vmem:[%s199 + $0x60] sm:$0xf]
      %v1981 = vld [vmem:[%s199 + $0x64] sm:$0xf]
      %v1982 = vld [vmem:[%s199 + $0x68] sm:$0xf]
      %v1983 = vld [vmem:[%s199 + $0x6c] sm:$0xf]
      %v1984 = vld [vmem:[%s199 + $0x70] sm:$0xf]
      %v1985 = vld [vmem:[%s199 + $0x74] sm:$0xf]
      %v1986 = vld [vmem:[%s199 + $0x78] sm:$0xf]
      %v1987 = vld [vmem:[%s199 + $0x7c] sm:$0xf]
      %v1988 = vld [vmem:[%s199 + $0x80] sm:$0xf]
      %v1989 = vld [vmem:[%s199 + $0x84] sm:$0xf]
      %v1990 = vmax.bf16 %v1958, 0
      %v1991 = vmax.bf16 %v1959, 0
      %v1992 = vmax.bf16 %v1960, 0
      %v1993 = vmax.bf16 %v1961, 0
      %v1994 = vmax.bf16 %v1962, 0
      %v1995 = vmax.bf16 %v1963, 0
      %v1996 = vmax.bf16 %v1964, 0
      %v1997 = vmax.bf16 %v1965, 0
      %v1998 = vmax.bf16 %v1966, 0
      %v1999 = vmax.bf16 %v1967, 0
      %v2000 = vmax.bf16 %v1968, 0
      %v2001 = vmax.bf16 %v1969, 0
      %v2002 = vmax.bf16 %v1970, 0
      %v2003 = vmax.bf16 %v1971, 0
      %v2004 = vmax.bf16 %v1972, 0
      %v2005 = vmax.bf16 %v1973, 0
      %v2006 = vmax.bf16 %v1974, 0
      %v2007 = vmax.bf16 %v1975, 0
      %v2008 = vmax.bf16 %v1976, 0
      %v2009 = vmax.bf16 %v1977, 0
      %v2010 = vmax.bf16 %v1978, 0
      %v2011 = vmax.bf16 %v1979, 0
      %v2012 = vmax.bf16 %v1980, 0
      %v2013 = vmax.bf16 %v1981, 0
      %v2014 = vmax.bf16 %v1982, 0
      %v2015 = vmax.bf16 %v1983, 0
      %v2016 = vmax.bf16 %v1984, 0
      %v2017 = vmax.bf16 %v1985, 0
      %v2018 = vmax.bf16 %v1986, 0
      %v2019 = vmax.bf16 %v1987, 0
      %v2020 = vmax.bf16 %v1988, 0
      %v2021 = vmax.bf16 %v1989, 0
      %s2022 = scalar_lea.vmem %s1, 6
      %v2023 = vld [vmem:[%s2022] sm:$0x3]
      %v2056 = vunpack.c.l.b16 %v1990
      %v2057 = vunpack.c.l.b16 %v1991
      %v2058 = vunpack.c.l.b16 %v1992
      %v2059 = vunpack.c.l.b16 %v1993
      %v2060 = vunpack.c.l.b16 %v1994
      %v2061 = vunpack.c.l.b16 %v1995
      %v2062 = vunpack.c.l.b16 %v1996
      %v2063 = vunpack.c.l.b16 %v1997
      %v2064 = vunpack.c.l.b16 %v1998
      %v2065 = vunpack.c.l.b16 %v1999
      %v2066 = vunpack.c.l.b16 %v2000
      %v2067 = vunpack.c.l.b16 %v2001
      %v2068 = vunpack.c.l.b16 %v2002
      %v2069 = vunpack.c.l.b16 %v2003
      %v2070 = vunpack.c.l.b16 %v2004
      %v2071 = vunpack.c.l.b16 %v2005
      %v2072 = vunpack.c.l.b16 %v2006
      %v2073 = vunpack.c.l.b16 %v2007
      %v2074 = vunpack.c.l.b16 %v2008
      %v2075 = vunpack.c.l.b16 %v2009
      %v2076 = vunpack.c.l.b16 %v2010
      %v2077 = vunpack.c.l.b16 %v2011
      %v2078 = vunpack.c.l.b16 %v2012
      %v2079 = vunpack.c.l.b16 %v2013
      %v2080 = vunpack.c.l.b16 %v2014
      %v2081 = vunpack.c.l.b16 %v2015
      %v2082 = vunpack.c.l.b16 %v2016
      %v2083 = vunpack.c.l.b16 %v2017
      %v2084 = vunpack.c.l.b16 %v2018
      %v2085 = vunpack.c.l.b16 %v2019
      %v2086 = vunpack.c.l.b16 %v2020
      %v2087 = vunpack.c.l.b16 %v2021
      %v2088 = vpack.c.b16 %v2057, %v2056
      %v2089 = vpack.c.b16 %v2059, %v2058
      %v2090 = vpack.c.b16 %v2061, %v2060
      %v2091 = vpack.c.b16 %v2063, %v2062
      %v2092 = vpack.c.b16 %v2065, %v2064
      %v2093 = vpack.c.b16 %v2067, %v2066
      %v2094 = vpack.c.b16 %v2069, %v2068
      %v2095 = vpack.c.b16 %v2071, %v2070
      %v2096 = vpack.c.b16 %v2073, %v2072
      %v2097 = vpack.c.b16 %v2075, %v2074
      %v2098 = vpack.c.b16 %v2077, %v2076
      %v2099 = vpack.c.b16 %v2079, %v2078
      %v2100 = vpack.c.b16 %v2081, %v2080
      %v2101 = vpack.c.b16 %v2083, %v2082
      %v2102 = vpack.c.b16 %v2085, %v2084
      %v2103 = vpack.c.b16 %v2087, %v2086
      %v2105 = vsel %vm355, %v2088, 0
      %v2108 = vsel %vm355, %v2089, 0
      %v2111 = vsel %vm355, %v2090, 0
      %v2114 = vsel %vm355, %v2091, 0
      %v2117 = vsel %vm355, %v2092, 0
      %v2120 = vsel %vm355, %v2093, 0
      %v2123 = vsel %vm355, %v2094, 0
      %v2126 = vsel %vm355, %v2095, 0
      %v2129 = vsel %vm355, %v2096, 0
      %v2132 = vsel %vm355, %v2097, 0
      %v2135 = vsel %vm355, %v2098, 0
      %v2138 = vsel %vm355, %v2099, 0
      %v2141 = vsel %vm355, %v2100, 0
      %v2144 = vsel %vm355, %v2101, 0
      %v2147 = vsel %vm355, %v2102, 0
      %v2150 = vsel %vm355, %v2103, 0
      %v2153 = vsel %vm404, %v2023, 0
      %2155 = vmatprep.subr.bf16.mxu0 0
      %2156 = vmatpush1.bf16.msra.mxu0 %v2153
      %2157 = vmatprep.subr.bf16.mxu0 0
      %2158 = vmatpush1.bf16.msra.mxu0 0
      %2159 = vmatprep.subr.bf16.mxu0 0
      %2160 = vmatpush1.bf16.msra.mxu0 0
      %2161 = vmatprep.subr.bf16.mxu0 0
      %2162 = vmatpush1.bf16.msra.mxu0 0
      %2163 = vmatprep.subr.bf16.mxu0 0
      %2164 = vmatpush1.bf16.msra.mxu0 0
      %2165 = vmatprep.subr.bf16.mxu0 0
      %2166 = vmatpush1.bf16.msra.mxu0 0
      %2167 = vmatprep.subr.bf16.mxu0 0
      %2168 = vmatpush1.bf16.msra.mxu0 0
      %2169 = vmatprep.subr.bf16.mxu0 0
      %2170 = vmatpush1.bf16.msra.mxu0 0
      %2171 = vmatprep.subr.bf16.mxu0 0
      %2172 = vmatpush1.bf16.msra.mxu0 0
      %2173 = vmatprep.subr.bf16.mxu0 0
      %2174 = vmatpush1.bf16.msra.mxu0 0
      %2175 = vmatprep.subr.bf16.mxu0 0
      %2176 = vmatpush1.bf16.msra.mxu0 0
      %2177 = vmatprep.subr.bf16.mxu0 0
      %2178 = vmatpush1.bf16.msra.mxu0 0
      %2179 = vmatprep.subr.bf16.mxu0 0
      %2180 = vmatpush1.bf16.msra.mxu0 0
      %2181 = vmatprep.subr.bf16.mxu0 0
      %2182 = vmatpush1.bf16.msra.mxu0 0
      %2183 = vmatprep.subr.bf16.mxu0 0
      %2184 = vmatpush1.bf16.msra.mxu0 0
      %2185 = vmatprep.subr.bf16.mxu0 0
      %2186 = vmatpush1.bf16.msra.mxu0 0
      %2187 = vmatprep.mubr.bf16.mxu0 0
      %2188 = vmatmul.mubr.bf16.gmra.mrb[0].mxu0 %v2105
      %v2189 = vpop.f32.mrb[0].mxu0
      %v2190 = vadd.f32 0.0, %v2189
      %v2191 = vpop.f32.mrb[0].mxu0
      %v2192 = vpop.f32.mrb[0].mxu0
      %v2193 = vadd.f32 0.0, %v2192
      %v2194 = vpop.f32.mrb[0].mxu0
      %2195 = vmatprep.mubr.bf16.mxu0 0
      %2196 = vmatmul.mubr.bf16.gmra.mrb[0].mxu0 %v2108
      %v2197 = vpop.f32.mrb[0].mxu0
      %v2198 = vadd.f32 0.0, %v2197
      %v2199 = vpop.f32.mrb[0].mxu0
      %v2200 = vpop.f32.mrb[0].mxu0
      %v2201 = vadd.f32 0.0, %v2200
      %v2202 = vpop.f32.mrb[0].mxu0
      %2203 = vmatprep.mubr.bf16.mxu0 0
      %2204 = vmatmul.mubr.bf16.gmra.mrb[0].mxu0 %v2111
      %v2205 = vpop.f32.mrb[0].mxu0
      %v2206 = vadd.f32 0.0, %v2205
      %v2207 = vpop.f32.mrb[0].mxu0
      %v2208 = vpop.f32.mrb[0].mxu0
      %v2209 = vadd.f32 0.0, %v2208
      %v2210 = vpop.f32.mrb[0].mxu0
      %2211 = vmatprep.mubr.bf16.mxu0 0
      %2212 = vmatmul.mubr.bf16.gmra.mrb[0].mxu0 %v2114
      %v2213 = vpop.f32.mrb[0].mxu0
      %v2214 = vadd.f32 0.0, %v2213
      %v2215 = vpop.f32.mrb[0].mxu0
      %v2216 = vpop.f32.mrb[0].mxu0
      %v2217 = vadd.f32 0.0, %v2216
      %v2218 = vpop.f32.mrb[0].mxu0
      %2219 = vmatprep.mubr.bf16.mxu0 0
      %2220 = vmatmul.mubr.bf16.gmra.mrb[0].mxu0 %v2117
      %v2221 = vpop.f32.mrb[0].mxu0
      %v2222 = vadd.f32 0.0, %v2221
      %v2223 = vpop.f32.mrb[0].mxu0
      %v2224 = vpop.f32.mrb[0].mxu0
      %v2225 = vadd.f32 0.0, %v2224
      %v2226 = vpop.f32.mrb[0].mxu0
      %2227 = vmatprep.mubr.bf16.mxu0 0
      %2228 = vmatmul.mubr.bf16.gmra.mrb[0].mxu0 %v2120
      %v2229 = vpop.f32.mrb[0].mxu0
      %v2230 = vadd.f32 0.0, %v2229
      %v2231 = vpop.f32.mrb[0].mxu0
      %v2232 = vpop.f32.mrb[0].mxu0
      %v2233 = vadd.f32 0.0, %v2232
      %v2234 = vpop.f32.mrb[0].mxu0
      %2235 = vmatprep.mubr.bf16.mxu0 0
      %2236 = vmatmul.mubr.bf16.gmra.mrb[0].mxu0 %v2123
      %v2237 = vpop.f32.mrb[0].mxu0
      %v2238 = vadd.f32 0.0, %v2237
      %v2239 = vpop.f32.mrb[0].mxu0
      %v2240 = vpop.f32.mrb[0].mxu0
      %v2241 = vadd.f32 0.0, %v2240
      %v2242 = vpop.f32.mrb[0].mxu0
      %2243 = vmatprep.mubr.bf16.mxu0 0
      %2244 = vmatmul.mubr.bf16.gmra.mrb[0].mxu0 %v2126
      %v2245 = vpop.f32.mrb[0].mxu0
      %v2246 = vadd.f32 0.0, %v2245
      %v2247 = vpop.f32.mrb[0].mxu0
      %v2248 = vpop.f32.mrb[0].mxu0
      %v2249 = vadd.f32 0.0, %v2248
      %v2250 = vpop.f32.mrb[0].mxu0
      %2251 = vmatprep.mubr.bf16.mxu0 0
      %2252 = vmatmul.mubr.bf16.gmra.mrb[0].mxu0 %v2129
      %v2253 = vpop.f32.mrb[0].mxu0
      %v2254 = vadd.f32 0.0, %v2253
      %v2255 = vpop.f32.mrb[0].mxu0
      %v2256 = vpop.f32.mrb[0].mxu0
      %v2257 = vadd.f32 0.0, %v2256
      %v2258 = vpop.f32.mrb[0].mxu0
      %2259 = vmatprep.mubr.bf16.mxu0 0
      %2260 = vmatmul.mubr.bf16.gmra.mrb[0].mxu0 %v2132
      %v2261 = vpop.f32.mrb[0].mxu0
      %v2262 = vadd.f32 0.0, %v2261
      %v2263 = vpop.f32.mrb[0].mxu0
      %v2264 = vpop.f32.mrb[0].mxu0
      %v2265 = vadd.f32 0.0, %v2264
      %v2266 = vpop.f32.mrb[0].mxu0
      %2267 = vmatprep.mubr.bf16.mxu0 0
      %2268 = vmatmul.mubr.bf16.gmra.mrb[0].mxu0 %v2135
      %v2269 = vpop.f32.mrb[0].mxu0
      %v2270 = vadd.f32 0.0, %v2269
      %v2271 = vpop.f32.mrb[0].mxu0
      %v2272 = vpop.f32.mrb[0].mxu0
      %v2273 = vadd.f32 0.0, %v2272
      %v2274 = vpop.f32.mrb[0].mxu0
      %2275 = vmatprep.mubr.bf16.mxu0 0
      %2276 = vmatmul.mubr.bf16.gmra.mrb[0].mxu0 %v2138
      %v2277 = vpop.f32.mrb[0].mxu0
      %v2278 = vadd.f32 0.0, %v2277
      %v2279 = vpop.f32.mrb[0].mxu0
      %v2280 = vpop.f32.mrb[0].mxu0
      %v2281 = vadd.f32 0.0, %v2280
      %v2282 = vpop.f32.mrb[0].mxu0
      %2283 = vmatprep.mubr.bf16.mxu0 0
      %2284 = vmatmul.mubr.bf16.gmra.mrb[0].mxu0 %v2141
      %v2285 = vpop.f32.mrb[0].mxu0
      %v2286 = vadd.f32 0.0, %v2285
      %v2287 = vpop.f32.mrb[0].mxu0
      %v2288 = vpop.f32.mrb[0].mxu0
      %v2289 = vadd.f32 0.0, %v2288
      %v2290 = vpop.f32.mrb[0].mxu0
      %2291 = vmatprep.mubr.bf16.mxu0 0
      %2292 = vmatmul.mubr.bf16.gmra.mrb[0].mxu0 %v2144
      %v2293 = vpop.f32.mrb[0].mxu0
      %v2294 = vadd.f32 0.0, %v2293
      %v2295 = vpop.f32.mrb[0].mxu0
      %v2296 = vpop.f32.mrb[0].mxu0
      %v2297 = vadd.f32 0.0, %v2296
      %v2298 = vpop.f32.mrb[0].mxu0
      %2299 = vmatprep.mubr.bf16.mxu0 0
      %2300 = vmatmul.mubr.bf16.gmra.mrb[0].mxu0 %v2147
      %v2301 = vpop.f32.mrb[0].mxu0
      %v2302 = vadd.f32 0.0, %v2301
      %v2303 = vpop.f32.mrb[0].mxu0
      %v2304 = vpop.f32.mrb[0].mxu0
      %v2305 = vadd.f32 0.0, %v2304
      %v2306 = vpop.f32.mrb[0].mxu0
      %2307 = vmatprep.mubr.bf16.mxu0 0
      %2308 = vmatmul.mubr.bf16.gmra.mrb[0].mxu0 %v2150
      %v2309 = vpop.f32.mrb[0].mxu0
      %v2310 = vadd.f32 0.0, %v2309
      %v2311 = vpop.f32.mrb[0].mxu0
      %v2312 = vpop.f32.mrb[0].mxu0
      %v2313 = vadd.f32 0.0, %v2312
      %v2314 = vpop.f32.mrb[0].mxu0
      %2315 = vdwg.mxu0
      %v2316 = vmul.f32 %v2190, %v604
      %v2317 = vmul.f32 %v2193, %v609
      %v2318 = vmul.f32 %v2198, %v614
      %v2319 = vmul.f32 %v2201, %v619
      %v2320 = vmul.f32 %v2206, %v624
      %v2321 = vmul.f32 %v2209, %v629
      %v2322 = vmul.f32 %v2214, %v634
      %v2323 = vmul.f32 %v2217, %v639
      %v2324 = vmul.f32 %v2222, %v644
      %v2325 = vmul.f32 %v2225, %v649
      %v2326 = vmul.f32 %v2230, %v654
      %v2327 = vmul.f32 %v2233, %v659
      %v2328 = vmul.f32 %v2238, %v664
      %v2329 = vmul.f32 %v2241, %v669
      %v2330 = vmul.f32 %v2246, %v674
      %v2331 = vmul.f32 %v2249, %v679
      %v2332 = vmul.f32 %v2254, %v684
      %v2333 = vmul.f32 %v2257, %v689
      %v2334 = vmul.f32 %v2262, %v694
      %v2335 = vmul.f32 %v2265, %v699
      %v2336 = vmul.f32 %v2270, %v704
      %v2337 = vmul.f32 %v2273, %v709
      %v2338 = vmul.f32 %v2278, %v714
      %v2339 = vmul.f32 %v2281, %v719
      %v2340 = vmul.f32 %v2286, %v724
      %v2341 = vmul.f32 %v2289, %v729
      %v2342 = vmul.f32 %v2294, %v734
      %v2343 = vmul.f32 %v2297, %v739
      %v2344 = vmul.f32 %v2302, %v744
      %v2345 = vmul.f32 %v2305, %v749
      %v2346 = vmul.f32 %v2310, %v754
      %v2347 = vmul.f32 %v2313, %v759
      %v2348 = vadd.f32 %v1926, %v2316
      %v2349 = vadd.f32 %v1927, %v2317
      %v2350 = vadd.f32 %v1928, %v2318
      %v2351 = vadd.f32 %v1929, %v2319
      %v2352 = vadd.f32 %v1930, %v2320
      %v2353 = vadd.f32 %v1931, %v2321
      %v2354 = vadd.f32 %v1932, %v2322
      %v2355 = vadd.f32 %v1933, %v2323
      %v2356 = vadd.f32 %v1934, %v2324
      %v2357 = vadd.f32 %v1935, %v2325
      %v2358 = vadd.f32 %v1936, %v2326
      %v2359 = vadd.f32 %v1937, %v2327
      %v2360 = vadd.f32 %v1938, %v2328
      %v2361 = vadd.f32 %v1939, %v2329
      %v2362 = vadd.f32 %v1940, %v2330
      %v2363 = vadd.f32 %v1941, %v2331
      %v2364 = vadd.f32 %v1942, %v2332
      %v2365 = vadd.f32 %v1943, %v2333
      %v2366 = vadd.f32 %v1944, %v2334
      %v2367 = vadd.f32 %v1945, %v2335
      %v2368 = vadd.f32 %v1946, %v2336
      %v2369 = vadd.f32 %v1947, %v2337
      %v2370 = vadd.f32 %v1948, %v2338
      %v2371 = vadd.f32 %v1949, %v2339
      %v2372 = vadd.f32 %v1950, %v2340
      %v2373 = vadd.f32 %v1951, %v2341
      %v2374 = vadd.f32 %v1952, %v2342
      %v2375 = vadd.f32 %v1953, %v2343
      %v2376 = vadd.f32 %v1954, %v2344
      %v2377 = vadd.f32 %v1955, %v2345
      %v2378 = vadd.f32 %v1956, %v2346
      %v2379 = vadd.f32 %v1957, %v2347
      %v2380 = vld [vmem:[%s199 + $0x8] sm:$0xf]
      %v2381 = vld [vmem:[%s199 + $0xc] sm:$0xf]
      %v2382 = vld [vmem:[%s199 + $0x10] sm:$0xf]
      %v2383 = vld [vmem:[%s199 + $0x14] sm:$0xf]
      %v2384 = vld [vmem:[%s199 + $0x18] sm:$0xf]
      %v2385 = vld [vmem:[%s199 + $0x1c] sm:$0xf]
      %v2386 = vld [vmem:[%s199 + $0x20] sm:$0xf]
      %v2387 = vld [vmem:[%s199 + $0x24] sm:$0xf]
      %v2388 = vld [vmem:[%s199 + $0x28] sm:$0xf]
      %v2389 = vld [vmem:[%s199 + $0x2c] sm:$0xf]
      %v2390 = vld [vmem:[%s199 + $0x30] sm:$0xf]
      %v2391 = vld [vmem:[%s199 + $0x34] sm:$0xf]
      %v2392 = vld [vmem:[%s199 + $0x38] sm:$0xf]
      %v2393 = vld [vmem:[%s199 + $0x3c] sm:$0xf]
      %v2394 = vld [vmem:[%s199 + $0x40] sm:$0xf]
      %v2395 = vld [vmem:[%s199 + $0x44] sm:$0xf]
      %v2396 = vld [vmem:[%s199 + $0x48] sm:$0xf]
      %v2397 = vld [vmem:[%s199 + $0x4c] sm:$0xf]
      %v2398 = vld [vmem:[%s199 + $0x50] sm:$0xf]
      %v2399 = vld [vmem:[%s199 + $0x54] sm:$0xf]
      %v2400 = vld [vmem:[%s199 + $0x58] sm:$0xf]
      %v2401 = vld [vmem:[%s199 + $0x5c] sm:$0xf]
      %v2402 = vld [vmem:[%s199 + $0x60] sm:$0xf]
      %v2403 = vld [vmem:[%s199 + $0x64] sm:$0xf]
      %v2404 = vld [vmem:[%s199 + $0x68] sm:$0xf]
      %v2405 = vld [vmem:[%s199 + $0x6c] sm:$0xf]
      %v2406 = vld [vmem:[%s199 + $0x70] sm:$0xf]
      %v2407 = vld [vmem:[%s199 + $0x74] sm:$0xf]
      %v2408 = vld [vmem:[%s199 + $0x78] sm:$0xf]
      %v2409 = vld [vmem:[%s199 + $0x7c] sm:$0xf]
      %v2410 = vld [vmem:[%s199 + $0x80] sm:$0xf]
      %v2411 = vld [vmem:[%s199 + $0x84] sm:$0xf]
      %v2412 = vld [vmem:[%s199 + $0x88] sm:$0x1]
      %v2413 = vmax.bf16 %v2380, 0
      %v2414 = vmax.bf16 %v2381, 0
      %v2415 = vmax.bf16 %v2382, 0
      %v2416 = vmax.bf16 %v2383, 0
      %v2417 = vmax.bf16 %v2384, 0
      %v2418 = vmax.bf16 %v2385, 0
      %v2419 = vmax.bf16 %v2386, 0
      %v2420 = vmax.bf16 %v2387, 0
      %v2421 = vmax.bf16 %v2388, 0
      %v2422 = vmax.bf16 %v2389, 0
      %v2423 = vmax.bf16 %v2390, 0
      %v2424 = vmax.bf16 %v2391, 0
      %v2425 = vmax.bf16 %v2392, 0
      %v2426 = vmax.bf16 %v2393, 0
      %v2427 = vmax.bf16 %v2394, 0
      %v2428 = vmax.bf16 %v2395, 0
      %v2429 = vmax.bf16 %v2396, 0
      %v2430 = vmax.bf16 %v2397, 0
      %v2431 = vmax.bf16 %v2398, 0
      %v2432 = vmax.bf16 %v2399, 0
      %v2433 = vmax.bf16 %v2400, 0
      %v2434 = vmax.bf16 %v2401, 0
      %v2435 = vmax.bf16 %v2402, 0
      %v2436 = vmax.bf16 %v2403, 0
      %v2437 = vmax.bf16 %v2404, 0
      %v2438 = vmax.bf16 %v2405, 0
      %v2439 = vmax.bf16 %v2406, 0
      %v2440 = vmax.bf16 %v2407, 0
      %v2441 = vmax.bf16 %v2408, 0
      %v2442 = vmax.bf16 %v2409, 0
      %v2443 = vmax.bf16 %v2410, 0
      %v2444 = vmax.bf16 %v2411, 0
      %v2445 = vmax.bf16 %v2412, 0
      %s2446 = scalar_lea.vmem %s1, 8
      %v2447 = vld [vmem:[%s2446] sm:$0x3]
      %v2481 = vunpack.c.l.b16 %v2413
      %v2482 = vunpack.c.l.b16 %v2414
      %v2483 = vunpack.c.l.b16 %v2415
      %v2484 = vunpack.c.l.b16 %v2416
      %v2485 = vunpack.c.l.b16 %v2417
      %v2486 = vunpack.c.l.b16 %v2418
      %v2487 = vunpack.c.l.b16 %v2419
      %v2488 = vunpack.c.l.b16 %v2420
      %v2489 = vunpack.c.l.b16 %v2421
      %v2490 = vunpack.c.l.b16 %v2422
      %v2491 = vunpack.c.l.b16 %v2423
      %v2492 = vunpack.c.l.b16 %v2424
      %v2493 = vunpack.c.l.b16 %v2425
      %v2494 = vunpack.c.l.b16 %v2426
      %v2495 = vunpack.c.l.b16 %v2427
      %v2496 = vunpack.c.l.b16 %v2428
      %v2497 = vunpack.c.l.b16 %v2429
      %v2498 = vunpack.c.l.b16 %v2430
      %v2499 = vunpack.c.l.b16 %v2431
      %v2500 = vunpack.c.l.b16 %v2432
      %v2501 = vunpack.c.l.b16 %v2433
      %v2502 = vunpack.c.l.b16 %v2434
      %v2503 = vunpack.c.l.b16 %v2435
      %v2504 = vunpack.c.l.b16 %v2436
      %v2505 = vunpack.c.l.b16 %v2437
      %v2506 = vunpack.c.l.b16 %v2438
      %v2507 = vunpack.c.l.b16 %v2439
      %v2508 = vunpack.c.l.b16 %v2440
      %v2509 = vunpack.c.l.b16 %v2441
      %v2510 = vunpack.c.l.b16 %v2442
      %v2511 = vunpack.c.l.b16 %v2443
      %v2512 = vunpack.c.l.b16 %v2444
      %v2513 = vunpack.c.l.b16 %v2445
      %v2514 = vpack.c.b16 %v2482, %v2481
      %v2515 = vpack.c.b16 %v2484, %v2483
      %v2516 = vpack.c.b16 %v2486, %v2485
      %v2517 = vpack.c.b16 %v2488, %v2487
      %v2518 = vpack.c.b16 %v2490, %v2489
      %v2519 = vpack.c.b16 %v2492, %v2491
      %v2520 = vpack.c.b16 %v2494, %v2493
      %v2521 = vpack.c.b16 %v2496, %v2495
      %v2522 = vpack.c.b16 %v2498, %v2497
      %v2523 = vpack.c.b16 %v2500, %v2499
      %v2524 = vpack.c.b16 %v2502, %v2501
      %v2525 = vpack.c.b16 %v2504, %v2503
      %v2526 = vpack.c.b16 %v2506, %v2505
      %v2527 = vpack.c.b16 %v2508, %v2507
      %v2528 = vpack.c.b16 %v2510, %v2509
      %v2529 = vpack.c.b16 %v2512, %v2511
      %v2530 = vpack.c.b16 %v2513, %v2513
      %v2532 = vshrl.u32 %v2514, 16
      %v2534 = vshll.u32 %v2514, 16
      %v2536 = vrot.slane %v2534, 1
      %v2537 = vor.u32 %v2532, %v2536
      %v2539 = vshll.u32 %v2515, 16
      %v2541 = vrot.slane %v2539, 1
      %v2542 = vsel %vm976, %v2537, %v2541
      %v2543 = vshrl.u32 %v2515, 16
      %v2545 = vor.u32 %v2543, %v2541
      %v2547 = vshll.u32 %v2516, 16
      %v2549 = vrot.slane %v2547, 1
      %v2550 = vsel %vm976, %v2545, %v2549
      %v2551 = vshrl.u32 %v2516, 16
      %v2553 = vor.u32 %v2551, %v2549
      %v2555 = vshll.u32 %v2517, 16
      %v2557 = vrot.slane %v2555, 1
      %v2558 = vsel %vm976, %v2553, %v2557
      %v2559 = vshrl.u32 %v2517, 16
      %v2561 = vor.u32 %v2559, %v2557
      %v2563 = vshll.u32 %v2518, 16
      %v2565 = vrot.slane %v2563, 1
      %v2566 = vsel %vm976, %v2561, %v2565
      %v2567 = vshrl.u32 %v2518, 16
      %v2569 = vor.u32 %v2567, %v2565
      %v2571 = vshll.u32 %v2519, 16
      %v2573 = vrot.slane %v2571, 1
      %v2574 = vsel %vm976, %v2569, %v2573
      %v2575 = vshrl.u32 %v2519, 16
      %v2577 = vor.u32 %v2575, %v2573
      %v2579 = vshll.u32 %v2520, 16
      %v2581 = vrot.slane %v2579, 1
      %v2582 = vsel %vm976, %v2577, %v2581
      %v2583 = vshrl.u32 %v2520, 16
      %v2585 = vor.u32 %v2583, %v2581
      %v2587 = vshll.u32 %v2521, 16
      %v2589 = vrot.slane %v2587, 1
      %v2590 = vsel %vm976, %v2585, %v2589
      %v2591 = vshrl.u32 %v2521, 16
      %v2593 = vor.u32 %v2591, %v2589
      %v2595 = vshll.u32 %v2522, 16
      %v2597 = vrot.slane %v2595, 1
      %v2598 = vsel %vm976, %v2593, %v2597
      %v2599 = vshrl.u32 %v2522, 16
      %v2601 = vor.u32 %v2599, %v2597
      %v2603 = vshll.u32 %v2523, 16
      %v2605 = vrot.slane %v2603, 1
      %v2606 = vsel %vm976, %v2601, %v2605
      %v2607 = vshrl.u32 %v2523, 16
      %v2609 = vor.u32 %v2607, %v2605
      %v2611 = vshll.u32 %v2524, 16
      %v2613 = vrot.slane %v2611, 1
      %v2614 = vsel %vm976, %v2609, %v2613
      %v2615 = vshrl.u32 %v2524, 16
      %v2617 = vor.u32 %v2615, %v2613
      %v2619 = vshll.u32 %v2525, 16
      %v2621 = vrot.slane %v2619, 1
      %v2622 = vsel %vm976, %v2617, %v2621
      %v2623 = vshrl.u32 %v2525, 16
      %v2625 = vor.u32 %v2623, %v2621
      %v2627 = vshll.u32 %v2526, 16
      %v2629 = vrot.slane %v2627, 1
      %v2630 = vsel %vm976, %v2625, %v2629
      %v2631 = vshrl.u32 %v2526, 16
      %v2633 = vor.u32 %v2631, %v2629
      %v2635 = vshll.u32 %v2527, 16
      %v2637 = vrot.slane %v2635, 1
      %v2638 = vsel %vm976, %v2633, %v2637
      %v2639 = vshrl.u32 %v2527, 16
      %v2641 = vor.u32 %v2639, %v2637
      %v2643 = vshll.u32 %v2528, 16
      %v2645 = vrot.slane %v2643, 1
      %v2646 = vsel %vm976, %v2641, %v2645
      %v2647 = vshrl.u32 %v2528, 16
      %v2649 = vor.u32 %v2647, %v2645
      %v2651 = vshll.u32 %v2529, 16
      %v2653 = vrot.slane %v2651, 1
      %v2654 = vsel %vm976, %v2649, %v2653
      %v2655 = vshrl.u32 %v2529, 16
      %v2657 = vor.u32 %v2655, %v2653
      %v2659 = vshll.u32 %v2530, 16
      %v2661 = vrot.slane %v2659, 1
      %v2662 = vsel %vm976, %v2657, %v2661
      %v2664 = vsel %vm355, %v2542, 0
      %v2667 = vsel %vm355, %v2550, 0
      %v2670 = vsel %vm355, %v2558, 0
      %v2673 = vsel %vm355, %v2566, 0
      %v2676 = vsel %vm355, %v2574, 0
      %v2679 = vsel %vm355, %v2582, 0
      %v2682 = vsel %vm355, %v2590, 0
      %v2685 = vsel %vm355, %v2598, 0
      %v2688 = vsel %vm355, %v2606, 0
      %v2691 = vsel %vm355, %v2614, 0
      %v2694 = vsel %vm355, %v2622, 0
      %v2697 = vsel %vm355, %v2630, 0
      %v2700 = vsel %vm355, %v2638, 0
      %v2703 = vsel %vm355, %v2646, 0
      %v2706 = vsel %vm355, %v2654, 0
      %v2709 = vsel %vm355, %v2662, 0
      %v2712 = vsel %vm404, %v2447, 0
      %2714 = vmatprep.subr.bf16.mxu0 0
      %2715 = vmatpush1.bf16.msra.mxu0 %v2712
      %2716 = vmatprep.subr.bf16.mxu0 0
      %2717 = vmatpush1.bf16.msra.mxu0 0
      %2718 = vmatprep.subr.bf16.mxu0 0
      %2719 = vmatpush1.bf16.msra.mxu0 0
      %2720 = vmatprep.subr.bf16.mxu0 0
      %2721 = vmatpush1.bf16.msra.mxu0 0
      %2722 = vmatprep.subr.bf16.mxu0 0
      %2723 = vmatpush1.bf16.msra.mxu0 0
      %2724 = vmatprep.subr.bf16.mxu0 0
      %2725 = vmatpush1.bf16.msra.mxu0 0
      %2726 = vmatprep.subr.bf16.mxu0 0
      %2727 = vmatpush1.bf16.msra.mxu0 0
      %2728 = vmatprep.subr.bf16.mxu0 0
      %2729 = vmatpush1.bf16.msra.mxu0 0
      %2730 = vmatprep.subr.bf16.mxu0 0
      %2731 = vmatpush1.bf16.msra.mxu0 0
      %2732 = vmatprep.subr.bf16.mxu0 0
      %2733 = vmatpush1.bf16.msra.mxu0 0
      %2734 = vmatprep.subr.bf16.mxu0 0
      %2735 = vmatpush1.bf16.msra.mxu0 0
      %2736 = vmatprep.subr.bf16.mxu0 0
      %2737 = vmatpush1.bf16.msra.mxu0 0
      %2738 = vmatprep.subr.bf16.mxu0 0
      %2739 = vmatpush1.bf16.msra.mxu0 0
      %2740 = vmatprep.subr.bf16.mxu0 0
      %2741 = vmatpush1.bf16.msra.mxu0 0
      %2742 = vmatprep.subr.bf16.mxu0 0
      %2743 = vmatpush1.bf16.msra.mxu0 0
      %2744 = vmatprep.subr.bf16.mxu0 0
      %2745 = vmatpush1.bf16.msra.mxu0 0
      %2746 = vmatprep.mubr.bf16.mxu0 0
      %2747 = vmatmul.mubr.bf16.gmra.mrb[0].mxu0 %v2664
      %v2748 = vpop.f32.mrb[0].mxu0
      %v2749 = vadd.f32 0.0, %v2748
      %v2750 = vpop.f32.mrb[0].mxu0
      %v2751 = vpop.f32.mrb[0].mxu0
      %v2752 = vadd.f32 0.0, %v2751
      %v2753 = vpop.f32.mrb[0].mxu0
      %2754 = vmatprep.mubr.bf16.mxu0 0
      %2755 = vmatmul.mubr.bf16.gmra.mrb[0].mxu0 %v2667
      %v2756 = vpop.f32.mrb[0].mxu0
      %v2757 = vadd.f32 0.0, %v2756
      %v2758 = vpop.f32.mrb[0].mxu0
      %v2759 = vpop.f32.mrb[0].mxu0
      %v2760 = vadd.f32 0.0, %v2759
      %v2761 = vpop.f32.mrb[0].mxu0
      %2762 = vmatprep.mubr.bf16.mxu0 0
      %2763 = vmatmul.mubr.bf16.gmra.mrb[0].mxu0 %v2670
      %v2764 = vpop.f32.mrb[0].mxu0
      %v2765 = vadd.f32 0.0, %v2764
      %v2766 = vpop.f32.mrb[0].mxu0
      %v2767 = vpop.f32.mrb[0].mxu0
      %v2768 = vadd.f32 0.0, %v2767
      %v2769 = vpop.f32.mrb[0].mxu0
      %2770 = vmatprep.mubr.bf16.mxu0 0
      %2771 = vmatmul.mubr.bf16.gmra.mrb[0].mxu0 %v2673
      %v2772 = vpop.f32.mrb[0].mxu0
      %v2773 = vadd.f32 0.0, %v2772
      %v2774 = vpop.f32.mrb[0].mxu0
      %v2775 = vpop.f32.mrb[0].mxu0
      %v2776 = vadd.f32 0.0, %v2775
      %v2777 = vpop.f32.mrb[0].mxu0
      %2778 = vmatprep.mubr.bf16.mxu0 0
      %2779 = vmatmul.mubr.bf16.gmra.mrb[0].mxu0 %v2676
      %v2780 = vpop.f32.mrb[0].mxu0
      %v2781 = vadd.f32 0.0, %v2780
      %v2782 = vpop.f32.mrb[0].mxu0
      %v2783 = vpop.f32.mrb[0].mxu0
      %v2784 = vadd.f32 0.0, %v2783
      %v2785 = vpop.f32.mrb[0].mxu0
      %2786 = vmatprep.mubr.bf16.mxu0 0
      %2787 = vmatmul.mubr.bf16.gmra.mrb[0].mxu0 %v2679
      %v2788 = vpop.f32.mrb[0].mxu0
      %v2789 = vadd.f32 0.0, %v2788
      %v2790 = vpop.f32.mrb[0].mxu0
      %v2791 = vpop.f32.mrb[0].mxu0
      %v2792 = vadd.f32 0.0, %v2791
      %v2793 = vpop.f32.mrb[0].mxu0
      %2794 = vmatprep.mubr.bf16.mxu0 0
      %2795 = vmatmul.mubr.bf16.gmra.mrb[0].mxu0 %v2682
      %v2796 = vpop.f32.mrb[0].mxu0
      %v2797 = vadd.f32 0.0, %v2796
      %v2798 = vpop.f32.mrb[0].mxu0
      %v2799 = vpop.f32.mrb[0].mxu0
      %v2800 = vadd.f32 0.0, %v2799
      %v2801 = vpop.f32.mrb[0].mxu0
      %2802 = vmatprep.mubr.bf16.mxu0 0
      %2803 = vmatmul.mubr.bf16.gmra.mrb[0].mxu0 %v2685
      %v2804 = vpop.f32.mrb[0].mxu0
      %v2805 = vadd.f32 0.0, %v2804
      %v2806 = vpop.f32.mrb[0].mxu0
      %v2807 = vpop.f32.mrb[0].mxu0
      %v2808 = vadd.f32 0.0, %v2807
      %v2809 = vpop.f32.mrb[0].mxu0
      %2810 = vmatprep.mubr.bf16.mxu0 0
      %2811 = vmatmul.mubr.bf16.gmra.mrb[0].mxu0 %v2688
      %v2812 = vpop.f32.mrb[0].mxu0
      %v2813 = vadd.f32 0.0, %v2812
      %v2814 = vpop.f32.mrb[0].mxu0
      %v2815 = vpop.f32.mrb[0].mxu0
      %v2816 = vadd.f32 0.0, %v2815
      %v2817 = vpop.f32.mrb[0].mxu0
      %2818 = vmatprep.mubr.bf16.mxu0 0
      %2819 = vmatmul.mubr.bf16.gmra.mrb[0].mxu0 %v2691
      %v2820 = vpop.f32.mrb[0].mxu0
      %v2821 = vadd.f32 0.0, %v2820
      %v2822 = vpop.f32.mrb[0].mxu0
      %v2823 = vpop.f32.mrb[0].mxu0
      %v2824 = vadd.f32 0.0, %v2823
      %v2825 = vpop.f32.mrb[0].mxu0
      %2826 = vmatprep.mubr.bf16.mxu0 0
      %2827 = vmatmul.mubr.bf16.gmra.mrb[0].mxu0 %v2694
      %v2828 = vpop.f32.mrb[0].mxu0
      %v2829 = vadd.f32 0.0, %v2828
      %v2830 = vpop.f32.mrb[0].mxu0
      %v2831 = vpop.f32.mrb[0].mxu0
      %v2832 = vadd.f32 0.0, %v2831
      %v2833 = vpop.f32.mrb[0].mxu0
      %2834 = vmatprep.mubr.bf16.mxu0 0
      %2835 = vmatmul.mubr.bf16.gmra.mrb[0].mxu0 %v2697
      %v2836 = vpop.f32.mrb[0].mxu0
      %v2837 = vadd.f32 0.0, %v2836
      %v2838 = vpop.f32.mrb[0].mxu0
      %v2839 = vpop.f32.mrb[0].mxu0
      %v2840 = vadd.f32 0.0, %v2839
      %v2841 = vpop.f32.mrb[0].mxu0
      %2842 = vmatprep.mubr.bf16.mxu0 0
      %2843 = vmatmul.mubr.bf16.gmra.mrb[0].mxu0 %v2700
      %v2844 = vpop.f32.mrb[0].mxu0
      %v2845 = vadd.f32 0.0, %v2844
      %v2846 = vpop.f32.mrb[0].mxu0
      %v2847 = vpop.f32.mrb[0].mxu0
      %v2848 = vadd.f32 0.0, %v2847
      %v2849 = vpop.f32.mrb[0].mxu0
      %2850 = vmatprep.mubr.bf16.mxu0 0
      %2851 = vmatmul.mubr.bf16.gmra.mrb[0].mxu0 %v2703
      %v2852 = vpop.f32.mrb[0].mxu0
      %v2853 = vadd.f32 0.0, %v2852
      %v2854 = vpop.f32.mrb[0].mxu0
      %v2855 = vpop.f32.mrb[0].mxu0
      %v2856 = vadd.f32 0.0, %v2855
      %v2857 = vpop.f32.mrb[0].mxu0
      %2858 = vmatprep.mubr.bf16.mxu0 0
      %2859 = vmatmul.mubr.bf16.gmra.mrb[0].mxu0 %v2706
      %v2860 = vpop.f32.mrb[0].mxu0
      %v2861 = vadd.f32 0.0, %v2860
      %v2862 = vpop.f32.mrb[0].mxu0
      %v2863 = vpop.f32.mrb[0].mxu0
      %v2864 = vadd.f32 0.0, %v2863
      %v2865 = vpop.f32.mrb[0].mxu0
      %2866 = vmatprep.mubr.bf16.mxu0 0
      %2867 = vmatmul.mubr.bf16.gmra.mrb[0].mxu0 %v2709
      %v2868 = vpop.f32.mrb[0].mxu0
      %v2869 = vadd.f32 0.0, %v2868
      %v2870 = vpop.f32.mrb[0].mxu0
      %v2871 = vpop.f32.mrb[0].mxu0
      %v2872 = vadd.f32 0.0, %v2871
      %v2873 = vpop.f32.mrb[0].mxu0
      %2874 = vdwg.mxu0
      %v2875 = vmul.f32 %v2749, %v1323
      %v2876 = vmul.f32 %v2752, %v1327
      %v2877 = vmul.f32 %v2757, %v1331
      %v2878 = vmul.f32 %v2760, %v1335
      %v2879 = vmul.f32 %v2765, %v1339
      %v2880 = vmul.f32 %v2768, %v1343
      %v2881 = vmul.f32 %v2773, %v1347
      %v2882 = vmul.f32 %v2776, %v1351
      %v2883 = vmul.f32 %v2781, %v1355
      %v2884 = vmul.f32 %v2784, %v1359
      %v2885 = vmul.f32 %v2789, %v1363
      %v2886 = vmul.f32 %v2792, %v1367
      %v2887 = vmul.f32 %v2797, %v1371
      %v2888 = vmul.f32 %v2800, %v1375
      %v2889 = vmul.f32 %v2805, %v1379
      %v2890 = vmul.f32 %v2808, %v1383
      %v2891 = vmul.f32 %v2813, %v1387
      %v2892 = vmul.f32 %v2816, %v1391
      %v2893 = vmul.f32 %v2821, %v1395
      %v2894 = vmul.f32 %v2824, %v1399
      %v2895 = vmul.f32 %v2829, %v1403
      %v2896 = vmul.f32 %v2832, %v1407
      %v2897 = vmul.f32 %v2837, %v1411
      %v2898 = vmul.f32 %v2840, %v1415
      %v2899 = vmul.f32 %v2845, %v1419
      %v2900 = vmul.f32 %v2848, %v1423
      %v2901 = vmul.f32 %v2853, %v1427
      %v2902 = vmul.f32 %v2856, %v1431
      %v2903 = vmul.f32 %v2861, %v1435
      %v2904 = vmul.f32 %v2864, %v1439
      %v2905 = vmul.f32 %v2869, %v1443
      %v2906 = vmul.f32 %v2872, %v1447
      %v2907 = vadd.f32 %v2348, %v2875
      %v2908 = vadd.f32 %v2349, %v2876
      %v2909 = vadd.f32 %v2350, %v2877
      %v2910 = vadd.f32 %v2351, %v2878
      %v2911 = vadd.f32 %v2352, %v2879
      %v2912 = vadd.f32 %v2353, %v2880
      %v2913 = vadd.f32 %v2354, %v2881
      %v2914 = vadd.f32 %v2355, %v2882
      %v2915 = vadd.f32 %v2356, %v2883
      %v2916 = vadd.f32 %v2357, %v2884
      %v2917 = vadd.f32 %v2358, %v2885
      %v2918 = vadd.f32 %v2359, %v2886
      %v2919 = vadd.f32 %v2360, %v2887
      %v2920 = vadd.f32 %v2361, %v2888
      %v2921 = vadd.f32 %v2362, %v2889
      %v2922 = vadd.f32 %v2363, %v2890
      %v2923 = vadd.f32 %v2364, %v2891
      %v2924 = vadd.f32 %v2365, %v2892
      %v2925 = vadd.f32 %v2366, %v2893
      %v2926 = vadd.f32 %v2367, %v2894
      %v2927 = vadd.f32 %v2368, %v2895
      %v2928 = vadd.f32 %v2369, %v2896
      %v2929 = vadd.f32 %v2370, %v2897
      %v2930 = vadd.f32 %v2371, %v2898
      %v2931 = vadd.f32 %v2372, %v2899
      %v2932 = vadd.f32 %v2373, %v2900
      %v2933 = vadd.f32 %v2374, %v2901
      %v2934 = vadd.f32 %v2375, %v2902
      %v2935 = vadd.f32 %v2376, %v2903
      %v2936 = vadd.f32 %v2377, %v2904
      %v2937 = vadd.f32 %v2378, %v2905
      %v2938 = vadd.f32 %v2379, %v2906
      %v2939 = vld [vmem:[%s199 + $0x8] sm:$0xe]
      %v2940 = vmax.bf16 %v2939, 0
      %s2941 = scalar_lea.vmem %s1, 10
      %v2942 = vld [vmem:[%s2941] sm:$0x3]
      %v2944 = vunpack.c.l.b16 %v2940
      %v2945 = vpack.c.b16 %v2482, %v2944
      %v2946 = vrot.slane %v2945, 1
      %v2947 = vrot.slane %v2515, 1
      %v2948 = vsel %vm1520, %v2946, %v2947
      %v2949 = vrot.slane %v2516, 1
      %v2950 = vsel %vm1520, %v2947, %v2949
      %v2951 = vrot.slane %v2517, 1
      %v2952 = vsel %vm1520, %v2949, %v2951
      %v2953 = vrot.slane %v2518, 1
      %v2954 = vsel %vm1520, %v2951, %v2953
      %v2955 = vrot.slane %v2519, 1
      %v2956 = vsel %vm1520, %v2953, %v2955
      %v2957 = vrot.slane %v2520, 1
      %v2958 = vsel %vm1520, %v2955, %v2957
      %v2959 = vrot.slane %v2521, 1
      %v2960 = vsel %vm1520, %v2957, %v2959
      %v2961 = vrot.slane %v2522, 1
      %v2962 = vsel %vm1520, %v2959, %v2961
      %v2963 = vrot.slane %v2523, 1
      %v2964 = vsel %vm1520, %v2961, %v2963
      %v2965 = vrot.slane %v2524, 1
      %v2966 = vsel %vm1520, %v2963, %v2965
      %v2967 = vrot.slane %v2525, 1
      %v2968 = vsel %vm1520, %v2965, %v2967
      %v2969 = vrot.slane %v2526, 1
      %v2970 = vsel %vm1520, %v2967, %v2969
      %v2971 = vrot.slane %v2527, 1
      %v2972 = vsel %vm1520, %v2969, %v2971
      %v2973 = vrot.slane %v2528, 1
      %v2974 = vsel %vm1520, %v2971, %v2973
      %v2975 = vrot.slane %v2529, 1
      %v2976 = vsel %vm1520, %v2973, %v2975
      %v2977 = vrot.slane %v2530, 1
      %v2978 = vsel %vm1520, %v2975, %v2977
      %v2980 = vsel %vm355, %v2948, 0
      %v2983 = vsel %vm355, %v2950, 0
      %v2986 = vsel %vm355, %v2952, 0
      %v2989 = vsel %vm355, %v2954, 0
      %v2992 = vsel %vm355, %v2956, 0
      %v2995 = vsel %vm355, %v2958, 0
      %v2998 = vsel %vm355, %v2960, 0
      %v3001 = vsel %vm355, %v2962, 0
      %v3004 = vsel %vm355, %v2964, 0
      %v3007 = vsel %vm355, %v2966, 0
      %v3010 = vsel %vm355, %v2968, 0
      %v3013 = vsel %vm355, %v2970, 0
      %v3016 = vsel %vm355, %v2972, 0
      %v3019 = vsel %vm355, %v2974, 0
      %v3022 = vsel %vm355, %v2976, 0
      %v3025 = vsel %vm355, %v2978, 0
      %v3028 = vsel %vm404, %v2942, 0
      %3030 = vmatprep.subr.bf16.mxu0 0
      %3031 = vmatpush1.bf16.msra.mxu0 %v3028
      %3032 = vmatprep.subr.bf16.mxu0 0
      %3033 = vmatpush1.bf16.msra.mxu0 0
      %3034 = vmatprep.subr.bf16.mxu0 0
      %3035 = vmatpush1.bf16.msra.mxu0 0
      %3036 = vmatprep.subr.bf16.mxu0 0
      %3037 = vmatpush1.bf16.msra.mxu0 0
      %3038 = vmatprep.subr.bf16.mxu0 0
      %3039 = vmatpush1.bf16.msra.mxu0 0
      %3040 = vmatprep.subr.bf16.mxu0 0
      %3041 = vmatpush1.bf16.msra.mxu0 0
      %3042 = vmatprep.subr.bf16.mxu0 0
      %3043 = vmatpush1.bf16.msra.mxu0 0
      %3044 = vmatprep.subr.bf16.mxu0 0
      %3045 = vmatpush1.bf16.msra.mxu0 0
      %3046 = vmatprep.subr.bf16.mxu0 0
      %3047 = vmatpush1.bf16.msra.mxu0 0
      %3048 = vmatprep.subr.bf16.mxu0 0
      %3049 = vmatpush1.bf16.msra.mxu0 0
      %3050 = vmatprep.subr.bf16.mxu0 0
      %3051 = vmatpush1.bf16.msra.mxu0 0
      %3052 = vmatprep.subr.bf16.mxu0 0
      %3053 = vmatpush1.bf16.msra.mxu0 0
      %3054 = vmatprep.subr.bf16.mxu0 0
      %3055 = vmatpush1.bf16.msra.mxu0 0
      %3056 = vmatprep.subr.bf16.mxu0 0
      %3057 = vmatpush1.bf16.msra.mxu0 0
      %3058 = vmatprep.subr.bf16.mxu0 0
      %3059 = vmatpush1.bf16.msra.mxu0 0
      %3060 = vmatprep.subr.bf16.mxu0 0
      %3061 = vmatpush1.bf16.msra.mxu0 0
      %3062 = vmatprep.mubr.bf16.mxu0 0
      %3063 = vmatmul.mubr.bf16.gmra.mrb[0].mxu0 %v2980
      %v3064 = vpop.f32.mrb[0].mxu0
      %v3065 = vadd.f32 0.0, %v3064
      %v3066 = vpop.f32.mrb[0].mxu0
      %v3067 = vpop.f32.mrb[0].mxu0
      %v3068 = vadd.f32 0.0, %v3067
      %v3069 = vpop.f32.mrb[0].mxu0
      %3070 = vmatprep.mubr.bf16.mxu0 0
      %3071 = vmatmul.mubr.bf16.gmra.mrb[0].mxu0 %v2983
      %v3072 = vpop.f32.mrb[0].mxu0
      %v3073 = vadd.f32 0.0, %v3072
      %v3074 = vpop.f32.mrb[0].mxu0
      %v3075 = vpop.f32.mrb[0].mxu0
      %v3076 = vadd.f32 0.0, %v3075
      %v3077 = vpop.f32.mrb[0].mxu0
      %3078 = vmatprep.mubr.bf16.mxu0 0
      %3079 = vmatmul.mubr.bf16.gmra.mrb[0].mxu0 %v2986
      %v3080 = vpop.f32.mrb[0].mxu0
      %v3081 = vadd.f32 0.0, %v3080
      %v3082 = vpop.f32.mrb[0].mxu0
      %v3083 = vpop.f32.mrb[0].mxu0
      %v3084 = vadd.f32 0.0, %v3083
      %v3085 = vpop.f32.mrb[0].mxu0
      %3086 = vmatprep.mubr.bf16.mxu0 0
      %3087 = vmatmul.mubr.bf16.gmra.mrb[0].mxu0 %v2989
      %v3088 = vpop.f32.mrb[0].mxu0
      %v3089 = vadd.f32 0.0, %v3088
      %v3090 = vpop.f32.mrb[0].mxu0
      %v3091 = vpop.f32.mrb[0].mxu0
      %v3092 = vadd.f32 0.0, %v3091
      %v3093 = vpop.f32.mrb[0].mxu0
      %3094 = vmatprep.mubr.bf16.mxu0 0
      %3095 = vmatmul.mubr.bf16.gmra.mrb[0].mxu0 %v2992
      %v3096 = vpop.f32.mrb[0].mxu0
      %v3097 = vadd.f32 0.0, %v3096
      %v3098 = vpop.f32.mrb[0].mxu0
      %v3099 = vpop.f32.mrb[0].mxu0
      %v3100 = vadd.f32 0.0, %v3099
      %v3101 = vpop.f32.mrb[0].mxu0
      %3102 = vmatprep.mubr.bf16.mxu0 0
      %3103 = vmatmul.mubr.bf16.gmra.mrb[0].mxu0 %v2995
      %v3104 = vpop.f32.mrb[0].mxu0
      %v3105 = vadd.f32 0.0, %v3104
      %v3106 = vpop.f32.mrb[0].mxu0
      %v3107 = vpop.f32.mrb[0].mxu0
      %v3108 = vadd.f32 0.0, %v3107
      %v3109 = vpop.f32.mrb[0].mxu0
      %3110 = vmatprep.mubr.bf16.mxu0 0
      %3111 = vmatmul.mubr.bf16.gmra.mrb[0].mxu0 %v2998
      %v3112 = vpop.f32.mrb[0].mxu0
      %v3113 = vadd.f32 0.0, %v3112
      %v3114 = vpop.f32.mrb[0].mxu0
      %v3115 = vpop.f32.mrb[0].mxu0
      %v3116 = vadd.f32 0.0, %v3115
      %v3117 = vpop.f32.mrb[0].mxu0
      %3118 = vmatprep.mubr.bf16.mxu0 0
      %3119 = vmatmul.mubr.bf16.gmra.mrb[0].mxu0 %v3001
      %v3120 = vpop.f32.mrb[0].mxu0
      %v3121 = vadd.f32 0.0, %v3120
      %v3122 = vpop.f32.mrb[0].mxu0
      %v3123 = vpop.f32.mrb[0].mxu0
      %v3124 = vadd.f32 0.0, %v3123
      %v3125 = vpop.f32.mrb[0].mxu0
      %3126 = vmatprep.mubr.bf16.mxu0 0
      %3127 = vmatmul.mubr.bf16.gmra.mrb[0].mxu0 %v3004
      %v3128 = vpop.f32.mrb[0].mxu0
      %v3129 = vadd.f32 0.0, %v3128
      %v3130 = vpop.f32.mrb[0].mxu0
      %v3131 = vpop.f32.mrb[0].mxu0
      %v3132 = vadd.f32 0.0, %v3131
      %v3133 = vpop.f32.mrb[0].mxu0
      %3134 = vmatprep.mubr.bf16.mxu0 0
      %3135 = vmatmul.mubr.bf16.gmra.mrb[0].mxu0 %v3007
      %v3136 = vpop.f32.mrb[0].mxu0
      %v3137 = vadd.f32 0.0, %v3136
      %v3138 = vpop.f32.mrb[0].mxu0
      %v3139 = vpop.f32.mrb[0].mxu0
      %v3140 = vadd.f32 0.0, %v3139
      %v3141 = vpop.f32.mrb[0].mxu0
      %3142 = vmatprep.mubr.bf16.mxu0 0
      %3143 = vmatmul.mubr.bf16.gmra.mrb[0].mxu0 %v3010
      %v3144 = vpop.f32.mrb[0].mxu0
      %v3145 = vadd.f32 0.0, %v3144
      %v3146 = vpop.f32.mrb[0].mxu0
      %v3147 = vpop.f32.mrb[0].mxu0
      %v3148 = vadd.f32 0.0, %v3147
      %v3149 = vpop.f32.mrb[0].mxu0
      %3150 = vmatprep.mubr.bf16.mxu0 0
      %3151 = vmatmul.mubr.bf16.gmra.mrb[0].mxu0 %v3013
      %v3152 = vpop.f32.mrb[0].mxu0
      %v3153 = vadd.f32 0.0, %v3152
      %v3154 = vpop.f32.mrb[0].mxu0
      %v3155 = vpop.f32.mrb[0].mxu0
      %v3156 = vadd.f32 0.0, %v3155
      %v3157 = vpop.f32.mrb[0].mxu0
      %3158 = vmatprep.mubr.bf16.mxu0 0
      %3159 = vmatmul.mubr.bf16.gmra.mrb[0].mxu0 %v3016
      %v3160 = vpop.f32.mrb[0].mxu0
      %v3161 = vadd.f32 0.0, %v3160
      %v3162 = vpop.f32.mrb[0].mxu0
      %v3163 = vpop.f32.mrb[0].mxu0
      %v3164 = vadd.f32 0.0, %v3163
      %v3165 = vpop.f32.mrb[0].mxu0
      %3166 = vmatprep.mubr.bf16.mxu0 0
      %3167 = vmatmul.mubr.bf16.gmra.mrb[0].mxu0 %v3019
      %v3168 = vpop.f32.mrb[0].mxu0
      %v3169 = vadd.f32 0.0, %v3168
      %v3170 = vpop.f32.mrb[0].mxu0
      %v3171 = vpop.f32.mrb[0].mxu0
      %v3172 = vadd.f32 0.0, %v3171
      %v3173 = vpop.f32.mrb[0].mxu0
      %3174 = vmatprep.mubr.bf16.mxu0 0
      %3175 = vmatmul.mubr.bf16.gmra.mrb[0].mxu0 %v3022
      %v3176 = vpop.f32.mrb[0].mxu0
      %v3177 = vadd.f32 0.0, %v3176
      %v3178 = vpop.f32.mrb[0].mxu0
      %v3179 = vpop.f32.mrb[0].mxu0
      %v3180 = vadd.f32 0.0, %v3179
      %v3181 = vpop.f32.mrb[0].mxu0
      %3182 = vmatprep.mubr.bf16.mxu0 0
      %3183 = vmatmul.mubr.bf16.gmra.mrb[0].mxu0 %v3025
      %v3184 = vpop.f32.mrb[0].mxu0
      %v3185 = vadd.f32 0.0, %v3184
      %v3186 = vpop.f32.mrb[0].mxu0
      %v3187 = vpop.f32.mrb[0].mxu0
      %v3188 = vadd.f32 0.0, %v3187
      %v3189 = vpop.f32.mrb[0].mxu0
      %3190 = vdwg.mxu0
      %v3191 = vmul.f32 %v3065, %v1768
      %v3192 = vmul.f32 %v3068, %v1772
      %v3193 = vmul.f32 %v3073, %v1776
      %v3194 = vmul.f32 %v3076, %v1780
      %v3195 = vmul.f32 %v3081, %v1784
      %v3196 = vmul.f32 %v3084, %v1788
      %v3197 = vmul.f32 %v3089, %v1792
      %v3198 = vmul.f32 %v3092, %v1796
      %v3199 = vmul.f32 %v3097, %v1800
      %v3200 = vmul.f32 %v3100, %v1804
      %v3201 = vmul.f32 %v3105, %v1808
      %v3202 = vmul.f32 %v3108, %v1812
      %v3203 = vmul.f32 %v3113, %v1816
      %v3204 = vmul.f32 %v3116, %v1820
      %v3205 = vmul.f32 %v3121, %v1824
      %v3206 = vmul.f32 %v3124, %v1828
      %v3207 = vmul.f32 %v3129, %v1832
      %v3208 = vmul.f32 %v3132, %v1836
      %v3209 = vmul.f32 %v3137, %v1840
      %v3210 = vmul.f32 %v3140, %v1844
      %v3211 = vmul.f32 %v3145, %v1848
      %v3212 = vmul.f32 %v3148, %v1852
      %v3213 = vmul.f32 %v3153, %v1856
      %v3214 = vmul.f32 %v3156, %v1860
      %v3215 = vmul.f32 %v3161, %v1864
      %v3216 = vmul.f32 %v3164, %v1868
      %v3217 = vmul.f32 %v3169, %v1872
      %v3218 = vmul.f32 %v3172, %v1876
      %v3219 = vmul.f32 %v3177, %v1880
      %v3220 = vmul.f32 %v3180, %v1884
      %v3221 = vmul.f32 %v3185, %v1888
      %v3222 = vmul.f32 %v3188, %v1892
      %v3223 = vadd.f32 %v2907, %v3191
      %v3224 = vadd.f32 %v2908, %v3192
      %v3225 = vadd.f32 %v2909, %v3193
      %v3226 = vadd.f32 %v2910, %v3194
      %v3227 = vadd.f32 %v2911, %v3195
      %v3228 = vadd.f32 %v2912, %v3196
      %v3229 = vadd.f32 %v2913, %v3197
      %v3230 = vadd.f32 %v2914, %v3198
      %v3231 = vadd.f32 %v2915, %v3199
      %v3232 = vadd.f32 %v2916, %v3200
      %v3233 = vadd.f32 %v2917, %v3201
      %v3234 = vadd.f32 %v2918, %v3202
      %v3235 = vadd.f32 %v2919, %v3203
      %v3236 = vadd.f32 %v2920, %v3204
      %v3237 = vadd.f32 %v2921, %v3205
      %v3238 = vadd.f32 %v2922, %v3206
      %v3239 = vadd.f32 %v2923, %v3207
      %v3240 = vadd.f32 %v2924, %v3208
      %v3241 = vadd.f32 %v2925, %v3209
      %v3242 = vadd.f32 %v2926, %v3210
      %v3243 = vadd.f32 %v2927, %v3211
      %v3244 = vadd.f32 %v2928, %v3212
      %v3245 = vadd.f32 %v2929, %v3213
      %v3246 = vadd.f32 %v2930, %v3214
      %v3247 = vadd.f32 %v2931, %v3215
      %v3248 = vadd.f32 %v2932, %v3216
      %v3249 = vadd.f32 %v2933, %v3217
      %v3250 = vadd.f32 %v2934, %v3218
      %v3251 = vadd.f32 %v2935, %v3219
      %v3252 = vadd.f32 %v2936, %v3220
      %v3253 = vadd.f32 %v2937, %v3221
      %v3254 = vadd.f32 %v2938, %v3222
      %v3255 = vld [vmem:[%s199 + $0x10] sm:$0xf]
      %v3256 = vld [vmem:[%s199 + $0x14] sm:$0xf]
      %v3257 = vld [vmem:[%s199 + $0x18] sm:$0xf]
      %v3258 = vld [vmem:[%s199 + $0x1c] sm:$0xf]
      %v3259 = vld [vmem:[%s199 + $0x20] sm:$0xf]
      %v3260 = vld [vmem:[%s199 + $0x24] sm:$0xf]
      %v3261 = vld [vmem:[%s199 + $0x28] sm:$0xf]
      %v3262 = vld [vmem:[%s199 + $0x2c] sm:$0xf]
      %v3263 = vld [vmem:[%s199 + $0x30] sm:$0xf]
      %v3264 = vld [vmem:[%s199 + $0x34] sm:$0xf]
      %v3265 = vld [vmem:[%s199 + $0x38] sm:$0xf]
      %v3266 = vld [vmem:[%s199 + $0x3c] sm:$0xf]
      %v3267 = vld [vmem:[%s199 + $0x40] sm:$0xf]
      %v3268 = vld [vmem:[%s199 + $0x44] sm:$0xf]
      %v3269 = vld [vmem:[%s199 + $0x48] sm:$0xf]
      %v3270 = vld [vmem:[%s199 + $0x4c] sm:$0xf]
      %v3271 = vld [vmem:[%s199 + $0x50] sm:$0xf]
      %v3272 = vld [vmem:[%s199 + $0x54] sm:$0xf]
      %v3273 = vld [vmem:[%s199 + $0x58] sm:$0xf]
      %v3274 = vld [vmem:[%s199 + $0x5c] sm:$0xf]
      %v3275 = vld [vmem:[%s199 + $0x60] sm:$0xf]
      %v3276 = vld [vmem:[%s199 + $0x64] sm:$0xf]
      %v3277 = vld [vmem:[%s199 + $0x68] sm:$0xf]
      %v3278 = vld [vmem:[%s199 + $0x6c] sm:$0xf]
      %v3279 = vld [vmem:[%s199 + $0x70] sm:$0xf]
      %v3280 = vld [vmem:[%s199 + $0x74] sm:$0xf]
      %v3281 = vld [vmem:[%s199 + $0x78] sm:$0xf]
      %v3282 = vld [vmem:[%s199 + $0x7c] sm:$0xf]
      %v3283 = vld [vmem:[%s199 + $0x80] sm:$0xf]
      %v3284 = vld [vmem:[%s199 + $0x84] sm:$0xf]
      %v3285 = vld [vmem:[%s199 + $0x88] sm:$0xf]
      %v3286 = vld [vmem:[%s199 + $0x8c] sm:$0xf]
      %v3287 = vmax.bf16 %v3255, 0
      %v3288 = vmax.bf16 %v3256, 0
      %v3289 = vmax.bf16 %v3257, 0
      %v3290 = vmax.bf16 %v3258, 0
      %v3291 = vmax.bf16 %v3259, 0
      %v3292 = vmax.bf16 %v3260, 0
      %v3293 = vmax.bf16 %v3261, 0
      %v3294 = vmax.bf16 %v3262, 0
      %v3295 = vmax.bf16 %v3263, 0
      %v3296 = vmax.bf16 %v3264, 0
      %v3297 = vmax.bf16 %v3265, 0
      %v3298 = vmax.bf16 %v3266, 0
      %v3299 = vmax.bf16 %v3267, 0
      %v3300 = vmax.bf16 %v3268, 0
      %v3301 = vmax.bf16 %v3269, 0
      %v3302 = vmax.bf16 %v3270, 0
      %v3303 = vmax.bf16 %v3271, 0
      %v3304 = vmax.bf16 %v3272, 0
      %v3305 = vmax.bf16 %v3273, 0
      %v3306 = vmax.bf16 %v3274, 0
      %v3307 = vmax.bf16 %v3275, 0
      %v3308 = vmax.bf16 %v3276, 0
      %v3309 = vmax.bf16 %v3277, 0
      %v3310 = vmax.bf16 %v3278, 0
      %v3311 = vmax.bf16 %v3279, 0
      %v3312 = vmax.bf16 %v3280, 0
      %v3313 = vmax.bf16 %v3281, 0
      %v3314 = vmax.bf16 %v3282, 0
      %v3315 = vmax.bf16 %v3283, 0
      %v3316 = vmax.bf16 %v3284, 0
      %v3317 = vmax.bf16 %v3285, 0
      %v3318 = vmax.bf16 %v3286, 0
      %s3319 = scalar_lea.vmem %s1, 12
      %v3320 = vld [vmem:[%s3319] sm:$0x3]
      %v3353 = vunpack.c.l.b16 %v3287
      %v3354 = vunpack.c.l.b16 %v3288
      %v3355 = vunpack.c.l.b16 %v3289
      %v3356 = vunpack.c.l.b16 %v3290
      %v3357 = vunpack.c.l.b16 %v3291
      %v3358 = vunpack.c.l.b16 %v3292
      %v3359 = vunpack.c.l.b16 %v3293
      %v3360 = vunpack.c.l.b16 %v3294
      %v3361 = vunpack.c.l.b16 %v3295
      %v3362 = vunpack.c.l.b16 %v3296
      %v3363 = vunpack.c.l.b16 %v3297
      %v3364 = vunpack.c.l.b16 %v3298
      %v3365 = vunpack.c.l.b16 %v3299
      %v3366 = vunpack.c.l.b16 %v3300
      %v3367 = vunpack.c.l.b16 %v3301
      %v3368 = vunpack.c.l.b16 %v3302
      %v3369 = vunpack.c.l.b16 %v3303
      %v3370 = vunpack.c.l.b16 %v3304
      %v3371 = vunpack.c.l.b16 %v3305
      %v3372 = vunpack.c.l.b16 %v3306
      %v3373 = vunpack.c.l.b16 %v3307
      %v3374 = vunpack.c.l.b16 %v3308
      %v3375 = vunpack.c.l.b16 %v3309
      %v3376 = vunpack.c.l.b16 %v3310
      %v3377 = vunpack.c.l.b16 %v3311
      %v3378 = vunpack.c.l.b16 %v3312
      %v3379 = vunpack.c.l.b16 %v3313
      %v3380 = vunpack.c.l.b16 %v3314
      %v3381 = vunpack.c.l.b16 %v3315
      %v3382 = vunpack.c.l.b16 %v3316
      %v3383 = vunpack.c.l.b16 %v3317
      %v3384 = vunpack.c.l.b16 %v3318
      %v3385 = vpack.c.b16 %v3354, %v3353
      %v3386 = vpack.c.b16 %v3356, %v3355
      %v3387 = vpack.c.b16 %v3358, %v3357
      %v3388 = vpack.c.b16 %v3360, %v3359
      %v3389 = vpack.c.b16 %v3362, %v3361
      %v3390 = vpack.c.b16 %v3364, %v3363
      %v3391 = vpack.c.b16 %v3366, %v3365
      %v3392 = vpack.c.b16 %v3368, %v3367
      %v3393 = vpack.c.b16 %v3370, %v3369
      %v3394 = vpack.c.b16 %v3372, %v3371
      %v3395 = vpack.c.b16 %v3374, %v3373
      %v3396 = vpack.c.b16 %v3376, %v3375
      %v3397 = vpack.c.b16 %v3378, %v3377
      %v3398 = vpack.c.b16 %v3380, %v3379
      %v3399 = vpack.c.b16 %v3382, %v3381
      %v3400 = vpack.c.b16 %v3384, %v3383
      %v3402 = vsel %vm355, %v3385, 0
      %v3405 = vsel %vm355, %v3386, 0
      %v3408 = vsel %vm355, %v3387, 0
      %v3411 = vsel %vm355, %v3388, 0
      %v3414 = vsel %vm355, %v3389, 0
      %v3417 = vsel %vm355, %v3390, 0
      %v3420 = vsel %vm355, %v3391, 0
      %v3423 = vsel %vm355, %v3392, 0
      %v3426 = vsel %vm355, %v3393, 0
      %v3429 = vsel %vm355, %v3394, 0
      %v3432 = vsel %vm355, %v3395, 0
      %v3435 = vsel %vm355, %v3396, 0
      %v3438 = vsel %vm355, %v3397, 0
      %v3441 = vsel %vm355, %v3398, 0
      %v3444 = vsel %vm355, %v3399, 0
      %v3447 = vsel %vm355, %v3400, 0
      %v3450 = vsel %vm404, %v3320, 0
      %3452 = vmatprep.subr.bf16.mxu0 0
      %3453 = vmatpush1.bf16.msra.mxu0 %v3450
      %3454 = vmatprep.subr.bf16.mxu0 0
      %3455 = vmatpush1.bf16.msra.mxu0 0
      %3456 = vmatprep.subr.bf16.mxu0 0
      %3457 = vmatpush1.bf16.msra.mxu0 0
      %3458 = vmatprep.subr.bf16.mxu0 0
      %3459 = vmatpush1.bf16.msra.mxu0 0
      %3460 = vmatprep.subr.bf16.mxu0 0
      %3461 = vmatpush1.bf16.msra.mxu0 0
      %3462 = vmatprep.subr.bf16.mxu0 0
      %3463 = vmatpush1.bf16.msra.mxu0 0
      %3464 = vmatprep.subr.bf16.mxu0 0
      %3465 = vmatpush1.bf16.msra.mxu0 0
      %3466 = vmatprep.subr.bf16.mxu0 0
      %3467 = vmatpush1.bf16.msra.mxu0 0
      %3468 = vmatprep.subr.bf16.mxu0 0
      %3469 = vmatpush1.bf16.msra.mxu0 0
      %3470 = vmatprep.subr.bf16.mxu0 0
      %3471 = vmatpush1.bf16.msra.mxu0 0
      %3472 = vmatprep.subr.bf16.mxu0 0
      %3473 = vmatpush1.bf16.msra.mxu0 0
      %3474 = vmatprep.subr.bf16.mxu0 0
      %3475 = vmatpush1.bf16.msra.mxu0 0
      %3476 = vmatprep.subr.bf16.mxu0 0
      %3477 = vmatpush1.bf16.msra.mxu0 0
      %3478 = vmatprep.subr.bf16.mxu0 0
      %3479 = vmatpush1.bf16.msra.mxu0 0
      %3480 = vmatprep.subr.bf16.mxu0 0
      %3481 = vmatpush1.bf16.msra.mxu0 0
      %3482 = vmatprep.subr.bf16.mxu0 0
      %3483 = vmatpush1.bf16.msra.mxu0 0
      %3484 = vmatprep.mubr.bf16.mxu0 0
      %3485 = vmatmul.mubr.bf16.gmra.mrb[0].mxu0 %v3402
      %v3486 = vpop.f32.mrb[0].mxu0
      %v3487 = vadd.f32 0.0, %v3486
      %v3488 = vpop.f32.mrb[0].mxu0
      %v3489 = vpop.f32.mrb[0].mxu0
      %v3490 = vadd.f32 0.0, %v3489
      %v3491 = vpop.f32.mrb[0].mxu0
      %3492 = vmatprep.mubr.bf16.mxu0 0
      %3493 = vmatmul.mubr.bf16.gmra.mrb[0].mxu0 %v3405
      %v3494 = vpop.f32.mrb[0].mxu0
      %v3495 = vadd.f32 0.0, %v3494
      %v3496 = vpop.f32.mrb[0].mxu0
      %v3497 = vpop.f32.mrb[0].mxu0
      %v3498 = vadd.f32 0.0, %v3497
      %v3499 = vpop.f32.mrb[0].mxu0
      %3500 = vmatprep.mubr.bf16.mxu0 0
      %3501 = vmatmul.mubr.bf16.gmra.mrb[0].mxu0 %v3408
      %v3502 = vpop.f32.mrb[0].mxu0
      %v3503 = vadd.f32 0.0, %v3502
      %v3504 = vpop.f32.mrb[0].mxu0
      %v3505 = vpop.f32.mrb[0].mxu0
      %v3506 = vadd.f32 0.0, %v3505
      %v3507 = vpop.f32.mrb[0].mxu0
      %3508 = vmatprep.mubr.bf16.mxu0 0
      %3509 = vmatmul.mubr.bf16.gmra.mrb[0].mxu0 %v3411
      %v3510 = vpop.f32.mrb[0].mxu0
      %v3511 = vadd.f32 0.0, %v3510
      %v3512 = vpop.f32.mrb[0].mxu0
      %v3513 = vpop.f32.mrb[0].mxu0
      %v3514 = vadd.f32 0.0, %v3513
      %v3515 = vpop.f32.mrb[0].mxu0
      %3516 = vmatprep.mubr.bf16.mxu0 0
      %3517 = vmatmul.mubr.bf16.gmra.mrb[0].mxu0 %v3414
      %v3518 = vpop.f32.mrb[0].mxu0
      %v3519 = vadd.f32 0.0, %v3518
      %v3520 = vpop.f32.mrb[0].mxu0
      %v3521 = vpop.f32.mrb[0].mxu0
      %v3522 = vadd.f32 0.0, %v3521
      %v3523 = vpop.f32.mrb[0].mxu0
      %3524 = vmatprep.mubr.bf16.mxu0 0
      %3525 = vmatmul.mubr.bf16.gmra.mrb[0].mxu0 %v3417
      %v3526 = vpop.f32.mrb[0].mxu0
      %v3527 = vadd.f32 0.0, %v3526
      %v3528 = vpop.f32.mrb[0].mxu0
      %v3529 = vpop.f32.mrb[0].mxu0
      %v3530 = vadd.f32 0.0, %v3529
      %v3531 = vpop.f32.mrb[0].mxu0
      %3532 = vmatprep.mubr.bf16.mxu0 0
      %3533 = vmatmul.mubr.bf16.gmra.mrb[0].mxu0 %v3420
      %v3534 = vpop.f32.mrb[0].mxu0
      %v3535 = vadd.f32 0.0, %v3534
      %v3536 = vpop.f32.mrb[0].mxu0
      %v3537 = vpop.f32.mrb[0].mxu0
      %v3538 = vadd.f32 0.0, %v3537
      %v3539 = vpop.f32.mrb[0].mxu0
      %3540 = vmatprep.mubr.bf16.mxu0 0
      %3541 = vmatmul.mubr.bf16.gmra.mrb[0].mxu0 %v3423
      %v3542 = vpop.f32.mrb[0].mxu0
      %v3543 = vadd.f32 0.0, %v3542
      %v3544 = vpop.f32.mrb[0].mxu0
      %v3545 = vpop.f32.mrb[0].mxu0
      %v3546 = vadd.f32 0.0, %v3545
      %v3547 = vpop.f32.mrb[0].mxu0
      %3548 = vmatprep.mubr.bf16.mxu0 0
      %3549 = vmatmul.mubr.bf16.gmra.mrb[0].mxu0 %v3426
      %v3550 = vpop.f32.mrb[0].mxu0
      %v3551 = vadd.f32 0.0, %v3550
      %v3552 = vpop.f32.mrb[0].mxu0
      %v3553 = vpop.f32.mrb[0].mxu0
      %v3554 = vadd.f32 0.0, %v3553
      %v3555 = vpop.f32.mrb[0].mxu0
      %3556 = vmatprep.mubr.bf16.mxu0 0
      %3557 = vmatmul.mubr.bf16.gmra.mrb[0].mxu0 %v3429
      %v3558 = vpop.f32.mrb[0].mxu0
      %v3559 = vadd.f32 0.0, %v3558
      %v3560 = vpop.f32.mrb[0].mxu0
      %v3561 = vpop.f32.mrb[0].mxu0
      %v3562 = vadd.f32 0.0, %v3561
      %v3563 = vpop.f32.mrb[0].mxu0
      %3564 = vmatprep.mubr.bf16.mxu0 0
      %3565 = vmatmul.mubr.bf16.gmra.mrb[0].mxu0 %v3432
      %v3566 = vpop.f32.mrb[0].mxu0
      %v3567 = vadd.f32 0.0, %v3566
      %v3568 = vpop.f32.mrb[0].mxu0
      %v3569 = vpop.f32.mrb[0].mxu0
      %v3570 = vadd.f32 0.0, %v3569
      %v3571 = vpop.f32.mrb[0].mxu0
      %3572 = vmatprep.mubr.bf16.mxu0 0
      %3573 = vmatmul.mubr.bf16.gmra.mrb[0].mxu0 %v3435
      %v3574 = vpop.f32.mrb[0].mxu0
      %v3575 = vadd.f32 0.0, %v3574
      %v3576 = vpop.f32.mrb[0].mxu0
      %v3577 = vpop.f32.mrb[0].mxu0
      %v3578 = vadd.f32 0.0, %v3577
      %v3579 = vpop.f32.mrb[0].mxu0
      %3580 = vmatprep.mubr.bf16.mxu0 0
      %3581 = vmatmul.mubr.bf16.gmra.mrb[0].mxu0 %v3438
      %v3582 = vpop.f32.mrb[0].mxu0
      %v3583 = vadd.f32 0.0, %v3582
      %v3584 = vpop.f32.mrb[0].mxu0
      %v3585 = vpop.f32.mrb[0].mxu0
      %v3586 = vadd.f32 0.0, %v3585
      %v3587 = vpop.f32.mrb[0].mxu0
      %3588 = vmatprep.mubr.bf16.mxu0 0
      %3589 = vmatmul.mubr.bf16.gmra.mrb[0].mxu0 %v3441
      %v3590 = vpop.f32.mrb[0].mxu0
      %v3591 = vadd.f32 0.0, %v3590
      %v3592 = vpop.f32.mrb[0].mxu0
      %v3593 = vpop.f32.mrb[0].mxu0
      %v3594 = vadd.f32 0.0, %v3593
      %v3595 = vpop.f32.mrb[0].mxu0
      %3596 = vmatprep.mubr.bf16.mxu0 0
      %3597 = vmatmul.mubr.bf16.gmra.mrb[0].mxu0 %v3444
      %v3598 = vpop.f32.mrb[0].mxu0
      %v3599 = vadd.f32 0.0, %v3598
      %v3600 = vpop.f32.mrb[0].mxu0
      %v3601 = vpop.f32.mrb[0].mxu0
      %v3602 = vadd.f32 0.0, %v3601
      %v3603 = vpop.f32.mrb[0].mxu0
      %3604 = vmatprep.mubr.bf16.mxu0 0
      %3605 = vmatmul.mubr.bf16.gmra.mrb[0].mxu0 %v3447
      %v3606 = vpop.f32.mrb[0].mxu0
      %v3607 = vadd.f32 0.0, %v3606
      %v3608 = vpop.f32.mrb[0].mxu0
      %v3609 = vpop.f32.mrb[0].mxu0
      %v3610 = vadd.f32 0.0, %v3609
      %v3611 = vpop.f32.mrb[0].mxu0
      %3612 = vdwg.mxu0
      %v3613 = vmul.f32 %v3487, %v604
      %v3614 = vmul.f32 %v3490, %v609
      %v3615 = vmul.f32 %v3495, %v614
      %v3616 = vmul.f32 %v3498, %v619
      %v3617 = vmul.f32 %v3503, %v624
      %v3618 = vmul.f32 %v3506, %v629
      %v3619 = vmul.f32 %v3511, %v634
      %v3620 = vmul.f32 %v3514, %v639
      %v3621 = vmul.f32 %v3519, %v644
      %v3622 = vmul.f32 %v3522, %v649
      %v3623 = vmul.f32 %v3527, %v654
      %v3624 = vmul.f32 %v3530, %v659
      %v3625 = vmul.f32 %v3535, %v664
      %v3626 = vmul.f32 %v3538, %v669
      %v3627 = vmul.f32 %v3543, %v674
      %v3628 = vmul.f32 %v3546, %v679
      %v3629 = vmul.f32 %v3551, %v684
      %v3630 = vmul.f32 %v3554, %v689
      %v3631 = vmul.f32 %v3559, %v694
      %v3632 = vmul.f32 %v3562, %v699
      %v3633 = vmul.f32 %v3567, %v704
      %v3634 = vmul.f32 %v3570, %v709
      %v3635 = vmul.f32 %v3575, %v714
      %v3636 = vmul.f32 %v3578, %v719
      %v3637 = vmul.f32 %v3583, %v724
      %v3638 = vmul.f32 %v3586, %v729
      %v3639 = vmul.f32 %v3591, %v734
      %v3640 = vmul.f32 %v3594, %v739
      %v3641 = vmul.f32 %v3599, %v744
      %v3642 = vmul.f32 %v3602, %v749
      %v3643 = vmul.f32 %v3607, %v754
      %v3644 = vmul.f32 %v3610, %v759
      %v3645 = vadd.f32 %v3223, %v3613
      %v3646 = vadd.f32 %v3224, %v3614
      %v3647 = vadd.f32 %v3225, %v3615
      %v3648 = vadd.f32 %v3226, %v3616
      %v3649 = vadd.f32 %v3227, %v3617
      %v3650 = vadd.f32 %v3228, %v3618
      %v3651 = vadd.f32 %v3229, %v3619
      %v3652 = vadd.f32 %v3230, %v3620
      %v3653 = vadd.f32 %v3231, %v3621
      %v3654 = vadd.f32 %v3232, %v3622
      %v3655 = vadd.f32 %v3233, %v3623
      %v3656 = vadd.f32 %v3234, %v3624
      %v3657 = vadd.f32 %v3235, %v3625
      %v3658 = vadd.f32 %v3236, %v3626
      %v3659 = vadd.f32 %v3237, %v3627
      %v3660 = vadd.f32 %v3238, %v3628
      %v3661 = vadd.f32 %v3239, %v3629
      %v3662 = vadd.f32 %v3240, %v3630
      %v3663 = vadd.f32 %v3241, %v3631
      %v3664 = vadd.f32 %v3242, %v3632
      %v3665 = vadd.f32 %v3243, %v3633
      %v3666 = vadd.f32 %v3244, %v3634
      %v3667 = vadd.f32 %v3245, %v3635
      %v3668 = vadd.f32 %v3246, %v3636
      %v3669 = vadd.f32 %v3247, %v3637
      %v3670 = vadd.f32 %v3248, %v3638
      %v3671 = vadd.f32 %v3249, %v3639
      %v3672 = vadd.f32 %v3250, %v3640
      %v3673 = vadd.f32 %v3251, %v3641
      %v3674 = vadd.f32 %v3252, %v3642
      %v3675 = vadd.f32 %v3253, %v3643
      %v3676 = vadd.f32 %v3254, %v3644
      %v3677 = vld [vmem:[%s199 + $0x10] sm:$0xf]
      %v3678 = vld [vmem:[%s199 + $0x14] sm:$0xf]
      %v3679 = vld [vmem:[%s199 + $0x18] sm:$0xf]
      %v3680 = vld [vmem:[%s199 + $0x1c] sm:$0xf]
      %v3681 = vld [vmem:[%s199 + $0x20] sm:$0xf]
      %v3682 = vld [vmem:[%s199 + $0x24] sm:$0xf]
      %v3683 = vld [vmem:[%s199 + $0x28] sm:$0xf]
      %v3684 = vld [vmem:[%s199 + $0x2c] sm:$0xf]
      %v3685 = vld [vmem:[%s199 + $0x30] sm:$0xf]
      %v3686 = vld [vmem:[%s199 + $0x34] sm:$0xf]
      %v3687 = vld [vmem:[%s199 + $0x38] sm:$0xf]
      %v3688 = vld [vmem:[%s199 + $0x3c] sm:$0xf]
      %v3689 = vld [vmem:[%s199 + $0x40] sm:$0xf]
      %v3690 = vld [vmem:[%s199 + $0x44] sm:$0xf]
      %v3691 = vld [vmem:[%s199 + $0x48] sm:$0xf]
      %v3692 = vld [vmem:[%s199 + $0x4c] sm:$0xf]
      %v3693 = vld [vmem:[%s199 + $0x50] sm:$0xf]
      %v3694 = vld [vmem:[%s199 + $0x54] sm:$0xf]
      %v3695 = vld [vmem:[%s199 + $0x58] sm:$0xf]
      %v3696 = vld [vmem:[%s199 + $0x5c] sm:$0xf]
      %v3697 = vld [vmem:[%s199 + $0x60] sm:$0xf]
      %v3698 = vld [vmem:[%s199 + $0x64] sm:$0xf]
      %v3699 = vld [vmem:[%s199 + $0x68] sm:$0xf]
      %v3700 = vld [vmem:[%s199 + $0x6c] sm:$0xf]
      %v3701 = vld [vmem:[%s199 + $0x70] sm:$0xf]
      %v3702 = vld [vmem:[%s199 + $0x74] sm:$0xf]
      %v3703 = vld [vmem:[%s199 + $0x78] sm:$0xf]
      %v3704 = vld [vmem:[%s199 + $0x7c] sm:$0xf]
      %v3705 = vld [vmem:[%s199 + $0x80] sm:$0xf]
      %v3706 = vld [vmem:[%s199 + $0x84] sm:$0xf]
      %v3707 = vld [vmem:[%s199 + $0x88] sm:$0xf]
      %v3708 = vld [vmem:[%s199 + $0x8c] sm:$0xf]
      %v3709 = vld [vmem:[%s199 + $0x90] sm:$0x1]
      %v3710 = vmax.bf16 %v3677, 0
      %v3711 = vmax.bf16 %v3678, 0
      %v3712 = vmax.bf16 %v3679, 0
      %v3713 = vmax.bf16 %v3680, 0
      %v3714 = vmax.bf16 %v3681, 0
      %v3715 = vmax.bf16 %v3682, 0
      %v3716 = vmax.bf16 %v3683, 0
      %v3717 = vmax.bf16 %v3684, 0
      %v3718 = vmax.bf16 %v3685, 0
      %v3719 = vmax.bf16 %v3686, 0
      %v3720 = vmax.bf16 %v3687, 0
      %v3721 = vmax.bf16 %v3688, 0
      %v3722 = vmax.bf16 %v3689, 0
      %v3723 = vmax.bf16 %v3690, 0
      %v3724 = vmax.bf16 %v3691, 0
      %v3725 = vmax.bf16 %v3692, 0
      %v3726 = vmax.bf16 %v3693, 0
      %v3727 = vmax.bf16 %v3694, 0
      %v3728 = vmax.bf16 %v3695, 0
      %v3729 = vmax.bf16 %v3696, 0
      %v3730 = vmax.bf16 %v3697, 0
      %v3731 = vmax.bf16 %v3698, 0
      %v3732 = vmax.bf16 %v3699, 0
      %v3733 = vmax.bf16 %v3700, 0
      %v3734 = vmax.bf16 %v3701, 0
      %v3735 = vmax.bf16 %v3702, 0
      %v3736 = vmax.bf16 %v3703, 0
      %v3737 = vmax.bf16 %v3704, 0
      %v3738 = vmax.bf16 %v3705, 0
      %v3739 = vmax.bf16 %v3706, 0
      %v3740 = vmax.bf16 %v3707, 0
      %v3741 = vmax.bf16 %v3708, 0
      %v3742 = vmax.bf16 %v3709, 0
      %s3743 = scalar_lea.vmem %s1, 14
      %v3744 = vld [vmem:[%s3743] sm:$0x3]
      %v3778 = vunpack.c.l.b16 %v3710
      %v3779 = vunpack.c.l.b16 %v3711
      %v3780 = vunpack.c.l.b16 %v3712
      %v3781 = vunpack.c.l.b16 %v3713
      %v3782 = vunpack.c.l.b16 %v3714
      %v3783 = vunpack.c.l.b16 %v3715
      %v3784 = vunpack.c.l.b16 %v3716
      %v3785 = vunpack.c.l.b16 %v3717
      %v3786 = vunpack.c.l.b16 %v3718
      %v3787 = vunpack.c.l.b16 %v3719
      %v3788 = vunpack.c.l.b16 %v3720
      %v3789 = vunpack.c.l.b16 %v3721
      %v3790 = vunpack.c.l.b16 %v3722
      %v3791 = vunpack.c.l.b16 %v3723
      %v3792 = vunpack.c.l.b16 %v3724
      %v3793 = vunpack.c.l.b16 %v3725
      %v3794 = vunpack.c.l.b16 %v3726
      %v3795 = vunpack.c.l.b16 %v3727
      %v3796 = vunpack.c.l.b16 %v3728
      %v3797 = vunpack.c.l.b16 %v3729
      %v3798 = vunpack.c.l.b16 %v3730
      %v3799 = vunpack.c.l.b16 %v3731
      %v3800 = vunpack.c.l.b16 %v3732
      %v3801 = vunpack.c.l.b16 %v3733
      %v3802 = vunpack.c.l.b16 %v3734
      %v3803 = vunpack.c.l.b16 %v3735
      %v3804 = vunpack.c.l.b16 %v3736
      %v3805 = vunpack.c.l.b16 %v3737
      %v3806 = vunpack.c.l.b16 %v3738
      %v3807 = vunpack.c.l.b16 %v3739
      %v3808 = vunpack.c.l.b16 %v3740
      %v3809 = vunpack.c.l.b16 %v3741
      %v3810 = vunpack.c.l.b16 %v3742
      %v3811 = vpack.c.b16 %v3779, %v3778
      %v3812 = vpack.c.b16 %v3781, %v3780
      %v3813 = vpack.c.b16 %v3783, %v3782
      %v3814 = vpack.c.b16 %v3785, %v3784
      %v3815 = vpack.c.b16 %v3787, %v3786
      %v3816 = vpack.c.b16 %v3789, %v3788
      %v3817 = vpack.c.b16 %v3791, %v3790
      %v3818 = vpack.c.b16 %v3793, %v3792
      %v3819 = vpack.c.b16 %v3795, %v3794
      %v3820 = vpack.c.b16 %v3797, %v3796
      %v3821 = vpack.c.b16 %v3799, %v3798
      %v3822 = vpack.c.b16 %v3801, %v3800
      %v3823 = vpack.c.b16 %v3803, %v3802
      %v3824 = vpack.c.b16 %v3805, %v3804
      %v3825 = vpack.c.b16 %v3807, %v3806
      %v3826 = vpack.c.b16 %v3809, %v3808
      %v3827 = vpack.c.b16 %v3810, %v3810
      %v3829 = vshrl.u32 %v3811, 16
      %v3831 = vshll.u32 %v3811, 16
      %v3833 = vrot.slane %v3831, 1
      %v3834 = vor.u32 %v3829, %v3833
      %v3836 = vshll.u32 %v3812, 16
      %v3838 = vrot.slane %v3836, 1
      %v3839 = vsel %vm976, %v3834, %v3838
      %v3840 = vshrl.u32 %v3812, 16
      %v3842 = vor.u32 %v3840, %v3838
      %v3844 = vshll.u32 %v3813, 16
      %v3846 = vrot.slane %v3844, 1
      %v3847 = vsel %vm976, %v3842, %v3846
      %v3848 = vshrl.u32 %v3813, 16
      %v3850 = vor.u32 %v3848, %v3846
      %v3852 = vshll.u32 %v3814, 16
      %v3854 = vrot.slane %v3852, 1
      %v3855 = vsel %vm976, %v3850, %v3854
      %v3856 = vshrl.u32 %v3814, 16
      %v3858 = vor.u32 %v3856, %v3854
      %v3860 = vshll.u32 %v3815, 16
      %v3862 = vrot.slane %v3860, 1
      %v3863 = vsel %vm976, %v3858, %v3862
      %v3864 = vshrl.u32 %v3815, 16
      %v3866 = vor.u32 %v3864, %v3862
      %v3868 = vshll.u32 %v3816, 16
      %v3870 = vrot.slane %v3868, 1
      %v3871 = vsel %vm976, %v3866, %v3870
      %v3872 = vshrl.u32 %v3816, 16
      %v3874 = vor.u32 %v3872, %v3870
      %v3876 = vshll.u32 %v3817, 16
      %v3878 = vrot.slane %v3876, 1
      %v3879 = vsel %vm976, %v3874, %v3878
      %v3880 = vshrl.u32 %v3817, 16
      %v3882 = vor.u32 %v3880, %v3878
      %v3884 = vshll.u32 %v3818, 16
      %v3886 = vrot.slane %v3884, 1
      %v3887 = vsel %vm976, %v3882, %v3886
      %v3888 = vshrl.u32 %v3818, 16
      %v3890 = vor.u32 %v3888, %v3886
      %v3892 = vshll.u32 %v3819, 16
      %v3894 = vrot.slane %v3892, 1
      %v3895 = vsel %vm976, %v3890, %v3894
      %v3896 = vshrl.u32 %v3819, 16
      %v3898 = vor.u32 %v3896, %v3894
      %v3900 = vshll.u32 %v3820, 16
      %v3902 = vrot.slane %v3900, 1
      %v3903 = vsel %vm976, %v3898, %v3902
      %v3904 = vshrl.u32 %v3820, 16
      %v3906 = vor.u32 %v3904, %v3902
      %v3908 = vshll.u32 %v3821, 16
      %v3910 = vrot.slane %v3908, 1
      %v3911 = vsel %vm976, %v3906, %v3910
      %v3912 = vshrl.u32 %v3821, 16
      %v3914 = vor.u32 %v3912, %v3910
      %v3916 = vshll.u32 %v3822, 16
      %v3918 = vrot.slane %v3916, 1
      %v3919 = vsel %vm976, %v3914, %v3918
      %v3920 = vshrl.u32 %v3822, 16
      %v3922 = vor.u32 %v3920, %v3918
      %v3924 = vshll.u32 %v3823, 16
      %v3926 = vrot.slane %v3924, 1
      %v3927 = vsel %vm976, %v3922, %v3926
      %v3928 = vshrl.u32 %v3823, 16
      %v3930 = vor.u32 %v3928, %v3926
      %v3932 = vshll.u32 %v3824, 16
      %v3934 = vrot.slane %v3932, 1
      %v3935 = vsel %vm976, %v3930, %v3934
      %v3936 = vshrl.u32 %v3824, 16
      %v3938 = vor.u32 %v3936, %v3934
      %v3940 = vshll.u32 %v3825, 16
      %v3942 = vrot.slane %v3940, 1
      %v3943 = vsel %vm976, %v3938, %v3942
      %v3944 = vshrl.u32 %v3825, 16
      %v3946 = vor.u32 %v3944, %v3942
      %v3948 = vshll.u32 %v3826, 16
      %v3950 = vrot.slane %v3948, 1
      %v3951 = vsel %vm976, %v3946, %v3950
      %v3952 = vshrl.u32 %v3826, 16
      %v3954 = vor.u32 %v3952, %v3950
      %v3956 = vshll.u32 %v3827, 16
      %v3958 = vrot.slane %v3956, 1
      %v3959 = vsel %vm976, %v3954, %v3958
      %v3961 = vsel %vm355, %v3839, 0
      %v3964 = vsel %vm355, %v3847, 0
      %v3967 = vsel %vm355, %v3855, 0
      %v3970 = vsel %vm355, %v3863, 0
      %v3973 = vsel %vm355, %v3871, 0
      %v3976 = vsel %vm355, %v3879, 0
      %v3979 = vsel %vm355, %v3887, 0
      %v3982 = vsel %vm355, %v3895, 0
      %v3985 = vsel %vm355, %v3903, 0
      %v3988 = vsel %vm355, %v3911, 0
      %v3991 = vsel %vm355, %v3919, 0
      %v3994 = vsel %vm355, %v3927, 0
      %v3997 = vsel %vm355, %v3935, 0
      %v4000 = vsel %vm355, %v3943, 0
      %v4003 = vsel %vm355, %v3951, 0
      %v4006 = vsel %vm355, %v3959, 0
      %v4009 = vsel %vm404, %v3744, 0
      %4011 = vmatprep.subr.bf16.mxu0 0
      %4012 = vmatpush1.bf16.msra.mxu0 %v4009
      %4013 = vmatprep.subr.bf16.mxu0 0
      %4014 = vmatpush1.bf16.msra.mxu0 0
      %4015 = vmatprep.subr.bf16.mxu0 0
      %4016 = vmatpush1.bf16.msra.mxu0 0
      %4017 = vmatprep.subr.bf16.mxu0 0
      %4018 = vmatpush1.bf16.msra.mxu0 0
      %4019 = vmatprep.subr.bf16.mxu0 0
      %4020 = vmatpush1.bf16.msra.mxu0 0
      %4021 = vmatprep.subr.bf16.mxu0 0
      %4022 = vmatpush1.bf16.msra.mxu0 0
      %4023 = vmatprep.subr.bf16.mxu0 0
      %4024 = vmatpush1.bf16.msra.mxu0 0
      %4025 = vmatprep.subr.bf16.mxu0 0
      %4026 = vmatpush1.bf16.msra.mxu0 0
      %4027 = vmatprep.subr.bf16.mxu0 0
      %4028 = vmatpush1.bf16.msra.mxu0 0
      %4029 = vmatprep.subr.bf16.mxu0 0
      %4030 = vmatpush1.bf16.msra.mxu0 0
      %4031 = vmatprep.subr.bf16.mxu0 0
      %4032 = vmatpush1.bf16.msra.mxu0 0
      %4033 = vmatprep.subr.bf16.mxu0 0
      %4034 = vmatpush1.bf16.msra.mxu0 0
      %4035 = vmatprep.subr.bf16.mxu0 0
      %4036 = vmatpush1.bf16.msra.mxu0 0
      %4037 = vmatprep.subr.bf16.mxu0 0
      %4038 = vmatpush1.bf16.msra.mxu0 0
      %4039 = vmatprep.subr.bf16.mxu0 0
      %4040 = vmatpush1.bf16.msra.mxu0 0
      %4041 = vmatprep.subr.bf16.mxu0 0
      %4042 = vmatpush1.bf16.msra.mxu0 0
      %4043 = vmatprep.mubr.bf16.mxu0 0
      %4044 = vmatmul.mubr.bf16.gmra.mrb[0].mxu0 %v3961
      %v4045 = vpop.f32.mrb[0].mxu0
      %v4046 = vadd.f32 0.0, %v4045
      %v4047 = vpop.f32.mrb[0].mxu0
      %v4048 = vpop.f32.mrb[0].mxu0
      %v4049 = vadd.f32 0.0, %v4048
      %v4050 = vpop.f32.mrb[0].mxu0
      %4051 = vmatprep.mubr.bf16.mxu0 0
      %4052 = vmatmul.mubr.bf16.gmra.mrb[0].mxu0 %v3964
      %v4053 = vpop.f32.mrb[0].mxu0
      %v4054 = vadd.f32 0.0, %v4053
      %v4055 = vpop.f32.mrb[0].mxu0
      %v4056 = vpop.f32.mrb[0].mxu0
      %v4057 = vadd.f32 0.0, %v4056
      %v4058 = vpop.f32.mrb[0].mxu0
      %4059 = vmatprep.mubr.bf16.mxu0 0
      %4060 = vmatmul.mubr.bf16.gmra.mrb[0].mxu0 %v3967
      %v4061 = vpop.f32.mrb[0].mxu0
      %v4062 = vadd.f32 0.0, %v4061
      %v4063 = vpop.f32.mrb[0].mxu0
      %v4064 = vpop.f32.mrb[0].mxu0
      %v4065 = vadd.f32 0.0, %v4064
      %v4066 = vpop.f32.mrb[0].mxu0
      %4067 = vmatprep.mubr.bf16.mxu0 0
      %4068 = vmatmul.mubr.bf16.gmra.mrb[0].mxu0 %v3970
      %v4069 = vpop.f32.mrb[0].mxu0
      %v4070 = vadd.f32 0.0, %v4069
      %v4071 = vpop.f32.mrb[0].mxu0
      %v4072 = vpop.f32.mrb[0].mxu0
      %v4073 = vadd.f32 0.0, %v4072
      %v4074 = vpop.f32.mrb[0].mxu0
      %4075 = vmatprep.mubr.bf16.mxu0 0
      %4076 = vmatmul.mubr.bf16.gmra.mrb[0].mxu0 %v3973
      %v4077 = vpop.f32.mrb[0].mxu0
      %v4078 = vadd.f32 0.0, %v4077
      %v4079 = vpop.f32.mrb[0].mxu0
      %v4080 = vpop.f32.mrb[0].mxu0
      %v4081 = vadd.f32 0.0, %v4080
      %v4082 = vpop.f32.mrb[0].mxu0
      %4083 = vmatprep.mubr.bf16.mxu0 0
      %4084 = vmatmul.mubr.bf16.gmra.mrb[0].mxu0 %v3976
      %v4085 = vpop.f32.mrb[0].mxu0
      %v4086 = vadd.f32 0.0, %v4085
      %v4087 = vpop.f32.mrb[0].mxu0
      %v4088 = vpop.f32.mrb[0].mxu0
      %v4089 = vadd.f32 0.0, %v4088
      %v4090 = vpop.f32.mrb[0].mxu0
      %4091 = vmatprep.mubr.bf16.mxu0 0
      %4092 = vmatmul.mubr.bf16.gmra.mrb[0].mxu0 %v3979
      %v4093 = vpop.f32.mrb[0].mxu0
      %v4094 = vadd.f32 0.0, %v4093
      %v4095 = vpop.f32.mrb[0].mxu0
      %v4096 = vpop.f32.mrb[0].mxu0
      %v4097 = vadd.f32 0.0, %v4096
      %v4098 = vpop.f32.mrb[0].mxu0
      %4099 = vmatprep.mubr.bf16.mxu0 0
      %4100 = vmatmul.mubr.bf16.gmra.mrb[0].mxu0 %v3982
      %v4101 = vpop.f32.mrb[0].mxu0
      %v4102 = vadd.f32 0.0, %v4101
      %v4103 = vpop.f32.mrb[0].mxu0
      %v4104 = vpop.f32.mrb[0].mxu0
      %v4105 = vadd.f32 0.0, %v4104
      %v4106 = vpop.f32.mrb[0].mxu0
      %4107 = vmatprep.mubr.bf16.mxu0 0
      %4108 = vmatmul.mubr.bf16.gmra.mrb[0].mxu0 %v3985
      %v4109 = vpop.f32.mrb[0].mxu0
      %v4110 = vadd.f32 0.0, %v4109
      %v4111 = vpop.f32.mrb[0].mxu0
      %v4112 = vpop.f32.mrb[0].mxu0
      %v4113 = vadd.f32 0.0, %v4112
      %v4114 = vpop.f32.mrb[0].mxu0
      %4115 = vmatprep.mubr.bf16.mxu0 0
      %4116 = vmatmul.mubr.bf16.gmra.mrb[0].mxu0 %v3988
      %v4117 = vpop.f32.mrb[0].mxu0
      %v4118 = vadd.f32 0.0, %v4117
      %v4119 = vpop.f32.mrb[0].mxu0
      %v4120 = vpop.f32.mrb[0].mxu0
      %v4121 = vadd.f32 0.0, %v4120
      %v4122 = vpop.f32.mrb[0].mxu0
      %4123 = vmatprep.mubr.bf16.mxu0 0
      %4124 = vmatmul.mubr.bf16.gmra.mrb[0].mxu0 %v3991
      %v4125 = vpop.f32.mrb[0].mxu0
      %v4126 = vadd.f32 0.0, %v4125
      %v4127 = vpop.f32.mrb[0].mxu0
      %v4128 = vpop.f32.mrb[0].mxu0
      %v4129 = vadd.f32 0.0, %v4128
      %v4130 = vpop.f32.mrb[0].mxu0
      %4131 = vmatprep.mubr.bf16.mxu0 0
      %4132 = vmatmul.mubr.bf16.gmra.mrb[0].mxu0 %v3994
      %v4133 = vpop.f32.mrb[0].mxu0
      %v4134 = vadd.f32 0.0, %v4133
      %v4135 = vpop.f32.mrb[0].mxu0
      %v4136 = vpop.f32.mrb[0].mxu0
      %v4137 = vadd.f32 0.0, %v4136
      %v4138 = vpop.f32.mrb[0].mxu0
      %4139 = vmatprep.mubr.bf16.mxu0 0
      %4140 = vmatmul.mubr.bf16.gmra.mrb[0].mxu0 %v3997
      %v4141 = vpop.f32.mrb[0].mxu0
      %v4142 = vadd.f32 0.0, %v4141
      %v4143 = vpop.f32.mrb[0].mxu0
      %v4144 = vpop.f32.mrb[0].mxu0
      %v4145 = vadd.f32 0.0, %v4144
      %v4146 = vpop.f32.mrb[0].mxu0
      %4147 = vmatprep.mubr.bf16.mxu0 0
      %4148 = vmatmul.mubr.bf16.gmra.mrb[0].mxu0 %v4000
      %v4149 = vpop.f32.mrb[0].mxu0
      %v4150 = vadd.f32 0.0, %v4149
      %v4151 = vpop.f32.mrb[0].mxu0
      %v4152 = vpop.f32.mrb[0].mxu0
      %v4153 = vadd.f32 0.0, %v4152
      %v4154 = vpop.f32.mrb[0].mxu0
      %4155 = vmatprep.mubr.bf16.mxu0 0
      %4156 = vmatmul.mubr.bf16.gmra.mrb[0].mxu0 %v4003
      %v4157 = vpop.f32.mrb[0].mxu0
      %v4158 = vadd.f32 0.0, %v4157
      %v4159 = vpop.f32.mrb[0].mxu0
      %v4160 = vpop.f32.mrb[0].mxu0
      %v4161 = vadd.f32 0.0, %v4160
      %v4162 = vpop.f32.mrb[0].mxu0
      %4163 = vmatprep.mubr.bf16.mxu0 0
      %4164 = vmatmul.mubr.bf16.gmra.mrb[0].mxu0 %v4006
      %v4165 = vpop.f32.mrb[0].mxu0
      %v4166 = vadd.f32 0.0, %v4165
      %v4167 = vpop.f32.mrb[0].mxu0
      %v4168 = vpop.f32.mrb[0].mxu0
      %v4169 = vadd.f32 0.0, %v4168
      %v4170 = vpop.f32.mrb[0].mxu0
      %4171 = vdwg.mxu0
      %v4172 = vmul.f32 %v4046, %v1323
      %v4173 = vmul.f32 %v4049, %v1327
      %v4174 = vmul.f32 %v4054, %v1331
      %v4175 = vmul.f32 %v4057, %v1335
      %v4176 = vmul.f32 %v4062, %v1339
      %v4177 = vmul.f32 %v4065, %v1343
      %v4178 = vmul.f32 %v4070, %v1347
      %v4179 = vmul.f32 %v4073, %v1351
      %v4180 = vmul.f32 %v4078, %v1355
      %v4181 = vmul.f32 %v4081, %v1359
      %v4182 = vmul.f32 %v4086, %v1363
      %v4183 = vmul.f32 %v4089, %v1367
      %v4184 = vmul.f32 %v4094, %v1371
      %v4185 = vmul.f32 %v4097, %v1375
      %v4186 = vmul.f32 %v4102, %v1379
      %v4187 = vmul.f32 %v4105, %v1383
      %v4188 = vmul.f32 %v4110, %v1387
      %v4189 = vmul.f32 %v4113, %v1391
      %v4190 = vmul.f32 %v4118, %v1395
      %v4191 = vmul.f32 %v4121, %v1399
      %v4192 = vmul.f32 %v4126, %v1403
      %v4193 = vmul.f32 %v4129, %v1407
      %v4194 = vmul.f32 %v4134, %v1411
      %v4195 = vmul.f32 %v4137, %v1415
      %v4196 = vmul.f32 %v4142, %v1419
      %v4197 = vmul.f32 %v4145, %v1423
      %v4198 = vmul.f32 %v4150, %v1427
      %v4199 = vmul.f32 %v4153, %v1431
      %v4200 = vmul.f32 %v4158, %v1435
      %v4201 = vmul.f32 %v4161, %v1439
      %v4202 = vmul.f32 %v4166, %v1443
      %v4203 = vmul.f32 %v4169, %v1447
      %v4204 = vadd.f32 %v3645, %v4172
      %v4205 = vadd.f32 %v3646, %v4173
      %v4206 = vadd.f32 %v3647, %v4174
      %v4207 = vadd.f32 %v3648, %v4175
      %v4208 = vadd.f32 %v3649, %v4176
      %v4209 = vadd.f32 %v3650, %v4177
      %v4210 = vadd.f32 %v3651, %v4178
      %v4211 = vadd.f32 %v3652, %v4179
      %v4212 = vadd.f32 %v3653, %v4180
      %v4213 = vadd.f32 %v3654, %v4181
      %v4214 = vadd.f32 %v3655, %v4182
      %v4215 = vadd.f32 %v3656, %v4183
      %v4216 = vadd.f32 %v3657, %v4184
      %v4217 = vadd.f32 %v3658, %v4185
      %v4218 = vadd.f32 %v3659, %v4186
      %v4219 = vadd.f32 %v3660, %v4187
      %v4220 = vadd.f32 %v3661, %v4188
      %v4221 = vadd.f32 %v3662, %v4189
      %v4222 = vadd.f32 %v3663, %v4190
      %v4223 = vadd.f32 %v3664, %v4191
      %v4224 = vadd.f32 %v3665, %v4192
      %v4225 = vadd.f32 %v3666, %v4193
      %v4226 = vadd.f32 %v3667, %v4194
      %v4227 = vadd.f32 %v3668, %v4195
      %v4228 = vadd.f32 %v3669, %v4196
      %v4229 = vadd.f32 %v3670, %v4197
      %v4230 = vadd.f32 %v3671, %v4198
      %v4231 = vadd.f32 %v3672, %v4199
      %v4232 = vadd.f32 %v3673, %v4200
      %v4233 = vadd.f32 %v3674, %v4201
      %v4234 = vadd.f32 %v3675, %v4202
      %v4235 = vadd.f32 %v3676, %v4203
      %v4236 = vld [vmem:[%s199 + $0x10] sm:$0xe]
      %v4237 = vmax.bf16 %v4236, 0
      %s4238 = scalar_lea.vmem %s1, 16
      %v4239 = vld [vmem:[%s4238] sm:$0x3]
      %v4241 = vunpack.c.l.b16 %v4237
      %v4242 = vpack.c.b16 %v3779, %v4241
      %v4243 = vrot.slane %v4242, 1
      %v4244 = vrot.slane %v3812, 1
      %v4245 = vsel %vm1520, %v4243, %v4244
      %v4246 = vrot.slane %v3813, 1
      %v4247 = vsel %vm1520, %v4244, %v4246
      %v4248 = vrot.slane %v3814, 1
      %v4249 = vsel %vm1520, %v4246, %v4248
      %v4250 = vrot.slane %v3815, 1
      %v4251 = vsel %vm1520, %v4248, %v4250
      %v4252 = vrot.slane %v3816, 1
      %v4253 = vsel %vm1520, %v4250, %v4252
      %v4254 = vrot.slane %v3817, 1
      %v4255 = vsel %vm1520, %v4252, %v4254
      %v4256 = vrot.slane %v3818, 1
      %v4257 = vsel %vm1520, %v4254, %v4256
      %v4258 = vrot.slane %v3819, 1
      %v4259 = vsel %vm1520, %v4256, %v4258
      %v4260 = vrot.slane %v3820, 1
      %v4261 = vsel %vm1520, %v4258, %v4260
      %v4262 = vrot.slane %v3821, 1
      %v4263 = vsel %vm1520, %v4260, %v4262
      %v4264 = vrot.slane %v3822, 1
      %v4265 = vsel %vm1520, %v4262, %v4264
      %v4266 = vrot.slane %v3823, 1
      %v4267 = vsel %vm1520, %v4264, %v4266
      %v4268 = vrot.slane %v3824, 1
      %v4269 = vsel %vm1520, %v4266, %v4268
      %v4270 = vrot.slane %v3825, 1
      %v4271 = vsel %vm1520, %v4268, %v4270
      %v4272 = vrot.slane %v3826, 1
      %v4273 = vsel %vm1520, %v4270, %v4272
      %v4274 = vrot.slane %v3827, 1
      %v4275 = vsel %vm1520, %v4272, %v4274
      %v4277 = vsel %vm355, %v4245, 0
      %v4280 = vsel %vm355, %v4247, 0
      %v4283 = vsel %vm355, %v4249, 0
      %v4286 = vsel %vm355, %v4251, 0
      %v4289 = vsel %vm355, %v4253, 0
      %v4292 = vsel %vm355, %v4255, 0
      %v4295 = vsel %vm355, %v4257, 0
      %v4298 = vsel %vm355, %v4259, 0
      %v4301 = vsel %vm355, %v4261, 0
      %v4304 = vsel %vm355, %v4263, 0
      %v4307 = vsel %vm355, %v4265, 0
      %v4310 = vsel %vm355, %v4267, 0
      %v4313 = vsel %vm355, %v4269, 0
      %v4316 = vsel %vm355, %v4271, 0
      %v4319 = vsel %vm355, %v4273, 0
      %v4322 = vsel %vm355, %v4275, 0
      %v4325 = vsel %vm404, %v4239, 0
      %4327 = vmatprep.subr.bf16.mxu0 0
      %4328 = vmatpush1.bf16.msra.mxu0 %v4325
      %4329 = vmatprep.subr.bf16.mxu0 0
      %4330 = vmatpush1.bf16.msra.mxu0 0
      %4331 = vmatprep.subr.bf16.mxu0 0
      %4332 = vmatpush1.bf16.msra.mxu0 0
      %4333 = vmatprep.subr.bf16.mxu0 0
      %4334 = vmatpush1.bf16.msra.mxu0 0
      %4335 = vmatprep.subr.bf16.mxu0 0
      %4336 = vmatpush1.bf16.msra.mxu0 0
      %4337 = vmatprep.subr.bf16.mxu0 0
      %4338 = vmatpush1.bf16.msra.mxu0 0
      %4339 = vmatprep.subr.bf16.mxu0 0
      %4340 = vmatpush1.bf16.msra.mxu0 0
      %4341 = vmatprep.subr.bf16.mxu0 0
      %4342 = vmatpush1.bf16.msra.mxu0 0
      %4343 = vmatprep.subr.bf16.mxu0 0
      %4344 = vmatpush1.bf16.msra.mxu0 0
      %4345 = vmatprep.subr.bf16.mxu0 0
      %4346 = vmatpush1.bf16.msra.mxu0 0
      %4347 = vmatprep.subr.bf16.mxu0 0
      %4348 = vmatpush1.bf16.msra.mxu0 0
      %4349 = vmatprep.subr.bf16.mxu0 0
      %4350 = vmatpush1.bf16.msra.mxu0 0
      %4351 = vmatprep.subr.bf16.mxu0 0
      %4352 = vmatpush1.bf16.msra.mxu0 0
      %4353 = vmatprep.subr.bf16.mxu0 0
      %4354 = vmatpush1.bf16.msra.mxu0 0
      %4355 = vmatprep.subr.bf16.mxu0 0
      %4356 = vmatpush1.bf16.msra.mxu0 0
      %4357 = vmatprep.subr.bf16.mxu0 0
      %4358 = vmatpush1.bf16.msra.mxu0 0
      %4359 = vmatprep.mubr.bf16.mxu0 0
      %4360 = vmatmul.mubr.bf16.gmra.mrb[0].mxu0 %v4277
      %v4361 = vpop.f32.mrb[0].mxu0
      %v4362 = vadd.f32 0.0, %v4361
      %v4363 = vpop.f32.mrb[0].mxu0
      %v4364 = vpop.f32.mrb[0].mxu0
      %v4365 = vadd.f32 0.0, %v4364
      %v4366 = vpop.f32.mrb[0].mxu0
      %4367 = vmatprep.mubr.bf16.mxu0 0
      %4368 = vmatmul.mubr.bf16.gmra.mrb[0].mxu0 %v4280
      %v4369 = vpop.f32.mrb[0].mxu0
      %v4370 = vadd.f32 0.0, %v4369
      %v4371 = vpop.f32.mrb[0].mxu0
      %v4372 = vpop.f32.mrb[0].mxu0
      %v4373 = vadd.f32 0.0, %v4372
      %v4374 = vpop.f32.mrb[0].mxu0
      %4375 = vmatprep.mubr.bf16.mxu0 0
      %4376 = vmatmul.mubr.bf16.gmra.mrb[0].mxu0 %v4283
      %v4377 = vpop.f32.mrb[0].mxu0
      %v4378 = vadd.f32 0.0, %v4377
      %v4379 = vpop.f32.mrb[0].mxu0
      %v4380 = vpop.f32.mrb[0].mxu0
      %v4381 = vadd.f32 0.0, %v4380
      %v4382 = vpop.f32.mrb[0].mxu0
      %4383 = vmatprep.mubr.bf16.mxu0 0
      %4384 = vmatmul.mubr.bf16.gmra.mrb[0].mxu0 %v4286
      %v4385 = vpop.f32.mrb[0].mxu0
      %v4386 = vadd.f32 0.0, %v4385
      %v4387 = vpop.f32.mrb[0].mxu0
      %v4388 = vpop.f32.mrb[0].mxu0
      %v4389 = vadd.f32 0.0, %v4388
      %v4390 = vpop.f32.mrb[0].mxu0
      %4391 = vmatprep.mubr.bf16.mxu0 0
      %4392 = vmatmul.mubr.bf16.gmra.mrb[0].mxu0 %v4289
      %v4393 = vpop.f32.mrb[0].mxu0
      %v4394 = vadd.f32 0.0, %v4393
      %v4395 = vpop.f32.mrb[0].mxu0
      %v4396 = vpop.f32.mrb[0].mxu0
      %v4397 = vadd.f32 0.0, %v4396
      %v4398 = vpop.f32.mrb[0].mxu0
      %4399 = vmatprep.mubr.bf16.mxu0 0
      %4400 = vmatmul.mubr.bf16.gmra.mrb[0].mxu0 %v4292
      %v4401 = vpop.f32.mrb[0].mxu0
      %v4402 = vadd.f32 0.0, %v4401
      %v4403 = vpop.f32.mrb[0].mxu0
      %v4404 = vpop.f32.mrb[0].mxu0
      %v4405 = vadd.f32 0.0, %v4404
      %v4406 = vpop.f32.mrb[0].mxu0
      %4407 = vmatprep.mubr.bf16.mxu0 0
      %4408 = vmatmul.mubr.bf16.gmra.mrb[0].mxu0 %v4295
      %v4409 = vpop.f32.mrb[0].mxu0
      %v4410 = vadd.f32 0.0, %v4409
      %v4411 = vpop.f32.mrb[0].mxu0
      %v4412 = vpop.f32.mrb[0].mxu0
      %v4413 = vadd.f32 0.0, %v4412
      %v4414 = vpop.f32.mrb[0].mxu0
      %4415 = vmatprep.mubr.bf16.mxu0 0
      %4416 = vmatmul.mubr.bf16.gmra.mrb[0].mxu0 %v4298
      %v4417 = vpop.f32.mrb[0].mxu0
      %v4418 = vadd.f32 0.0, %v4417
      %v4419 = vpop.f32.mrb[0].mxu0
      %v4420 = vpop.f32.mrb[0].mxu0
      %v4421 = vadd.f32 0.0, %v4420
      %v4422 = vpop.f32.mrb[0].mxu0
      %4423 = vmatprep.mubr.bf16.mxu0 0
      %4424 = vmatmul.mubr.bf16.gmra.mrb[0].mxu0 %v4301
      %v4425 = vpop.f32.mrb[0].mxu0
      %v4426 = vadd.f32 0.0, %v4425
      %v4427 = vpop.f32.mrb[0].mxu0
      %v4428 = vpop.f32.mrb[0].mxu0
      %v4429 = vadd.f32 0.0, %v4428
      %v4430 = vpop.f32.mrb[0].mxu0
      %4431 = vmatprep.mubr.bf16.mxu0 0
      %4432 = vmatmul.mubr.bf16.gmra.mrb[0].mxu0 %v4304
      %v4433 = vpop.f32.mrb[0].mxu0
      %v4434 = vadd.f32 0.0, %v4433
      %v4435 = vpop.f32.mrb[0].mxu0
      %v4436 = vpop.f32.mrb[0].mxu0
      %v4437 = vadd.f32 0.0, %v4436
      %v4438 = vpop.f32.mrb[0].mxu0
      %4439 = vmatprep.mubr.bf16.mxu0 0
      %4440 = vmatmul.mubr.bf16.gmra.mrb[0].mxu0 %v4307
      %v4441 = vpop.f32.mrb[0].mxu0
      %v4442 = vadd.f32 0.0, %v4441
      %v4443 = vpop.f32.mrb[0].mxu0
      %v4444 = vpop.f32.mrb[0].mxu0
      %v4445 = vadd.f32 0.0, %v4444
      %v4446 = vpop.f32.mrb[0].mxu0
      %4447 = vmatprep.mubr.bf16.mxu0 0
      %4448 = vmatmul.mubr.bf16.gmra.mrb[0].mxu0 %v4310
      %v4449 = vpop.f32.mrb[0].mxu0
      %v4450 = vadd.f32 0.0, %v4449
      %v4451 = vpop.f32.mrb[0].mxu0
      %v4452 = vpop.f32.mrb[0].mxu0
      %v4453 = vadd.f32 0.0, %v4452
      %v4454 = vpop.f32.mrb[0].mxu0
      %4455 = vmatprep.mubr.bf16.mxu0 0
      %4456 = vmatmul.mubr.bf16.gmra.mrb[0].mxu0 %v4313
      %v4457 = vpop.f32.mrb[0].mxu0
      %v4458 = vadd.f32 0.0, %v4457
      %v4459 = vpop.f32.mrb[0].mxu0
      %v4460 = vpop.f32.mrb[0].mxu0
      %v4461 = vadd.f32 0.0, %v4460
      %v4462 = vpop.f32.mrb[0].mxu0
      %4463 = vmatprep.mubr.bf16.mxu0 0
      %4464 = vmatmul.mubr.bf16.gmra.mrb[0].mxu0 %v4316
      %v4465 = vpop.f32.mrb[0].mxu0
      %v4466 = vadd.f32 0.0, %v4465
      %v4467 = vpop.f32.mrb[0].mxu0
      %v4468 = vpop.f32.mrb[0].mxu0
      %v4469 = vadd.f32 0.0, %v4468
      %v4470 = vpop.f32.mrb[0].mxu0
      %4471 = vmatprep.mubr.bf16.mxu0 0
      %4472 = vmatmul.mubr.bf16.gmra.mrb[0].mxu0 %v4319
      %v4473 = vpop.f32.mrb[0].mxu0
      %v4474 = vadd.f32 0.0, %v4473
      %v4475 = vpop.f32.mrb[0].mxu0
      %v4476 = vpop.f32.mrb[0].mxu0
      %v4477 = vadd.f32 0.0, %v4476
      %v4478 = vpop.f32.mrb[0].mxu0
      %4479 = vmatprep.mubr.bf16.mxu0 0
      %4480 = vmatmul.mubr.bf16.gmra.mrb[0].mxu0 %v4322
      %v4481 = vpop.f32.mrb[0].mxu0
      %v4482 = vadd.f32 0.0, %v4481
      %v4483 = vpop.f32.mrb[0].mxu0
      %v4484 = vpop.f32.mrb[0].mxu0
      %v4485 = vadd.f32 0.0, %v4484
      %v4486 = vpop.f32.mrb[0].mxu0
      %4487 = vdwg.mxu0
      %v4488 = vmul.f32 %v4362, %v1768
      %v4489 = vmul.f32 %v4365, %v1772
      %v4490 = vmul.f32 %v4370, %v1776
      %v4491 = vmul.f32 %v4373, %v1780
      %v4492 = vmul.f32 %v4378, %v1784
      %v4493 = vmul.f32 %v4381, %v1788
      %v4494 = vmul.f32 %v4386, %v1792
      %v4495 = vmul.f32 %v4389, %v1796
      %v4496 = vmul.f32 %v4394, %v1800
      %v4497 = vmul.f32 %v4397, %v1804
      %v4498 = vmul.f32 %v4402, %v1808
      %v4499 = vmul.f32 %v4405, %v1812
      %v4500 = vmul.f32 %v4410, %v1816
      %v4501 = vmul.f32 %v4413, %v1820
      %v4502 = vmul.f32 %v4418, %v1824
      %v4503 = vmul.f32 %v4421, %v1828
      %v4504 = vmul.f32 %v4426, %v1832
      %v4505 = vmul.f32 %v4429, %v1836
      %v4506 = vmul.f32 %v4434, %v1840
      %v4507 = vmul.f32 %v4437, %v1844
      %v4508 = vmul.f32 %v4442, %v1848
      %v4509 = vmul.f32 %v4445, %v1852
      %v4510 = vmul.f32 %v4450, %v1856
      %v4511 = vmul.f32 %v4453, %v1860
      %v4512 = vmul.f32 %v4458, %v1864
      %v4513 = vmul.f32 %v4461, %v1868
      %v4514 = vmul.f32 %v4466, %v1872
      %v4515 = vmul.f32 %v4469, %v1876
      %v4516 = vmul.f32 %v4474, %v1880
      %v4517 = vmul.f32 %v4477, %v1884
      %v4518 = vmul.f32 %v4482, %v1888
      %v4519 = vmul.f32 %v4485, %v1892
      %v4520 = vadd.f32 %v4204, %v4488
      %v4521 = vadd.f32 %v4205, %v4489
      %v4522 = vadd.f32 %v4206, %v4490
      %v4523 = vadd.f32 %v4207, %v4491
      %v4524 = vadd.f32 %v4208, %v4492
      %v4525 = vadd.f32 %v4209, %v4493
      %v4526 = vadd.f32 %v4210, %v4494
      %v4527 = vadd.f32 %v4211, %v4495
      %v4528 = vadd.f32 %v4212, %v4496
      %v4529 = vadd.f32 %v4213, %v4497
      %v4530 = vadd.f32 %v4214, %v4498
      %v4531 = vadd.f32 %v4215, %v4499
      %v4532 = vadd.f32 %v4216, %v4500
      %v4533 = vadd.f32 %v4217, %v4501
      %v4534 = vadd.f32 %v4218, %v4502
      %v4535 = vadd.f32 %v4219, %v4503
      %v4536 = vadd.f32 %v4220, %v4504
      %v4537 = vadd.f32 %v4221, %v4505
      %v4538 = vadd.f32 %v4222, %v4506
      %v4539 = vadd.f32 %v4223, %v4507
      %v4540 = vadd.f32 %v4224, %v4508
      %v4541 = vadd.f32 %v4225, %v4509
      %v4542 = vadd.f32 %v4226, %v4510
      %v4543 = vadd.f32 %v4227, %v4511
      %v4544 = vadd.f32 %v4228, %v4512
      %v4545 = vadd.f32 %v4229, %v4513
      %v4546 = vadd.f32 %v4230, %v4514
      %v4547 = vadd.f32 %v4231, %v4515
      %v4548 = vadd.f32 %v4232, %v4516
      %v4549 = vadd.f32 %v4233, %v4517
      %v4550 = vadd.f32 %v4234, %v4518
      %v4551 = vadd.f32 %v4235, %v4519
      %4552 = vst.msk [vmem:[%s204] sm:$0xff] %vm355, %v4520
      %4553 = vst.msk [vmem:[%s204 + $0x8] sm:$0xff] %vm355, %v4521
      %4554 = vst.msk [vmem:[%s204 + $0x10] sm:$0xff] %vm355, %v4522
      %4555 = vst.msk [vmem:[%s204 + $0x18] sm:$0xff] %vm355, %v4523
      %4556 = vst.msk [vmem:[%s204 + $0x20] sm:$0xff] %vm355, %v4524
      %4557 = vst.msk [vmem:[%s204 + $0x28] sm:$0xff] %vm355, %v4525
      %4558 = vst.msk [vmem:[%s204 + $0x30] sm:$0xff] %vm355, %v4526
      %4559 = vst.msk [vmem:[%s204 + $0x38] sm:$0xff] %vm355, %v4527
      %4560 = vst.msk [vmem:[%s204 + $0x40] sm:$0xff] %vm355, %v4528
      %4561 = vst.msk [vmem:[%s204 + $0x48] sm:$0xff] %vm355, %v4529
      %4562 = vst.msk [vmem:[%s204 + $0x50] sm:$0xff] %vm355, %v4530
      %4563 = vst.msk [vmem:[%s204 + $0x58] sm:$0xff] %vm355, %v4531
      %4564 = vst.msk [vmem:[%s204 + $0x60] sm:$0xff] %vm355, %v4532
      %4565 = vst.msk [vmem:[%s204 + $0x68] sm:$0xff] %vm355, %v4533
      %4566 = vst.msk [vmem:[%s204 + $0x70] sm:$0xff] %vm355, %v4534
      %4567 = vst.msk [vmem:[%s204 + $0x78] sm:$0xff] %vm355, %v4535
      %4568 = vst.msk [vmem:[%s204 + $0x80] sm:$0xff] %vm355, %v4536
      %4569 = vst.msk [vmem:[%s204 + $0x88] sm:$0xff] %vm355, %v4537
      %4570 = vst.msk [vmem:[%s204 + $0x90] sm:$0xff] %vm355, %v4538
      %4571 = vst.msk [vmem:[%s204 + $0x98] sm:$0xff] %vm355, %v4539
      %4572 = vst.msk [vmem:[%s204 + $0xa0] sm:$0xff] %vm355, %v4540
      %4573 = vst.msk [vmem:[%s204 + $0xa8] sm:$0xff] %vm355, %v4541
      %4574 = vst.msk [vmem:[%s204 + $0xb0] sm:$0xff] %vm355, %v4542
      %4575 = vst.msk [vmem:[%s204 + $0xb8] sm:$0xff] %vm355, %v4543
      %4576 = vst.msk [vmem:[%s204 + $0xc0] sm:$0xff] %vm355, %v4544
      %4577 = vst.msk [vmem:[%s204 + $0xc8] sm:$0xff] %vm355, %v4545
      %4578 = vst.msk [vmem:[%s204 + $0xd0] sm:$0xff] %vm355, %v4546
      %4579 = vst.msk [vmem:[%s204 + $0xd8] sm:$0xff] %vm355, %v4547
      %4580 = vst.msk [vmem:[%s204 + $0xe0] sm:$0xff] %vm355, %v4548
      %4581 = vst.msk [vmem:[%s204 + $0xe8] sm:$0xff] %vm355, %v4549
      %4582 = vst.msk [vmem:[%s204 + $0xf0] sm:$0xff] %vm355, %v4550
      %4583 = vst.msk [vmem:[%s204 + $0xf8] sm:$0xff] %vm355, %v4551
      %v4584 = vsel %vm355, %v4520, 0.0
      %v4585 = vsel %vm355, %v4521, 0.0
      %v4586 = vadd.f32 %v4584, %v4585
      %v4587 = vsel %vm355, %v4522, 0.0
      %v4588 = vadd.f32 %v4586, %v4587
      %v4589 = vsel %vm355, %v4523, 0.0
      %v4590 = vadd.f32 %v4588, %v4589
      %v4591 = vsel %vm355, %v4524, 0.0
      %v4592 = vadd.f32 %v4590, %v4591
      %v4593 = vsel %vm355, %v4525, 0.0
      %v4594 = vadd.f32 %v4592, %v4593
      %v4595 = vsel %vm355, %v4526, 0.0
      %v4596 = vadd.f32 %v4594, %v4595
      %v4597 = vsel %vm355, %v4527, 0.0
      %v4598 = vadd.f32 %v4596, %v4597
      %v4599 = vsel %vm355, %v4528, 0.0
      %v4600 = vadd.f32 %v4598, %v4599
      %v4601 = vsel %vm355, %v4529, 0.0
      %v4602 = vadd.f32 %v4600, %v4601
      %v4603 = vsel %vm355, %v4530, 0.0
      %v4604 = vadd.f32 %v4602, %v4603
      %v4605 = vsel %vm355, %v4531, 0.0
      %v4606 = vadd.f32 %v4604, %v4605
      %v4607 = vsel %vm355, %v4532, 0.0
      %v4608 = vadd.f32 %v4606, %v4607
      %v4609 = vsel %vm355, %v4533, 0.0
      %v4610 = vadd.f32 %v4608, %v4609
      %v4611 = vsel %vm355, %v4534, 0.0
      %v4612 = vadd.f32 %v4610, %v4611
      %v4613 = vsel %vm355, %v4535, 0.0
      %v4614 = vadd.f32 %v4612, %v4613
      %v4615 = vsel %vm355, %v4536, 0.0
      %v4616 = vadd.f32 %v4614, %v4615
      %v4617 = vsel %vm355, %v4537, 0.0
      %v4618 = vadd.f32 %v4616, %v4617
      %v4619 = vsel %vm355, %v4538, 0.0
      %v4620 = vadd.f32 %v4618, %v4619
      %v4621 = vsel %vm355, %v4539, 0.0
      %v4622 = vadd.f32 %v4620, %v4621
      %v4623 = vsel %vm355, %v4540, 0.0
      %v4624 = vadd.f32 %v4622, %v4623
      %v4625 = vsel %vm355, %v4541, 0.0
      %v4626 = vadd.f32 %v4624, %v4625
      %v4627 = vsel %vm355, %v4542, 0.0
      %v4628 = vadd.f32 %v4626, %v4627
      %v4629 = vsel %vm355, %v4543, 0.0
      %v4630 = vadd.f32 %v4628, %v4629
      %v4631 = vsel %vm355, %v4544, 0.0
      %v4632 = vadd.f32 %v4630, %v4631
      %v4633 = vsel %vm355, %v4545, 0.0
      %v4634 = vadd.f32 %v4632, %v4633
      %v4635 = vsel %vm355, %v4546, 0.0
      %v4636 = vadd.f32 %v4634, %v4635
      %v4637 = vsel %vm355, %v4547, 0.0
      %v4638 = vadd.f32 %v4636, %v4637
      %v4639 = vsel %vm355, %v4548, 0.0
      %v4640 = vadd.f32 %v4638, %v4639
      %v4641 = vsel %vm355, %v4549, 0.0
      %v4642 = vadd.f32 %v4640, %v4641
      %v4643 = vsel %vm355, %v4550, 0.0
      %v4644 = vadd.f32 %v4642, %v4643
      %v4645 = vsel %vm355, %v4551, 0.0
      %v4646 = vadd.f32 %v4644, %v4645
      %v4647 = vrot.slane %v4646, 4
      %v4648 = vadd.f32 %v4646, %v4647
      %v4649 = vrot.slane %v4648, 2
      %v4650 = vadd.f32 %v4648, %v4649
      %v4651 = vrot.slane %v4650, 1
      %v4652 = vadd.f32 %v4650, %v4651
      %vm4653 = vcmask 24576
      %4654 = vst.msk [vmem:[%s208] sm:$0x1] %vm4653, %v4652
      %v4655 = vmul.f32 %v4520, %v4520
      %v4656 = vmul.f32 %v4521, %v4521
      %v4657 = vmul.f32 %v4522, %v4522
      %v4658 = vmul.f32 %v4523, %v4523
      %v4659 = vmul.f32 %v4524, %v4524
      %v4660 = vmul.f32 %v4525, %v4525
      %v4661 = vmul.f32 %v4526, %v4526
      %v4662 = vmul.f32 %v4527, %v4527
      %v4663 = vmul.f32 %v4528, %v4528
      %v4664 = vmul.f32 %v4529, %v4529
      %v4665 = vmul.f32 %v4530, %v4530
      %v4666 = vmul.f32 %v4531, %v4531
      %v4667 = vmul.f32 %v4532, %v4532
      %v4668 = vmul.f32 %v4533, %v4533
      %v4669 = vmul.f32 %v4534, %v4534
      %v4670 = vmul.f32 %v4535, %v4535
      %v4671 = vmul.f32 %v4536, %v4536
      %v4672 = vmul.f32 %v4537, %v4537
      %v4673 = vmul.f32 %v4538, %v4538
      %v4674 = vmul.f32 %v4539, %v4539
      %v4675 = vmul.f32 %v4540, %v4540
      %v4676 = vmul.f32 %v4541, %v4541
      %v4677 = vmul.f32 %v4542, %v4542
      %v4678 = vmul.f32 %v4543, %v4543
      %v4679 = vmul.f32 %v4544, %v4544
      %v4680 = vmul.f32 %v4545, %v4545
      %v4681 = vmul.f32 %v4546, %v4546
      %v4682 = vmul.f32 %v4547, %v4547
      %v4683 = vmul.f32 %v4548, %v4548
      %v4684 = vmul.f32 %v4549, %v4549
      %v4685 = vmul.f32 %v4550, %v4550
      %v4686 = vmul.f32 %v4551, %v4551
      %v4687 = vsel %vm355, %v4655, 0.0
      %v4688 = vsel %vm355, %v4656, 0.0
      %v4689 = vadd.f32 %v4687, %v4688
      %v4690 = vsel %vm355, %v4657, 0.0
      %v4691 = vadd.f32 %v4689, %v4690
      %v4692 = vsel %vm355, %v4658, 0.0
      %v4693 = vadd.f32 %v4691, %v4692
      %v4694 = vsel %vm355, %v4659, 0.0
      %v4695 = vadd.f32 %v4693, %v4694
      %v4696 = vsel %vm355, %v4660, 0.0
      %v4697 = vadd.f32 %v4695, %v4696
      %v4698 = vsel %vm355, %v4661, 0.0
      %v4699 = vadd.f32 %v4697, %v4698
      %v4700 = vsel %vm355, %v4662, 0.0
      %v4701 = vadd.f32 %v4699, %v4700
      %v4702 = vsel %vm355, %v4663, 0.0
      %v4703 = vadd.f32 %v4701, %v4702
      %v4704 = vsel %vm355, %v4664, 0.0
      %v4705 = vadd.f32 %v4703, %v4704
      %v4706 = vsel %vm355, %v4665, 0.0
      %v4707 = vadd.f32 %v4705, %v4706
      %v4708 = vsel %vm355, %v4666, 0.0
      %v4709 = vadd.f32 %v4707, %v4708
      %v4710 = vsel %vm355, %v4667, 0.0
      %v4711 = vadd.f32 %v4709, %v4710
      %v4712 = vsel %vm355, %v4668, 0.0
      %v4713 = vadd.f32 %v4711, %v4712
      %v4714 = vsel %vm355, %v4669, 0.0
      %v4715 = vadd.f32 %v4713, %v4714
      %v4716 = vsel %vm355, %v4670, 0.0
      %v4717 = vadd.f32 %v4715, %v4716
      %v4718 = vsel %vm355, %v4671, 0.0
      %v4719 = vadd.f32 %v4717, %v4718
      %v4720 = vsel %vm355, %v4672, 0.0
      %v4721 = vadd.f32 %v4719, %v4720
      %v4722 = vsel %vm355, %v4673, 0.0
      %v4723 = vadd.f32 %v4721, %v4722
      %v4724 = vsel %vm355, %v4674, 0.0
      %v4725 = vadd.f32 %v4723, %v4724
      %v4726 = vsel %vm355, %v4675, 0.0
      %v4727 = vadd.f32 %v4725, %v4726
      %v4728 = vsel %vm355, %v4676, 0.0
      %v4729 = vadd.f32 %v4727, %v4728
      %v4730 = vsel %vm355, %v4677, 0.0
      %v4731 = vadd.f32 %v4729, %v4730
      %v4732 = vsel %vm355, %v4678, 0.0
      %v4733 = vadd.f32 %v4731, %v4732
      %v4734 = vsel %vm355, %v4679, 0.0
      %v4735 = vadd.f32 %v4733, %v4734
      %v4736 = vsel %vm355, %v4680, 0.0
      %v4737 = vadd.f32 %v4735, %v4736
      %v4738 = vsel %vm355, %v4681, 0.0
      %v4739 = vadd.f32 %v4737, %v4738
      %v4740 = vsel %vm355, %v4682, 0.0
      %v4741 = vadd.f32 %v4739, %v4740
      %v4742 = vsel %vm355, %v4683, 0.0
      %v4743 = vadd.f32 %v4741, %v4742
      %v4744 = vsel %vm355, %v4684, 0.0
      %v4745 = vadd.f32 %v4743, %v4744
      %v4746 = vsel %vm355, %v4685, 0.0
      %v4747 = vadd.f32 %v4745, %v4746
      %v4748 = vsel %vm355, %v4686, 0.0
      %v4749 = vadd.f32 %v4747, %v4748
      %v4750 = vrot.slane %v4749, 4
      %v4751 = vadd.f32 %v4749, %v4750
      %v4752 = vrot.slane %v4751, 2
      %v4753 = vadd.f32 %v4751, %v4752
      %v4754 = vrot.slane %v4753, 1
      %v4755 = vadd.f32 %v4753, %v4754
      %4756 = vst.msk [vmem:[%s208 + $0x1] sm:$0x1] %vm4653, %v4755
      %p4757 = scmp.lt.s32.totalorder %s16, 1
      %s4758 = scalar_select %p4757, %s16, 1
      %s4759 = smul.addr %s4758, 32
      %s4760 = smul.addr %s4759, 8
      %s4761 = scalar_lea.vmem %s3, %s4760
      %p4762 = scmp.lt.s32.totalorder %s16, 1
      %s4763 = scalar_select %p4762, %s16, 1
      %s4764 = smul.addr %s4763, 2
      %s4765 = scalar_lea.vmem %s4, %s4764
      // Predicated region
      $region33: #{_forward_impl.5} parent=31 // pred_check
        %p4766 = pneg %p102
      $region34: #{_forward_impl.5} parent=31 // pred_check_branch
        %4768 = sbr.rel (%p4766) target = $region36
      $region35: #{_forward_impl.5} parent=31 // pred_region
        _
      $region36: #{_forward_impl.5} parent=31 // pred_fallthru
        _
      // Predicated region
      $region37: #{_forward_impl.5} parent=31 // pred_check
        %p4769 = pneg %p128
      $region38: #{_forward_impl.5} parent=31 // pred_check_branch
        %4771 = sbr.rel (%p4769) target = $region40
      $region39: #{_forward_impl.5} parent=31 // pred_region
        _
      $region40: #{_forward_impl.5} parent=31 // pred_fallthru
        _
    $region32: #{_forward_impl.5} parent=5 // pred_fallthru
      _
    %p4772 = scmp.le.s32.totalorder 2, %s11
    // Predicated region
    $region41: #{_forward_impl.5} parent=5 // pred_check
      %p4773 = pneg %p4772
    $region42: #{_forward_impl.5} parent=5 // pred_check_branch
      %4775 = sbr.rel (%p4773) target = $region44
    $region43: #{_forward_impl.5} parent=5 // pred_region
      %s4776 = ssub.s32 %s11, 2
      // Predicated region
      $region45: #{_forward_impl.5} parent=43 // pred_check
        %p4777 = pneg %p108
      $region46: #{_forward_impl.5} parent=43 // pred_check_branch
        %4779 = sbr.rel (%p4777) target = $region48
      $region47: #{_forward_impl.5} parent=43 // pred_region
        %p4780 = scmp.lt.s32.totalorder %s17, 1
        %s4781 = scalar_select %p4780, %s17, 1
        %s4782 = smul.addr %s4781, 32
        %s4783 = smul.addr %s4782, 8
        %s4784 = scalar_lea.vmem %s3, %s4783
      $region48: #{_forward_impl.5} parent=43 // pred_fallthru
        _
      // Predicated region
      $region49: #{_forward_impl.5} parent=43 // pred_check
        %p4785 = pneg %p134
      $region50: #{_forward_impl.5} parent=43 // pred_check_branch
        %4787 = sbr.rel (%p4785) target = $region52
      $region51: #{_forward_impl.5} parent=43 // pred_region
        %p4788 = scmp.lt.s32.totalorder %s17, 1
        %s4789 = scalar_select %p4788, %s17, 1
        %s4790 = smul.addr %s4789, 2
        %s4791 = scalar_lea.vmem %s4, %s4790
      $region52: #{_forward_impl.5} parent=43 // pred_fallthru
        _
    $region44: #{_forward_impl.5} parent=5 // pred_fallthru
      _
  $region6: #{_forward_impl.5} parent=0 // loop_footer
    %s15 = sadd.s32 1, %s11
  $region7: #{_forward_impl.5} parent=0 // loop_footer_branch
    %10 = sbr.rel target = $region3
  $region8: #{_forward_impl.5} parent=0 // loop_exit
    _

</llo_original>
